<compile_context>
chip_gen: v7x
topology: tpu7x:2x2x1
jax: 0.10.0
libtpu: 0.0.40
codegen_flags: <defaults>
</compile_context>

<pallas_src>
import jax
import jax.numpy as jnp
from jax.experimental import pallas as pl
from jax.experimental.pallas import tpu as pltpu


# encoder: 3x (Linear, ReLU), (Linear, Sigmoid); decoder: same pattern
_ACTS = ("relu", "relu", "relu", "sigmoid", "relu", "relu", "relu", "sigmoid")


# ----------------------------------------------------------------------------
# Fused Pallas kernel: all 8 layers in one body, intermediates stay on-chip.
# ----------------------------------------------------------------------------
def _fused_autoencoder_kernel(x_ref, *refs):
    o_ref = refs[-1]
    wb_refs = refs[:-1]                      # (w0, b0, w1, b1, ..., w7, b7)
    y = x_ref[...].astype(jnp.float32)       # [tb, F] activations, fp32
    for li, act in enumerate(_ACTS):
        w = wb_refs[2 * li][...]             # [K, N] bf16 weights -> MXU
        b = wb_refs[2 * li + 1][...]         # [1, N] fp32 bias
        # bf16 MXU matmul, fp32 accumulation; epilogue stays fp32 (VPU/EUP).
        y = jnp.dot(y.astype(w.dtype), w, preferred_element_type=jnp.float32) + b
        if act == "relu":
            y = jnp.maximum(y, 0.0)
        else:
            y = jax.nn.sigmoid(y)            # exp + reciprocal on the EUP
    o_ref[...] = y.astype(o_ref.dtype)


# ----------------------------------------------------------------------------
# Wrapper: one pallas_call for the whole forward pass (mode='both').
# ----------------------------------------------------------------------------
def pommer_linear_autoencoder(x, params, *, batch_tile=256):
    B, F = x.shape

    # Pick a batch tile: whole (sublane-padded) batch if small, else
    # `batch_tile`-row tiles sharded across the grid ("parallel" => both
    # v7x TensorCores when the batch is large).
    pb = ((B + 7) // 8) * 8
    tb = pb if pb <= batch_tile else batch_tile
    pb = ((pb + tb - 1) // tb) * tb
    if pb != B:
        x = jnp.pad(x, ((0, pb - B), (0, 0)))
    grid = (pb // tb,)

    flat_params = []
    in_specs = [pl.BlockSpec((tb, F), lambda i: (i, 0))]
    for (w, b) in params:
        flat_params += [w, b]
        # Constant block index: weights/biases stay resident in VMEM across
        # batch-grid steps (no re-DMA per tile).
        in_specs += [
            pl.BlockSpec(w.shape, lambda i: (0, 0)),
            pl.BlockSpec(b.shape, lambda i: (0, 0)),
        ]

    out = pl.pallas_call(
        _fused_autoencoder_kernel,
        out_shape=jax.ShapeDtypeStruct((pb, F), jnp.float32),
        grid=grid,
        in_specs=in_specs,
        out_specs=pl.BlockSpec((tb, F), lambda i: (i, 0)),
        compiler_params=pltpu.CompilerParams(
            dimension_semantics=("parallel",),
            vmem_limit_bytes=32 * 1024 * 1024,   # right-sized; fits v5e/v6e/v7x
        ),
    )(x, *flat_params)
    return out[:B]


# ----------------------------------------------------------------------------
# Parameter construction (PyTorch-default-like uniform init; weights -> bf16)
# ----------------------------------------------------------------------------
def make_params(num_features: int, key):
    enc_dims = [(num_features, 1024), (1024, 512), (512, 256), (256, 128)]
    dec_dims = [(128, 256), (256, 512), (512, 1024), (1024, num_features)]
    params = []
    for (fan_in, fan_out) in enc_dims + dec_dims:
        key, kw, kb = jax.random.split(key, 3)
        bound = 1.0 / jnp.sqrt(float(fan_in))
        w = jax.random.uniform(kw, (fan_in, fan_out), jnp.float32, -bound, bound)
        b = jax.random.uniform(kb, (1, fan_out), jnp.float32, -bound, bound)
        params.append((w.astype(jnp.bfloat16), b))   # bf16 weights, fp32 bias
    return params


# Pure-JAX reference performing the identical math (bf16 weights, fp32 acc).
def _ref_forward(x, params):
    y = x.astype(jnp.float32)
    for (w, b), act in zip(params, _ACTS):
        y = jnp.dot(y.astype(w.dtype), w, preferred_element_type=jnp.float32) + b
        y = jnp.maximum(y, 0.0) if act == "relu" else jax.nn.sigmoid(y)
    return y


if __name__ == "__main__":
    NUM_FEATURES = 512
    BATCH = 8

    key = jax.random.PRNGKey(0)
    key, kx = jax.random.split(key)
    x = jax.random.normal(kx, (BATCH, NUM_FEATURES), jnp.float32)
    params = make_params(NUM_FEATURES, key)

    out = pommer_linear_autoencoder(x, params)
    out = jax.block_until_ready(out)

    ref = _ref_forward(x, params)
    assert out.shape == (BATCH, NUM_FEATURES)
    assert jnp.allclose(out, ref, atol=2e-3, rtol=2e-3), (
        float(jnp.max(jnp.abs(out - ref))))

    print("KERNEL_OK")
</pallas_src>

<mosaic_0001>
module attributes {stable_mosaic.version = 11 : i64} {
  func.func @_fused_autoencoder_kernel(%arg0: i32, %arg1: memref<8x512xf32, #tpu.memory_space<vmem>>, %arg2: memref<512x1024xbf16, #tpu.memory_space<vmem>>, %arg3: memref<1x1024xf32, #tpu.memory_space<vmem>>, %arg4: memref<1024x512xbf16, #tpu.memory_space<vmem>>, %arg5: memref<1x512xf32, #tpu.memory_space<vmem>>, %arg6: memref<512x256xbf16, #tpu.memory_space<vmem>>, %arg7: memref<1x256xf32, #tpu.memory_space<vmem>>, %arg8: memref<256x128xbf16, #tpu.memory_space<vmem>>, %arg9: memref<1x128xf32, #tpu.memory_space<vmem>>, %arg10: memref<128x256xbf16, #tpu.memory_space<vmem>>, %arg11: memref<1x256xf32, #tpu.memory_space<vmem>>, %arg12: memref<256x512xbf16, #tpu.memory_space<vmem>>, %arg13: memref<1x512xf32, #tpu.memory_space<vmem>>, %arg14: memref<512x1024xbf16, #tpu.memory_space<vmem>>, %arg15: memref<1x1024xf32, #tpu.memory_space<vmem>>, %arg16: memref<1024x512xbf16, #tpu.memory_space<vmem>>, %arg17: memref<1x512xf32, #tpu.memory_space<vmem>>, %arg18: memref<8x512xf32, #tpu.memory_space<vmem>>) attributes {dimension_semantics = [#tpu.dimension_semantics<parallel>], iteration_bounds = array<i64: 1>, scalar_prefetch = 0 : i64, scratch_operands = 0 : i64, tpu.core_type = #tpu.core_type<tc>, window_params = [{transform_indices = @transform_0, window_bounds = array<i64: 8, 512>}, {pipeline_mode = #tpu.pipeline_mode<synchronous>, transform_indices = @transform_1, window_bounds = array<i64: 512, 1024>}, {pipeline_mode = #tpu.pipeline_mode<synchronous>, transform_indices = @transform_2, window_bounds = array<i64: 1, 1024>}, {pipeline_mode = #tpu.pipeline_mode<synchronous>, transform_indices = @transform_3, window_bounds = array<i64: 1024, 512>}, {pipeline_mode = #tpu.pipeline_mode<synchronous>, transform_indices = @transform_4, window_bounds = array<i64: 1, 512>}, {pipeline_mode = #tpu.pipeline_mode<synchronous>, transform_indices = @transform_5, window_bounds = array<i64: 512, 256>}, {pipeline_mode = #tpu.pipeline_mode<synchronous>, transform_indices = @transform_6, window_bounds = array<i64: 1, 256>}, {pipeline_mode = #tpu.pipeline_mode<synchronous>, transform_indices = @transform_7, window_bounds = array<i64: 256, 128>}, {pipeline_mode = #tpu.pipeline_mode<synchronous>, transform_indices = @transform_8, window_bounds = array<i64: 1, 128>}, {pipeline_mode = #tpu.pipeline_mode<synchronous>, transform_indices = @transform_9, window_bounds = array<i64: 128, 256>}, {pipeline_mode = #tpu.pipeline_mode<synchronous>, transform_indices = @transform_10, window_bounds = array<i64: 1, 256>}, {pipeline_mode = #tpu.pipeline_mode<synchronous>, transform_indices = @transform_11, window_bounds = array<i64: 256, 512>}, {pipeline_mode = #tpu.pipeline_mode<synchronous>, transform_indices = @transform_12, window_bounds = array<i64: 1, 512>}, {pipeline_mode = #tpu.pipeline_mode<synchronous>, transform_indices = @transform_13, window_bounds = array<i64: 512, 1024>}, {pipeline_mode = #tpu.pipeline_mode<synchronous>, transform_indices = @transform_14, window_bounds = array<i64: 1, 1024>}, {pipeline_mode = #tpu.pipeline_mode<synchronous>, transform_indices = @transform_15, window_bounds = array<i64: 1024, 512>}, {pipeline_mode = #tpu.pipeline_mode<synchronous>, transform_indices = @transform_16, window_bounds = array<i64: 1, 512>}, {transform_indices = @transform_17, window_bounds = array<i64: 8, 512>}]} {
    %c0 = arith.constant 0 : index
    %c0_0 = arith.constant 0 : index
    %0 = vector.load %arg1[%c0, %c0_0] : memref<8x512xf32, #tpu.memory_space<vmem>>, vector<8x512xf32>
    %c0_1 = arith.constant 0 : index
    %c0_2 = arith.constant 0 : index
    %1 = vector.load %arg2[%c0_1, %c0_2] : memref<512x1024xbf16, #tpu.memory_space<vmem>>, vector<512x1024xbf16>
    %c0_3 = arith.constant 0 : index
    %c0_4 = arith.constant 0 : index
    %2 = vector.load %arg3[%c0_3, %c0_4] : memref<1x1024xf32, #tpu.memory_space<vmem>>, vector<1x1024xf32>
    %3 = arith.truncf %0 : vector<8x512xf32> to vector<8x512xbf16>
    %cst = arith.constant dense<0.000000e+00> : vector<8x1024xf32>
    %4 = tpu.matmul %3, %1, %cst {dimension_numbers = #tpu.dot_dimension_numbers<[1], [0], [0], [1], [0, 0, 1, 1], [], []>} : vector<8x512xbf16>, vector<512x1024xbf16>, vector<8x1024xf32> -> vector<8x1024xf32>
    %5 = vector.broadcast %2 : vector<1x1024xf32> to vector<8x1024xf32>
    %6 = arith.addf %4, %5 : vector<8x1024xf32>
    %cst_5 = arith.constant 0.000000e+00 : f32
    %7 = vector.broadcast %cst_5 : f32 to vector<8x1024xf32>
    %8 = arith.maximumf %6, %7 : vector<8x1024xf32>
    %c0_6 = arith.constant 0 : index
    %c0_7 = arith.constant 0 : index
    %9 = vector.load %arg4[%c0_6, %c0_7] : memref<1024x512xbf16, #tpu.memory_space<vmem>>, vector<1024x512xbf16>
    %c0_8 = arith.constant 0 : index
    %c0_9 = arith.constant 0 : index
    %10 = vector.load %arg5[%c0_8, %c0_9] : memref<1x512xf32, #tpu.memory_space<vmem>>, vector<1x512xf32>
    %11 = arith.truncf %8 : vector<8x1024xf32> to vector<8x1024xbf16>
    %cst_10 = arith.constant dense<0.000000e+00> : vector<8x512xf32>
    %12 = tpu.matmul %11, %9, %cst_10 {dimension_numbers = #tpu.dot_dimension_numbers<[1], [0], [0], [1], [0, 0, 1, 1], [], []>} : vector<8x1024xbf16>, vector<1024x512xbf16>, vector<8x512xf32> -> vector<8x512xf32>
    %13 = vector.broadcast %10 : vector<1x512xf32> to vector<8x512xf32>
    %14 = arith.addf %12, %13 : vector<8x512xf32>
    %cst_11 = arith.constant 0.000000e+00 : f32
    %15 = vector.broadcast %cst_11 : f32 to vector<8x512xf32>
    %16 = arith.maximumf %14, %15 : vector<8x512xf32>
    %c0_12 = arith.constant 0 : index
    %c0_13 = arith.constant 0 : index
    %17 = vector.load %arg6[%c0_12, %c0_13] : memref<512x256xbf16, #tpu.memory_space<vmem>>, vector<512x256xbf16>
    %c0_14 = arith.constant 0 : index
    %c0_15 = arith.constant 0 : index
    %18 = vector.load %arg7[%c0_14, %c0_15] : memref<1x256xf32, #tpu.memory_space<vmem>>, vector<1x256xf32>
    %19 = arith.truncf %16 : vector<8x512xf32> to vector<8x512xbf16>
    %cst_16 = arith.constant dense<0.000000e+00> : vector<8x256xf32>
    %20 = tpu.matmul %19, %17, %cst_16 {dimension_numbers = #tpu.dot_dimension_numbers<[1], [0], [0], [1], [0, 0, 1, 1], [], []>} : vector<8x512xbf16>, vector<512x256xbf16>, vector<8x256xf32> -> vector<8x256xf32>
    %21 = vector.broadcast %18 : vector<1x256xf32> to vector<8x256xf32>
    %22 = arith.addf %20, %21 : vector<8x256xf32>
    %cst_17 = arith.constant 0.000000e+00 : f32
    %23 = vector.broadcast %cst_17 : f32 to vector<8x256xf32>
    %24 = arith.maximumf %22, %23 : vector<8x256xf32>
    %c0_18 = arith.constant 0 : index
    %c0_19 = arith.constant 0 : index
    %25 = vector.load %arg8[%c0_18, %c0_19] : memref<256x128xbf16, #tpu.memory_space<vmem>>, vector<256x128xbf16>
    %c0_20 = arith.constant 0 : index
    %c0_21 = arith.constant 0 : index
    %26 = vector.load %arg9[%c0_20, %c0_21] : memref<1x128xf32, #tpu.memory_space<vmem>>, vector<1x128xf32>
    %27 = arith.truncf %24 : vector<8x256xf32> to vector<8x256xbf16>
    %cst_22 = arith.constant dense<0.000000e+00> : vector<8x128xf32>
    %28 = tpu.matmul %27, %25, %cst_22 {dimension_numbers = #tpu.dot_dimension_numbers<[1], [0], [0], [1], [0, 0, 1, 1], [], []>} : vector<8x256xbf16>, vector<256x128xbf16>, vector<8x128xf32> -> vector<8x128xf32>
    %29 = vector.broadcast %26 : vector<1x128xf32> to vector<8x128xf32>
    %30 = arith.addf %28, %29 : vector<8x128xf32>
    %31 = arith.negf %30 : vector<8x128xf32>
    %32 = math.exp %31 : vector<8x128xf32>
    %cst_23 = arith.constant 1.000000e+00 : f32
    %33 = vector.broadcast %cst_23 : f32 to vector<8x128xf32>
    %34 = arith.addf %33, %32 : vector<8x128xf32>
    %35 = arith.divf %33, %34 : vector<8x128xf32>
    %c0_24 = arith.constant 0 : index
    %c0_25 = arith.constant 0 : index
    %36 = vector.load %arg10[%c0_24, %c0_25] : memref<128x256xbf16, #tpu.memory_space<vmem>>, vector<128x256xbf16>
    %c0_26 = arith.constant 0 : index
    %c0_27 = arith.constant 0 : index
    %37 = vector.load %arg11[%c0_26, %c0_27] : memref<1x256xf32, #tpu.memory_space<vmem>>, vector<1x256xf32>
    %38 = arith.truncf %35 : vector<8x128xf32> to vector<8x128xbf16>
    %cst_28 = arith.constant dense<0.000000e+00> : vector<8x256xf32>
    %39 = tpu.matmul %38, %36, %cst_28 {dimension_numbers = #tpu.dot_dimension_numbers<[1], [0], [0], [1], [0, 0, 1, 1], [], []>} : vector<8x128xbf16>, vector<128x256xbf16>, vector<8x256xf32> -> vector<8x256xf32>
    %40 = vector.broadcast %37 : vector<1x256xf32> to vector<8x256xf32>
    %41 = arith.addf %39, %40 : vector<8x256xf32>
    %cst_29 = arith.constant 0.000000e+00 : f32
    %42 = vector.broadcast %cst_29 : f32 to vector<8x256xf32>
    %43 = arith.maximumf %41, %42 : vector<8x256xf32>
    %c0_30 = arith.constant 0 : index
    %c0_31 = arith.constant 0 : index
    %44 = vector.load %arg12[%c0_30, %c0_31] : memref<256x512xbf16, #tpu.memory_space<vmem>>, vector<256x512xbf16>
    %c0_32 = arith.constant 0 : index
    %c0_33 = arith.constant 0 : index
    %45 = vector.load %arg13[%c0_32, %c0_33] : memref<1x512xf32, #tpu.memory_space<vmem>>, vector<1x512xf32>
    %46 = arith.truncf %43 : vector<8x256xf32> to vector<8x256xbf16>
    %cst_34 = arith.constant dense<0.000000e+00> : vector<8x512xf32>
    %47 = tpu.matmul %46, %44, %cst_34 {dimension_numbers = #tpu.dot_dimension_numbers<[1], [0], [0], [1], [0, 0, 1, 1], [], []>} : vector<8x256xbf16>, vector<256x512xbf16>, vector<8x512xf32> -> vector<8x512xf32>
    %48 = vector.broadcast %45 : vector<1x512xf32> to vector<8x512xf32>
    %49 = arith.addf %47, %48 : vector<8x512xf32>
    %cst_35 = arith.constant 0.000000e+00 : f32
    %50 = vector.broadcast %cst_35 : f32 to vector<8x512xf32>
    %51 = arith.maximumf %49, %50 : vector<8x512xf32>
    %c0_36 = arith.constant 0 : index
    %c0_37 = arith.constant 0 : index
    %52 = vector.load %arg14[%c0_36, %c0_37] : memref<512x1024xbf16, #tpu.memory_space<vmem>>, vector<512x1024xbf16>
    %c0_38 = arith.constant 0 : index
    %c0_39 = arith.constant 0 : index
    %53 = vector.load %arg15[%c0_38, %c0_39] : memref<1x1024xf32, #tpu.memory_space<vmem>>, vector<1x1024xf32>
    %54 = arith.truncf %51 : vector<8x512xf32> to vector<8x512xbf16>
    %cst_40 = arith.constant dense<0.000000e+00> : vector<8x1024xf32>
    %55 = tpu.matmul %54, %52, %cst_40 {dimension_numbers = #tpu.dot_dimension_numbers<[1], [0], [0], [1], [0, 0, 1, 1], [], []>} : vector<8x512xbf16>, vector<512x1024xbf16>, vector<8x1024xf32> -> vector<8x1024xf32>
    %56 = vector.broadcast %53 : vector<1x1024xf32> to vector<8x1024xf32>
    %57 = arith.addf %55, %56 : vector<8x1024xf32>
    %cst_41 = arith.constant 0.000000e+00 : f32
    %58 = vector.broadcast %cst_41 : f32 to vector<8x1024xf32>
    %59 = arith.maximumf %57, %58 : vector<8x1024xf32>
    %c0_42 = arith.constant 0 : index
    %c0_43 = arith.constant 0 : index
    %60 = vector.load %arg16[%c0_42, %c0_43] : memref<1024x512xbf16, #tpu.memory_space<vmem>>, vector<1024x512xbf16>
    %c0_44 = arith.constant 0 : index
    %c0_45 = arith.constant 0 : index
    %61 = vector.load %arg17[%c0_44, %c0_45] : memref<1x512xf32, #tpu.memory_space<vmem>>, vector<1x512xf32>
    %62 = arith.truncf %59 : vector<8x1024xf32> to vector<8x1024xbf16>
    %cst_46 = arith.constant dense<0.000000e+00> : vector<8x512xf32>
    %63 = tpu.matmul %62, %60, %cst_46 {dimension_numbers = #tpu.dot_dimension_numbers<[1], [0], [0], [1], [0, 0, 1, 1], [], []>} : vector<8x1024xbf16>, vector<1024x512xbf16>, vector<8x512xf32> -> vector<8x512xf32>
    %64 = vector.broadcast %61 : vector<1x512xf32> to vector<8x512xf32>
    %65 = arith.addf %63, %64 : vector<8x512xf32>
    %66 = arith.negf %65 : vector<8x512xf32>
    %67 = math.exp %66 : vector<8x512xf32>
    %cst_47 = arith.constant 1.000000e+00 : f32
    %68 = vector.broadcast %cst_47 : f32 to vector<8x512xf32>
    %69 = arith.addf %68, %67 : vector<8x512xf32>
    %70 = arith.divf %68, %69 : vector<8x512xf32>
    %c0_48 = arith.constant 0 : index
    %c0_49 = arith.constant 0 : index
    %71 = vector.load %arg18[%c0_48, %c0_49] : memref<8x512xf32, #tpu.memory_space<vmem>>, vector<8x512xf32>
    tpu.vector_store %arg18[%c0_48, %c0_49], %70 {strides = array<i32>} : memref<8x512xf32, #tpu.memory_space<vmem>>, vector<8x512xf32>,
    return
  }
  func.func @transform_0(%arg0: i32) -> (i32, i32) {
    %c0_i32 = arith.constant 0 : i32
    %c0_i32_0 = arith.constant 0 : i32
    return %arg0, %c0_i32 : i32, i32
  }
  func.func @transform_1(%arg0: i32) -> (i32, i32) {
    %c0_i32 = arith.constant 0 : i32
    %c0_i32_0 = arith.constant 0 : i32
    %c0_i32_1 = arith.constant 0 : i32
    return %c0_i32, %c0_i32_0 : i32, i32
  }
  func.func @transform_2(%arg0: i32) -> (i32, i32) {
    %c0_i32 = arith.constant 0 : i32
    %c0_i32_0 = arith.constant 0 : i32
    %c0_i32_1 = arith.constant 0 : i32
    return %c0_i32, %c0_i32_0 : i32, i32
  }
  func.func @transform_3(%arg0: i32) -> (i32, i32) {
    %c0_i32 = arith.constant 0 : i32
    %c0_i32_0 = arith.constant 0 : i32
    %c0_i32_1 = arith.constant 0 : i32
    return %c0_i32, %c0_i32_0 : i32, i32
  }
  func.func @transform_4(%arg0: i32) -> (i32, i32) {
    %c0_i32 = arith.constant 0 : i32
    %c0_i32_0 = arith.constant 0 : i32
    %c0_i32_1 = arith.constant 0 : i32
    return %c0_i32, %c0_i32_0 : i32, i32
  }
  func.func @transform_5(%arg0: i32) -> (i32, i32) {
    %c0_i32 = arith.constant 0 : i32
    %c0_i32_0 = arith.constant 0 : i32
    %c0_i32_1 = arith.constant 0 : i32
    return %c0_i32, %c0_i32_0 : i32, i32
  }
  func.func @transform_6(%arg0: i32) -> (i32, i32) {
    %c0_i32 = arith.constant 0 : i32
    %c0_i32_0 = arith.constant 0 : i32
    %c0_i32_1 = arith.constant 0 : i32
    return %c0_i32, %c0_i32_0 : i32, i32
  }
  func.func @transform_7(%arg0: i32) -> (i32, i32) {
    %c0_i32 = arith.constant 0 : i32
    %c0_i32_0 = arith.constant 0 : i32
    %c0_i32_1 = arith.constant 0 : i32
    return %c0_i32, %c0_i32_0 : i32, i32
  }
  func.func @transform_8(%arg0: i32) -> (i32, i32) {
    %c0_i32 = arith.constant 0 : i32
    %c0_i32_0 = arith.constant 0 : i32
    %c0_i32_1 = arith.constant 0 : i32
    return %c0_i32, %c0_i32_0 : i32, i32
  }
  func.func @transform_9(%arg0: i32) -> (i32, i32) {
    %c0_i32 = arith.constant 0 : i32
    %c0_i32_0 = arith.constant 0 : i32
    %c0_i32_1 = arith.constant 0 : i32
    return %c0_i32, %c0_i32_0 : i32, i32
  }
  func.func @transform_10(%arg0: i32) -> (i32, i32) {
    %c0_i32 = arith.constant 0 : i32
    %c0_i32_0 = arith.constant 0 : i32
    %c0_i32_1 = arith.constant 0 : i32
    return %c0_i32, %c0_i32_0 : i32, i32
  }
  func.func @transform_11(%arg0: i32) -> (i32, i32) {
    %c0_i32 = arith.constant 0 : i32
    %c0_i32_0 = arith.constant 0 : i32
    %c0_i32_1 = arith.constant 0 : i32
    return %c0_i32, %c0_i32_0 : i32, i32
  }
  func.func @transform_12(%arg0: i32) -> (i32, i32) {
    %c0_i32 = arith.constant 0 : i32
    %c0_i32_0 = arith.constant 0 : i32
    %c0_i32_1 = arith.constant 0 : i32
    return %c0_i32, %c0_i32_0 : i32, i32
  }
  func.func @transform_13(%arg0: i32) -> (i32, i32) {
    %c0_i32 = arith.constant 0 : i32
    %c0_i32_0 = arith.constant 0 : i32
    %c0_i32_1 = arith.constant 0 : i32
    return %c0_i32, %c0_i32_0 : i32, i32
  }
  func.func @transform_14(%arg0: i32) -> (i32, i32) {
    %c0_i32 = arith.constant 0 : i32
    %c0_i32_0 = arith.constant 0 : i32
    %c0_i32_1 = arith.constant 0 : i32
    return %c0_i32, %c0_i32_0 : i32, i32
  }
  func.func @transform_15(%arg0: i32) -> (i32, i32) {
    %c0_i32 = arith.constant 0 : i32
    %c0_i32_0 = arith.constant 0 : i32
    %c0_i32_1 = arith.constant 0 : i32
    return %c0_i32, %c0_i32_0 : i32, i32
  }
  func.func @transform_16(%arg0: i32) -> (i32, i32) {
    %c0_i32 = arith.constant 0 : i32
    %c0_i32_0 = arith.constant 0 : i32
    %c0_i32_1 = arith.constant 0 : i32
    return %c0_i32, %c0_i32_0 : i32, i32
  }
  func.func @transform_17(%arg0: i32) -> (i32, i32) {
    %c0_i32 = arith.constant 0 : i32
    %c0_i32_0 = arith.constant 0 : i32
    return %arg0, %c0_i32 : i32, i32
  }
}

</mosaic_0001>

<llo_original>
// kernel: tpu_custom_call.1
$region0: #{tpu_custom_call.1}
  #allocation0 [shape = 'u32[]', space=smem, size = 0x4, offset = 0x4, fixed_abs, tag = 'smem constant byte address 0x4 - core index']
  #allocation1 [shape = 'u32[144,128]{1,0:T(1,128)}', space=vmem, size = 0x12000, scoped, tag = 'internal scratch']
  %s0 = inlined_call_operand.hbm [shape: f32[8,512], index: 0, kind: input, shape index: {}]
  %s1 = inlined_call_operand.hbm [shape: bf16[512,1024], index: 1, kind: input, shape index: {}]
  %s2 = inlined_call_operand.hbm [shape: f32[1,1024], index: 2, kind: input, shape index: {}]
  %s3 = inlined_call_operand.hbm [shape: bf16[1024,512], index: 3, kind: input, shape index: {}]
  %s4 = inlined_call_operand.vmem [shape: f32[1,512], index: 4, kind: input, shape index: {}]
  %s5 = inlined_call_operand.hbm [shape: bf16[512,256], index: 5, kind: input, shape index: {}]
  %s6 = inlined_call_operand.vmem [shape: f32[1,256], index: 6, kind: input, shape index: {}]
  %s7 = inlined_call_operand.hbm [shape: bf16[256,128], index: 7, kind: input, shape index: {}]
  %s8 = inlined_call_operand.vmem [shape: f32[1,128], index: 8, kind: input, shape index: {}]
  %s9 = inlined_call_operand.hbm [shape: bf16[128,256], index: 9, kind: input, shape index: {}]
  %s10 = inlined_call_operand.vmem [shape: f32[1,256], index: 10, kind: input, shape index: {}]
  %s11 = inlined_call_operand.hbm [shape: bf16[256,512], index: 11, kind: input, shape index: {}]
  %s12 = inlined_call_operand.vmem [shape: f32[1,512], index: 12, kind: input, shape index: {}]
  %s13 = inlined_call_operand.hbm [shape: bf16[512,1024], index: 13, kind: input, shape index: {}]
  %s14 = inlined_call_operand.vmem [shape: f32[1,1024], index: 14, kind: input, shape index: {}]
  %s15 = inlined_call_operand.hbm [shape: bf16[1024,512], index: 15, kind: input, shape index: {}]
  %s16 = inlined_call_operand.vmem [shape: f32[1,512], index: 16, kind: input, shape index: {}]
  %s17 = inlined_call_operand.hbm [shape: f32[8,512], index: 17, kind: output, shape index: {}]
  %s18 = sld [smem:[#allocation0]]
  $region118: #{tpu_custom_call.1} parent=0
    _
  %s20 = ssub.s32 1, %s18
  %s21 = scalar_select 0, %s20, %s18
  $region1: #{tpu_custom_call.1} parent=0
    #allocation2 [shape = 'u8[16384]{0}', space=vmem, size = 0x4000, scoped, tag = 'input window, operand 0, single buffered']
    #allocation3 [shape = 's32[1]{0}', space=sflag, size = 0x4, scoped, tag = 'scoped memory for tpu_custom_call.1']
    #allocation4 [shape = 's32[1]{0}', space=sflag, size = 0x4, scoped, tag = 'scoped memory for tpu_custom_call.1']
    #allocation5 [shape = 'u8[1048576]{0}', space=vmem, size = 0x100000, scoped, tag = 'input window, operand 1, single buffered']
    #allocation6 [shape = 's32[1]{0}', space=sflag, size = 0x4, scoped, tag = 'scoped memory for tpu_custom_call.1']
    #allocation7 [shape = 'u8[4096]{0}', space=vmem, size = 0x1000, scoped, tag = 'input window, operand 2, single buffered']
    #allocation8 [shape = 'u8[1048576]{0}', space=vmem, size = 0x100000, scoped, tag = 'input window, operand 3, single buffered']
    #allocation9 [shape = 's32[1]{0}', space=sflag, size = 0x4, scoped, tag = 'scoped memory for tpu_custom_call.1']
    #allocation10 [shape = 'u8[262144]{0}', space=vmem, size = 0x40000, scoped, tag = 'input window, operand 5, single buffered']
    #allocation11 [shape = 'u8[65536]{0}', space=vmem, size = 0x10000, scoped, tag = 'input window, operand 7, single buffered']
    #allocation12 [shape = 's32[1]{0}', space=sflag, size = 0x4, scoped, tag = 'scoped memory for tpu_custom_call.1']
    #allocation13 [shape = 'u8[65536]{0}', space=vmem, size = 0x10000, scoped, tag = 'input window, operand 9, single buffered']
    #allocation14 [shape = 'u8[262144]{0}', space=vmem, size = 0x40000, scoped, tag = 'input window, operand 11, single buffered']
    #allocation15 [shape = 's32[1]{0}', space=sflag, size = 0x4, scoped, tag = 'scoped memory for tpu_custom_call.1']
    #allocation16 [shape = 'u8[1048576]{0}', space=vmem, size = 0x100000, scoped, tag = 'input window, operand 13, single buffered']
    #allocation17 [shape = 'u8[1048576]{0}', space=vmem, size = 0x100000, scoped, tag = 'input window, operand 15, single buffered']
    #allocation18 [shape = 's32[1]{0}', space=sflag, size = 0x4, scoped, tag = 'scoped memory for tpu_custom_call.1']
    #allocation19 [shape = 'u8[16384]{0}', space=vmem, size = 0x4000, scoped, tag = 'output window, operand 0, single buffered']
    %22 = vsyncpa [#allocation3], 0
    %23 = vsyncpa [#allocation6], 0
    %24 = vsyncpa [#allocation9], 0
    %25 = vsyncpa [#allocation12], 0
    %26 = vsyncpa [#allocation15], 0
    %27 = vsyncpa [#allocation18], 0
    %28 = vsyncpa [#allocation4], 0
    // Predicated region
    $region2: #{tpu_custom_call.1} parent=1 // pred_check
      _
    $region3: #{tpu_custom_call.1} parent=1 // pred_check_branch
      %30 = sbr.rel (0) target = $region5
    $region4: #{tpu_custom_call.1} parent=1 // pred_region
      %s32 = ssub.s32 512, 512
      %33 = vsyncadd [#allocation3], %s32
      %s35 = sshll.u32 [#allocation2], 4
      %s36 = int_to_ptr.vmem [resolvable:$true] %s35
      %38 = dma.hbm_to_vmem [thread:$0]  %s0, 512, %s36, [#allocation3]
    $region5: #{tpu_custom_call.1} parent=1 // pred_fallthru
      _
    // Predicated region
    $region6: #{tpu_custom_call.1} parent=1 // pred_check
      _
    $region7: #{tpu_custom_call.1} parent=1 // pred_check_branch
      %40 = sbr.rel (0) target = $region9
    $region8: #{tpu_custom_call.1} parent=1 // pred_region
      %s42 = ssub.s32 32768, 32768
      %43 = vsyncadd [#allocation6], %s42
      %s44 = sshll.u32 [#allocation5], 4
      %s45 = int_to_ptr.vmem [resolvable:$true] %s44
      %50 = dma.hbm_to_vmem [thread:$0]  %s1, 32768, %s45, [#allocation6], 512, 512, 32
    $region9: #{tpu_custom_call.1} parent=1 // pred_fallthru
      _
    // Predicated region
    $region10: #{tpu_custom_call.1} parent=1 // pred_check
      _
    $region11: #{tpu_custom_call.1} parent=1 // pred_check_branch
      %52 = sbr.rel (0) target = $region13
    $region12: #{tpu_custom_call.1} parent=1 // pred_region
      %s54 = ssub.s32 128, 128
      %55 = vsyncadd [#allocation6], %s54
      %s57 = sshll.u32 [#allocation7], 4
      %s58 = int_to_ptr.vmem [resolvable:$true] %s57
      %60 = dma.hbm_to_vmem [thread:$0]  %s2, 128, %s58, [#allocation6]
    $region13: #{tpu_custom_call.1} parent=1 // pred_fallthru
      _
    // Predicated region
    $region14: #{tpu_custom_call.1} parent=1 // pred_check
      _
    $region15: #{tpu_custom_call.1} parent=1 // pred_check_branch
      %62 = sbr.rel (0) target = $region17
    $region16: #{tpu_custom_call.1} parent=1 // pred_region
      %s64 = ssub.s32 32768, 32768
      %65 = vsyncadd [#allocation9], %s64
      %s66 = sshll.u32 [#allocation8], 4
      %s67 = int_to_ptr.vmem [resolvable:$true] %s66
      %72 = dma.hbm_to_vmem [thread:$0]  %s3, 32768, %s67, [#allocation9], 256, 256, 16
    $region17: #{tpu_custom_call.1} parent=1 // pred_fallthru
      _
    // Predicated region
    $region18: #{tpu_custom_call.1} parent=1 // pred_check
      _
    $region19: #{tpu_custom_call.1} parent=1 // pred_check_branch
      %74 = sbr.rel (0) target = $region21
    $region20: #{tpu_custom_call.1} parent=1 // pred_region
      _
    $region21: #{tpu_custom_call.1} parent=1 // pred_fallthru
      _
    // Predicated region
    $region22: #{tpu_custom_call.1} parent=1 // pred_check
      _
    $region23: #{tpu_custom_call.1} parent=1 // pred_check_branch
      %76 = sbr.rel (0) target = $region25
    $region24: #{tpu_custom_call.1} parent=1 // pred_region
      %s78 = ssub.s32 8192, 8192
      %79 = vsyncadd [#allocation9], %s78
      %s80 = sshll.u32 [#allocation10], 4
      %s81 = int_to_ptr.vmem [resolvable:$true] %s80
      %86 = dma.hbm_to_vmem [thread:$0]  %s5, 8192, %s81, [#allocation9], 128, 128, 8
    $region25: #{tpu_custom_call.1} parent=1 // pred_fallthru
      _
    // Predicated region
    $region26: #{tpu_custom_call.1} parent=1 // pred_check
      _
    $region27: #{tpu_custom_call.1} parent=1 // pred_check_branch
      %88 = sbr.rel (0) target = $region29
    $region28: #{tpu_custom_call.1} parent=1 // pred_region
      _
    $region29: #{tpu_custom_call.1} parent=1 // pred_fallthru
      _
    // Predicated region
    $region30: #{tpu_custom_call.1} parent=1 // pred_check
      _
    $region31: #{tpu_custom_call.1} parent=1 // pred_check_branch
      %90 = sbr.rel (0) target = $region33
    $region32: #{tpu_custom_call.1} parent=1 // pred_region
      %s92 = ssub.s32 2048, 2048
      %93 = vsyncadd [#allocation12], %s92
      %s94 = sshll.u32 [#allocation11], 4
      %s95 = int_to_ptr.vmem [resolvable:$true] %s94
      %100 = dma.hbm_to_vmem [thread:$0]  %s7, 2048, %s95, [#allocation12], 64, 64, 4
    $region33: #{tpu_custom_call.1} parent=1 // pred_fallthru
      _
    // Predicated region
    $region34: #{tpu_custom_call.1} parent=1 // pred_check
      _
    $region35: #{tpu_custom_call.1} parent=1 // pred_check_branch
      %102 = sbr.rel (0) target = $region37
    $region36: #{tpu_custom_call.1} parent=1 // pred_region
      _
    $region37: #{tpu_custom_call.1} parent=1 // pred_fallthru
      _
    // Predicated region
    $region38: #{tpu_custom_call.1} parent=1 // pred_check
      _
    $region39: #{tpu_custom_call.1} parent=1 // pred_check_branch
      %104 = sbr.rel (0) target = $region41
    $region40: #{tpu_custom_call.1} parent=1 // pred_region
      %s106 = ssub.s32 2048, 2048
      %107 = vsyncadd [#allocation12], %s106
      %s108 = sshll.u32 [#allocation13], 4
      %s109 = int_to_ptr.vmem [resolvable:$true] %s108
      %114 = dma.hbm_to_vmem [thread:$0]  %s9, 2048, %s109, [#allocation12], 128, 128, 8
    $region41: #{tpu_custom_call.1} parent=1 // pred_fallthru
      _
    // Predicated region
    $region42: #{tpu_custom_call.1} parent=1 // pred_check
      _
    $region43: #{tpu_custom_call.1} parent=1 // pred_check_branch
      %116 = sbr.rel (0) target = $region45
    $region44: #{tpu_custom_call.1} parent=1 // pred_region
      _
    $region45: #{tpu_custom_call.1} parent=1 // pred_fallthru
      _
    // Predicated region
    $region46: #{tpu_custom_call.1} parent=1 // pred_check
      _
    $region47: #{tpu_custom_call.1} parent=1 // pred_check_branch
      %118 = sbr.rel (0) target = $region49
    $region48: #{tpu_custom_call.1} parent=1 // pred_region
      %s120 = ssub.s32 8192, 8192
      %121 = vsyncadd [#allocation15], %s120
      %s122 = sshll.u32 [#allocation14], 4
      %s123 = int_to_ptr.vmem [resolvable:$true] %s122
      %128 = dma.hbm_to_vmem [thread:$0]  %s11, 8192, %s123, [#allocation15], 256, 256, 16
    $region49: #{tpu_custom_call.1} parent=1 // pred_fallthru
      _
    // Predicated region
    $region50: #{tpu_custom_call.1} parent=1 // pred_check
      _
    $region51: #{tpu_custom_call.1} parent=1 // pred_check_branch
      %130 = sbr.rel (0) target = $region53
    $region52: #{tpu_custom_call.1} parent=1 // pred_region
      _
    $region53: #{tpu_custom_call.1} parent=1 // pred_fallthru
      _
    // Predicated region
    $region54: #{tpu_custom_call.1} parent=1 // pred_check
      _
    $region55: #{tpu_custom_call.1} parent=1 // pred_check_branch
      %132 = sbr.rel (0) target = $region57
    $region56: #{tpu_custom_call.1} parent=1 // pred_region
      %s134 = ssub.s32 32768, 32768
      %135 = vsyncadd [#allocation15], %s134
      %s136 = sshll.u32 [#allocation16], 4
      %s137 = int_to_ptr.vmem [resolvable:$true] %s136
      %142 = dma.hbm_to_vmem [thread:$0]  %s13, 32768, %s137, [#allocation15], 512, 512, 32
    $region57: #{tpu_custom_call.1} parent=1 // pred_fallthru
      _
    // Predicated region
    $region58: #{tpu_custom_call.1} parent=1 // pred_check
      _
    $region59: #{tpu_custom_call.1} parent=1 // pred_check_branch
      %144 = sbr.rel (0) target = $region61
    $region60: #{tpu_custom_call.1} parent=1 // pred_region
      _
    $region61: #{tpu_custom_call.1} parent=1 // pred_fallthru
      _
    // Predicated region
    $region62: #{tpu_custom_call.1} parent=1 // pred_check
      _
    $region63: #{tpu_custom_call.1} parent=1 // pred_check_branch
      %146 = sbr.rel (0) target = $region65
    $region64: #{tpu_custom_call.1} parent=1 // pred_region
      %s148 = ssub.s32 32768, 32768
      %149 = vsyncadd [#allocation18], %s148
      %s150 = sshll.u32 [#allocation17], 4
      %s151 = int_to_ptr.vmem [resolvable:$true] %s150
      %156 = dma.hbm_to_vmem [thread:$0]  %s15, 32768, %s151, [#allocation18], 256, 256, 16
    $region65: #{tpu_custom_call.1} parent=1 // pred_fallthru
      _
    // Predicated region
    $region66: #{tpu_custom_call.1} parent=1 // pred_check
      _
    $region67: #{tpu_custom_call.1} parent=1 // pred_check_branch
      %158 = sbr.rel (0) target = $region69
    $region68: #{tpu_custom_call.1} parent=1 // pred_region
      _
    $region69: #{tpu_custom_call.1} parent=1 // pred_fallthru
      _
    // Predicated region
    $region70: #{tpu_custom_call.1} parent=1 // pred_check
      _
    $region71: #{tpu_custom_call.1} parent=1 // pred_check_branch
      %160 = sbr.rel (0) target = $region73
    $region72: #{tpu_custom_call.1} parent=1 // pred_region
      %161 = dma.done [#allocation3], 512
    $region73: #{tpu_custom_call.1} parent=1 // pred_fallthru
      _
    // Predicated region
    $region74: #{tpu_custom_call.1} parent=1 // pred_check
      _
    $region75: #{tpu_custom_call.1} parent=1 // pred_check_branch
      %163 = sbr.rel (0) target = $region77
    $region76: #{tpu_custom_call.1} parent=1 // pred_region
      %164 = dma.done [#allocation6], 32768
    $region77: #{tpu_custom_call.1} parent=1 // pred_fallthru
      _
    // Predicated region
    $region78: #{tpu_custom_call.1} parent=1 // pred_check
      _
    $region79: #{tpu_custom_call.1} parent=1 // pred_check_branch
      %166 = sbr.rel (0) target = $region81
    $region80: #{tpu_custom_call.1} parent=1 // pred_region
      %167 = dma.done [#allocation6], 128
    $region81: #{tpu_custom_call.1} parent=1 // pred_fallthru
      _
    // Predicated region
    $region82: #{tpu_custom_call.1} parent=1 // pred_check
      _
    $region83: #{tpu_custom_call.1} parent=1 // pred_check_branch
      %169 = sbr.rel (0) target = $region85
    $region84: #{tpu_custom_call.1} parent=1 // pred_region
      %170 = dma.done [#allocation9], 32768
    $region85: #{tpu_custom_call.1} parent=1 // pred_fallthru
      _
    // Predicated region
    $region86: #{tpu_custom_call.1} parent=1 // pred_check
      _
    $region87: #{tpu_custom_call.1} parent=1 // pred_check_branch
      %172 = sbr.rel (0) target = $region89
    $region88: #{tpu_custom_call.1} parent=1 // pred_region
      %173 = dma.done [#allocation9], 8192
    $region89: #{tpu_custom_call.1} parent=1 // pred_fallthru
      _
    // Predicated region
    $region90: #{tpu_custom_call.1} parent=1 // pred_check
      _
    $region91: #{tpu_custom_call.1} parent=1 // pred_check_branch
      %175 = sbr.rel (0) target = $region93
    $region92: #{tpu_custom_call.1} parent=1 // pred_region
      %176 = dma.done [#allocation12], 2048
    $region93: #{tpu_custom_call.1} parent=1 // pred_fallthru
      _
    // Predicated region
    $region94: #{tpu_custom_call.1} parent=1 // pred_check
      _
    $region95: #{tpu_custom_call.1} parent=1 // pred_check_branch
      %178 = sbr.rel (0) target = $region97
    $region96: #{tpu_custom_call.1} parent=1 // pred_region
      %179 = dma.done [#allocation12], 2048
    $region97: #{tpu_custom_call.1} parent=1 // pred_fallthru
      _
    // Predicated region
    $region98: #{tpu_custom_call.1} parent=1 // pred_check
      _
    $region99: #{tpu_custom_call.1} parent=1 // pred_check_branch
      %181 = sbr.rel (0) target = $region101
    $region100: #{tpu_custom_call.1} parent=1 // pred_region
      %182 = dma.done [#allocation15], 8192
    $region101: #{tpu_custom_call.1} parent=1 // pred_fallthru
      _
    // Predicated region
    $region102: #{tpu_custom_call.1} parent=1 // pred_check
      _
    $region103: #{tpu_custom_call.1} parent=1 // pred_check_branch
      %184 = sbr.rel (0) target = $region105
    $region104: #{tpu_custom_call.1} parent=1 // pred_region
      %185 = dma.done [#allocation15], 32768
    $region105: #{tpu_custom_call.1} parent=1 // pred_fallthru
      _
    // Predicated region
    $region106: #{tpu_custom_call.1} parent=1 // pred_check
      _
    $region107: #{tpu_custom_call.1} parent=1 // pred_check_branch
      %187 = sbr.rel (0) target = $region109
    $region108: #{tpu_custom_call.1} parent=1 // pred_region
      %188 = dma.done [#allocation18], 32768
    $region109: #{tpu_custom_call.1} parent=1 // pred_fallthru
      _
    %v190 = vld [vmem:[#allocation2] sm:$0xff]
    %v191 = vld [vmem:[#allocation2 + $0x8] sm:$0xff]
    %v192 = vld [vmem:[#allocation2 + $0x10] sm:$0xff]
    %v193 = vld [vmem:[#allocation2 + $0x18] sm:$0xff]
    %v194 = vld [vmem:[#allocation5] sm:$0xff]
    %v195 = vld [vmem:[#allocation5 + $0x8] sm:$0xff]
    %v196 = vld [vmem:[#allocation5 + $0x10] sm:$0xff]
    %v197 = vld [vmem:[#allocation5 + $0x18] sm:$0xff]
    %v198 = vld [vmem:[#allocation5 + $0x20] sm:$0xff]
    %v199 = vld [vmem:[#allocation5 + $0x28] sm:$0xff]
    %v200 = vld [vmem:[#allocation5 + $0x30] sm:$0xff]
    %v201 = vld [vmem:[#allocation5 + $0x38] sm:$0xff]
    %v202 = vld [vmem:[#allocation5 + $0x40] sm:$0xff]
    %v203 = vld [vmem:[#allocation5 + $0x48] sm:$0xff]
    %v204 = vld [vmem:[#allocation5 + $0x50] sm:$0xff]
    %v205 = vld [vmem:[#allocation5 + $0x58] sm:$0xff]
    %v206 = vld [vmem:[#allocation5 + $0x60] sm:$0xff]
    %v207 = vld [vmem:[#allocation5 + $0x68] sm:$0xff]
    %v208 = vld [vmem:[#allocation5 + $0x70] sm:$0xff]
    %v209 = vld [vmem:[#allocation5 + $0x78] sm:$0xff]
    %v210 = vld [vmem:[#allocation5 + $0x80] sm:$0xff]
    %v211 = vld [vmem:[#allocation5 + $0x88] sm:$0xff]
    %v212 = vld [vmem:[#allocation5 + $0x90] sm:$0xff]
    %v213 = vld [vmem:[#allocation5 + $0x98] sm:$0xff]
    %v214 = vld [vmem:[#allocation5 + $0xa0] sm:$0xff]
    %v215 = vld [vmem:[#allocation5 + $0xa8] sm:$0xff]
    %v216 = vld [vmem:[#allocation5 + $0xb0] sm:$0xff]
    %v217 = vld [vmem:[#allocation5 + $0xb8] sm:$0xff]
    %v218 = vld [vmem:[#allocation5 + $0xc0] sm:$0xff]
    %v219 = vld [vmem:[#allocation5 + $0xc8] sm:$0xff]
    %v220 = vld [vmem:[#allocation5 + $0xd0] sm:$0xff]
    %v221 = vld [vmem:[#allocation5 + $0xd8] sm:$0xff]
    %v222 = vld [vmem:[#allocation5 + $0xe0] sm:$0xff]
    %v223 = vld [vmem:[#allocation5 + $0xe8] sm:$0xff]
    %v224 = vld [vmem:[#allocation5 + $0xf0] sm:$0xff]
    %v225 = vld [vmem:[#allocation5 + $0xf8] sm:$0xff]
    %v226 = vld [vmem:[#allocation5 + $0x100] sm:$0xff]
    %v227 = vld [vmem:[#allocation5 + $0x108] sm:$0xff]
    %v228 = vld [vmem:[#allocation5 + $0x110] sm:$0xff]
    %v229 = vld [vmem:[#allocation5 + $0x118] sm:$0xff]
    %v230 = vld [vmem:[#allocation5 + $0x120] sm:$0xff]
    %v231 = vld [vmem:[#allocation5 + $0x128] sm:$0xff]
    %v232 = vld [vmem:[#allocation5 + $0x130] sm:$0xff]
    %v233 = vld [vmem:[#allocation5 + $0x138] sm:$0xff]
    %v234 = vld [vmem:[#allocation5 + $0x140] sm:$0xff]
    %v235 = vld [vmem:[#allocation5 + $0x148] sm:$0xff]
    %v236 = vld [vmem:[#allocation5 + $0x150] sm:$0xff]
    %v237 = vld [vmem:[#allocation5 + $0x158] sm:$0xff]
    %v238 = vld [vmem:[#allocation5 + $0x160] sm:$0xff]
    %v239 = vld [vmem:[#allocation5 + $0x168] sm:$0xff]
    %v240 = vld [vmem:[#allocation5 + $0x170] sm:$0xff]
    %v241 = vld [vmem:[#allocation5 + $0x178] sm:$0xff]
    %v242 = vld [vmem:[#allocation5 + $0x180] sm:$0xff]
    %v243 = vld [vmem:[#allocation5 + $0x188] sm:$0xff]
    %v244 = vld [vmem:[#allocation5 + $0x190] sm:$0xff]
    %v245 = vld [vmem:[#allocation5 + $0x198] sm:$0xff]
    %v246 = vld [vmem:[#allocation5 + $0x1a0] sm:$0xff]
    %v247 = vld [vmem:[#allocation5 + $0x1a8] sm:$0xff]
    %v248 = vld [vmem:[#allocation5 + $0x1b0] sm:$0xff]
    %v249 = vld [vmem:[#allocation5 + $0x1b8] sm:$0xff]
    %v250 = vld [vmem:[#allocation5 + $0x1c0] sm:$0xff]
    %v251 = vld [vmem:[#allocation5 + $0x1c8] sm:$0xff]
    %v252 = vld [vmem:[#allocation5 + $0x1d0] sm:$0xff]
    %v253 = vld [vmem:[#allocation5 + $0x1d8] sm:$0xff]
    %v254 = vld [vmem:[#allocation5 + $0x1e0] sm:$0xff]
    %v255 = vld [vmem:[#allocation5 + $0x1e8] sm:$0xff]
    %v256 = vld [vmem:[#allocation5 + $0x1f0] sm:$0xff]
    %v257 = vld [vmem:[#allocation5 + $0x1f8] sm:$0xff]
    %v258 = vld [vmem:[#allocation5 + $0x200] sm:$0xff]
    %v259 = vld [vmem:[#allocation5 + $0x208] sm:$0xff]
    %v260 = vld [vmem:[#allocation5 + $0x210] sm:$0xff]
    %v261 = vld [vmem:[#allocation5 + $0x218] sm:$0xff]
    %v262 = vld [vmem:[#allocation5 + $0x220] sm:$0xff]
    %v263 = vld [vmem:[#allocation5 + $0x228] sm:$0xff]
    %v264 = vld [vmem:[#allocation5 + $0x230] sm:$0xff]
    %v265 = vld [vmem:[#allocation5 + $0x238] sm:$0xff]
    %v266 = vld [vmem:[#allocation5 + $0x240] sm:$0xff]
    %v267 = vld [vmem:[#allocation5 + $0x248] sm:$0xff]
    %v268 = vld [vmem:[#allocation5 + $0x250] sm:$0xff]
    %v269 = vld [vmem:[#allocation5 + $0x258] sm:$0xff]
    %v270 = vld [vmem:[#allocation5 + $0x260] sm:$0xff]
    %v271 = vld [vmem:[#allocation5 + $0x268] sm:$0xff]
    %v272 = vld [vmem:[#allocation5 + $0x270] sm:$0xff]
    %v273 = vld [vmem:[#allocation5 + $0x278] sm:$0xff]
    %v274 = vld [vmem:[#allocation5 + $0x280] sm:$0xff]
    %v275 = vld [vmem:[#allocation5 + $0x288] sm:$0xff]
    %v276 = vld [vmem:[#allocation5 + $0x290] sm:$0xff]
    %v277 = vld [vmem:[#allocation5 + $0x298] sm:$0xff]
    %v278 = vld [vmem:[#allocation5 + $0x2a0] sm:$0xff]
    %v279 = vld [vmem:[#allocation5 + $0x2a8] sm:$0xff]
    %v280 = vld [vmem:[#allocation5 + $0x2b0] sm:$0xff]
    %v281 = vld [vmem:[#allocation5 + $0x2b8] sm:$0xff]
    %v282 = vld [vmem:[#allocation5 + $0x2c0] sm:$0xff]
    %v283 = vld [vmem:[#allocation5 + $0x2c8] sm:$0xff]
    %v284 = vld [vmem:[#allocation5 + $0x2d0] sm:$0xff]
    %v285 = vld [vmem:[#allocation5 + $0x2d8] sm:$0xff]
    %v286 = vld [vmem:[#allocation5 + $0x2e0] sm:$0xff]
    %v287 = vld [vmem:[#allocation5 + $0x2e8] sm:$0xff]
    %v288 = vld [vmem:[#allocation5 + $0x2f0] sm:$0xff]
    %v289 = vld [vmem:[#allocation5 + $0x2f8] sm:$0xff]
    %v290 = vld [vmem:[#allocation5 + $0x300] sm:$0xff]
    %v291 = vld [vmem:[#allocation5 + $0x308] sm:$0xff]
    %v292 = vld [vmem:[#allocation5 + $0x310] sm:$0xff]
    %v293 = vld [vmem:[#allocation5 + $0x318] sm:$0xff]
    %v294 = vld [vmem:[#allocation5 + $0x320] sm:$0xff]
    %v295 = vld [vmem:[#allocation5 + $0x328] sm:$0xff]
    %v296 = vld [vmem:[#allocation5 + $0x330] sm:$0xff]
    %v297 = vld [vmem:[#allocation5 + $0x338] sm:$0xff]
    %v298 = vld [vmem:[#allocation5 + $0x340] sm:$0xff]
    %v299 = vld [vmem:[#allocation5 + $0x348] sm:$0xff]
    %v300 = vld [vmem:[#allocation5 + $0x350] sm:$0xff]
    %v301 = vld [vmem:[#allocation5 + $0x358] sm:$0xff]
    %v302 = vld [vmem:[#allocation5 + $0x360] sm:$0xff]
    %v303 = vld [vmem:[#allocation5 + $0x368] sm:$0xff]
    %v304 = vld [vmem:[#allocation5 + $0x370] sm:$0xff]
    %v305 = vld [vmem:[#allocation5 + $0x378] sm:$0xff]
    %v306 = vld [vmem:[#allocation5 + $0x380] sm:$0xff]
    %v307 = vld [vmem:[#allocation5 + $0x388] sm:$0xff]
    %v308 = vld [vmem:[#allocation5 + $0x390] sm:$0xff]
    %v309 = vld [vmem:[#allocation5 + $0x398] sm:$0xff]
    %v310 = vld [vmem:[#allocation5 + $0x3a0] sm:$0xff]
    %v311 = vld [vmem:[#allocation5 + $0x3a8] sm:$0xff]
    %v312 = vld [vmem:[#allocation5 + $0x3b0] sm:$0xff]
    %v313 = vld [vmem:[#allocation5 + $0x3b8] sm:$0xff]
    %v314 = vld [vmem:[#allocation5 + $0x3c0] sm:$0xff]
    %v315 = vld [vmem:[#allocation5 + $0x3c8] sm:$0xff]
    %v316 = vld [vmem:[#allocation5 + $0x3d0] sm:$0xff]
    %v317 = vld [vmem:[#allocation5 + $0x3d8] sm:$0xff]
    %v318 = vld [vmem:[#allocation5 + $0x3e0] sm:$0xff]
    %v319 = vld [vmem:[#allocation5 + $0x3e8] sm:$0xff]
    %v320 = vld [vmem:[#allocation5 + $0x3f0] sm:$0xff]
    %v321 = vld [vmem:[#allocation5 + $0x3f8] sm:$0xff]
    %v322 = vld [vmem:[#allocation5 + $0x400] sm:$0xff]
    %v323 = vld [vmem:[#allocation5 + $0x408] sm:$0xff]
    %v324 = vld [vmem:[#allocation5 + $0x410] sm:$0xff]
    %v325 = vld [vmem:[#allocation5 + $0x418] sm:$0xff]
    %v326 = vld [vmem:[#allocation5 + $0x420] sm:$0xff]
    %v327 = vld [vmem:[#allocation5 + $0x428] sm:$0xff]
    %v328 = vld [vmem:[#allocation5 + $0x430] sm:$0xff]
    %v329 = vld [vmem:[#allocation5 + $0x438] sm:$0xff]
    %v330 = vld [vmem:[#allocation5 + $0x440] sm:$0xff]
    %v331 = vld [vmem:[#allocation5 + $0x448] sm:$0xff]
    %v332 = vld [vmem:[#allocation5 + $0x450] sm:$0xff]
    %v333 = vld [vmem:[#allocation5 + $0x458] sm:$0xff]
    %v334 = vld [vmem:[#allocation5 + $0x460] sm:$0xff]
    %v335 = vld [vmem:[#allocation5 + $0x468] sm:$0xff]
    %v336 = vld [vmem:[#allocation5 + $0x470] sm:$0xff]
    %v337 = vld [vmem:[#allocation5 + $0x478] sm:$0xff]
    %v338 = vld [vmem:[#allocation5 + $0x480] sm:$0xff]
    %v339 = vld [vmem:[#allocation5 + $0x488] sm:$0xff]
    %v340 = vld [vmem:[#allocation5 + $0x490] sm:$0xff]
    %v341 = vld [vmem:[#allocation5 + $0x498] sm:$0xff]
    %v342 = vld [vmem:[#allocation5 + $0x4a0] sm:$0xff]
    %v343 = vld [vmem:[#allocation5 + $0x4a8] sm:$0xff]
    %v344 = vld [vmem:[#allocation5 + $0x4b0] sm:$0xff]
    %v345 = vld [vmem:[#allocation5 + $0x4b8] sm:$0xff]
    %v346 = vld [vmem:[#allocation5 + $0x4c0] sm:$0xff]
    %v347 = vld [vmem:[#allocation5 + $0x4c8] sm:$0xff]
    %v348 = vld [vmem:[#allocation5 + $0x4d0] sm:$0xff]
    %v349 = vld [vmem:[#allocation5 + $0x4d8] sm:$0xff]
    %v350 = vld [vmem:[#allocation5 + $0x4e0] sm:$0xff]
    %v351 = vld [vmem:[#allocation5 + $0x4e8] sm:$0xff]
    %v352 = vld [vmem:[#allocation5 + $0x4f0] sm:$0xff]
    %v353 = vld [vmem:[#allocation5 + $0x4f8] sm:$0xff]
    %v354 = vld [vmem:[#allocation5 + $0x500] sm:$0xff]
    %v355 = vld [vmem:[#allocation5 + $0x508] sm:$0xff]
    %v356 = vld [vmem:[#allocation5 + $0x510] sm:$0xff]
    %v357 = vld [vmem:[#allocation5 + $0x518] sm:$0xff]
    %v358 = vld [vmem:[#allocation5 + $0x520] sm:$0xff]
    %v359 = vld [vmem:[#allocation5 + $0x528] sm:$0xff]
    %v360 = vld [vmem:[#allocation5 + $0x530] sm:$0xff]
    %v361 = vld [vmem:[#allocation5 + $0x538] sm:$0xff]
    %v362 = vld [vmem:[#allocation5 + $0x540] sm:$0xff]
    %v363 = vld [vmem:[#allocation5 + $0x548] sm:$0xff]
    %v364 = vld [vmem:[#allocation5 + $0x550] sm:$0xff]
    %v365 = vld [vmem:[#allocation5 + $0x558] sm:$0xff]
    %v366 = vld [vmem:[#allocation5 + $0x560] sm:$0xff]
    %v367 = vld [vmem:[#allocation5 + $0x568] sm:$0xff]
    %v368 = vld [vmem:[#allocation5 + $0x570] sm:$0xff]
    %v369 = vld [vmem:[#allocation5 + $0x578] sm:$0xff]
    %v370 = vld [vmem:[#allocation5 + $0x580] sm:$0xff]
    %v371 = vld [vmem:[#allocation5 + $0x588] sm:$0xff]
    %v372 = vld [vmem:[#allocation5 + $0x590] sm:$0xff]
    %v373 = vld [vmem:[#allocation5 + $0x598] sm:$0xff]
    %v374 = vld [vmem:[#allocation5 + $0x5a0] sm:$0xff]
    %v375 = vld [vmem:[#allocation5 + $0x5a8] sm:$0xff]
    %v376 = vld [vmem:[#allocation5 + $0x5b0] sm:$0xff]
    %v377 = vld [vmem:[#allocation5 + $0x5b8] sm:$0xff]
    %v378 = vld [vmem:[#allocation5 + $0x5c0] sm:$0xff]
    %v379 = vld [vmem:[#allocation5 + $0x5c8] sm:$0xff]
    %v380 = vld [vmem:[#allocation5 + $0x5d0] sm:$0xff]
    %v381 = vld [vmem:[#allocation5 + $0x5d8] sm:$0xff]
    %v382 = vld [vmem:[#allocation5 + $0x5e0] sm:$0xff]
    %v383 = vld [vmem:[#allocation5 + $0x5e8] sm:$0xff]
    %v384 = vld [vmem:[#allocation5 + $0x5f0] sm:$0xff]
    %v385 = vld [vmem:[#allocation5 + $0x5f8] sm:$0xff]
    %v386 = vld [vmem:[#allocation5 + $0x600] sm:$0xff]
    %v387 = vld [vmem:[#allocation5 + $0x608] sm:$0xff]
    %v388 = vld [vmem:[#allocation5 + $0x610] sm:$0xff]
    %v389 = vld [vmem:[#allocation5 + $0x618] sm:$0xff]
    %v390 = vld [vmem:[#allocation5 + $0x620] sm:$0xff]
    %v391 = vld [vmem:[#allocation5 + $0x628] sm:$0xff]
    %v392 = vld [vmem:[#allocation5 + $0x630] sm:$0xff]
    %v393 = vld [vmem:[#allocation5 + $0x638] sm:$0xff]
    %v394 = vld [vmem:[#allocation5 + $0x640] sm:$0xff]
    %v395 = vld [vmem:[#allocation5 + $0x648] sm:$0xff]
    %v396 = vld [vmem:[#allocation5 + $0x650] sm:$0xff]
    %v397 = vld [vmem:[#allocation5 + $0x658] sm:$0xff]
    %v398 = vld [vmem:[#allocation5 + $0x660] sm:$0xff]
    %v399 = vld [vmem:[#allocation5 + $0x668] sm:$0xff]
    %v400 = vld [vmem:[#allocation5 + $0x670] sm:$0xff]
    %v401 = vld [vmem:[#allocation5 + $0x678] sm:$0xff]
    %v402 = vld [vmem:[#allocation5 + $0x680] sm:$0xff]
    %v403 = vld [vmem:[#allocation5 + $0x688] sm:$0xff]
    %v404 = vld [vmem:[#allocation5 + $0x690] sm:$0xff]
    %v405 = vld [vmem:[#allocation5 + $0x698] sm:$0xff]
    %v406 = vld [vmem:[#allocation5 + $0x6a0] sm:$0xff]
    %v407 = vld [vmem:[#allocation5 + $0x6a8] sm:$0xff]
    %v408 = vld [vmem:[#allocation5 + $0x6b0] sm:$0xff]
    %v409 = vld [vmem:[#allocation5 + $0x6b8] sm:$0xff]
    %v410 = vld [vmem:[#allocation5 + $0x6c0] sm:$0xff]
    %v411 = vld [vmem:[#allocation5 + $0x6c8] sm:$0xff]
    %v412 = vld [vmem:[#allocation5 + $0x6d0] sm:$0xff]
    %v413 = vld [vmem:[#allocation5 + $0x6d8] sm:$0xff]
    %v414 = vld [vmem:[#allocation5 + $0x6e0] sm:$0xff]
    %v415 = vld [vmem:[#allocation5 + $0x6e8] sm:$0xff]
    %v416 = vld [vmem:[#allocation5 + $0x6f0] sm:$0xff]
    %v417 = vld [vmem:[#allocation5 + $0x6f8] sm:$0xff]
    %v418 = vld [vmem:[#allocation5 + $0x700] sm:$0xff]
    %v419 = vld [vmem:[#allocation5 + $0x708] sm:$0xff]
    %v420 = vld [vmem:[#allocation5 + $0x710] sm:$0xff]
    %v421 = vld [vmem:[#allocation5 + $0x718] sm:$0xff]
    %v422 = vld [vmem:[#allocation5 + $0x720] sm:$0xff]
    %v423 = vld [vmem:[#allocation5 + $0x728] sm:$0xff]
    %v424 = vld [vmem:[#allocation5 + $0x730] sm:$0xff]
    %v425 = vld [vmem:[#allocation5 + $0x738] sm:$0xff]
    %v426 = vld [vmem:[#allocation5 + $0x740] sm:$0xff]
    %v427 = vld [vmem:[#allocation5 + $0x748] sm:$0xff]
    %v428 = vld [vmem:[#allocation5 + $0x750] sm:$0xff]
    %v429 = vld [vmem:[#allocation5 + $0x758] sm:$0xff]
    %v430 = vld [vmem:[#allocation5 + $0x760] sm:$0xff]
    %v431 = vld [vmem:[#allocation5 + $0x768] sm:$0xff]
    %v432 = vld [vmem:[#allocation5 + $0x770] sm:$0xff]
    %v433 = vld [vmem:[#allocation5 + $0x778] sm:$0xff]
    %v434 = vld [vmem:[#allocation5 + $0x780] sm:$0xff]
    %v435 = vld [vmem:[#allocation5 + $0x788] sm:$0xff]
    %v436 = vld [vmem:[#allocation5 + $0x790] sm:$0xff]
    %v437 = vld [vmem:[#allocation5 + $0x798] sm:$0xff]
    %v438 = vld [vmem:[#allocation5 + $0x7a0] sm:$0xff]
    %v439 = vld [vmem:[#allocation5 + $0x7a8] sm:$0xff]
    %v440 = vld [vmem:[#allocation5 + $0x7b0] sm:$0xff]
    %v441 = vld [vmem:[#allocation5 + $0x7b8] sm:$0xff]
    %v442 = vld [vmem:[#allocation5 + $0x7c0] sm:$0xff]
    %v443 = vld [vmem:[#allocation5 + $0x7c8] sm:$0xff]
    %v444 = vld [vmem:[#allocation5 + $0x7d0] sm:$0xff]
    %v445 = vld [vmem:[#allocation5 + $0x7d8] sm:$0xff]
    %v446 = vld [vmem:[#allocation5 + $0x7e0] sm:$0xff]
    %v447 = vld [vmem:[#allocation5 + $0x7e8] sm:$0xff]
    %v448 = vld [vmem:[#allocation5 + $0x7f0] sm:$0xff]
    %v449 = vld [vmem:[#allocation5 + $0x7f8] sm:$0xff]
    %v450 = vld [vmem:[#allocation7] sm:$0xff]
    %v451 = vpack.c.bf16 %v190, %v190
    %v452 = vpack.c.bf16 %v191, %v191
    %v453 = vpack.c.bf16 %v192, %v192
    %v454 = vpack.c.bf16 %v193, %v193
    %v456 = vlaneseq
    %v457 = vshrl.u32 %v456, 7
    %v458 = vsub.s32 0, %v457
    %v459 = vrot.slane %v450, %v458
    %v460 = vlaneseq
    %v461 = vshrl.u32 %v460, 7
    %v462 = vsub.s32 1, %v461
    %v463 = vrot.slane %v450, %v462
    %v464 = vlaneseq
    %v465 = vshrl.u32 %v464, 7
    %v466 = vsub.s32 2, %v465
    %v467 = vrot.slane %v450, %v466
    %v468 = vlaneseq
    %v469 = vshrl.u32 %v468, 7
    %v470 = vsub.s32 3, %v469
    %v471 = vrot.slane %v450, %v470
    %v472 = vlaneseq
    %v473 = vshrl.u32 %v472, 7
    %v474 = vsub.s32 4, %v473
    %v475 = vrot.slane %v450, %v474
    %v476 = vlaneseq
    %v477 = vshrl.u32 %v476, 7
    %v478 = vsub.s32 5, %v477
    %v479 = vrot.slane %v450, %v478
    %v480 = vlaneseq
    %v481 = vshrl.u32 %v480, 7
    %v482 = vsub.s32 6, %v481
    %v483 = vrot.slane %v450, %v482
    %v484 = vlaneseq
    %v485 = vshrl.u32 %v484, 7
    %v486 = vsub.s32 7, %v485
    %v487 = vrot.slane %v450, %v486
    %v752 = vunpack.c.l.b16 %v194
    %v753 = vunpack.c.h.b16 %v194
    %v754 = vunpack.c.l.b16 %v195
    %v755 = vunpack.c.h.b16 %v195
    %v756 = vunpack.c.l.b16 %v196
    %v757 = vunpack.c.h.b16 %v196
    %v758 = vunpack.c.l.b16 %v197
    %v759 = vunpack.c.h.b16 %v197
    %v760 = vunpack.c.l.b16 %v198
    %v761 = vunpack.c.h.b16 %v198
    %v762 = vunpack.c.l.b16 %v199
    %v763 = vunpack.c.h.b16 %v199
    %v764 = vunpack.c.l.b16 %v200
    %v765 = vunpack.c.h.b16 %v200
    %v766 = vunpack.c.l.b16 %v201
    %v767 = vunpack.c.h.b16 %v201
    %v768 = vunpack.c.l.b16 %v202
    %v769 = vunpack.c.h.b16 %v202
    %v770 = vunpack.c.l.b16 %v203
    %v771 = vunpack.c.h.b16 %v203
    %v772 = vunpack.c.l.b16 %v204
    %v773 = vunpack.c.h.b16 %v204
    %v774 = vunpack.c.l.b16 %v205
    %v775 = vunpack.c.h.b16 %v205
    %v776 = vunpack.c.l.b16 %v206
    %v777 = vunpack.c.h.b16 %v206
    %v778 = vunpack.c.l.b16 %v207
    %v779 = vunpack.c.h.b16 %v207
    %v780 = vunpack.c.l.b16 %v208
    %v781 = vunpack.c.h.b16 %v208
    %v782 = vunpack.c.l.b16 %v209
    %v783 = vunpack.c.h.b16 %v209
    %v784 = vunpack.c.l.b16 %v210
    %v785 = vunpack.c.h.b16 %v210
    %v786 = vunpack.c.l.b16 %v211
    %v787 = vunpack.c.h.b16 %v211
    %v788 = vunpack.c.l.b16 %v212
    %v789 = vunpack.c.h.b16 %v212
    %v790 = vunpack.c.l.b16 %v213
    %v791 = vunpack.c.h.b16 %v213
    %v792 = vunpack.c.l.b16 %v214
    %v793 = vunpack.c.h.b16 %v214
    %v794 = vunpack.c.l.b16 %v215
    %v795 = vunpack.c.h.b16 %v215
    %v796 = vunpack.c.l.b16 %v216
    %v797 = vunpack.c.h.b16 %v216
    %v798 = vunpack.c.l.b16 %v217
    %v799 = vunpack.c.h.b16 %v217
    %v800 = vunpack.c.l.b16 %v218
    %v801 = vunpack.c.h.b16 %v218
    %v802 = vunpack.c.l.b16 %v219
    %v803 = vunpack.c.h.b16 %v219
    %v804 = vunpack.c.l.b16 %v220
    %v805 = vunpack.c.h.b16 %v220
    %v806 = vunpack.c.l.b16 %v221
    %v807 = vunpack.c.h.b16 %v221
    %v808 = vunpack.c.l.b16 %v222
    %v809 = vunpack.c.h.b16 %v222
    %v810 = vunpack.c.l.b16 %v223
    %v811 = vunpack.c.h.b16 %v223
    %v812 = vunpack.c.l.b16 %v224
    %v813 = vunpack.c.h.b16 %v224
    %v814 = vunpack.c.l.b16 %v225
    %v815 = vunpack.c.h.b16 %v225
    %v816 = vunpack.c.l.b16 %v226
    %v817 = vunpack.c.h.b16 %v226
    %v818 = vunpack.c.l.b16 %v227
    %v819 = vunpack.c.h.b16 %v227
    %v820 = vunpack.c.l.b16 %v228
    %v821 = vunpack.c.h.b16 %v228
    %v822 = vunpack.c.l.b16 %v229
    %v823 = vunpack.c.h.b16 %v229
    %v824 = vunpack.c.l.b16 %v230
    %v825 = vunpack.c.h.b16 %v230
    %v826 = vunpack.c.l.b16 %v231
    %v827 = vunpack.c.h.b16 %v231
    %v828 = vunpack.c.l.b16 %v232
    %v829 = vunpack.c.h.b16 %v232
    %v830 = vunpack.c.l.b16 %v233
    %v831 = vunpack.c.h.b16 %v233
    %v832 = vunpack.c.l.b16 %v234
    %v833 = vunpack.c.h.b16 %v234
    %v834 = vunpack.c.l.b16 %v235
    %v835 = vunpack.c.h.b16 %v235
    %v836 = vunpack.c.l.b16 %v236
    %v837 = vunpack.c.h.b16 %v236
    %v838 = vunpack.c.l.b16 %v237
    %v839 = vunpack.c.h.b16 %v237
    %v840 = vunpack.c.l.b16 %v238
    %v841 = vunpack.c.h.b16 %v238
    %v842 = vunpack.c.l.b16 %v239
    %v843 = vunpack.c.h.b16 %v239
    %v844 = vunpack.c.l.b16 %v240
    %v845 = vunpack.c.h.b16 %v240
    %v846 = vunpack.c.l.b16 %v241
    %v847 = vunpack.c.h.b16 %v241
    %v848 = vunpack.c.l.b16 %v242
    %v849 = vunpack.c.h.b16 %v242
    %v850 = vunpack.c.l.b16 %v243
    %v851 = vunpack.c.h.b16 %v243
    %v852 = vunpack.c.l.b16 %v244
    %v853 = vunpack.c.h.b16 %v244
    %v854 = vunpack.c.l.b16 %v245
    %v855 = vunpack.c.h.b16 %v245
    %v856 = vunpack.c.l.b16 %v246
    %v857 = vunpack.c.h.b16 %v246
    %v858 = vunpack.c.l.b16 %v247
    %v859 = vunpack.c.h.b16 %v247
    %v860 = vunpack.c.l.b16 %v248
    %v861 = vunpack.c.h.b16 %v248
    %v862 = vunpack.c.l.b16 %v249
    %v863 = vunpack.c.h.b16 %v249
    %v864 = vunpack.c.l.b16 %v250
    %v865 = vunpack.c.h.b16 %v250
    %v866 = vunpack.c.l.b16 %v251
    %v867 = vunpack.c.h.b16 %v251
    %v868 = vunpack.c.l.b16 %v252
    %v869 = vunpack.c.h.b16 %v252
    %v870 = vunpack.c.l.b16 %v253
    %v871 = vunpack.c.h.b16 %v253
    %v872 = vunpack.c.l.b16 %v254
    %v873 = vunpack.c.h.b16 %v254
    %v874 = vunpack.c.l.b16 %v255
    %v875 = vunpack.c.h.b16 %v255
    %v876 = vunpack.c.l.b16 %v256
    %v877 = vunpack.c.h.b16 %v256
    %v878 = vunpack.c.l.b16 %v257
    %v879 = vunpack.c.h.b16 %v257
    %v880 = vunpack.c.l.b16 %v258
    %v881 = vunpack.c.h.b16 %v258
    %v882 = vunpack.c.l.b16 %v259
    %v883 = vunpack.c.h.b16 %v259
    %v884 = vunpack.c.l.b16 %v260
    %v885 = vunpack.c.h.b16 %v260
    %v886 = vunpack.c.l.b16 %v261
    %v887 = vunpack.c.h.b16 %v261
    %v888 = vunpack.c.l.b16 %v262
    %v889 = vunpack.c.h.b16 %v262
    %v890 = vunpack.c.l.b16 %v263
    %v891 = vunpack.c.h.b16 %v263
    %v892 = vunpack.c.l.b16 %v264
    %v893 = vunpack.c.h.b16 %v264
    %v894 = vunpack.c.l.b16 %v265
    %v895 = vunpack.c.h.b16 %v265
    %v896 = vunpack.c.l.b16 %v266
    %v897 = vunpack.c.h.b16 %v266
    %v898 = vunpack.c.l.b16 %v267
    %v899 = vunpack.c.h.b16 %v267
    %v900 = vunpack.c.l.b16 %v268
    %v901 = vunpack.c.h.b16 %v268
    %v902 = vunpack.c.l.b16 %v269
    %v903 = vunpack.c.h.b16 %v269
    %v904 = vunpack.c.l.b16 %v270
    %v905 = vunpack.c.h.b16 %v270
    %v906 = vunpack.c.l.b16 %v271
    %v907 = vunpack.c.h.b16 %v271
    %v908 = vunpack.c.l.b16 %v272
    %v909 = vunpack.c.h.b16 %v272
    %v910 = vunpack.c.l.b16 %v273
    %v911 = vunpack.c.h.b16 %v273
    %v912 = vunpack.c.l.b16 %v274
    %v913 = vunpack.c.h.b16 %v274
    %v914 = vunpack.c.l.b16 %v275
    %v915 = vunpack.c.h.b16 %v275
    %v916 = vunpack.c.l.b16 %v276
    %v917 = vunpack.c.h.b16 %v276
    %v918 = vunpack.c.l.b16 %v277
    %v919 = vunpack.c.h.b16 %v277
    %v920 = vunpack.c.l.b16 %v278
    %v921 = vunpack.c.h.b16 %v278
    %v922 = vunpack.c.l.b16 %v279
    %v923 = vunpack.c.h.b16 %v279
    %v924 = vunpack.c.l.b16 %v280
    %v925 = vunpack.c.h.b16 %v280
    %v926 = vunpack.c.l.b16 %v281
    %v927 = vunpack.c.h.b16 %v281
    %v928 = vunpack.c.l.b16 %v282
    %v929 = vunpack.c.h.b16 %v282
    %v930 = vunpack.c.l.b16 %v283
    %v931 = vunpack.c.h.b16 %v283
    %v932 = vunpack.c.l.b16 %v284
    %v933 = vunpack.c.h.b16 %v284
    %v934 = vunpack.c.l.b16 %v285
    %v935 = vunpack.c.h.b16 %v285
    %v936 = vunpack.c.l.b16 %v286
    %v937 = vunpack.c.h.b16 %v286
    %v938 = vunpack.c.l.b16 %v287
    %v939 = vunpack.c.h.b16 %v287
    %v940 = vunpack.c.l.b16 %v288
    %v941 = vunpack.c.h.b16 %v288
    %v942 = vunpack.c.l.b16 %v289
    %v943 = vunpack.c.h.b16 %v289
    %v944 = vunpack.c.l.b16 %v290
    %v945 = vunpack.c.h.b16 %v290
    %v946 = vunpack.c.l.b16 %v291
    %v947 = vunpack.c.h.b16 %v291
    %v948 = vunpack.c.l.b16 %v292
    %v949 = vunpack.c.h.b16 %v292
    %v950 = vunpack.c.l.b16 %v293
    %v951 = vunpack.c.h.b16 %v293
    %v952 = vunpack.c.l.b16 %v294
    %v953 = vunpack.c.h.b16 %v294
    %v954 = vunpack.c.l.b16 %v295
    %v955 = vunpack.c.h.b16 %v295
    %v956 = vunpack.c.l.b16 %v296
    %v957 = vunpack.c.h.b16 %v296
    %v958 = vunpack.c.l.b16 %v297
    %v959 = vunpack.c.h.b16 %v297
    %v960 = vunpack.c.l.b16 %v298
    %v961 = vunpack.c.h.b16 %v298
    %v962 = vunpack.c.l.b16 %v299
    %v963 = vunpack.c.h.b16 %v299
    %v964 = vunpack.c.l.b16 %v300
    %v965 = vunpack.c.h.b16 %v300
    %v966 = vunpack.c.l.b16 %v301
    %v967 = vunpack.c.h.b16 %v301
    %v968 = vunpack.c.l.b16 %v302
    %v969 = vunpack.c.h.b16 %v302
    %v970 = vunpack.c.l.b16 %v303
    %v971 = vunpack.c.h.b16 %v303
    %v972 = vunpack.c.l.b16 %v304
    %v973 = vunpack.c.h.b16 %v304
    %v974 = vunpack.c.l.b16 %v305
    %v975 = vunpack.c.h.b16 %v305
    %v976 = vunpack.c.l.b16 %v306
    %v977 = vunpack.c.h.b16 %v306
    %v978 = vunpack.c.l.b16 %v307
    %v979 = vunpack.c.h.b16 %v307
    %v980 = vunpack.c.l.b16 %v308
    %v981 = vunpack.c.h.b16 %v308
    %v982 = vunpack.c.l.b16 %v309
    %v983 = vunpack.c.h.b16 %v309
    %v984 = vunpack.c.l.b16 %v310
    %v985 = vunpack.c.h.b16 %v310
    %v986 = vunpack.c.l.b16 %v311
    %v987 = vunpack.c.h.b16 %v311
    %v988 = vunpack.c.l.b16 %v312
    %v989 = vunpack.c.h.b16 %v312
    %v990 = vunpack.c.l.b16 %v313
    %v991 = vunpack.c.h.b16 %v313
    %v992 = vunpack.c.l.b16 %v314
    %v993 = vunpack.c.h.b16 %v314
    %v994 = vunpack.c.l.b16 %v315
    %v995 = vunpack.c.h.b16 %v315
    %v996 = vunpack.c.l.b16 %v316
    %v997 = vunpack.c.h.b16 %v316
    %v998 = vunpack.c.l.b16 %v317
    %v999 = vunpack.c.h.b16 %v317
    %v1000 = vunpack.c.l.b16 %v318
    %v1001 = vunpack.c.h.b16 %v318
    %v1002 = vunpack.c.l.b16 %v319
    %v1003 = vunpack.c.h.b16 %v319
    %v1004 = vunpack.c.l.b16 %v320
    %v1005 = vunpack.c.h.b16 %v320
    %v1006 = vunpack.c.l.b16 %v321
    %v1007 = vunpack.c.h.b16 %v321
    %v1008 = vunpack.c.l.b16 %v322
    %v1009 = vunpack.c.h.b16 %v322
    %v1010 = vunpack.c.l.b16 %v323
    %v1011 = vunpack.c.h.b16 %v323
    %v1012 = vunpack.c.l.b16 %v324
    %v1013 = vunpack.c.h.b16 %v324
    %v1014 = vunpack.c.l.b16 %v325
    %v1015 = vunpack.c.h.b16 %v325
    %v1016 = vunpack.c.l.b16 %v326
    %v1017 = vunpack.c.h.b16 %v326
    %v1018 = vunpack.c.l.b16 %v327
    %v1019 = vunpack.c.h.b16 %v327
    %v1020 = vunpack.c.l.b16 %v328
    %v1021 = vunpack.c.h.b16 %v328
    %v1022 = vunpack.c.l.b16 %v329
    %v1023 = vunpack.c.h.b16 %v329
    %v1024 = vunpack.c.l.b16 %v330
    %v1025 = vunpack.c.h.b16 %v330
    %v1026 = vunpack.c.l.b16 %v331
    %v1027 = vunpack.c.h.b16 %v331
    %v1028 = vunpack.c.l.b16 %v332
    %v1029 = vunpack.c.h.b16 %v332
    %v1030 = vunpack.c.l.b16 %v333
    %v1031 = vunpack.c.h.b16 %v333
    %v1032 = vunpack.c.l.b16 %v334
    %v1033 = vunpack.c.h.b16 %v334
    %v1034 = vunpack.c.l.b16 %v335
    %v1035 = vunpack.c.h.b16 %v335
    %v1036 = vunpack.c.l.b16 %v336
    %v1037 = vunpack.c.h.b16 %v336
    %v1038 = vunpack.c.l.b16 %v337
    %v1039 = vunpack.c.h.b16 %v337
    %v1040 = vunpack.c.l.b16 %v338
    %v1041 = vunpack.c.h.b16 %v338
    %v1042 = vunpack.c.l.b16 %v339
    %v1043 = vunpack.c.h.b16 %v339
    %v1044 = vunpack.c.l.b16 %v340
    %v1045 = vunpack.c.h.b16 %v340
    %v1046 = vunpack.c.l.b16 %v341
    %v1047 = vunpack.c.h.b16 %v341
    %v1048 = vunpack.c.l.b16 %v342
    %v1049 = vunpack.c.h.b16 %v342
    %v1050 = vunpack.c.l.b16 %v343
    %v1051 = vunpack.c.h.b16 %v343
    %v1052 = vunpack.c.l.b16 %v344
    %v1053 = vunpack.c.h.b16 %v344
    %v1054 = vunpack.c.l.b16 %v345
    %v1055 = vunpack.c.h.b16 %v345
    %v1056 = vunpack.c.l.b16 %v346
    %v1057 = vunpack.c.h.b16 %v346
    %v1058 = vunpack.c.l.b16 %v347
    %v1059 = vunpack.c.h.b16 %v347
    %v1060 = vunpack.c.l.b16 %v348
    %v1061 = vunpack.c.h.b16 %v348
    %v1062 = vunpack.c.l.b16 %v349
    %v1063 = vunpack.c.h.b16 %v349
    %v1064 = vunpack.c.l.b16 %v350
    %v1065 = vunpack.c.h.b16 %v350
    %v1066 = vunpack.c.l.b16 %v351
    %v1067 = vunpack.c.h.b16 %v351
    %v1068 = vunpack.c.l.b16 %v352
    %v1069 = vunpack.c.h.b16 %v352
    %v1070 = vunpack.c.l.b16 %v353
    %v1071 = vunpack.c.h.b16 %v353
    %v1072 = vunpack.c.l.b16 %v354
    %v1073 = vunpack.c.h.b16 %v354
    %v1074 = vunpack.c.l.b16 %v355
    %v1075 = vunpack.c.h.b16 %v355
    %v1076 = vunpack.c.l.b16 %v356
    %v1077 = vunpack.c.h.b16 %v356
    %v1078 = vunpack.c.l.b16 %v357
    %v1079 = vunpack.c.h.b16 %v357
    %v1080 = vunpack.c.l.b16 %v358
    %v1081 = vunpack.c.h.b16 %v358
    %v1082 = vunpack.c.l.b16 %v359
    %v1083 = vunpack.c.h.b16 %v359
    %v1084 = vunpack.c.l.b16 %v360
    %v1085 = vunpack.c.h.b16 %v360
    %v1086 = vunpack.c.l.b16 %v361
    %v1087 = vunpack.c.h.b16 %v361
    %v1088 = vunpack.c.l.b16 %v362
    %v1089 = vunpack.c.h.b16 %v362
    %v1090 = vunpack.c.l.b16 %v363
    %v1091 = vunpack.c.h.b16 %v363
    %v1092 = vunpack.c.l.b16 %v364
    %v1093 = vunpack.c.h.b16 %v364
    %v1094 = vunpack.c.l.b16 %v365
    %v1095 = vunpack.c.h.b16 %v365
    %v1096 = vunpack.c.l.b16 %v366
    %v1097 = vunpack.c.h.b16 %v366
    %v1098 = vunpack.c.l.b16 %v367
    %v1099 = vunpack.c.h.b16 %v367
    %v1100 = vunpack.c.l.b16 %v368
    %v1101 = vunpack.c.h.b16 %v368
    %v1102 = vunpack.c.l.b16 %v369
    %v1103 = vunpack.c.h.b16 %v369
    %v1104 = vunpack.c.l.b16 %v370
    %v1105 = vunpack.c.h.b16 %v370
    %v1106 = vunpack.c.l.b16 %v371
    %v1107 = vunpack.c.h.b16 %v371
    %v1108 = vunpack.c.l.b16 %v372
    %v1109 = vunpack.c.h.b16 %v372
    %v1110 = vunpack.c.l.b16 %v373
    %v1111 = vunpack.c.h.b16 %v373
    %v1112 = vunpack.c.l.b16 %v374
    %v1113 = vunpack.c.h.b16 %v374
    %v1114 = vunpack.c.l.b16 %v375
    %v1115 = vunpack.c.h.b16 %v375
    %v1116 = vunpack.c.l.b16 %v376
    %v1117 = vunpack.c.h.b16 %v376
    %v1118 = vunpack.c.l.b16 %v377
    %v1119 = vunpack.c.h.b16 %v377
    %v1120 = vunpack.c.l.b16 %v378
    %v1121 = vunpack.c.h.b16 %v378
    %v1122 = vunpack.c.l.b16 %v379
    %v1123 = vunpack.c.h.b16 %v379
    %v1124 = vunpack.c.l.b16 %v380
    %v1125 = vunpack.c.h.b16 %v380
    %v1126 = vunpack.c.l.b16 %v381
    %v1127 = vunpack.c.h.b16 %v381
    %v1128 = vunpack.c.l.b16 %v382
    %v1129 = vunpack.c.h.b16 %v382
    %v1130 = vunpack.c.l.b16 %v383
    %v1131 = vunpack.c.h.b16 %v383
    %v1132 = vunpack.c.l.b16 %v384
    %v1133 = vunpack.c.h.b16 %v384
    %v1134 = vunpack.c.l.b16 %v385
    %v1135 = vunpack.c.h.b16 %v385
    %v1136 = vunpack.c.l.b16 %v386
    %v1137 = vunpack.c.h.b16 %v386
    %v1138 = vunpack.c.l.b16 %v387
    %v1139 = vunpack.c.h.b16 %v387
    %v1140 = vunpack.c.l.b16 %v388
    %v1141 = vunpack.c.h.b16 %v388
    %v1142 = vunpack.c.l.b16 %v389
    %v1143 = vunpack.c.h.b16 %v389
    %v1144 = vunpack.c.l.b16 %v390
    %v1145 = vunpack.c.h.b16 %v390
    %v1146 = vunpack.c.l.b16 %v391
    %v1147 = vunpack.c.h.b16 %v391
    %v1148 = vunpack.c.l.b16 %v392
    %v1149 = vunpack.c.h.b16 %v392
    %v1150 = vunpack.c.l.b16 %v393
    %v1151 = vunpack.c.h.b16 %v393
    %v1152 = vunpack.c.l.b16 %v394
    %v1153 = vunpack.c.h.b16 %v394
    %v1154 = vunpack.c.l.b16 %v395
    %v1155 = vunpack.c.h.b16 %v395
    %v1156 = vunpack.c.l.b16 %v396
    %v1157 = vunpack.c.h.b16 %v396
    %v1158 = vunpack.c.l.b16 %v397
    %v1159 = vunpack.c.h.b16 %v397
    %v1160 = vunpack.c.l.b16 %v398
    %v1161 = vunpack.c.h.b16 %v398
    %v1162 = vunpack.c.l.b16 %v399
    %v1163 = vunpack.c.h.b16 %v399
    %v1164 = vunpack.c.l.b16 %v400
    %v1165 = vunpack.c.h.b16 %v400
    %v1166 = vunpack.c.l.b16 %v401
    %v1167 = vunpack.c.h.b16 %v401
    %v1168 = vunpack.c.l.b16 %v402
    %v1169 = vunpack.c.h.b16 %v402
    %v1170 = vunpack.c.l.b16 %v403
    %v1171 = vunpack.c.h.b16 %v403
    %v1172 = vunpack.c.l.b16 %v404
    %v1173 = vunpack.c.h.b16 %v404
    %v1174 = vunpack.c.l.b16 %v405
    %v1175 = vunpack.c.h.b16 %v405
    %v1176 = vunpack.c.l.b16 %v406
    %v1177 = vunpack.c.h.b16 %v406
    %v1178 = vunpack.c.l.b16 %v407
    %v1179 = vunpack.c.h.b16 %v407
    %v1180 = vunpack.c.l.b16 %v408
    %v1181 = vunpack.c.h.b16 %v408
    %v1182 = vunpack.c.l.b16 %v409
    %v1183 = vunpack.c.h.b16 %v409
    %v1184 = vunpack.c.l.b16 %v410
    %v1185 = vunpack.c.h.b16 %v410
    %v1186 = vunpack.c.l.b16 %v411
    %v1187 = vunpack.c.h.b16 %v411
    %v1188 = vunpack.c.l.b16 %v412
    %v1189 = vunpack.c.h.b16 %v412
    %v1190 = vunpack.c.l.b16 %v413
    %v1191 = vunpack.c.h.b16 %v413
    %v1192 = vunpack.c.l.b16 %v414
    %v1193 = vunpack.c.h.b16 %v414
    %v1194 = vunpack.c.l.b16 %v415
    %v1195 = vunpack.c.h.b16 %v415
    %v1196 = vunpack.c.l.b16 %v416
    %v1197 = vunpack.c.h.b16 %v416
    %v1198 = vunpack.c.l.b16 %v417
    %v1199 = vunpack.c.h.b16 %v417
    %v1200 = vunpack.c.l.b16 %v418
    %v1201 = vunpack.c.h.b16 %v418
    %v1202 = vunpack.c.l.b16 %v419
    %v1203 = vunpack.c.h.b16 %v419
    %v1204 = vunpack.c.l.b16 %v420
    %v1205 = vunpack.c.h.b16 %v420
    %v1206 = vunpack.c.l.b16 %v421
    %v1207 = vunpack.c.h.b16 %v421
    %v1208 = vunpack.c.l.b16 %v422
    %v1209 = vunpack.c.h.b16 %v422
    %v1210 = vunpack.c.l.b16 %v423
    %v1211 = vunpack.c.h.b16 %v423
    %v1212 = vunpack.c.l.b16 %v424
    %v1213 = vunpack.c.h.b16 %v424
    %v1214 = vunpack.c.l.b16 %v425
    %v1215 = vunpack.c.h.b16 %v425
    %v1216 = vunpack.c.l.b16 %v426
    %v1217 = vunpack.c.h.b16 %v426
    %v1218 = vunpack.c.l.b16 %v427
    %v1219 = vunpack.c.h.b16 %v427
    %v1220 = vunpack.c.l.b16 %v428
    %v1221 = vunpack.c.h.b16 %v428
    %v1222 = vunpack.c.l.b16 %v429
    %v1223 = vunpack.c.h.b16 %v429
    %v1224 = vunpack.c.l.b16 %v430
    %v1225 = vunpack.c.h.b16 %v430
    %v1226 = vunpack.c.l.b16 %v431
    %v1227 = vunpack.c.h.b16 %v431
    %v1228 = vunpack.c.l.b16 %v432
    %v1229 = vunpack.c.h.b16 %v432
    %v1230 = vunpack.c.l.b16 %v433
    %v1231 = vunpack.c.h.b16 %v433
    %v1232 = vunpack.c.l.b16 %v434
    %v1233 = vunpack.c.h.b16 %v434
    %v1234 = vunpack.c.l.b16 %v435
    %v1235 = vunpack.c.h.b16 %v435
    %v1236 = vunpack.c.l.b16 %v436
    %v1237 = vunpack.c.h.b16 %v436
    %v1238 = vunpack.c.l.b16 %v437
    %v1239 = vunpack.c.h.b16 %v437
    %v1240 = vunpack.c.l.b16 %v438
    %v1241 = vunpack.c.h.b16 %v438
    %v1242 = vunpack.c.l.b16 %v439
    %v1243 = vunpack.c.h.b16 %v439
    %v1244 = vunpack.c.l.b16 %v440
    %v1245 = vunpack.c.h.b16 %v440
    %v1246 = vunpack.c.l.b16 %v441
    %v1247 = vunpack.c.h.b16 %v441
    %v1248 = vunpack.c.l.b16 %v442
    %v1249 = vunpack.c.h.b16 %v442
    %v1250 = vunpack.c.l.b16 %v443
    %v1251 = vunpack.c.h.b16 %v443
    %v1252 = vunpack.c.l.b16 %v444
    %v1253 = vunpack.c.h.b16 %v444
    %v1254 = vunpack.c.l.b16 %v445
    %v1255 = vunpack.c.h.b16 %v445
    %v1256 = vunpack.c.l.b16 %v446
    %v1257 = vunpack.c.h.b16 %v446
    %v1258 = vunpack.c.l.b16 %v447
    %v1259 = vunpack.c.h.b16 %v447
    %v1260 = vunpack.c.l.b16 %v448
    %v1261 = vunpack.c.h.b16 %v448
    %v1262 = vunpack.c.l.b16 %v449
    %v1263 = vunpack.c.h.b16 %v449
    %v1264 = vpack.c.b16 %v760, %v752
    %v1265 = vpack.c.b16 %v761, %v753
    %v1266 = vpack.c.b16 %v762, %v754
    %v1267 = vpack.c.b16 %v763, %v755
    %v1268 = vpack.c.b16 %v764, %v756
    %v1269 = vpack.c.b16 %v765, %v757
    %v1270 = vpack.c.b16 %v766, %v758
    %v1271 = vpack.c.b16 %v767, %v759
    %v1272 = vpack.c.b16 %v776, %v768
    %v1273 = vpack.c.b16 %v777, %v769
    %v1274 = vpack.c.b16 %v778, %v770
    %v1275 = vpack.c.b16 %v779, %v771
    %v1276 = vpack.c.b16 %v780, %v772
    %v1277 = vpack.c.b16 %v781, %v773
    %v1278 = vpack.c.b16 %v782, %v774
    %v1279 = vpack.c.b16 %v783, %v775
    %v1280 = vpack.c.b16 %v792, %v784
    %v1281 = vpack.c.b16 %v793, %v785
    %v1282 = vpack.c.b16 %v794, %v786
    %v1283 = vpack.c.b16 %v795, %v787
    %v1284 = vpack.c.b16 %v796, %v788
    %v1285 = vpack.c.b16 %v797, %v789
    %v1286 = vpack.c.b16 %v798, %v790
    %v1287 = vpack.c.b16 %v799, %v791
    %v1288 = vpack.c.b16 %v808, %v800
    %v1289 = vpack.c.b16 %v809, %v801
    %v1290 = vpack.c.b16 %v810, %v802
    %v1291 = vpack.c.b16 %v811, %v803
    %v1292 = vpack.c.b16 %v812, %v804
    %v1293 = vpack.c.b16 %v813, %v805
    %v1294 = vpack.c.b16 %v814, %v806
    %v1295 = vpack.c.b16 %v815, %v807
    %v1296 = vpack.c.b16 %v824, %v816
    %v1297 = vpack.c.b16 %v825, %v817
    %v1298 = vpack.c.b16 %v826, %v818
    %v1299 = vpack.c.b16 %v827, %v819
    %v1300 = vpack.c.b16 %v828, %v820
    %v1301 = vpack.c.b16 %v829, %v821
    %v1302 = vpack.c.b16 %v830, %v822
    %v1303 = vpack.c.b16 %v831, %v823
    %v1304 = vpack.c.b16 %v840, %v832
    %v1305 = vpack.c.b16 %v841, %v833
    %v1306 = vpack.c.b16 %v842, %v834
    %v1307 = vpack.c.b16 %v843, %v835
    %v1308 = vpack.c.b16 %v844, %v836
    %v1309 = vpack.c.b16 %v845, %v837
    %v1310 = vpack.c.b16 %v846, %v838
    %v1311 = vpack.c.b16 %v847, %v839
    %v1312 = vpack.c.b16 %v856, %v848
    %v1313 = vpack.c.b16 %v857, %v849
    %v1314 = vpack.c.b16 %v858, %v850
    %v1315 = vpack.c.b16 %v859, %v851
    %v1316 = vpack.c.b16 %v860, %v852
    %v1317 = vpack.c.b16 %v861, %v853
    %v1318 = vpack.c.b16 %v862, %v854
    %v1319 = vpack.c.b16 %v863, %v855
    %v1320 = vpack.c.b16 %v872, %v864
    %v1321 = vpack.c.b16 %v873, %v865
    %v1322 = vpack.c.b16 %v874, %v866
    %v1323 = vpack.c.b16 %v875, %v867
    %v1324 = vpack.c.b16 %v876, %v868
    %v1325 = vpack.c.b16 %v877, %v869
    %v1326 = vpack.c.b16 %v878, %v870
    %v1327 = vpack.c.b16 %v879, %v871
    %v1328 = vpack.c.b16 %v888, %v880
    %v1329 = vpack.c.b16 %v889, %v881
    %v1330 = vpack.c.b16 %v890, %v882
    %v1331 = vpack.c.b16 %v891, %v883
    %v1332 = vpack.c.b16 %v892, %v884
    %v1333 = vpack.c.b16 %v893, %v885
    %v1334 = vpack.c.b16 %v894, %v886
    %v1335 = vpack.c.b16 %v895, %v887
    %v1336 = vpack.c.b16 %v904, %v896
    %v1337 = vpack.c.b16 %v905, %v897
    %v1338 = vpack.c.b16 %v906, %v898
    %v1339 = vpack.c.b16 %v907, %v899
    %v1340 = vpack.c.b16 %v908, %v900
    %v1341 = vpack.c.b16 %v909, %v901
    %v1342 = vpack.c.b16 %v910, %v902
    %v1343 = vpack.c.b16 %v911, %v903
    %v1344 = vpack.c.b16 %v920, %v912
    %v1345 = vpack.c.b16 %v921, %v913
    %v1346 = vpack.c.b16 %v922, %v914
    %v1347 = vpack.c.b16 %v923, %v915
    %v1348 = vpack.c.b16 %v924, %v916
    %v1349 = vpack.c.b16 %v925, %v917
    %v1350 = vpack.c.b16 %v926, %v918
    %v1351 = vpack.c.b16 %v927, %v919
    %v1352 = vpack.c.b16 %v936, %v928
    %v1353 = vpack.c.b16 %v937, %v929
    %v1354 = vpack.c.b16 %v938, %v930
    %v1355 = vpack.c.b16 %v939, %v931
    %v1356 = vpack.c.b16 %v940, %v932
    %v1357 = vpack.c.b16 %v941, %v933
    %v1358 = vpack.c.b16 %v942, %v934
    %v1359 = vpack.c.b16 %v943, %v935
    %v1360 = vpack.c.b16 %v952, %v944
    %v1361 = vpack.c.b16 %v953, %v945
    %v1362 = vpack.c.b16 %v954, %v946
    %v1363 = vpack.c.b16 %v955, %v947
    %v1364 = vpack.c.b16 %v956, %v948
    %v1365 = vpack.c.b16 %v957, %v949
    %v1366 = vpack.c.b16 %v958, %v950
    %v1367 = vpack.c.b16 %v959, %v951
    %v1368 = vpack.c.b16 %v968, %v960
    %v1369 = vpack.c.b16 %v969, %v961
    %v1370 = vpack.c.b16 %v970, %v962
    %v1371 = vpack.c.b16 %v971, %v963
    %v1372 = vpack.c.b16 %v972, %v964
    %v1373 = vpack.c.b16 %v973, %v965
    %v1374 = vpack.c.b16 %v974, %v966
    %v1375 = vpack.c.b16 %v975, %v967
    %v1376 = vpack.c.b16 %v984, %v976
    %v1377 = vpack.c.b16 %v985, %v977
    %v1378 = vpack.c.b16 %v986, %v978
    %v1379 = vpack.c.b16 %v987, %v979
    %v1380 = vpack.c.b16 %v988, %v980
    %v1381 = vpack.c.b16 %v989, %v981
    %v1382 = vpack.c.b16 %v990, %v982
    %v1383 = vpack.c.b16 %v991, %v983
    %v1384 = vpack.c.b16 %v1000, %v992
    %v1385 = vpack.c.b16 %v1001, %v993
    %v1386 = vpack.c.b16 %v1002, %v994
    %v1387 = vpack.c.b16 %v1003, %v995
    %v1388 = vpack.c.b16 %v1004, %v996
    %v1389 = vpack.c.b16 %v1005, %v997
    %v1390 = vpack.c.b16 %v1006, %v998
    %v1391 = vpack.c.b16 %v1007, %v999
    %v1392 = vpack.c.b16 %v1016, %v1008
    %v1393 = vpack.c.b16 %v1017, %v1009
    %v1394 = vpack.c.b16 %v1018, %v1010
    %v1395 = vpack.c.b16 %v1019, %v1011
    %v1396 = vpack.c.b16 %v1020, %v1012
    %v1397 = vpack.c.b16 %v1021, %v1013
    %v1398 = vpack.c.b16 %v1022, %v1014
    %v1399 = vpack.c.b16 %v1023, %v1015
    %v1400 = vpack.c.b16 %v1032, %v1024
    %v1401 = vpack.c.b16 %v1033, %v1025
    %v1402 = vpack.c.b16 %v1034, %v1026
    %v1403 = vpack.c.b16 %v1035, %v1027
    %v1404 = vpack.c.b16 %v1036, %v1028
    %v1405 = vpack.c.b16 %v1037, %v1029
    %v1406 = vpack.c.b16 %v1038, %v1030
    %v1407 = vpack.c.b16 %v1039, %v1031
    %v1408 = vpack.c.b16 %v1048, %v1040
    %v1409 = vpack.c.b16 %v1049, %v1041
    %v1410 = vpack.c.b16 %v1050, %v1042
    %v1411 = vpack.c.b16 %v1051, %v1043
    %v1412 = vpack.c.b16 %v1052, %v1044
    %v1413 = vpack.c.b16 %v1053, %v1045
    %v1414 = vpack.c.b16 %v1054, %v1046
    %v1415 = vpack.c.b16 %v1055, %v1047
    %v1416 = vpack.c.b16 %v1064, %v1056
    %v1417 = vpack.c.b16 %v1065, %v1057
    %v1418 = vpack.c.b16 %v1066, %v1058
    %v1419 = vpack.c.b16 %v1067, %v1059
    %v1420 = vpack.c.b16 %v1068, %v1060
    %v1421 = vpack.c.b16 %v1069, %v1061
    %v1422 = vpack.c.b16 %v1070, %v1062
    %v1423 = vpack.c.b16 %v1071, %v1063
    %v1424 = vpack.c.b16 %v1080, %v1072
    %v1425 = vpack.c.b16 %v1081, %v1073
    %v1426 = vpack.c.b16 %v1082, %v1074
    %v1427 = vpack.c.b16 %v1083, %v1075
    %v1428 = vpack.c.b16 %v1084, %v1076
    %v1429 = vpack.c.b16 %v1085, %v1077
    %v1430 = vpack.c.b16 %v1086, %v1078
    %v1431 = vpack.c.b16 %v1087, %v1079
    %v1432 = vpack.c.b16 %v1096, %v1088
    %v1433 = vpack.c.b16 %v1097, %v1089
    %v1434 = vpack.c.b16 %v1098, %v1090
    %v1435 = vpack.c.b16 %v1099, %v1091
    %v1436 = vpack.c.b16 %v1100, %v1092
    %v1437 = vpack.c.b16 %v1101, %v1093
    %v1438 = vpack.c.b16 %v1102, %v1094
    %v1439 = vpack.c.b16 %v1103, %v1095
    %v1440 = vpack.c.b16 %v1112, %v1104
    %v1441 = vpack.c.b16 %v1113, %v1105
    %v1442 = vpack.c.b16 %v1114, %v1106
    %v1443 = vpack.c.b16 %v1115, %v1107
    %v1444 = vpack.c.b16 %v1116, %v1108
    %v1445 = vpack.c.b16 %v1117, %v1109
    %v1446 = vpack.c.b16 %v1118, %v1110
    %v1447 = vpack.c.b16 %v1119, %v1111
    %v1448 = vpack.c.b16 %v1128, %v1120
    %v1449 = vpack.c.b16 %v1129, %v1121
    %v1450 = vpack.c.b16 %v1130, %v1122
    %v1451 = vpack.c.b16 %v1131, %v1123
    %v1452 = vpack.c.b16 %v1132, %v1124
    %v1453 = vpack.c.b16 %v1133, %v1125
    %v1454 = vpack.c.b16 %v1134, %v1126
    %v1455 = vpack.c.b16 %v1135, %v1127
    %v1456 = vpack.c.b16 %v1144, %v1136
    %v1457 = vpack.c.b16 %v1145, %v1137
    %v1458 = vpack.c.b16 %v1146, %v1138
    %v1459 = vpack.c.b16 %v1147, %v1139
    %v1460 = vpack.c.b16 %v1148, %v1140
    %v1461 = vpack.c.b16 %v1149, %v1141
    %v1462 = vpack.c.b16 %v1150, %v1142
    %v1463 = vpack.c.b16 %v1151, %v1143
    %v1464 = vpack.c.b16 %v1160, %v1152
    %v1465 = vpack.c.b16 %v1161, %v1153
    %v1466 = vpack.c.b16 %v1162, %v1154
    %v1467 = vpack.c.b16 %v1163, %v1155
    %v1468 = vpack.c.b16 %v1164, %v1156
    %v1469 = vpack.c.b16 %v1165, %v1157
    %v1470 = vpack.c.b16 %v1166, %v1158
    %v1471 = vpack.c.b16 %v1167, %v1159
    %v1472 = vpack.c.b16 %v1176, %v1168
    %v1473 = vpack.c.b16 %v1177, %v1169
    %v1474 = vpack.c.b16 %v1178, %v1170
    %v1475 = vpack.c.b16 %v1179, %v1171
    %v1476 = vpack.c.b16 %v1180, %v1172
    %v1477 = vpack.c.b16 %v1181, %v1173
    %v1478 = vpack.c.b16 %v1182, %v1174
    %v1479 = vpack.c.b16 %v1183, %v1175
    %v1480 = vpack.c.b16 %v1192, %v1184
    %v1481 = vpack.c.b16 %v1193, %v1185
    %v1482 = vpack.c.b16 %v1194, %v1186
    %v1483 = vpack.c.b16 %v1195, %v1187
    %v1484 = vpack.c.b16 %v1196, %v1188
    %v1485 = vpack.c.b16 %v1197, %v1189
    %v1486 = vpack.c.b16 %v1198, %v1190
    %v1487 = vpack.c.b16 %v1199, %v1191
    %v1488 = vpack.c.b16 %v1208, %v1200
    %v1489 = vpack.c.b16 %v1209, %v1201
    %v1490 = vpack.c.b16 %v1210, %v1202
    %v1491 = vpack.c.b16 %v1211, %v1203
    %v1492 = vpack.c.b16 %v1212, %v1204
    %v1493 = vpack.c.b16 %v1213, %v1205
    %v1494 = vpack.c.b16 %v1214, %v1206
    %v1495 = vpack.c.b16 %v1215, %v1207
    %v1496 = vpack.c.b16 %v1224, %v1216
    %v1497 = vpack.c.b16 %v1225, %v1217
    %v1498 = vpack.c.b16 %v1226, %v1218
    %v1499 = vpack.c.b16 %v1227, %v1219
    %v1500 = vpack.c.b16 %v1228, %v1220
    %v1501 = vpack.c.b16 %v1229, %v1221
    %v1502 = vpack.c.b16 %v1230, %v1222
    %v1503 = vpack.c.b16 %v1231, %v1223
    %v1504 = vpack.c.b16 %v1240, %v1232
    %v1505 = vpack.c.b16 %v1241, %v1233
    %v1506 = vpack.c.b16 %v1242, %v1234
    %v1507 = vpack.c.b16 %v1243, %v1235
    %v1508 = vpack.c.b16 %v1244, %v1236
    %v1509 = vpack.c.b16 %v1245, %v1237
    %v1510 = vpack.c.b16 %v1246, %v1238
    %v1511 = vpack.c.b16 %v1247, %v1239
    %v1512 = vpack.c.b16 %v1256, %v1248
    %v1513 = vpack.c.b16 %v1257, %v1249
    %v1514 = vpack.c.b16 %v1258, %v1250
    %v1515 = vpack.c.b16 %v1259, %v1251
    %v1516 = vpack.c.b16 %v1260, %v1252
    %v1517 = vpack.c.b16 %v1261, %v1253
    %v1518 = vpack.c.b16 %v1262, %v1254
    %v1519 = vpack.c.b16 %v1263, %v1255
    %1776 = vmatprep.subr.bf16.mxu0 %v1265
    %1777 = vmatpush1.bf16.msra.mxu0 %v1264
    %1778 = vmatprep.subr.bf16.mxu0 %v1273
    %1779 = vmatpush1.bf16.msra.mxu0 %v1272
    %1780 = vmatprep.subr.bf16.mxu0 %v1281
    %1781 = vmatpush1.bf16.msra.mxu0 %v1280
    %1782 = vmatprep.subr.bf16.mxu0 %v1289
    %1783 = vmatpush1.bf16.msra.mxu0 %v1288
    %1784 = vmatprep.subr.bf16.mxu0 %v1297
    %1785 = vmatpush1.bf16.msra.mxu0 %v1296
    %1786 = vmatprep.subr.bf16.mxu0 %v1305
    %1787 = vmatpush1.bf16.msra.mxu0 %v1304
    %1788 = vmatprep.subr.bf16.mxu0 %v1313
    %1789 = vmatpush1.bf16.msra.mxu0 %v1312
    %1790 = vmatprep.subr.bf16.mxu0 %v1321
    %1791 = vmatpush1.bf16.msra.mxu0 %v1320
    %1792 = vmatprep.subr.bf16.mxu0 %v1329
    %1793 = vmatpush1.bf16.msra.mxu0 %v1328
    %1794 = vmatprep.subr.bf16.mxu0 %v1337
    %1795 = vmatpush1.bf16.msra.mxu0 %v1336
    %1796 = vmatprep.subr.bf16.mxu0 %v1345
    %1797 = vmatpush1.bf16.msra.mxu0 %v1344
    %1798 = vmatprep.subr.bf16.mxu0 %v1353
    %1799 = vmatpush1.bf16.msra.mxu0 %v1352
    %1800 = vmatprep.subr.bf16.mxu0 %v1361
    %1801 = vmatpush1.bf16.msra.mxu0 %v1360
    %1802 = vmatprep.subr.bf16.mxu0 %v1369
    %1803 = vmatpush1.bf16.msra.mxu0 %v1368
    %1804 = vmatprep.subr.bf16.mxu0 %v1377
    %1805 = vmatpush1.bf16.msra.mxu0 %v1376
    %1806 = vmatprep.subr.bf16.mxu0 %v1385
    %1807 = vmatpush1.bf16.msra.mxu0 %v1384
    %1808 = vmatprep.mubr.bf16.mxu0 %v452
    %1809 = vmatmul.mubr.bf16.gmra.mrb[0].mxu0 %v451
    %v1810 = vpop.f32.mrb[0].mxu0
    %v1811 = vadd.f32 %v459, %v1810
    %v1812 = vpop.f32.mrb[0].mxu0
    %v1813 = vadd.f32 %v463, %v1812
    %v1814 = vpop.f32.mrb[0].mxu0
    %v1815 = vpop.f32.mrb[0].mxu0
    %1816 = vdwg.mxu0
    %1817 = vmatprep.subr.bf16.mxu0 %v1393
    %1818 = vmatpush1.bf16.msra.mxu0 %v1392
    %1819 = vmatprep.subr.bf16.mxu0 %v1401
    %1820 = vmatpush1.bf16.msra.mxu0 %v1400
    %1821 = vmatprep.subr.bf16.mxu0 %v1409
    %1822 = vmatpush1.bf16.msra.mxu0 %v1408
    %1823 = vmatprep.subr.bf16.mxu0 %v1417
    %1824 = vmatpush1.bf16.msra.mxu0 %v1416
    %1825 = vmatprep.subr.bf16.mxu0 %v1425
    %1826 = vmatpush1.bf16.msra.mxu0 %v1424
    %1827 = vmatprep.subr.bf16.mxu0 %v1433
    %1828 = vmatpush1.bf16.msra.mxu0 %v1432
    %1829 = vmatprep.subr.bf16.mxu0 %v1441
    %1830 = vmatpush1.bf16.msra.mxu0 %v1440
    %1831 = vmatprep.subr.bf16.mxu0 %v1449
    %1832 = vmatpush1.bf16.msra.mxu0 %v1448
    %1833 = vmatprep.subr.bf16.mxu0 %v1457
    %1834 = vmatpush1.bf16.msra.mxu0 %v1456
    %1835 = vmatprep.subr.bf16.mxu0 %v1465
    %1836 = vmatpush1.bf16.msra.mxu0 %v1464
    %1837 = vmatprep.subr.bf16.mxu0 %v1473
    %1838 = vmatpush1.bf16.msra.mxu0 %v1472
    %1839 = vmatprep.subr.bf16.mxu0 %v1481
    %1840 = vmatpush1.bf16.msra.mxu0 %v1480
    %1841 = vmatprep.subr.bf16.mxu0 %v1489
    %1842 = vmatpush1.bf16.msra.mxu0 %v1488
    %1843 = vmatprep.subr.bf16.mxu0 %v1497
    %1844 = vmatpush1.bf16.msra.mxu0 %v1496
    %1845 = vmatprep.subr.bf16.mxu0 %v1505
    %1846 = vmatpush1.bf16.msra.mxu0 %v1504
    %1847 = vmatprep.subr.bf16.mxu0 %v1513
    %1848 = vmatpush1.bf16.msra.mxu0 %v1512
    %1849 = vmatprep.mubr.bf16.mxu0 %v454
    %1850 = vmatmul.mubr.bf16.gmra.mrb[0].mxu0 %v453
    %v1851 = vpop.f32.mrb[0].mxu0
    %v1852 = vadd.f32 %v1811, %v1851
    %v1853 = vpop.f32.mrb[0].mxu0
    %v1854 = vadd.f32 %v1813, %v1853
    %v1855 = vpop.f32.mrb[0].mxu0
    %v1856 = vpop.f32.mrb[0].mxu0
    %1857 = vdwg.mxu0
    %1858 = vmatprep.subr.bf16.mxu0 %v1267
    %1859 = vmatpush1.bf16.msra.mxu0 %v1266
    %1860 = vmatprep.subr.bf16.mxu0 %v1275
    %1861 = vmatpush1.bf16.msra.mxu0 %v1274
    %1862 = vmatprep.subr.bf16.mxu0 %v1283
    %1863 = vmatpush1.bf16.msra.mxu0 %v1282
    %1864 = vmatprep.subr.bf16.mxu0 %v1291
    %1865 = vmatpush1.bf16.msra.mxu0 %v1290
    %1866 = vmatprep.subr.bf16.mxu0 %v1299
    %1867 = vmatpush1.bf16.msra.mxu0 %v1298
    %1868 = vmatprep.subr.bf16.mxu0 %v1307
    %1869 = vmatpush1.bf16.msra.mxu0 %v1306
    %1870 = vmatprep.subr.bf16.mxu0 %v1315
    %1871 = vmatpush1.bf16.msra.mxu0 %v1314
    %1872 = vmatprep.subr.bf16.mxu0 %v1323
    %1873 = vmatpush1.bf16.msra.mxu0 %v1322
    %1874 = vmatprep.subr.bf16.mxu0 %v1331
    %1875 = vmatpush1.bf16.msra.mxu0 %v1330
    %1876 = vmatprep.subr.bf16.mxu0 %v1339
    %1877 = vmatpush1.bf16.msra.mxu0 %v1338
    %1878 = vmatprep.subr.bf16.mxu0 %v1347
    %1879 = vmatpush1.bf16.msra.mxu0 %v1346
    %1880 = vmatprep.subr.bf16.mxu0 %v1355
    %1881 = vmatpush1.bf16.msra.mxu0 %v1354
    %1882 = vmatprep.subr.bf16.mxu0 %v1363
    %1883 = vmatpush1.bf16.msra.mxu0 %v1362
    %1884 = vmatprep.subr.bf16.mxu0 %v1371
    %1885 = vmatpush1.bf16.msra.mxu0 %v1370
    %1886 = vmatprep.subr.bf16.mxu0 %v1379
    %1887 = vmatpush1.bf16.msra.mxu0 %v1378
    %1888 = vmatprep.subr.bf16.mxu0 %v1387
    %1889 = vmatpush1.bf16.msra.mxu0 %v1386
    %1890 = vmatprep.mubr.bf16.mxu0 %v452
    %1891 = vmatmul.mubr.bf16.gmra.mrb[0].mxu0 %v451
    %v1892 = vpop.f32.mrb[0].mxu0
    %v1893 = vadd.f32 %v467, %v1892
    %v1894 = vpop.f32.mrb[0].mxu0
    %v1895 = vadd.f32 %v471, %v1894
    %v1896 = vpop.f32.mrb[0].mxu0
    %v1897 = vpop.f32.mrb[0].mxu0
    %1898 = vdwg.mxu0
    %1899 = vmatprep.subr.bf16.mxu0 %v1395
    %1900 = vmatpush1.bf16.msra.mxu0 %v1394
    %1901 = vmatprep.subr.bf16.mxu0 %v1403
    %1902 = vmatpush1.bf16.msra.mxu0 %v1402
    %1903 = vmatprep.subr.bf16.mxu0 %v1411
    %1904 = vmatpush1.bf16.msra.mxu0 %v1410
    %1905 = vmatprep.subr.bf16.mxu0 %v1419
    %1906 = vmatpush1.bf16.msra.mxu0 %v1418
    %1907 = vmatprep.subr.bf16.mxu0 %v1427
    %1908 = vmatpush1.bf16.msra.mxu0 %v1426
    %1909 = vmatprep.subr.bf16.mxu0 %v1435
    %1910 = vmatpush1.bf16.msra.mxu0 %v1434
    %1911 = vmatprep.subr.bf16.mxu0 %v1443
    %1912 = vmatpush1.bf16.msra.mxu0 %v1442
    %1913 = vmatprep.subr.bf16.mxu0 %v1451
    %1914 = vmatpush1.bf16.msra.mxu0 %v1450
    %1915 = vmatprep.subr.bf16.mxu0 %v1459
    %1916 = vmatpush1.bf16.msra.mxu0 %v1458
    %1917 = vmatprep.subr.bf16.mxu0 %v1467
    %1918 = vmatpush1.bf16.msra.mxu0 %v1466
    %1919 = vmatprep.subr.bf16.mxu0 %v1475
    %1920 = vmatpush1.bf16.msra.mxu0 %v1474
    %1921 = vmatprep.subr.bf16.mxu0 %v1483
    %1922 = vmatpush1.bf16.msra.mxu0 %v1482
    %1923 = vmatprep.subr.bf16.mxu0 %v1491
    %1924 = vmatpush1.bf16.msra.mxu0 %v1490
    %1925 = vmatprep.subr.bf16.mxu0 %v1499
    %1926 = vmatpush1.bf16.msra.mxu0 %v1498
    %1927 = vmatprep.subr.bf16.mxu0 %v1507
    %1928 = vmatpush1.bf16.msra.mxu0 %v1506
    %1929 = vmatprep.subr.bf16.mxu0 %v1515
    %1930 = vmatpush1.bf16.msra.mxu0 %v1514
    %1931 = vmatprep.mubr.bf16.mxu0 %v454
    %1932 = vmatmul.mubr.bf16.gmra.mrb[0].mxu0 %v453
    %v1933 = vpop.f32.mrb[0].mxu0
    %v1934 = vadd.f32 %v1893, %v1933
    %v1935 = vpop.f32.mrb[0].mxu0
    %v1936 = vadd.f32 %v1895, %v1935
    %v1937 = vpop.f32.mrb[0].mxu0
    %v1938 = vpop.f32.mrb[0].mxu0
    %1939 = vdwg.mxu0
    %1940 = vmatprep.subr.bf16.mxu0 %v1269
    %1941 = vmatpush1.bf16.msra.mxu0 %v1268
    %1942 = vmatprep.subr.bf16.mxu0 %v1277
    %1943 = vmatpush1.bf16.msra.mxu0 %v1276
    %1944 = vmatprep.subr.bf16.mxu0 %v1285
    %1945 = vmatpush1.bf16.msra.mxu0 %v1284
    %1946 = vmatprep.subr.bf16.mxu0 %v1293
    %1947 = vmatpush1.bf16.msra.mxu0 %v1292
    %1948 = vmatprep.subr.bf16.mxu0 %v1301
    %1949 = vmatpush1.bf16.msra.mxu0 %v1300
    %1950 = vmatprep.subr.bf16.mxu0 %v1309
    %1951 = vmatpush1.bf16.msra.mxu0 %v1308
    %1952 = vmatprep.subr.bf16.mxu0 %v1317
    %1953 = vmatpush1.bf16.msra.mxu0 %v1316
    %1954 = vmatprep.subr.bf16.mxu0 %v1325
    %1955 = vmatpush1.bf16.msra.mxu0 %v1324
    %1956 = vmatprep.subr.bf16.mxu0 %v1333
    %1957 = vmatpush1.bf16.msra.mxu0 %v1332
    %1958 = vmatprep.subr.bf16.mxu0 %v1341
    %1959 = vmatpush1.bf16.msra.mxu0 %v1340
    %1960 = vmatprep.subr.bf16.mxu0 %v1349
    %1961 = vmatpush1.bf16.msra.mxu0 %v1348
    %1962 = vmatprep.subr.bf16.mxu0 %v1357
    %1963 = vmatpush1.bf16.msra.mxu0 %v1356
    %1964 = vmatprep.subr.bf16.mxu0 %v1365
    %1965 = vmatpush1.bf16.msra.mxu0 %v1364
    %1966 = vmatprep.subr.bf16.mxu0 %v1373
    %1967 = vmatpush1.bf16.msra.mxu0 %v1372
    %1968 = vmatprep.subr.bf16.mxu0 %v1381
    %1969 = vmatpush1.bf16.msra.mxu0 %v1380
    %1970 = vmatprep.subr.bf16.mxu0 %v1389
    %1971 = vmatpush1.bf16.msra.mxu0 %v1388
    %1972 = vmatprep.mubr.bf16.mxu0 %v452
    %1973 = vmatmul.mubr.bf16.gmra.mrb[0].mxu0 %v451
    %v1974 = vpop.f32.mrb[0].mxu0
    %v1975 = vadd.f32 %v475, %v1974
    %v1976 = vpop.f32.mrb[0].mxu0
    %v1977 = vadd.f32 %v479, %v1976
    %v1978 = vpop.f32.mrb[0].mxu0
    %v1979 = vpop.f32.mrb[0].mxu0
    %1980 = vdwg.mxu0
    %1981 = vmatprep.subr.bf16.mxu0 %v1397
    %1982 = vmatpush1.bf16.msra.mxu0 %v1396
    %1983 = vmatprep.subr.bf16.mxu0 %v1405
    %1984 = vmatpush1.bf16.msra.mxu0 %v1404
    %1985 = vmatprep.subr.bf16.mxu0 %v1413
    %1986 = vmatpush1.bf16.msra.mxu0 %v1412
    %1987 = vmatprep.subr.bf16.mxu0 %v1421
    %1988 = vmatpush1.bf16.msra.mxu0 %v1420
    %1989 = vmatprep.subr.bf16.mxu0 %v1429
    %1990 = vmatpush1.bf16.msra.mxu0 %v1428
    %1991 = vmatprep.subr.bf16.mxu0 %v1437
    %1992 = vmatpush1.bf16.msra.mxu0 %v1436
    %1993 = vmatprep.subr.bf16.mxu0 %v1445
    %1994 = vmatpush1.bf16.msra.mxu0 %v1444
    %1995 = vmatprep.subr.bf16.mxu0 %v1453
    %1996 = vmatpush1.bf16.msra.mxu0 %v1452
    %1997 = vmatprep.subr.bf16.mxu0 %v1461
    %1998 = vmatpush1.bf16.msra.mxu0 %v1460
    %1999 = vmatprep.subr.bf16.mxu0 %v1469
    %2000 = vmatpush1.bf16.msra.mxu0 %v1468
    %2001 = vmatprep.subr.bf16.mxu0 %v1477
    %2002 = vmatpush1.bf16.msra.mxu0 %v1476
    %2003 = vmatprep.subr.bf16.mxu0 %v1485
    %2004 = vmatpush1.bf16.msra.mxu0 %v1484
    %2005 = vmatprep.subr.bf16.mxu0 %v1493
    %2006 = vmatpush1.bf16.msra.mxu0 %v1492
    %2007 = vmatprep.subr.bf16.mxu0 %v1501
    %2008 = vmatpush1.bf16.msra.mxu0 %v1500
    %2009 = vmatprep.subr.bf16.mxu0 %v1509
    %2010 = vmatpush1.bf16.msra.mxu0 %v1508
    %2011 = vmatprep.subr.bf16.mxu0 %v1517
    %2012 = vmatpush1.bf16.msra.mxu0 %v1516
    %2013 = vmatprep.mubr.bf16.mxu0 %v454
    %2014 = vmatmul.mubr.bf16.gmra.mrb[0].mxu0 %v453
    %v2015 = vpop.f32.mrb[0].mxu0
    %v2016 = vadd.f32 %v1975, %v2015
    %v2017 = vpop.f32.mrb[0].mxu0
    %v2018 = vadd.f32 %v1977, %v2017
    %v2019 = vpop.f32.mrb[0].mxu0
    %v2020 = vpop.f32.mrb[0].mxu0
    %2021 = vdwg.mxu0
    %2022 = vmatprep.subr.bf16.mxu0 %v1271
    %2023 = vmatpush1.bf16.msra.mxu0 %v1270
    %2024 = vmatprep.subr.bf16.mxu0 %v1279
    %2025 = vmatpush1.bf16.msra.mxu0 %v1278
    %2026 = vmatprep.subr.bf16.mxu0 %v1287
    %2027 = vmatpush1.bf16.msra.mxu0 %v1286
    %2028 = vmatprep.subr.bf16.mxu0 %v1295
    %2029 = vmatpush1.bf16.msra.mxu0 %v1294
    %2030 = vmatprep.subr.bf16.mxu0 %v1303
    %2031 = vmatpush1.bf16.msra.mxu0 %v1302
    %2032 = vmatprep.subr.bf16.mxu0 %v1311
    %2033 = vmatpush1.bf16.msra.mxu0 %v1310
    %2034 = vmatprep.subr.bf16.mxu0 %v1319
    %2035 = vmatpush1.bf16.msra.mxu0 %v1318
    %2036 = vmatprep.subr.bf16.mxu0 %v1327
    %2037 = vmatpush1.bf16.msra.mxu0 %v1326
    %2038 = vmatprep.subr.bf16.mxu0 %v1335
    %2039 = vmatpush1.bf16.msra.mxu0 %v1334
    %2040 = vmatprep.subr.bf16.mxu0 %v1343
    %2041 = vmatpush1.bf16.msra.mxu0 %v1342
    %2042 = vmatprep.subr.bf16.mxu0 %v1351
    %2043 = vmatpush1.bf16.msra.mxu0 %v1350
    %2044 = vmatprep.subr.bf16.mxu0 %v1359
    %2045 = vmatpush1.bf16.msra.mxu0 %v1358
    %2046 = vmatprep.subr.bf16.mxu0 %v1367
    %2047 = vmatpush1.bf16.msra.mxu0 %v1366
    %2048 = vmatprep.subr.bf16.mxu0 %v1375
    %2049 = vmatpush1.bf16.msra.mxu0 %v1374
    %2050 = vmatprep.subr.bf16.mxu0 %v1383
    %2051 = vmatpush1.bf16.msra.mxu0 %v1382
    %2052 = vmatprep.subr.bf16.mxu0 %v1391
    %2053 = vmatpush1.bf16.msra.mxu0 %v1390
    %2054 = vmatprep.mubr.bf16.mxu0 %v452
    %2055 = vmatmul.mubr.bf16.gmra.mrb[0].mxu0 %v451
    %v2056 = vpop.f32.mrb[0].mxu0
    %v2057 = vadd.f32 %v483, %v2056
    %v2058 = vpop.f32.mrb[0].mxu0
    %v2059 = vadd.f32 %v487, %v2058
    %v2060 = vpop.f32.mrb[0].mxu0
    %v2061 = vpop.f32.mrb[0].mxu0
    %2062 = vdwg.mxu0
    %2063 = vmatprep.subr.bf16.mxu0 %v1399
    %2064 = vmatpush1.bf16.msra.mxu0 %v1398
    %2065 = vmatprep.subr.bf16.mxu0 %v1407
    %2066 = vmatpush1.bf16.msra.mxu0 %v1406
    %2067 = vmatprep.subr.bf16.mxu0 %v1415
    %2068 = vmatpush1.bf16.msra.mxu0 %v1414
    %2069 = vmatprep.subr.bf16.mxu0 %v1423
    %2070 = vmatpush1.bf16.msra.mxu0 %v1422
    %2071 = vmatprep.subr.bf16.mxu0 %v1431
    %2072 = vmatpush1.bf16.msra.mxu0 %v1430
    %2073 = vmatprep.subr.bf16.mxu0 %v1439
    %2074 = vmatpush1.bf16.msra.mxu0 %v1438
    %2075 = vmatprep.subr.bf16.mxu0 %v1447
    %2076 = vmatpush1.bf16.msra.mxu0 %v1446
    %2077 = vmatprep.subr.bf16.mxu0 %v1455
    %2078 = vmatpush1.bf16.msra.mxu0 %v1454
    %2079 = vmatprep.subr.bf16.mxu0 %v1463
    %2080 = vmatpush1.bf16.msra.mxu0 %v1462
    %2081 = vmatprep.subr.bf16.mxu0 %v1471
    %2082 = vmatpush1.bf16.msra.mxu0 %v1470
    %2083 = vmatprep.subr.bf16.mxu0 %v1479
    %2084 = vmatpush1.bf16.msra.mxu0 %v1478
    %2085 = vmatprep.subr.bf16.mxu0 %v1487
    %2086 = vmatpush1.bf16.msra.mxu0 %v1486
    %2087 = vmatprep.subr.bf16.mxu0 %v1495
    %2088 = vmatpush1.bf16.msra.mxu0 %v1494
    %2089 = vmatprep.subr.bf16.mxu0 %v1503
    %2090 = vmatpush1.bf16.msra.mxu0 %v1502
    %2091 = vmatprep.subr.bf16.mxu0 %v1511
    %2092 = vmatpush1.bf16.msra.mxu0 %v1510
    %2093 = vmatprep.subr.bf16.mxu0 %v1519
    %2094 = vmatpush1.bf16.msra.mxu0 %v1518
    %2095 = vmatprep.mubr.bf16.mxu0 %v454
    %2096 = vmatmul.mubr.bf16.gmra.mrb[0].mxu0 %v453
    %v2097 = vpop.f32.mrb[0].mxu0
    %v2098 = vadd.f32 %v2057, %v2097
    %v2099 = vpop.f32.mrb[0].mxu0
    %v2100 = vadd.f32 %v2059, %v2099
    %v2101 = vpop.f32.mrb[0].mxu0
    %v2102 = vpop.f32.mrb[0].mxu0
    %2103 = vdwg.mxu0
    %v2104 = vmax.f32 %v1852, 0.0
    %v2105 = vmax.f32 %v1854, 0.0
    %v2106 = vmax.f32 %v1934, 0.0
    %v2107 = vmax.f32 %v1936, 0.0
    %v2108 = vmax.f32 %v2016, 0.0
    %v2109 = vmax.f32 %v2018, 0.0
    %v2110 = vmax.f32 %v2098, 0.0
    %v2111 = vmax.f32 %v2100, 0.0
    %v2112 = vld [vmem:[#allocation8] sm:$0xff]
    %v2113 = vld [vmem:[#allocation8 + $0x8] sm:$0xff]
    %v2114 = vld [vmem:[#allocation8 + $0x10] sm:$0xff]
    %v2115 = vld [vmem:[#allocation8 + $0x18] sm:$0xff]
    %v2116 = vld [vmem:[#allocation8 + $0x20] sm:$0xff]
    %v2117 = vld [vmem:[#allocation8 + $0x28] sm:$0xff]
    %v2118 = vld [vmem:[#allocation8 + $0x30] sm:$0xff]
    %v2119 = vld [vmem:[#allocation8 + $0x38] sm:$0xff]
    %v2120 = vld [vmem:[#allocation8 + $0x40] sm:$0xff]
    %v2121 = vld [vmem:[#allocation8 + $0x48] sm:$0xff]
    %v2122 = vld [vmem:[#allocation8 + $0x50] sm:$0xff]
    %v2123 = vld [vmem:[#allocation8 + $0x58] sm:$0xff]
    %v2124 = vld [vmem:[#allocation8 + $0x60] sm:$0xff]
    %v2125 = vld [vmem:[#allocation8 + $0x68] sm:$0xff]
    %v2126 = vld [vmem:[#allocation8 + $0x70] sm:$0xff]
    %v2127 = vld [vmem:[#allocation8 + $0x78] sm:$0xff]
    %v2128 = vld [vmem:[#allocation8 + $0x80] sm:$0xff]
    %v2129 = vld [vmem:[#allocation8 + $0x88] sm:$0xff]
    %v2130 = vld [vmem:[#allocation8 + $0x90] sm:$0xff]
    %v2131 = vld [vmem:[#allocation8 + $0x98] sm:$0xff]
    %v2132 = vld [vmem:[#allocation8 + $0xa0] sm:$0xff]
    %v2133 = vld [vmem:[#allocation8 + $0xa8] sm:$0xff]
    %v2134 = vld [vmem:[#allocation8 + $0xb0] sm:$0xff]
    %v2135 = vld [vmem:[#allocation8 + $0xb8] sm:$0xff]
    %v2136 = vld [vmem:[#allocation8 + $0xc0] sm:$0xff]
    %v2137 = vld [vmem:[#allocation8 + $0xc8] sm:$0xff]
    %v2138 = vld [vmem:[#allocation8 + $0xd0] sm:$0xff]
    %v2139 = vld [vmem:[#allocation8 + $0xd8] sm:$0xff]
    %v2140 = vld [vmem:[#allocation8 + $0xe0] sm:$0xff]
    %v2141 = vld [vmem:[#allocation8 + $0xe8] sm:$0xff]
    %v2142 = vld [vmem:[#allocation8 + $0xf0] sm:$0xff]
    %v2143 = vld [vmem:[#allocation8 + $0xf8] sm:$0xff]
    %v2144 = vld [vmem:[#allocation8 + $0x100] sm:$0xff]
    %v2145 = vld [vmem:[#allocation8 + $0x108] sm:$0xff]
    %v2146 = vld [vmem:[#allocation8 + $0x110] sm:$0xff]
    %v2147 = vld [vmem:[#allocation8 + $0x118] sm:$0xff]
    %v2148 = vld [vmem:[#allocation8 + $0x120] sm:$0xff]
    %v2149 = vld [vmem:[#allocation8 + $0x128] sm:$0xff]
    %v2150 = vld [vmem:[#allocation8 + $0x130] sm:$0xff]
    %v2151 = vld [vmem:[#allocation8 + $0x138] sm:$0xff]
    %v2152 = vld [vmem:[#allocation8 + $0x140] sm:$0xff]
    %v2153 = vld [vmem:[#allocation8 + $0x148] sm:$0xff]
    %v2154 = vld [vmem:[#allocation8 + $0x150] sm:$0xff]
    %v2155 = vld [vmem:[#allocation8 + $0x158] sm:$0xff]
    %v2156 = vld [vmem:[#allocation8 + $0x160] sm:$0xff]
    %v2157 = vld [vmem:[#allocation8 + $0x168] sm:$0xff]
    %v2158 = vld [vmem:[#allocation8 + $0x170] sm:$0xff]
    %v2159 = vld [vmem:[#allocation8 + $0x178] sm:$0xff]
    %v2160 = vld [vmem:[#allocation8 + $0x180] sm:$0xff]
    %v2161 = vld [vmem:[#allocation8 + $0x188] sm:$0xff]
    %v2162 = vld [vmem:[#allocation8 + $0x190] sm:$0xff]
    %v2163 = vld [vmem:[#allocation8 + $0x198] sm:$0xff]
    %v2164 = vld [vmem:[#allocation8 + $0x1a0] sm:$0xff]
    %v2165 = vld [vmem:[#allocation8 + $0x1a8] sm:$0xff]
    %v2166 = vld [vmem:[#allocation8 + $0x1b0] sm:$0xff]
    %v2167 = vld [vmem:[#allocation8 + $0x1b8] sm:$0xff]
    %v2168 = vld [vmem:[#allocation8 + $0x1c0] sm:$0xff]
    %v2169 = vld [vmem:[#allocation8 + $0x1c8] sm:$0xff]
    %v2170 = vld [vmem:[#allocation8 + $0x1d0] sm:$0xff]
    %v2171 = vld [vmem:[#allocation8 + $0x1d8] sm:$0xff]
    %v2172 = vld [vmem:[#allocation8 + $0x1e0] sm:$0xff]
    %v2173 = vld [vmem:[#allocation8 + $0x1e8] sm:$0xff]
    %v2174 = vld [vmem:[#allocation8 + $0x1f0] sm:$0xff]
    %v2175 = vld [vmem:[#allocation8 + $0x1f8] sm:$0xff]
    %v2176 = vld [vmem:[#allocation8 + $0x200] sm:$0xff]
    %v2177 = vld [vmem:[#allocation8 + $0x208] sm:$0xff]
    %v2178 = vld [vmem:[#allocation8 + $0x210] sm:$0xff]
    %v2179 = vld [vmem:[#allocation8 + $0x218] sm:$0xff]
    %v2180 = vld [vmem:[#allocation8 + $0x220] sm:$0xff]
    %v2181 = vld [vmem:[#allocation8 + $0x228] sm:$0xff]
    %v2182 = vld [vmem:[#allocation8 + $0x230] sm:$0xff]
    %v2183 = vld [vmem:[#allocation8 + $0x238] sm:$0xff]
    %v2184 = vld [vmem:[#allocation8 + $0x240] sm:$0xff]
    %v2185 = vld [vmem:[#allocation8 + $0x248] sm:$0xff]
    %v2186 = vld [vmem:[#allocation8 + $0x250] sm:$0xff]
    %v2187 = vld [vmem:[#allocation8 + $0x258] sm:$0xff]
    %v2188 = vld [vmem:[#allocation8 + $0x260] sm:$0xff]
    %v2189 = vld [vmem:[#allocation8 + $0x268] sm:$0xff]
    %v2190 = vld [vmem:[#allocation8 + $0x270] sm:$0xff]
    %v2191 = vld [vmem:[#allocation8 + $0x278] sm:$0xff]
    %v2192 = vld [vmem:[#allocation8 + $0x280] sm:$0xff]
    %v2193 = vld [vmem:[#allocation8 + $0x288] sm:$0xff]
    %v2194 = vld [vmem:[#allocation8 + $0x290] sm:$0xff]
    %v2195 = vld [vmem:[#allocation8 + $0x298] sm:$0xff]
    %v2196 = vld [vmem:[#allocation8 + $0x2a0] sm:$0xff]
    %v2197 = vld [vmem:[#allocation8 + $0x2a8] sm:$0xff]
    %v2198 = vld [vmem:[#allocation8 + $0x2b0] sm:$0xff]
    %v2199 = vld [vmem:[#allocation8 + $0x2b8] sm:$0xff]
    %v2200 = vld [vmem:[#allocation8 + $0x2c0] sm:$0xff]
    %v2201 = vld [vmem:[#allocation8 + $0x2c8] sm:$0xff]
    %v2202 = vld [vmem:[#allocation8 + $0x2d0] sm:$0xff]
    %v2203 = vld [vmem:[#allocation8 + $0x2d8] sm:$0xff]
    %v2204 = vld [vmem:[#allocation8 + $0x2e0] sm:$0xff]
    %v2205 = vld [vmem:[#allocation8 + $0x2e8] sm:$0xff]
    %v2206 = vld [vmem:[#allocation8 + $0x2f0] sm:$0xff]
    %v2207 = vld [vmem:[#allocation8 + $0x2f8] sm:$0xff]
    %v2208 = vld [vmem:[#allocation8 + $0x300] sm:$0xff]
    %v2209 = vld [vmem:[#allocation8 + $0x308] sm:$0xff]
    %v2210 = vld [vmem:[#allocation8 + $0x310] sm:$0xff]
    %v2211 = vld [vmem:[#allocation8 + $0x318] sm:$0xff]
    %v2212 = vld [vmem:[#allocation8 + $0x320] sm:$0xff]
    %v2213 = vld [vmem:[#allocation8 + $0x328] sm:$0xff]
    %v2214 = vld [vmem:[#allocation8 + $0x330] sm:$0xff]
    %v2215 = vld [vmem:[#allocation8 + $0x338] sm:$0xff]
    %v2216 = vld [vmem:[#allocation8 + $0x340] sm:$0xff]
    %v2217 = vld [vmem:[#allocation8 + $0x348] sm:$0xff]
    %v2218 = vld [vmem:[#allocation8 + $0x350] sm:$0xff]
    %v2219 = vld [vmem:[#allocation8 + $0x358] sm:$0xff]
    %v2220 = vld [vmem:[#allocation8 + $0x360] sm:$0xff]
    %v2221 = vld [vmem:[#allocation8 + $0x368] sm:$0xff]
    %v2222 = vld [vmem:[#allocation8 + $0x370] sm:$0xff]
    %v2223 = vld [vmem:[#allocation8 + $0x378] sm:$0xff]
    %v2224 = vld [vmem:[#allocation8 + $0x380] sm:$0xff]
    %v2225 = vld [vmem:[#allocation8 + $0x388] sm:$0xff]
    %v2226 = vld [vmem:[#allocation8 + $0x390] sm:$0xff]
    %v2227 = vld [vmem:[#allocation8 + $0x398] sm:$0xff]
    %v2228 = vld [vmem:[#allocation8 + $0x3a0] sm:$0xff]
    %v2229 = vld [vmem:[#allocation8 + $0x3a8] sm:$0xff]
    %v2230 = vld [vmem:[#allocation8 + $0x3b0] sm:$0xff]
    %v2231 = vld [vmem:[#allocation8 + $0x3b8] sm:$0xff]
    %v2232 = vld [vmem:[#allocation8 + $0x3c0] sm:$0xff]
    %v2233 = vld [vmem:[#allocation8 + $0x3c8] sm:$0xff]
    %v2234 = vld [vmem:[#allocation8 + $0x3d0] sm:$0xff]
    %v2235 = vld [vmem:[#allocation8 + $0x3d8] sm:$0xff]
    %v2236 = vld [vmem:[#allocation8 + $0x3e0] sm:$0xff]
    %v2237 = vld [vmem:[#allocation8 + $0x3e8] sm:$0xff]
    %v2238 = vld [vmem:[#allocation8 + $0x3f0] sm:$0xff]
    %v2239 = vld [vmem:[#allocation8 + $0x3f8] sm:$0xff]
    %v2240 = vld [vmem:[#allocation8 + $0x400] sm:$0xff]
    %v2241 = vld [vmem:[#allocation8 + $0x408] sm:$0xff]
    %v2242 = vld [vmem:[#allocation8 + $0x410] sm:$0xff]
    %v2243 = vld [vmem:[#allocation8 + $0x418] sm:$0xff]
    %v2244 = vld [vmem:[#allocation8 + $0x420] sm:$0xff]
    %v2245 = vld [vmem:[#allocation8 + $0x428] sm:$0xff]
    %v2246 = vld [vmem:[#allocation8 + $0x430] sm:$0xff]
    %v2247 = vld [vmem:[#allocation8 + $0x438] sm:$0xff]
    %v2248 = vld [vmem:[#allocation8 + $0x440] sm:$0xff]
    %v2249 = vld [vmem:[#allocation8 + $0x448] sm:$0xff]
    %v2250 = vld [vmem:[#allocation8 + $0x450] sm:$0xff]
    %v2251 = vld [vmem:[#allocation8 + $0x458] sm:$0xff]
    %v2252 = vld [vmem:[#allocation8 + $0x460] sm:$0xff]
    %v2253 = vld [vmem:[#allocation8 + $0x468] sm:$0xff]
    %v2254 = vld [vmem:[#allocation8 + $0x470] sm:$0xff]
    %v2255 = vld [vmem:[#allocation8 + $0x478] sm:$0xff]
    %v2256 = vld [vmem:[#allocation8 + $0x480] sm:$0xff]
    %v2257 = vld [vmem:[#allocation8 + $0x488] sm:$0xff]
    %v2258 = vld [vmem:[#allocation8 + $0x490] sm:$0xff]
    %v2259 = vld [vmem:[#allocation8 + $0x498] sm:$0xff]
    %v2260 = vld [vmem:[#allocation8 + $0x4a0] sm:$0xff]
    %v2261 = vld [vmem:[#allocation8 + $0x4a8] sm:$0xff]
    %v2262 = vld [vmem:[#allocation8 + $0x4b0] sm:$0xff]
    %v2263 = vld [vmem:[#allocation8 + $0x4b8] sm:$0xff]
    %v2264 = vld [vmem:[#allocation8 + $0x4c0] sm:$0xff]
    %v2265 = vld [vmem:[#allocation8 + $0x4c8] sm:$0xff]
    %v2266 = vld [vmem:[#allocation8 + $0x4d0] sm:$0xff]
    %v2267 = vld [vmem:[#allocation8 + $0x4d8] sm:$0xff]
    %v2268 = vld [vmem:[#allocation8 + $0x4e0] sm:$0xff]
    %v2269 = vld [vmem:[#allocation8 + $0x4e8] sm:$0xff]
    %v2270 = vld [vmem:[#allocation8 + $0x4f0] sm:$0xff]
    %v2271 = vld [vmem:[#allocation8 + $0x4f8] sm:$0xff]
    %v2272 = vld [vmem:[#allocation8 + $0x500] sm:$0xff]
    %v2273 = vld [vmem:[#allocation8 + $0x508] sm:$0xff]
    %v2274 = vld [vmem:[#allocation8 + $0x510] sm:$0xff]
    %v2275 = vld [vmem:[#allocation8 + $0x518] sm:$0xff]
    %v2276 = vld [vmem:[#allocation8 + $0x520] sm:$0xff]
    %v2277 = vld [vmem:[#allocation8 + $0x528] sm:$0xff]
    %v2278 = vld [vmem:[#allocation8 + $0x530] sm:$0xff]
    %v2279 = vld [vmem:[#allocation8 + $0x538] sm:$0xff]
    %v2280 = vld [vmem:[#allocation8 + $0x540] sm:$0xff]
    %v2281 = vld [vmem:[#allocation8 + $0x548] sm:$0xff]
    %v2282 = vld [vmem:[#allocation8 + $0x550] sm:$0xff]
    %v2283 = vld [vmem:[#allocation8 + $0x558] sm:$0xff]
    %v2284 = vld [vmem:[#allocation8 + $0x560] sm:$0xff]
    %v2285 = vld [vmem:[#allocation8 + $0x568] sm:$0xff]
    %v2286 = vld [vmem:[#allocation8 + $0x570] sm:$0xff]
    %v2287 = vld [vmem:[#allocation8 + $0x578] sm:$0xff]
    %v2288 = vld [vmem:[#allocation8 + $0x580] sm:$0xff]
    %v2289 = vld [vmem:[#allocation8 + $0x588] sm:$0xff]
    %v2290 = vld [vmem:[#allocation8 + $0x590] sm:$0xff]
    %v2291 = vld [vmem:[#allocation8 + $0x598] sm:$0xff]
    %v2292 = vld [vmem:[#allocation8 + $0x5a0] sm:$0xff]
    %v2293 = vld [vmem:[#allocation8 + $0x5a8] sm:$0xff]
    %v2294 = vld [vmem:[#allocation8 + $0x5b0] sm:$0xff]
    %v2295 = vld [vmem:[#allocation8 + $0x5b8] sm:$0xff]
    %v2296 = vld [vmem:[#allocation8 + $0x5c0] sm:$0xff]
    %v2297 = vld [vmem:[#allocation8 + $0x5c8] sm:$0xff]
    %v2298 = vld [vmem:[#allocation8 + $0x5d0] sm:$0xff]
    %v2299 = vld [vmem:[#allocation8 + $0x5d8] sm:$0xff]
    %v2300 = vld [vmem:[#allocation8 + $0x5e0] sm:$0xff]
    %v2301 = vld [vmem:[#allocation8 + $0x5e8] sm:$0xff]
    %v2302 = vld [vmem:[#allocation8 + $0x5f0] sm:$0xff]
    %v2303 = vld [vmem:[#allocation8 + $0x5f8] sm:$0xff]
    %v2304 = vld [vmem:[#allocation8 + $0x600] sm:$0xff]
    %v2305 = vld [vmem:[#allocation8 + $0x608] sm:$0xff]
    %v2306 = vld [vmem:[#allocation8 + $0x610] sm:$0xff]
    %v2307 = vld [vmem:[#allocation8 + $0x618] sm:$0xff]
    %v2308 = vld [vmem:[#allocation8 + $0x620] sm:$0xff]
    %v2309 = vld [vmem:[#allocation8 + $0x628] sm:$0xff]
    %v2310 = vld [vmem:[#allocation8 + $0x630] sm:$0xff]
    %v2311 = vld [vmem:[#allocation8 + $0x638] sm:$0xff]
    %v2312 = vld [vmem:[#allocation8 + $0x640] sm:$0xff]
    %v2313 = vld [vmem:[#allocation8 + $0x648] sm:$0xff]
    %v2314 = vld [vmem:[#allocation8 + $0x650] sm:$0xff]
    %v2315 = vld [vmem:[#allocation8 + $0x658] sm:$0xff]
    %v2316 = vld [vmem:[#allocation8 + $0x660] sm:$0xff]
    %v2317 = vld [vmem:[#allocation8 + $0x668] sm:$0xff]
    %v2318 = vld [vmem:[#allocation8 + $0x670] sm:$0xff]
    %v2319 = vld [vmem:[#allocation8 + $0x678] sm:$0xff]
    %v2320 = vld [vmem:[#allocation8 + $0x680] sm:$0xff]
    %v2321 = vld [vmem:[#allocation8 + $0x688] sm:$0xff]
    %v2322 = vld [vmem:[#allocation8 + $0x690] sm:$0xff]
    %v2323 = vld [vmem:[#allocation8 + $0x698] sm:$0xff]
    %v2324 = vld [vmem:[#allocation8 + $0x6a0] sm:$0xff]
    %v2325 = vld [vmem:[#allocation8 + $0x6a8] sm:$0xff]
    %v2326 = vld [vmem:[#allocation8 + $0x6b0] sm:$0xff]
    %v2327 = vld [vmem:[#allocation8 + $0x6b8] sm:$0xff]
    %v2328 = vld [vmem:[#allocation8 + $0x6c0] sm:$0xff]
    %v2329 = vld [vmem:[#allocation8 + $0x6c8] sm:$0xff]
    %v2330 = vld [vmem:[#allocation8 + $0x6d0] sm:$0xff]
    %v2331 = vld [vmem:[#allocation8 + $0x6d8] sm:$0xff]
    %v2332 = vld [vmem:[#allocation8 + $0x6e0] sm:$0xff]
    %v2333 = vld [vmem:[#allocation8 + $0x6e8] sm:$0xff]
    %v2334 = vld [vmem:[#allocation8 + $0x6f0] sm:$0xff]
    %v2335 = vld [vmem:[#allocation8 + $0x6f8] sm:$0xff]
    %v2336 = vld [vmem:[#allocation8 + $0x700] sm:$0xff]
    %v2337 = vld [vmem:[#allocation8 + $0x708] sm:$0xff]
    %v2338 = vld [vmem:[#allocation8 + $0x710] sm:$0xff]
    %v2339 = vld [vmem:[#allocation8 + $0x718] sm:$0xff]
    %v2340 = vld [vmem:[#allocation8 + $0x720] sm:$0xff]
    %v2341 = vld [vmem:[#allocation8 + $0x728] sm:$0xff]
    %v2342 = vld [vmem:[#allocation8 + $0x730] sm:$0xff]
    %v2343 = vld [vmem:[#allocation8 + $0x738] sm:$0xff]
    %v2344 = vld [vmem:[#allocation8 + $0x740] sm:$0xff]
    %v2345 = vld [vmem:[#allocation8 + $0x748] sm:$0xff]
    %v2346 = vld [vmem:[#allocation8 + $0x750] sm:$0xff]
    %v2347 = vld [vmem:[#allocation8 + $0x758] sm:$0xff]
    %v2348 = vld [vmem:[#allocation8 + $0x760] sm:$0xff]
    %v2349 = vld [vmem:[#allocation8 + $0x768] sm:$0xff]
    %v2350 = vld [vmem:[#allocation8 + $0x770] sm:$0xff]
    %v2351 = vld [vmem:[#allocation8 + $0x778] sm:$0xff]
    %v2352 = vld [vmem:[#allocation8 + $0x780] sm:$0xff]
    %v2353 = vld [vmem:[#allocation8 + $0x788] sm:$0xff]
    %v2354 = vld [vmem:[#allocation8 + $0x790] sm:$0xff]
    %v2355 = vld [vmem:[#allocation8 + $0x798] sm:$0xff]
    %v2356 = vld [vmem:[#allocation8 + $0x7a0] sm:$0xff]
    %v2357 = vld [vmem:[#allocation8 + $0x7a8] sm:$0xff]
    %v2358 = vld [vmem:[#allocation8 + $0x7b0] sm:$0xff]
    %v2359 = vld [vmem:[#allocation8 + $0x7b8] sm:$0xff]
    %v2360 = vld [vmem:[#allocation8 + $0x7c0] sm:$0xff]
    %v2361 = vld [vmem:[#allocation8 + $0x7c8] sm:$0xff]
    %v2362 = vld [vmem:[#allocation8 + $0x7d0] sm:$0xff]
    %v2363 = vld [vmem:[#allocation8 + $0x7d8] sm:$0xff]
    %v2364 = vld [vmem:[#allocation8 + $0x7e0] sm:$0xff]
    %v2365 = vld [vmem:[#allocation8 + $0x7e8] sm:$0xff]
    %v2366 = vld [vmem:[#allocation8 + $0x7f0] sm:$0xff]
    %v2367 = vld [vmem:[#allocation8 + $0x7f8] sm:$0xff]
    %v2368 = vld [vmem:[%s4] sm:$0xf]
    %v2369 = vpack.c.bf16 %v2104, %v2104
    %v2370 = vpack.c.bf16 %v2105, %v2105
    %v2371 = vpack.c.bf16 %v2106, %v2106
    %v2372 = vpack.c.bf16 %v2107, %v2107
    %v2373 = vpack.c.bf16 %v2108, %v2108
    %v2374 = vpack.c.bf16 %v2109, %v2109
    %v2375 = vpack.c.bf16 %v2110, %v2110
    %v2376 = vpack.c.bf16 %v2111, %v2111
    %v2378 = vlaneseq
    %v2379 = vshrl.u32 %v2378, 7
    %v2380 = vsub.s32 0, %v2379
    %v2381 = vrot.slane %v2368, %v2380
    %v2382 = vlaneseq
    %v2383 = vshrl.u32 %v2382, 7
    %v2384 = vsub.s32 1, %v2383
    %v2385 = vrot.slane %v2368, %v2384
    %v2386 = vlaneseq
    %v2387 = vshrl.u32 %v2386, 7
    %v2388 = vsub.s32 2, %v2387
    %v2389 = vrot.slane %v2368, %v2388
    %v2390 = vlaneseq
    %v2391 = vshrl.u32 %v2390, 7
    %v2392 = vsub.s32 3, %v2391
    %v2393 = vrot.slane %v2368, %v2392
    %v2654 = vunpack.c.l.b16 %v2112
    %v2655 = vunpack.c.h.b16 %v2112
    %v2656 = vunpack.c.l.b16 %v2113
    %v2657 = vunpack.c.h.b16 %v2113
    %v2658 = vunpack.c.l.b16 %v2114
    %v2659 = vunpack.c.h.b16 %v2114
    %v2660 = vunpack.c.l.b16 %v2115
    %v2661 = vunpack.c.h.b16 %v2115
    %v2662 = vunpack.c.l.b16 %v2116
    %v2663 = vunpack.c.h.b16 %v2116
    %v2664 = vunpack.c.l.b16 %v2117
    %v2665 = vunpack.c.h.b16 %v2117
    %v2666 = vunpack.c.l.b16 %v2118
    %v2667 = vunpack.c.h.b16 %v2118
    %v2668 = vunpack.c.l.b16 %v2119
    %v2669 = vunpack.c.h.b16 %v2119
    %v2670 = vunpack.c.l.b16 %v2120
    %v2671 = vunpack.c.h.b16 %v2120
    %v2672 = vunpack.c.l.b16 %v2121
    %v2673 = vunpack.c.h.b16 %v2121
    %v2674 = vunpack.c.l.b16 %v2122
    %v2675 = vunpack.c.h.b16 %v2122
    %v2676 = vunpack.c.l.b16 %v2123
    %v2677 = vunpack.c.h.b16 %v2123
    %v2678 = vunpack.c.l.b16 %v2124
    %v2679 = vunpack.c.h.b16 %v2124
    %v2680 = vunpack.c.l.b16 %v2125
    %v2681 = vunpack.c.h.b16 %v2125
    %v2682 = vunpack.c.l.b16 %v2126
    %v2683 = vunpack.c.h.b16 %v2126
    %v2684 = vunpack.c.l.b16 %v2127
    %v2685 = vunpack.c.h.b16 %v2127
    %v2686 = vunpack.c.l.b16 %v2128
    %v2687 = vunpack.c.h.b16 %v2128
    %v2688 = vunpack.c.l.b16 %v2129
    %v2689 = vunpack.c.h.b16 %v2129
    %v2690 = vunpack.c.l.b16 %v2130
    %v2691 = vunpack.c.h.b16 %v2130
    %v2692 = vunpack.c.l.b16 %v2131
    %v2693 = vunpack.c.h.b16 %v2131
    %v2694 = vunpack.c.l.b16 %v2132
    %v2695 = vunpack.c.h.b16 %v2132
    %v2696 = vunpack.c.l.b16 %v2133
    %v2697 = vunpack.c.h.b16 %v2133
    %v2698 = vunpack.c.l.b16 %v2134
    %v2699 = vunpack.c.h.b16 %v2134
    %v2700 = vunpack.c.l.b16 %v2135
    %v2701 = vunpack.c.h.b16 %v2135
    %v2702 = vunpack.c.l.b16 %v2136
    %v2703 = vunpack.c.h.b16 %v2136
    %v2704 = vunpack.c.l.b16 %v2137
    %v2705 = vunpack.c.h.b16 %v2137
    %v2706 = vunpack.c.l.b16 %v2138
    %v2707 = vunpack.c.h.b16 %v2138
    %v2708 = vunpack.c.l.b16 %v2139
    %v2709 = vunpack.c.h.b16 %v2139
    %v2710 = vunpack.c.l.b16 %v2140
    %v2711 = vunpack.c.h.b16 %v2140
    %v2712 = vunpack.c.l.b16 %v2141
    %v2713 = vunpack.c.h.b16 %v2141
    %v2714 = vunpack.c.l.b16 %v2142
    %v2715 = vunpack.c.h.b16 %v2142
    %v2716 = vunpack.c.l.b16 %v2143
    %v2717 = vunpack.c.h.b16 %v2143
    %v2718 = vunpack.c.l.b16 %v2144
    %v2719 = vunpack.c.h.b16 %v2144
    %v2720 = vunpack.c.l.b16 %v2145
    %v2721 = vunpack.c.h.b16 %v2145
    %v2722 = vunpack.c.l.b16 %v2146
    %v2723 = vunpack.c.h.b16 %v2146
    %v2724 = vunpack.c.l.b16 %v2147
    %v2725 = vunpack.c.h.b16 %v2147
    %v2726 = vunpack.c.l.b16 %v2148
    %v2727 = vunpack.c.h.b16 %v2148
    %v2728 = vunpack.c.l.b16 %v2149
    %v2729 = vunpack.c.h.b16 %v2149
    %v2730 = vunpack.c.l.b16 %v2150
    %v2731 = vunpack.c.h.b16 %v2150
    %v2732 = vunpack.c.l.b16 %v2151
    %v2733 = vunpack.c.h.b16 %v2151
    %v2734 = vunpack.c.l.b16 %v2152
    %v2735 = vunpack.c.h.b16 %v2152
    %v2736 = vunpack.c.l.b16 %v2153
    %v2737 = vunpack.c.h.b16 %v2153
    %v2738 = vunpack.c.l.b16 %v2154
    %v2739 = vunpack.c.h.b16 %v2154
    %v2740 = vunpack.c.l.b16 %v2155
    %v2741 = vunpack.c.h.b16 %v2155
    %v2742 = vunpack.c.l.b16 %v2156
    %v2743 = vunpack.c.h.b16 %v2156
    %v2744 = vunpack.c.l.b16 %v2157
    %v2745 = vunpack.c.h.b16 %v2157
    %v2746 = vunpack.c.l.b16 %v2158
    %v2747 = vunpack.c.h.b16 %v2158
    %v2748 = vunpack.c.l.b16 %v2159
    %v2749 = vunpack.c.h.b16 %v2159
    %v2750 = vunpack.c.l.b16 %v2160
    %v2751 = vunpack.c.h.b16 %v2160
    %v2752 = vunpack.c.l.b16 %v2161
    %v2753 = vunpack.c.h.b16 %v2161
    %v2754 = vunpack.c.l.b16 %v2162
    %v2755 = vunpack.c.h.b16 %v2162
    %v2756 = vunpack.c.l.b16 %v2163
    %v2757 = vunpack.c.h.b16 %v2163
    %v2758 = vunpack.c.l.b16 %v2164
    %v2759 = vunpack.c.h.b16 %v2164
    %v2760 = vunpack.c.l.b16 %v2165
    %v2761 = vunpack.c.h.b16 %v2165
    %v2762 = vunpack.c.l.b16 %v2166
    %v2763 = vunpack.c.h.b16 %v2166
    %v2764 = vunpack.c.l.b16 %v2167
    %v2765 = vunpack.c.h.b16 %v2167
    %v2766 = vunpack.c.l.b16 %v2168
    %v2767 = vunpack.c.h.b16 %v2168
    %v2768 = vunpack.c.l.b16 %v2169
    %v2769 = vunpack.c.h.b16 %v2169
    %v2770 = vunpack.c.l.b16 %v2170
    %v2771 = vunpack.c.h.b16 %v2170
    %v2772 = vunpack.c.l.b16 %v2171
    %v2773 = vunpack.c.h.b16 %v2171
    %v2774 = vunpack.c.l.b16 %v2172
    %v2775 = vunpack.c.h.b16 %v2172
    %v2776 = vunpack.c.l.b16 %v2173
    %v2777 = vunpack.c.h.b16 %v2173
    %v2778 = vunpack.c.l.b16 %v2174
    %v2779 = vunpack.c.h.b16 %v2174
    %v2780 = vunpack.c.l.b16 %v2175
    %v2781 = vunpack.c.h.b16 %v2175
    %v2782 = vunpack.c.l.b16 %v2176
    %v2783 = vunpack.c.h.b16 %v2176
    %v2784 = vunpack.c.l.b16 %v2177
    %v2785 = vunpack.c.h.b16 %v2177
    %v2786 = vunpack.c.l.b16 %v2178
    %v2787 = vunpack.c.h.b16 %v2178
    %v2788 = vunpack.c.l.b16 %v2179
    %v2789 = vunpack.c.h.b16 %v2179
    %v2790 = vunpack.c.l.b16 %v2180
    %v2791 = vunpack.c.h.b16 %v2180
    %v2792 = vunpack.c.l.b16 %v2181
    %v2793 = vunpack.c.h.b16 %v2181
    %v2794 = vunpack.c.l.b16 %v2182
    %v2795 = vunpack.c.h.b16 %v2182
    %v2796 = vunpack.c.l.b16 %v2183
    %v2797 = vunpack.c.h.b16 %v2183
    %v2798 = vunpack.c.l.b16 %v2184
    %v2799 = vunpack.c.h.b16 %v2184
    %v2800 = vunpack.c.l.b16 %v2185
    %v2801 = vunpack.c.h.b16 %v2185
    %v2802 = vunpack.c.l.b16 %v2186
    %v2803 = vunpack.c.h.b16 %v2186
    %v2804 = vunpack.c.l.b16 %v2187
    %v2805 = vunpack.c.h.b16 %v2187
    %v2806 = vunpack.c.l.b16 %v2188
    %v2807 = vunpack.c.h.b16 %v2188
    %v2808 = vunpack.c.l.b16 %v2189
    %v2809 = vunpack.c.h.b16 %v2189
    %v2810 = vunpack.c.l.b16 %v2190
    %v2811 = vunpack.c.h.b16 %v2190
    %v2812 = vunpack.c.l.b16 %v2191
    %v2813 = vunpack.c.h.b16 %v2191
    %v2814 = vunpack.c.l.b16 %v2192
    %v2815 = vunpack.c.h.b16 %v2192
    %v2816 = vunpack.c.l.b16 %v2193
    %v2817 = vunpack.c.h.b16 %v2193
    %v2818 = vunpack.c.l.b16 %v2194
    %v2819 = vunpack.c.h.b16 %v2194
    %v2820 = vunpack.c.l.b16 %v2195
    %v2821 = vunpack.c.h.b16 %v2195
    %v2822 = vunpack.c.l.b16 %v2196
    %v2823 = vunpack.c.h.b16 %v2196
    %v2824 = vunpack.c.l.b16 %v2197
    %v2825 = vunpack.c.h.b16 %v2197
    %v2826 = vunpack.c.l.b16 %v2198
    %v2827 = vunpack.c.h.b16 %v2198
    %v2828 = vunpack.c.l.b16 %v2199
    %v2829 = vunpack.c.h.b16 %v2199
    %v2830 = vunpack.c.l.b16 %v2200
    %v2831 = vunpack.c.h.b16 %v2200
    %v2832 = vunpack.c.l.b16 %v2201
    %v2833 = vunpack.c.h.b16 %v2201
    %v2834 = vunpack.c.l.b16 %v2202
    %v2835 = vunpack.c.h.b16 %v2202
    %v2836 = vunpack.c.l.b16 %v2203
    %v2837 = vunpack.c.h.b16 %v2203
    %v2838 = vunpack.c.l.b16 %v2204
    %v2839 = vunpack.c.h.b16 %v2204
    %v2840 = vunpack.c.l.b16 %v2205
    %v2841 = vunpack.c.h.b16 %v2205
    %v2842 = vunpack.c.l.b16 %v2206
    %v2843 = vunpack.c.h.b16 %v2206
    %v2844 = vunpack.c.l.b16 %v2207
    %v2845 = vunpack.c.h.b16 %v2207
    %v2846 = vunpack.c.l.b16 %v2208
    %v2847 = vunpack.c.h.b16 %v2208
    %v2848 = vunpack.c.l.b16 %v2209
    %v2849 = vunpack.c.h.b16 %v2209
    %v2850 = vunpack.c.l.b16 %v2210
    %v2851 = vunpack.c.h.b16 %v2210
    %v2852 = vunpack.c.l.b16 %v2211
    %v2853 = vunpack.c.h.b16 %v2211
    %v2854 = vunpack.c.l.b16 %v2212
    %v2855 = vunpack.c.h.b16 %v2212
    %v2856 = vunpack.c.l.b16 %v2213
    %v2857 = vunpack.c.h.b16 %v2213
    %v2858 = vunpack.c.l.b16 %v2214
    %v2859 = vunpack.c.h.b16 %v2214
    %v2860 = vunpack.c.l.b16 %v2215
    %v2861 = vunpack.c.h.b16 %v2215
    %v2862 = vunpack.c.l.b16 %v2216
    %v2863 = vunpack.c.h.b16 %v2216
    %v2864 = vunpack.c.l.b16 %v2217
    %v2865 = vunpack.c.h.b16 %v2217
    %v2866 = vunpack.c.l.b16 %v2218
    %v2867 = vunpack.c.h.b16 %v2218
    %v2868 = vunpack.c.l.b16 %v2219
    %v2869 = vunpack.c.h.b16 %v2219
    %v2870 = vunpack.c.l.b16 %v2220
    %v2871 = vunpack.c.h.b16 %v2220
    %v2872 = vunpack.c.l.b16 %v2221
    %v2873 = vunpack.c.h.b16 %v2221
    %v2874 = vunpack.c.l.b16 %v2222
    %v2875 = vunpack.c.h.b16 %v2222
    %v2876 = vunpack.c.l.b16 %v2223
    %v2877 = vunpack.c.h.b16 %v2223
    %v2878 = vunpack.c.l.b16 %v2224
    %v2879 = vunpack.c.h.b16 %v2224
    %v2880 = vunpack.c.l.b16 %v2225
    %v2881 = vunpack.c.h.b16 %v2225
    %v2882 = vunpack.c.l.b16 %v2226
    %v2883 = vunpack.c.h.b16 %v2226
    %v2884 = vunpack.c.l.b16 %v2227
    %v2885 = vunpack.c.h.b16 %v2227
    %v2886 = vunpack.c.l.b16 %v2228
    %v2887 = vunpack.c.h.b16 %v2228
    %v2888 = vunpack.c.l.b16 %v2229
    %v2889 = vunpack.c.h.b16 %v2229
    %v2890 = vunpack.c.l.b16 %v2230
    %v2891 = vunpack.c.h.b16 %v2230
    %v2892 = vunpack.c.l.b16 %v2231
    %v2893 = vunpack.c.h.b16 %v2231
    %v2894 = vunpack.c.l.b16 %v2232
    %v2895 = vunpack.c.h.b16 %v2232
    %v2896 = vunpack.c.l.b16 %v2233
    %v2897 = vunpack.c.h.b16 %v2233
    %v2898 = vunpack.c.l.b16 %v2234
    %v2899 = vunpack.c.h.b16 %v2234
    %v2900 = vunpack.c.l.b16 %v2235
    %v2901 = vunpack.c.h.b16 %v2235
    %v2902 = vunpack.c.l.b16 %v2236
    %v2903 = vunpack.c.h.b16 %v2236
    %v2904 = vunpack.c.l.b16 %v2237
    %v2905 = vunpack.c.h.b16 %v2237
    %v2906 = vunpack.c.l.b16 %v2238
    %v2907 = vunpack.c.h.b16 %v2238
    %v2908 = vunpack.c.l.b16 %v2239
    %v2909 = vunpack.c.h.b16 %v2239
    %v2910 = vunpack.c.l.b16 %v2240
    %v2911 = vunpack.c.h.b16 %v2240
    %v2912 = vunpack.c.l.b16 %v2241
    %v2913 = vunpack.c.h.b16 %v2241
    %v2914 = vunpack.c.l.b16 %v2242
    %v2915 = vunpack.c.h.b16 %v2242
    %v2916 = vunpack.c.l.b16 %v2243
    %v2917 = vunpack.c.h.b16 %v2243
    %v2918 = vunpack.c.l.b16 %v2244
    %v2919 = vunpack.c.h.b16 %v2244
    %v2920 = vunpack.c.l.b16 %v2245
    %v2921 = vunpack.c.h.b16 %v2245
    %v2922 = vunpack.c.l.b16 %v2246
    %v2923 = vunpack.c.h.b16 %v2246
    %v2924 = vunpack.c.l.b16 %v2247
    %v2925 = vunpack.c.h.b16 %v2247
    %v2926 = vunpack.c.l.b16 %v2248
    %v2927 = vunpack.c.h.b16 %v2248
    %v2928 = vunpack.c.l.b16 %v2249
    %v2929 = vunpack.c.h.b16 %v2249
    %v2930 = vunpack.c.l.b16 %v2250
    %v2931 = vunpack.c.h.b16 %v2250
    %v2932 = vunpack.c.l.b16 %v2251
    %v2933 = vunpack.c.h.b16 %v2251
    %v2934 = vunpack.c.l.b16 %v2252
    %v2935 = vunpack.c.h.b16 %v2252
    %v2936 = vunpack.c.l.b16 %v2253
    %v2937 = vunpack.c.h.b16 %v2253
    %v2938 = vunpack.c.l.b16 %v2254
    %v2939 = vunpack.c.h.b16 %v2254
    %v2940 = vunpack.c.l.b16 %v2255
    %v2941 = vunpack.c.h.b16 %v2255
    %v2942 = vunpack.c.l.b16 %v2256
    %v2943 = vunpack.c.h.b16 %v2256
    %v2944 = vunpack.c.l.b16 %v2257
    %v2945 = vunpack.c.h.b16 %v2257
    %v2946 = vunpack.c.l.b16 %v2258
    %v2947 = vunpack.c.h.b16 %v2258
    %v2948 = vunpack.c.l.b16 %v2259
    %v2949 = vunpack.c.h.b16 %v2259
    %v2950 = vunpack.c.l.b16 %v2260
    %v2951 = vunpack.c.h.b16 %v2260
    %v2952 = vunpack.c.l.b16 %v2261
    %v2953 = vunpack.c.h.b16 %v2261
    %v2954 = vunpack.c.l.b16 %v2262
    %v2955 = vunpack.c.h.b16 %v2262
    %v2956 = vunpack.c.l.b16 %v2263
    %v2957 = vunpack.c.h.b16 %v2263
    %v2958 = vunpack.c.l.b16 %v2264
    %v2959 = vunpack.c.h.b16 %v2264
    %v2960 = vunpack.c.l.b16 %v2265
    %v2961 = vunpack.c.h.b16 %v2265
    %v2962 = vunpack.c.l.b16 %v2266
    %v2963 = vunpack.c.h.b16 %v2266
    %v2964 = vunpack.c.l.b16 %v2267
    %v2965 = vunpack.c.h.b16 %v2267
    %v2966 = vunpack.c.l.b16 %v2268
    %v2967 = vunpack.c.h.b16 %v2268
    %v2968 = vunpack.c.l.b16 %v2269
    %v2969 = vunpack.c.h.b16 %v2269
    %v2970 = vunpack.c.l.b16 %v2270
    %v2971 = vunpack.c.h.b16 %v2270
    %v2972 = vunpack.c.l.b16 %v2271
    %v2973 = vunpack.c.h.b16 %v2271
    %v2974 = vunpack.c.l.b16 %v2272
    %v2975 = vunpack.c.h.b16 %v2272
    %v2976 = vunpack.c.l.b16 %v2273
    %v2977 = vunpack.c.h.b16 %v2273
    %v2978 = vunpack.c.l.b16 %v2274
    %v2979 = vunpack.c.h.b16 %v2274
    %v2980 = vunpack.c.l.b16 %v2275
    %v2981 = vunpack.c.h.b16 %v2275
    %v2982 = vunpack.c.l.b16 %v2276
    %v2983 = vunpack.c.h.b16 %v2276
    %v2984 = vunpack.c.l.b16 %v2277
    %v2985 = vunpack.c.h.b16 %v2277
    %v2986 = vunpack.c.l.b16 %v2278
    %v2987 = vunpack.c.h.b16 %v2278
    %v2988 = vunpack.c.l.b16 %v2279
    %v2989 = vunpack.c.h.b16 %v2279
    %v2990 = vunpack.c.l.b16 %v2280
    %v2991 = vunpack.c.h.b16 %v2280
    %v2992 = vunpack.c.l.b16 %v2281
    %v2993 = vunpack.c.h.b16 %v2281
    %v2994 = vunpack.c.l.b16 %v2282
    %v2995 = vunpack.c.h.b16 %v2282
    %v2996 = vunpack.c.l.b16 %v2283
    %v2997 = vunpack.c.h.b16 %v2283
    %v2998 = vunpack.c.l.b16 %v2284
    %v2999 = vunpack.c.h.b16 %v2284
    %v3000 = vunpack.c.l.b16 %v2285
    %v3001 = vunpack.c.h.b16 %v2285
    %v3002 = vunpack.c.l.b16 %v2286
    %v3003 = vunpack.c.h.b16 %v2286
    %v3004 = vunpack.c.l.b16 %v2287
    %v3005 = vunpack.c.h.b16 %v2287
    %v3006 = vunpack.c.l.b16 %v2288
    %v3007 = vunpack.c.h.b16 %v2288
    %v3008 = vunpack.c.l.b16 %v2289
    %v3009 = vunpack.c.h.b16 %v2289
    %v3010 = vunpack.c.l.b16 %v2290
    %v3011 = vunpack.c.h.b16 %v2290
    %v3012 = vunpack.c.l.b16 %v2291
    %v3013 = vunpack.c.h.b16 %v2291
    %v3014 = vunpack.c.l.b16 %v2292
    %v3015 = vunpack.c.h.b16 %v2292
    %v3016 = vunpack.c.l.b16 %v2293
    %v3017 = vunpack.c.h.b16 %v2293
    %v3018 = vunpack.c.l.b16 %v2294
    %v3019 = vunpack.c.h.b16 %v2294
    %v3020 = vunpack.c.l.b16 %v2295
    %v3021 = vunpack.c.h.b16 %v2295
    %v3022 = vunpack.c.l.b16 %v2296
    %v3023 = vunpack.c.h.b16 %v2296
    %v3024 = vunpack.c.l.b16 %v2297
    %v3025 = vunpack.c.h.b16 %v2297
    %v3026 = vunpack.c.l.b16 %v2298
    %v3027 = vunpack.c.h.b16 %v2298
    %v3028 = vunpack.c.l.b16 %v2299
    %v3029 = vunpack.c.h.b16 %v2299
    %v3030 = vunpack.c.l.b16 %v2300
    %v3031 = vunpack.c.h.b16 %v2300
    %v3032 = vunpack.c.l.b16 %v2301
    %v3033 = vunpack.c.h.b16 %v2301
    %v3034 = vunpack.c.l.b16 %v2302
    %v3035 = vunpack.c.h.b16 %v2302
    %v3036 = vunpack.c.l.b16 %v2303
    %v3037 = vunpack.c.h.b16 %v2303
    %v3038 = vunpack.c.l.b16 %v2304
    %v3039 = vunpack.c.h.b16 %v2304
    %v3040 = vunpack.c.l.b16 %v2305
    %v3041 = vunpack.c.h.b16 %v2305
    %v3042 = vunpack.c.l.b16 %v2306
    %v3043 = vunpack.c.h.b16 %v2306
    %v3044 = vunpack.c.l.b16 %v2307
    %v3045 = vunpack.c.h.b16 %v2307
    %v3046 = vunpack.c.l.b16 %v2308
    %v3047 = vunpack.c.h.b16 %v2308
    %v3048 = vunpack.c.l.b16 %v2309
    %v3049 = vunpack.c.h.b16 %v2309
    %v3050 = vunpack.c.l.b16 %v2310
    %v3051 = vunpack.c.h.b16 %v2310
    %v3052 = vunpack.c.l.b16 %v2311
    %v3053 = vunpack.c.h.b16 %v2311
    %v3054 = vunpack.c.l.b16 %v2312
    %v3055 = vunpack.c.h.b16 %v2312
    %v3056 = vunpack.c.l.b16 %v2313
    %v3057 = vunpack.c.h.b16 %v2313
    %v3058 = vunpack.c.l.b16 %v2314
    %v3059 = vunpack.c.h.b16 %v2314
    %v3060 = vunpack.c.l.b16 %v2315
    %v3061 = vunpack.c.h.b16 %v2315
    %v3062 = vunpack.c.l.b16 %v2316
    %v3063 = vunpack.c.h.b16 %v2316
    %v3064 = vunpack.c.l.b16 %v2317
    %v3065 = vunpack.c.h.b16 %v2317
    %v3066 = vunpack.c.l.b16 %v2318
    %v3067 = vunpack.c.h.b16 %v2318
    %v3068 = vunpack.c.l.b16 %v2319
    %v3069 = vunpack.c.h.b16 %v2319
    %v3070 = vunpack.c.l.b16 %v2320
    %v3071 = vunpack.c.h.b16 %v2320
    %v3072 = vunpack.c.l.b16 %v2321
    %v3073 = vunpack.c.h.b16 %v2321
    %v3074 = vunpack.c.l.b16 %v2322
    %v3075 = vunpack.c.h.b16 %v2322
    %v3076 = vunpack.c.l.b16 %v2323
    %v3077 = vunpack.c.h.b16 %v2323
    %v3078 = vunpack.c.l.b16 %v2324
    %v3079 = vunpack.c.h.b16 %v2324
    %v3080 = vunpack.c.l.b16 %v2325
    %v3081 = vunpack.c.h.b16 %v2325
    %v3082 = vunpack.c.l.b16 %v2326
    %v3083 = vunpack.c.h.b16 %v2326
    %v3084 = vunpack.c.l.b16 %v2327
    %v3085 = vunpack.c.h.b16 %v2327
    %v3086 = vunpack.c.l.b16 %v2328
    %v3087 = vunpack.c.h.b16 %v2328
    %v3088 = vunpack.c.l.b16 %v2329
    %v3089 = vunpack.c.h.b16 %v2329
    %v3090 = vunpack.c.l.b16 %v2330
    %v3091 = vunpack.c.h.b16 %v2330
    %v3092 = vunpack.c.l.b16 %v2331
    %v3093 = vunpack.c.h.b16 %v2331
    %v3094 = vunpack.c.l.b16 %v2332
    %v3095 = vunpack.c.h.b16 %v2332
    %v3096 = vunpack.c.l.b16 %v2333
    %v3097 = vunpack.c.h.b16 %v2333
    %v3098 = vunpack.c.l.b16 %v2334
    %v3099 = vunpack.c.h.b16 %v2334
    %v3100 = vunpack.c.l.b16 %v2335
    %v3101 = vunpack.c.h.b16 %v2335
    %v3102 = vunpack.c.l.b16 %v2336
    %v3103 = vunpack.c.h.b16 %v2336
    %v3104 = vunpack.c.l.b16 %v2337
    %v3105 = vunpack.c.h.b16 %v2337
    %v3106 = vunpack.c.l.b16 %v2338
    %v3107 = vunpack.c.h.b16 %v2338
    %v3108 = vunpack.c.l.b16 %v2339
    %v3109 = vunpack.c.h.b16 %v2339
    %v3110 = vunpack.c.l.b16 %v2340
    %v3111 = vunpack.c.h.b16 %v2340
    %v3112 = vunpack.c.l.b16 %v2341
    %v3113 = vunpack.c.h.b16 %v2341
    %v3114 = vunpack.c.l.b16 %v2342
    %v3115 = vunpack.c.h.b16 %v2342
    %v3116 = vunpack.c.l.b16 %v2343
    %v3117 = vunpack.c.h.b16 %v2343
    %v3118 = vunpack.c.l.b16 %v2344
    %v3119 = vunpack.c.h.b16 %v2344
    %v3120 = vunpack.c.l.b16 %v2345
    %v3121 = vunpack.c.h.b16 %v2345
    %v3122 = vunpack.c.l.b16 %v2346
    %v3123 = vunpack.c.h.b16 %v2346
    %v3124 = vunpack.c.l.b16 %v2347
    %v3125 = vunpack.c.h.b16 %v2347
    %v3126 = vunpack.c.l.b16 %v2348
    %v3127 = vunpack.c.h.b16 %v2348
    %v3128 = vunpack.c.l.b16 %v2349
    %v3129 = vunpack.c.h.b16 %v2349
    %v3130 = vunpack.c.l.b16 %v2350
    %v3131 = vunpack.c.h.b16 %v2350
    %v3132 = vunpack.c.l.b16 %v2351
    %v3133 = vunpack.c.h.b16 %v2351
    %v3134 = vunpack.c.l.b16 %v2352
    %v3135 = vunpack.c.h.b16 %v2352
    %v3136 = vunpack.c.l.b16 %v2353
    %v3137 = vunpack.c.h.b16 %v2353
    %v3138 = vunpack.c.l.b16 %v2354
    %v3139 = vunpack.c.h.b16 %v2354
    %v3140 = vunpack.c.l.b16 %v2355
    %v3141 = vunpack.c.h.b16 %v2355
    %v3142 = vunpack.c.l.b16 %v2356
    %v3143 = vunpack.c.h.b16 %v2356
    %v3144 = vunpack.c.l.b16 %v2357
    %v3145 = vunpack.c.h.b16 %v2357
    %v3146 = vunpack.c.l.b16 %v2358
    %v3147 = vunpack.c.h.b16 %v2358
    %v3148 = vunpack.c.l.b16 %v2359
    %v3149 = vunpack.c.h.b16 %v2359
    %v3150 = vunpack.c.l.b16 %v2360
    %v3151 = vunpack.c.h.b16 %v2360
    %v3152 = vunpack.c.l.b16 %v2361
    %v3153 = vunpack.c.h.b16 %v2361
    %v3154 = vunpack.c.l.b16 %v2362
    %v3155 = vunpack.c.h.b16 %v2362
    %v3156 = vunpack.c.l.b16 %v2363
    %v3157 = vunpack.c.h.b16 %v2363
    %v3158 = vunpack.c.l.b16 %v2364
    %v3159 = vunpack.c.h.b16 %v2364
    %v3160 = vunpack.c.l.b16 %v2365
    %v3161 = vunpack.c.h.b16 %v2365
    %v3162 = vunpack.c.l.b16 %v2366
    %v3163 = vunpack.c.h.b16 %v2366
    %v3164 = vunpack.c.l.b16 %v2367
    %v3165 = vunpack.c.h.b16 %v2367
    %v3166 = vpack.c.b16 %v2658, %v2654
    %v3167 = vpack.c.b16 %v2659, %v2655
    %v3168 = vpack.c.b16 %v2660, %v2656
    %v3169 = vpack.c.b16 %v2661, %v2657
    %v3170 = vpack.c.b16 %v2666, %v2662
    %v3171 = vpack.c.b16 %v2667, %v2663
    %v3172 = vpack.c.b16 %v2668, %v2664
    %v3173 = vpack.c.b16 %v2669, %v2665
    %v3174 = vpack.c.b16 %v2674, %v2670
    %v3175 = vpack.c.b16 %v2675, %v2671
    %v3176 = vpack.c.b16 %v2676, %v2672
    %v3177 = vpack.c.b16 %v2677, %v2673
    %v3178 = vpack.c.b16 %v2682, %v2678
    %v3179 = vpack.c.b16 %v2683, %v2679
    %v3180 = vpack.c.b16 %v2684, %v2680
    %v3181 = vpack.c.b16 %v2685, %v2681
    %v3182 = vpack.c.b16 %v2690, %v2686
    %v3183 = vpack.c.b16 %v2691, %v2687
    %v3184 = vpack.c.b16 %v2692, %v2688
    %v3185 = vpack.c.b16 %v2693, %v2689
    %v3186 = vpack.c.b16 %v2698, %v2694
    %v3187 = vpack.c.b16 %v2699, %v2695
    %v3188 = vpack.c.b16 %v2700, %v2696
    %v3189 = vpack.c.b16 %v2701, %v2697
    %v3190 = vpack.c.b16 %v2706, %v2702
    %v3191 = vpack.c.b16 %v2707, %v2703
    %v3192 = vpack.c.b16 %v2708, %v2704
    %v3193 = vpack.c.b16 %v2709, %v2705
    %v3194 = vpack.c.b16 %v2714, %v2710
    %v3195 = vpack.c.b16 %v2715, %v2711
    %v3196 = vpack.c.b16 %v2716, %v2712
    %v3197 = vpack.c.b16 %v2717, %v2713
    %v3198 = vpack.c.b16 %v2722, %v2718
    %v3199 = vpack.c.b16 %v2723, %v2719
    %v3200 = vpack.c.b16 %v2724, %v2720
    %v3201 = vpack.c.b16 %v2725, %v2721
    %v3202 = vpack.c.b16 %v2730, %v2726
    %v3203 = vpack.c.b16 %v2731, %v2727
    %v3204 = vpack.c.b16 %v2732, %v2728
    %v3205 = vpack.c.b16 %v2733, %v2729
    %v3206 = vpack.c.b16 %v2738, %v2734
    %v3207 = vpack.c.b16 %v2739, %v2735
    %v3208 = vpack.c.b16 %v2740, %v2736
    %v3209 = vpack.c.b16 %v2741, %v2737
    %v3210 = vpack.c.b16 %v2746, %v2742
    %v3211 = vpack.c.b16 %v2747, %v2743
    %v3212 = vpack.c.b16 %v2748, %v2744
    %v3213 = vpack.c.b16 %v2749, %v2745
    %v3214 = vpack.c.b16 %v2754, %v2750
    %v3215 = vpack.c.b16 %v2755, %v2751
    %v3216 = vpack.c.b16 %v2756, %v2752
    %v3217 = vpack.c.b16 %v2757, %v2753
    %v3218 = vpack.c.b16 %v2762, %v2758
    %v3219 = vpack.c.b16 %v2763, %v2759
    %v3220 = vpack.c.b16 %v2764, %v2760
    %v3221 = vpack.c.b16 %v2765, %v2761
    %v3222 = vpack.c.b16 %v2770, %v2766
    %v3223 = vpack.c.b16 %v2771, %v2767
    %v3224 = vpack.c.b16 %v2772, %v2768
    %v3225 = vpack.c.b16 %v2773, %v2769
    %v3226 = vpack.c.b16 %v2778, %v2774
    %v3227 = vpack.c.b16 %v2779, %v2775
    %v3228 = vpack.c.b16 %v2780, %v2776
    %v3229 = vpack.c.b16 %v2781, %v2777
    %v3230 = vpack.c.b16 %v2786, %v2782
    %v3231 = vpack.c.b16 %v2787, %v2783
    %v3232 = vpack.c.b16 %v2788, %v2784
    %v3233 = vpack.c.b16 %v2789, %v2785
    %v3234 = vpack.c.b16 %v2794, %v2790
    %v3235 = vpack.c.b16 %v2795, %v2791
    %v3236 = vpack.c.b16 %v2796, %v2792
    %v3237 = vpack.c.b16 %v2797, %v2793
    %v3238 = vpack.c.b16 %v2802, %v2798
    %v3239 = vpack.c.b16 %v2803, %v2799
    %v3240 = vpack.c.b16 %v2804, %v2800
    %v3241 = vpack.c.b16 %v2805, %v2801
    %v3242 = vpack.c.b16 %v2810, %v2806
    %v3243 = vpack.c.b16 %v2811, %v2807
    %v3244 = vpack.c.b16 %v2812, %v2808
    %v3245 = vpack.c.b16 %v2813, %v2809
    %v3246 = vpack.c.b16 %v2818, %v2814
    %v3247 = vpack.c.b16 %v2819, %v2815
    %v3248 = vpack.c.b16 %v2820, %v2816
    %v3249 = vpack.c.b16 %v2821, %v2817
    %v3250 = vpack.c.b16 %v2826, %v2822
    %v3251 = vpack.c.b16 %v2827, %v2823
    %v3252 = vpack.c.b16 %v2828, %v2824
    %v3253 = vpack.c.b16 %v2829, %v2825
    %v3254 = vpack.c.b16 %v2834, %v2830
    %v3255 = vpack.c.b16 %v2835, %v2831
    %v3256 = vpack.c.b16 %v2836, %v2832
    %v3257 = vpack.c.b16 %v2837, %v2833
    %v3258 = vpack.c.b16 %v2842, %v2838
    %v3259 = vpack.c.b16 %v2843, %v2839
    %v3260 = vpack.c.b16 %v2844, %v2840
    %v3261 = vpack.c.b16 %v2845, %v2841
    %v3262 = vpack.c.b16 %v2850, %v2846
    %v3263 = vpack.c.b16 %v2851, %v2847
    %v3264 = vpack.c.b16 %v2852, %v2848
    %v3265 = vpack.c.b16 %v2853, %v2849
    %v3266 = vpack.c.b16 %v2858, %v2854
    %v3267 = vpack.c.b16 %v2859, %v2855
    %v3268 = vpack.c.b16 %v2860, %v2856
    %v3269 = vpack.c.b16 %v2861, %v2857
    %v3270 = vpack.c.b16 %v2866, %v2862
    %v3271 = vpack.c.b16 %v2867, %v2863
    %v3272 = vpack.c.b16 %v2868, %v2864
    %v3273 = vpack.c.b16 %v2869, %v2865
    %v3274 = vpack.c.b16 %v2874, %v2870
    %v3275 = vpack.c.b16 %v2875, %v2871
    %v3276 = vpack.c.b16 %v2876, %v2872
    %v3277 = vpack.c.b16 %v2877, %v2873
    %v3278 = vpack.c.b16 %v2882, %v2878
    %v3279 = vpack.c.b16 %v2883, %v2879
    %v3280 = vpack.c.b16 %v2884, %v2880
    %v3281 = vpack.c.b16 %v2885, %v2881
    %v3282 = vpack.c.b16 %v2890, %v2886
    %v3283 = vpack.c.b16 %v2891, %v2887
    %v3284 = vpack.c.b16 %v2892, %v2888
    %v3285 = vpack.c.b16 %v2893, %v2889
    %v3286 = vpack.c.b16 %v2898, %v2894
    %v3287 = vpack.c.b16 %v2899, %v2895
    %v3288 = vpack.c.b16 %v2900, %v2896
    %v3289 = vpack.c.b16 %v2901, %v2897
    %v3290 = vpack.c.b16 %v2906, %v2902
    %v3291 = vpack.c.b16 %v2907, %v2903
    %v3292 = vpack.c.b16 %v2908, %v2904
    %v3293 = vpack.c.b16 %v2909, %v2905
    %v3294 = vpack.c.b16 %v2914, %v2910
    %v3295 = vpack.c.b16 %v2915, %v2911
    %v3296 = vpack.c.b16 %v2916, %v2912
    %v3297 = vpack.c.b16 %v2917, %v2913
    %v3298 = vpack.c.b16 %v2922, %v2918
    %v3299 = vpack.c.b16 %v2923, %v2919
    %v3300 = vpack.c.b16 %v2924, %v2920
    %v3301 = vpack.c.b16 %v2925, %v2921
    %v3302 = vpack.c.b16 %v2930, %v2926
    %v3303 = vpack.c.b16 %v2931, %v2927
    %v3304 = vpack.c.b16 %v2932, %v2928
    %v3305 = vpack.c.b16 %v2933, %v2929
    %v3306 = vpack.c.b16 %v2938, %v2934
    %v3307 = vpack.c.b16 %v2939, %v2935
    %v3308 = vpack.c.b16 %v2940, %v2936
    %v3309 = vpack.c.b16 %v2941, %v2937
    %v3310 = vpack.c.b16 %v2946, %v2942
    %v3311 = vpack.c.b16 %v2947, %v2943
    %v3312 = vpack.c.b16 %v2948, %v2944
    %v3313 = vpack.c.b16 %v2949, %v2945
    %v3314 = vpack.c.b16 %v2954, %v2950
    %v3315 = vpack.c.b16 %v2955, %v2951
    %v3316 = vpack.c.b16 %v2956, %v2952
    %v3317 = vpack.c.b16 %v2957, %v2953
    %v3318 = vpack.c.b16 %v2962, %v2958
    %v3319 = vpack.c.b16 %v2963, %v2959
    %v3320 = vpack.c.b16 %v2964, %v2960
    %v3321 = vpack.c.b16 %v2965, %v2961
    %v3322 = vpack.c.b16 %v2970, %v2966
    %v3323 = vpack.c.b16 %v2971, %v2967
    %v3324 = vpack.c.b16 %v2972, %v2968
    %v3325 = vpack.c.b16 %v2973, %v2969
    %v3326 = vpack.c.b16 %v2978, %v2974
    %v3327 = vpack.c.b16 %v2979, %v2975
    %v3328 = vpack.c.b16 %v2980, %v2976
    %v3329 = vpack.c.b16 %v2981, %v2977
    %v3330 = vpack.c.b16 %v2986, %v2982
    %v3331 = vpack.c.b16 %v2987, %v2983
    %v3332 = vpack.c.b16 %v2988, %v2984
    %v3333 = vpack.c.b16 %v2989, %v2985
    %v3334 = vpack.c.b16 %v2994, %v2990
    %v3335 = vpack.c.b16 %v2995, %v2991
    %v3336 = vpack.c.b16 %v2996, %v2992
    %v3337 = vpack.c.b16 %v2997, %v2993
    %v3338 = vpack.c.b16 %v3002, %v2998
    %v3339 = vpack.c.b16 %v3003, %v2999
    %v3340 = vpack.c.b16 %v3004, %v3000
    %v3341 = vpack.c.b16 %v3005, %v3001
    %v3342 = vpack.c.b16 %v3010, %v3006
    %v3343 = vpack.c.b16 %v3011, %v3007
    %v3344 = vpack.c.b16 %v3012, %v3008
    %v3345 = vpack.c.b16 %v3013, %v3009
    %v3346 = vpack.c.b16 %v3018, %v3014
    %v3347 = vpack.c.b16 %v3019, %v3015
    %v3348 = vpack.c.b16 %v3020, %v3016
    %v3349 = vpack.c.b16 %v3021, %v3017
    %v3350 = vpack.c.b16 %v3026, %v3022
    %v3351 = vpack.c.b16 %v3027, %v3023
    %v3352 = vpack.c.b16 %v3028, %v3024
    %v3353 = vpack.c.b16 %v3029, %v3025
    %v3354 = vpack.c.b16 %v3034, %v3030
    %v3355 = vpack.c.b16 %v3035, %v3031
    %v3356 = vpack.c.b16 %v3036, %v3032
    %v3357 = vpack.c.b16 %v3037, %v3033
    %v3358 = vpack.c.b16 %v3042, %v3038
    %v3359 = vpack.c.b16 %v3043, %v3039
    %v3360 = vpack.c.b16 %v3044, %v3040
    %v3361 = vpack.c.b16 %v3045, %v3041
    %v3362 = vpack.c.b16 %v3050, %v3046
    %v3363 = vpack.c.b16 %v3051, %v3047
    %v3364 = vpack.c.b16 %v3052, %v3048
    %v3365 = vpack.c.b16 %v3053, %v3049
    %v3366 = vpack.c.b16 %v3058, %v3054
    %v3367 = vpack.c.b16 %v3059, %v3055
    %v3368 = vpack.c.b16 %v3060, %v3056
    %v3369 = vpack.c.b16 %v3061, %v3057
    %v3370 = vpack.c.b16 %v3066, %v3062
    %v3371 = vpack.c.b16 %v3067, %v3063
    %v3372 = vpack.c.b16 %v3068, %v3064
    %v3373 = vpack.c.b16 %v3069, %v3065
    %v3374 = vpack.c.b16 %v3074, %v3070
    %v3375 = vpack.c.b16 %v3075, %v3071
    %v3376 = vpack.c.b16 %v3076, %v3072
    %v3377 = vpack.c.b16 %v3077, %v3073
    %v3378 = vpack.c.b16 %v3082, %v3078
    %v3379 = vpack.c.b16 %v3083, %v3079
    %v3380 = vpack.c.b16 %v3084, %v3080
    %v3381 = vpack.c.b16 %v3085, %v3081
    %v3382 = vpack.c.b16 %v3090, %v3086
    %v3383 = vpack.c.b16 %v3091, %v3087
    %v3384 = vpack.c.b16 %v3092, %v3088
    %v3385 = vpack.c.b16 %v3093, %v3089
    %v3386 = vpack.c.b16 %v3098, %v3094
    %v3387 = vpack.c.b16 %v3099, %v3095
    %v3388 = vpack.c.b16 %v3100, %v3096
    %v3389 = vpack.c.b16 %v3101, %v3097
    %v3390 = vpack.c.b16 %v3106, %v3102
    %v3391 = vpack.c.b16 %v3107, %v3103
    %v3392 = vpack.c.b16 %v3108, %v3104
    %v3393 = vpack.c.b16 %v3109, %v3105
    %v3394 = vpack.c.b16 %v3114, %v3110
    %v3395 = vpack.c.b16 %v3115, %v3111
    %v3396 = vpack.c.b16 %v3116, %v3112
    %v3397 = vpack.c.b16 %v3117, %v3113
    %v3398 = vpack.c.b16 %v3122, %v3118
    %v3399 = vpack.c.b16 %v3123, %v3119
    %v3400 = vpack.c.b16 %v3124, %v3120
    %v3401 = vpack.c.b16 %v3125, %v3121
    %v3402 = vpack.c.b16 %v3130, %v3126
    %v3403 = vpack.c.b16 %v3131, %v3127
    %v3404 = vpack.c.b16 %v3132, %v3128
    %v3405 = vpack.c.b16 %v3133, %v3129
    %v3406 = vpack.c.b16 %v3138, %v3134
    %v3407 = vpack.c.b16 %v3139, %v3135
    %v3408 = vpack.c.b16 %v3140, %v3136
    %v3409 = vpack.c.b16 %v3141, %v3137
    %v3410 = vpack.c.b16 %v3146, %v3142
    %v3411 = vpack.c.b16 %v3147, %v3143
    %v3412 = vpack.c.b16 %v3148, %v3144
    %v3413 = vpack.c.b16 %v3149, %v3145
    %v3414 = vpack.c.b16 %v3154, %v3150
    %v3415 = vpack.c.b16 %v3155, %v3151
    %v3416 = vpack.c.b16 %v3156, %v3152
    %v3417 = vpack.c.b16 %v3157, %v3153
    %v3418 = vpack.c.b16 %v3162, %v3158
    %v3419 = vpack.c.b16 %v3163, %v3159
    %v3420 = vpack.c.b16 %v3164, %v3160
    %v3421 = vpack.c.b16 %v3165, %v3161
    %3678 = vmatprep.subr.bf16.mxu0 %v3167
    %3679 = vmatpush1.bf16.msra.mxu0 %v3166
    %3680 = vmatprep.subr.bf16.mxu0 %v3171
    %3681 = vmatpush1.bf16.msra.mxu0 %v3170
    %3682 = vmatprep.subr.bf16.mxu0 %v3175
    %3683 = vmatpush1.bf16.msra.mxu0 %v3174
    %3684 = vmatprep.subr.bf16.mxu0 %v3179
    %3685 = vmatpush1.bf16.msra.mxu0 %v3178
    %3686 = vmatprep.subr.bf16.mxu0 %v3183
    %3687 = vmatpush1.bf16.msra.mxu0 %v3182
    %3688 = vmatprep.subr.bf16.mxu0 %v3187
    %3689 = vmatpush1.bf16.msra.mxu0 %v3186
    %3690 = vmatprep.subr.bf16.mxu0 %v3191
    %3691 = vmatpush1.bf16.msra.mxu0 %v3190
    %3692 = vmatprep.subr.bf16.mxu0 %v3195
    %3693 = vmatpush1.bf16.msra.mxu0 %v3194
    %3694 = vmatprep.subr.bf16.mxu0 %v3199
    %3695 = vmatpush1.bf16.msra.mxu0 %v3198
    %3696 = vmatprep.subr.bf16.mxu0 %v3203
    %3697 = vmatpush1.bf16.msra.mxu0 %v3202
    %3698 = vmatprep.subr.bf16.mxu0 %v3207
    %3699 = vmatpush1.bf16.msra.mxu0 %v3206
    %3700 = vmatprep.subr.bf16.mxu0 %v3211
    %3701 = vmatpush1.bf16.msra.mxu0 %v3210
    %3702 = vmatprep.subr.bf16.mxu0 %v3215
    %3703 = vmatpush1.bf16.msra.mxu0 %v3214
    %3704 = vmatprep.subr.bf16.mxu0 %v3219
    %3705 = vmatpush1.bf16.msra.mxu0 %v3218
    %3706 = vmatprep.subr.bf16.mxu0 %v3223
    %3707 = vmatpush1.bf16.msra.mxu0 %v3222
    %3708 = vmatprep.subr.bf16.mxu0 %v3227
    %3709 = vmatpush1.bf16.msra.mxu0 %v3226
    %3710 = vmatprep.mubr.bf16.mxu0 %v2370
    %3711 = vmatmul.mubr.bf16.gmra.mrb[0].mxu0 %v2369
    %v3712 = vpop.f32.mrb[0].mxu0
    %v3713 = vadd.f32 %v2381, %v3712
    %v3714 = vpop.f32.mrb[0].mxu0
    %v3715 = vadd.f32 %v2385, %v3714
    %v3716 = vpop.f32.mrb[0].mxu0
    %v3717 = vpop.f32.mrb[0].mxu0
    %3718 = vdwg.mxu0
    %3719 = vmatprep.subr.bf16.mxu0 %v3231
    %3720 = vmatpush1.bf16.msra.mxu0 %v3230
    %3721 = vmatprep.subr.bf16.mxu0 %v3235
    %3722 = vmatpush1.bf16.msra.mxu0 %v3234
    %3723 = vmatprep.subr.bf16.mxu0 %v3239
    %3724 = vmatpush1.bf16.msra.mxu0 %v3238
    %3725 = vmatprep.subr.bf16.mxu0 %v3243
    %3726 = vmatpush1.bf16.msra.mxu0 %v3242
    %3727 = vmatprep.subr.bf16.mxu0 %v3247
    %3728 = vmatpush1.bf16.msra.mxu0 %v3246
    %3729 = vmatprep.subr.bf16.mxu0 %v3251
    %3730 = vmatpush1.bf16.msra.mxu0 %v3250
    %3731 = vmatprep.subr.bf16.mxu0 %v3255
    %3732 = vmatpush1.bf16.msra.mxu0 %v3254
    %3733 = vmatprep.subr.bf16.mxu0 %v3259
    %3734 = vmatpush1.bf16.msra.mxu0 %v3258
    %3735 = vmatprep.subr.bf16.mxu0 %v3263
    %3736 = vmatpush1.bf16.msra.mxu0 %v3262
    %3737 = vmatprep.subr.bf16.mxu0 %v3267
    %3738 = vmatpush1.bf16.msra.mxu0 %v3266
    %3739 = vmatprep.subr.bf16.mxu0 %v3271
    %3740 = vmatpush1.bf16.msra.mxu0 %v3270
    %3741 = vmatprep.subr.bf16.mxu0 %v3275
    %3742 = vmatpush1.bf16.msra.mxu0 %v3274
    %3743 = vmatprep.subr.bf16.mxu0 %v3279
    %3744 = vmatpush1.bf16.msra.mxu0 %v3278
    %3745 = vmatprep.subr.bf16.mxu0 %v3283
    %3746 = vmatpush1.bf16.msra.mxu0 %v3282
    %3747 = vmatprep.subr.bf16.mxu0 %v3287
    %3748 = vmatpush1.bf16.msra.mxu0 %v3286
    %3749 = vmatprep.subr.bf16.mxu0 %v3291
    %3750 = vmatpush1.bf16.msra.mxu0 %v3290
    %3751 = vmatprep.mubr.bf16.mxu0 %v2372
    %3752 = vmatmul.mubr.bf16.gmra.mrb[0].mxu0 %v2371
    %v3753 = vpop.f32.mrb[0].mxu0
    %v3754 = vadd.f32 %v3713, %v3753
    %v3755 = vpop.f32.mrb[0].mxu0
    %v3756 = vadd.f32 %v3715, %v3755
    %v3757 = vpop.f32.mrb[0].mxu0
    %v3758 = vpop.f32.mrb[0].mxu0
    %3759 = vdwg.mxu0
    %3760 = vmatprep.subr.bf16.mxu0 %v3295
    %3761 = vmatpush1.bf16.msra.mxu0 %v3294
    %3762 = vmatprep.subr.bf16.mxu0 %v3299
    %3763 = vmatpush1.bf16.msra.mxu0 %v3298
    %3764 = vmatprep.subr.bf16.mxu0 %v3303
    %3765 = vmatpush1.bf16.msra.mxu0 %v3302
    %3766 = vmatprep.subr.bf16.mxu0 %v3307
    %3767 = vmatpush1.bf16.msra.mxu0 %v3306
    %3768 = vmatprep.subr.bf16.mxu0 %v3311
    %3769 = vmatpush1.bf16.msra.mxu0 %v3310
    %3770 = vmatprep.subr.bf16.mxu0 %v3315
    %3771 = vmatpush1.bf16.msra.mxu0 %v3314
    %3772 = vmatprep.subr.bf16.mxu0 %v3319
    %3773 = vmatpush1.bf16.msra.mxu0 %v3318
    %3774 = vmatprep.subr.bf16.mxu0 %v3323
    %3775 = vmatpush1.bf16.msra.mxu0 %v3322
    %3776 = vmatprep.subr.bf16.mxu0 %v3327
    %3777 = vmatpush1.bf16.msra.mxu0 %v3326
    %3778 = vmatprep.subr.bf16.mxu0 %v3331
    %3779 = vmatpush1.bf16.msra.mxu0 %v3330
    %3780 = vmatprep.subr.bf16.mxu0 %v3335
    %3781 = vmatpush1.bf16.msra.mxu0 %v3334
    %3782 = vmatprep.subr.bf16.mxu0 %v3339
    %3783 = vmatpush1.bf16.msra.mxu0 %v3338
    %3784 = vmatprep.subr.bf16.mxu0 %v3343
    %3785 = vmatpush1.bf16.msra.mxu0 %v3342
    %3786 = vmatprep.subr.bf16.mxu0 %v3347
    %3787 = vmatpush1.bf16.msra.mxu0 %v3346
    %3788 = vmatprep.subr.bf16.mxu0 %v3351
    %3789 = vmatpush1.bf16.msra.mxu0 %v3350
    %3790 = vmatprep.subr.bf16.mxu0 %v3355
    %3791 = vmatpush1.bf16.msra.mxu0 %v3354
    %3792 = vmatprep.mubr.bf16.mxu0 %v2374
    %3793 = vmatmul.mubr.bf16.gmra.mrb[0].mxu0 %v2373
    %v3794 = vpop.f32.mrb[0].mxu0
    %v3795 = vadd.f32 %v3754, %v3794
    %v3796 = vpop.f32.mrb[0].mxu0
    %v3797 = vadd.f32 %v3756, %v3796
    %v3798 = vpop.f32.mrb[0].mxu0
    %v3799 = vpop.f32.mrb[0].mxu0
    %3800 = vdwg.mxu0
    %3801 = vmatprep.subr.bf16.mxu0 %v3359
    %3802 = vmatpush1.bf16.msra.mxu0 %v3358
    %3803 = vmatprep.subr.bf16.mxu0 %v3363
    %3804 = vmatpush1.bf16.msra.mxu0 %v3362
    %3805 = vmatprep.subr.bf16.mxu0 %v3367
    %3806 = vmatpush1.bf16.msra.mxu0 %v3366
    %3807 = vmatprep.subr.bf16.mxu0 %v3371
    %3808 = vmatpush1.bf16.msra.mxu0 %v3370
    %3809 = vmatprep.subr.bf16.mxu0 %v3375
    %3810 = vmatpush1.bf16.msra.mxu0 %v3374
    %3811 = vmatprep.subr.bf16.mxu0 %v3379
    %3812 = vmatpush1.bf16.msra.mxu0 %v3378
    %3813 = vmatprep.subr.bf16.mxu0 %v3383
    %3814 = vmatpush1.bf16.msra.mxu0 %v3382
    %3815 = vmatprep.subr.bf16.mxu0 %v3387
    %3816 = vmatpush1.bf16.msra.mxu0 %v3386
    %3817 = vmatprep.subr.bf16.mxu0 %v3391
    %3818 = vmatpush1.bf16.msra.mxu0 %v3390
    %3819 = vmatprep.subr.bf16.mxu0 %v3395
    %3820 = vmatpush1.bf16.msra.mxu0 %v3394
    %3821 = vmatprep.subr.bf16.mxu0 %v3399
    %3822 = vmatpush1.bf16.msra.mxu0 %v3398
    %3823 = vmatprep.subr.bf16.mxu0 %v3403
    %3824 = vmatpush1.bf16.msra.mxu0 %v3402
    %3825 = vmatprep.subr.bf16.mxu0 %v3407
    %3826 = vmatpush1.bf16.msra.mxu0 %v3406
    %3827 = vmatprep.subr.bf16.mxu0 %v3411
    %3828 = vmatpush1.bf16.msra.mxu0 %v3410
    %3829 = vmatprep.subr.bf16.mxu0 %v3415
    %3830 = vmatpush1.bf16.msra.mxu0 %v3414
    %3831 = vmatprep.subr.bf16.mxu0 %v3419
    %3832 = vmatpush1.bf16.msra.mxu0 %v3418
    %3833 = vmatprep.mubr.bf16.mxu0 %v2376
    %3834 = vmatmul.mubr.bf16.gmra.mrb[0].mxu0 %v2375
    %v3835 = vpop.f32.mrb[0].mxu0
    %v3836 = vadd.f32 %v3795, %v3835
    %v3837 = vpop.f32.mrb[0].mxu0
    %v3838 = vadd.f32 %v3797, %v3837
    %v3839 = vpop.f32.mrb[0].mxu0
    %v3840 = vpop.f32.mrb[0].mxu0
    %3841 = vdwg.mxu0
    %3842 = vmatprep.subr.bf16.mxu0 %v3169
    %3843 = vmatpush1.bf16.msra.mxu0 %v3168
    %3844 = vmatprep.subr.bf16.mxu0 %v3173
    %3845 = vmatpush1.bf16.msra.mxu0 %v3172
    %3846 = vmatprep.subr.bf16.mxu0 %v3177
    %3847 = vmatpush1.bf16.msra.mxu0 %v3176
    %3848 = vmatprep.subr.bf16.mxu0 %v3181
    %3849 = vmatpush1.bf16.msra.mxu0 %v3180
    %3850 = vmatprep.subr.bf16.mxu0 %v3185
    %3851 = vmatpush1.bf16.msra.mxu0 %v3184
    %3852 = vmatprep.subr.bf16.mxu0 %v3189
    %3853 = vmatpush1.bf16.msra.mxu0 %v3188
    %3854 = vmatprep.subr.bf16.mxu0 %v3193
    %3855 = vmatpush1.bf16.msra.mxu0 %v3192
    %3856 = vmatprep.subr.bf16.mxu0 %v3197
    %3857 = vmatpush1.bf16.msra.mxu0 %v3196
    %3858 = vmatprep.subr.bf16.mxu0 %v3201
    %3859 = vmatpush1.bf16.msra.mxu0 %v3200
    %3860 = vmatprep.subr.bf16.mxu0 %v3205
    %3861 = vmatpush1.bf16.msra.mxu0 %v3204
    %3862 = vmatprep.subr.bf16.mxu0 %v3209
    %3863 = vmatpush1.bf16.msra.mxu0 %v3208
    %3864 = vmatprep.subr.bf16.mxu0 %v3213
    %3865 = vmatpush1.bf16.msra.mxu0 %v3212
    %3866 = vmatprep.subr.bf16.mxu0 %v3217
    %3867 = vmatpush1.bf16.msra.mxu0 %v3216
    %3868 = vmatprep.subr.bf16.mxu0 %v3221
    %3869 = vmatpush1.bf16.msra.mxu0 %v3220
    %3870 = vmatprep.subr.bf16.mxu0 %v3225
    %3871 = vmatpush1.bf16.msra.mxu0 %v3224
    %3872 = vmatprep.subr.bf16.mxu0 %v3229
    %3873 = vmatpush1.bf16.msra.mxu0 %v3228
    %3874 = vmatprep.mubr.bf16.mxu0 %v2370
    %3875 = vmatmul.mubr.bf16.gmra.mrb[0].mxu0 %v2369
    %v3876 = vpop.f32.mrb[0].mxu0
    %v3877 = vadd.f32 %v2389, %v3876
    %v3878 = vpop.f32.mrb[0].mxu0
    %v3879 = vadd.f32 %v2393, %v3878
    %v3880 = vpop.f32.mrb[0].mxu0
    %v3881 = vpop.f32.mrb[0].mxu0
    %3882 = vdwg.mxu0
    %3883 = vmatprep.subr.bf16.mxu0 %v3233
    %3884 = vmatpush1.bf16.msra.mxu0 %v3232
    %3885 = vmatprep.subr.bf16.mxu0 %v3237
    %3886 = vmatpush1.bf16.msra.mxu0 %v3236
    %3887 = vmatprep.subr.bf16.mxu0 %v3241
    %3888 = vmatpush1.bf16.msra.mxu0 %v3240
    %3889 = vmatprep.subr.bf16.mxu0 %v3245
    %3890 = vmatpush1.bf16.msra.mxu0 %v3244
    %3891 = vmatprep.subr.bf16.mxu0 %v3249
    %3892 = vmatpush1.bf16.msra.mxu0 %v3248
    %3893 = vmatprep.subr.bf16.mxu0 %v3253
    %3894 = vmatpush1.bf16.msra.mxu0 %v3252
    %3895 = vmatprep.subr.bf16.mxu0 %v3257
    %3896 = vmatpush1.bf16.msra.mxu0 %v3256
    %3897 = vmatprep.subr.bf16.mxu0 %v3261
    %3898 = vmatpush1.bf16.msra.mxu0 %v3260
    %3899 = vmatprep.subr.bf16.mxu0 %v3265
    %3900 = vmatpush1.bf16.msra.mxu0 %v3264
    %3901 = vmatprep.subr.bf16.mxu0 %v3269
    %3902 = vmatpush1.bf16.msra.mxu0 %v3268
    %3903 = vmatprep.subr.bf16.mxu0 %v3273
    %3904 = vmatpush1.bf16.msra.mxu0 %v3272
    %3905 = vmatprep.subr.bf16.mxu0 %v3277
    %3906 = vmatpush1.bf16.msra.mxu0 %v3276
    %3907 = vmatprep.subr.bf16.mxu0 %v3281
    %3908 = vmatpush1.bf16.msra.mxu0 %v3280
    %3909 = vmatprep.subr.bf16.mxu0 %v3285
    %3910 = vmatpush1.bf16.msra.mxu0 %v3284
    %3911 = vmatprep.subr.bf16.mxu0 %v3289
    %3912 = vmatpush1.bf16.msra.mxu0 %v3288
    %3913 = vmatprep.subr.bf16.mxu0 %v3293
    %3914 = vmatpush1.bf16.msra.mxu0 %v3292
    %3915 = vmatprep.mubr.bf16.mxu0 %v2372
    %3916 = vmatmul.mubr.bf16.gmra.mrb[0].mxu0 %v2371
    %v3917 = vpop.f32.mrb[0].mxu0
    %v3918 = vadd.f32 %v3877, %v3917
    %v3919 = vpop.f32.mrb[0].mxu0
    %v3920 = vadd.f32 %v3879, %v3919
    %v3921 = vpop.f32.mrb[0].mxu0
    %v3922 = vpop.f32.mrb[0].mxu0
    %3923 = vdwg.mxu0
    %3924 = vmatprep.subr.bf16.mxu0 %v3297
    %3925 = vmatpush1.bf16.msra.mxu0 %v3296
    %3926 = vmatprep.subr.bf16.mxu0 %v3301
    %3927 = vmatpush1.bf16.msra.mxu0 %v3300
    %3928 = vmatprep.subr.bf16.mxu0 %v3305
    %3929 = vmatpush1.bf16.msra.mxu0 %v3304
    %3930 = vmatprep.subr.bf16.mxu0 %v3309
    %3931 = vmatpush1.bf16.msra.mxu0 %v3308
    %3932 = vmatprep.subr.bf16.mxu0 %v3313
    %3933 = vmatpush1.bf16.msra.mxu0 %v3312
    %3934 = vmatprep.subr.bf16.mxu0 %v3317
    %3935 = vmatpush1.bf16.msra.mxu0 %v3316
    %3936 = vmatprep.subr.bf16.mxu0 %v3321
    %3937 = vmatpush1.bf16.msra.mxu0 %v3320
    %3938 = vmatprep.subr.bf16.mxu0 %v3325
    %3939 = vmatpush1.bf16.msra.mxu0 %v3324
    %3940 = vmatprep.subr.bf16.mxu0 %v3329
    %3941 = vmatpush1.bf16.msra.mxu0 %v3328
    %3942 = vmatprep.subr.bf16.mxu0 %v3333
    %3943 = vmatpush1.bf16.msra.mxu0 %v3332
    %3944 = vmatprep.subr.bf16.mxu0 %v3337
    %3945 = vmatpush1.bf16.msra.mxu0 %v3336
    %3946 = vmatprep.subr.bf16.mxu0 %v3341
    %3947 = vmatpush1.bf16.msra.mxu0 %v3340
    %3948 = vmatprep.subr.bf16.mxu0 %v3345
    %3949 = vmatpush1.bf16.msra.mxu0 %v3344
    %3950 = vmatprep.subr.bf16.mxu0 %v3349
    %3951 = vmatpush1.bf16.msra.mxu0 %v3348
    %3952 = vmatprep.subr.bf16.mxu0 %v3353
    %3953 = vmatpush1.bf16.msra.mxu0 %v3352
    %3954 = vmatprep.subr.bf16.mxu0 %v3357
    %3955 = vmatpush1.bf16.msra.mxu0 %v3356
    %3956 = vmatprep.mubr.bf16.mxu0 %v2374
    %3957 = vmatmul.mubr.bf16.gmra.mrb[0].mxu0 %v2373
    %v3958 = vpop.f32.mrb[0].mxu0
    %v3959 = vadd.f32 %v3918, %v3958
    %v3960 = vpop.f32.mrb[0].mxu0
    %v3961 = vadd.f32 %v3920, %v3960
    %v3962 = vpop.f32.mrb[0].mxu0
    %v3963 = vpop.f32.mrb[0].mxu0
    %3964 = vdwg.mxu0
    %3965 = vmatprep.subr.bf16.mxu0 %v3361
    %3966 = vmatpush1.bf16.msra.mxu0 %v3360
    %3967 = vmatprep.subr.bf16.mxu0 %v3365
    %3968 = vmatpush1.bf16.msra.mxu0 %v3364
    %3969 = vmatprep.subr.bf16.mxu0 %v3369
    %3970 = vmatpush1.bf16.msra.mxu0 %v3368
    %3971 = vmatprep.subr.bf16.mxu0 %v3373
    %3972 = vmatpush1.bf16.msra.mxu0 %v3372
    %3973 = vmatprep.subr.bf16.mxu0 %v3377
    %3974 = vmatpush1.bf16.msra.mxu0 %v3376
    %3975 = vmatprep.subr.bf16.mxu0 %v3381
    %3976 = vmatpush1.bf16.msra.mxu0 %v3380
    %3977 = vmatprep.subr.bf16.mxu0 %v3385
    %3978 = vmatpush1.bf16.msra.mxu0 %v3384
    %3979 = vmatprep.subr.bf16.mxu0 %v3389
    %3980 = vmatpush1.bf16.msra.mxu0 %v3388
    %3981 = vmatprep.subr.bf16.mxu0 %v3393
    %3982 = vmatpush1.bf16.msra.mxu0 %v3392
    %3983 = vmatprep.subr.bf16.mxu0 %v3397
    %3984 = vmatpush1.bf16.msra.mxu0 %v3396
    %3985 = vmatprep.subr.bf16.mxu0 %v3401
    %3986 = vmatpush1.bf16.msra.mxu0 %v3400
    %3987 = vmatprep.subr.bf16.mxu0 %v3405
    %3988 = vmatpush1.bf16.msra.mxu0 %v3404
    %3989 = vmatprep.subr.bf16.mxu0 %v3409
    %3990 = vmatpush1.bf16.msra.mxu0 %v3408
    %3991 = vmatprep.subr.bf16.mxu0 %v3413
    %3992 = vmatpush1.bf16.msra.mxu0 %v3412
    %3993 = vmatprep.subr.bf16.mxu0 %v3417
    %3994 = vmatpush1.bf16.msra.mxu0 %v3416
    %3995 = vmatprep.subr.bf16.mxu0 %v3421
    %3996 = vmatpush1.bf16.msra.mxu0 %v3420
    %3997 = vmatprep.mubr.bf16.mxu0 %v2376
    %3998 = vmatmul.mubr.bf16.gmra.mrb[0].mxu0 %v2375
    %v3999 = vpop.f32.mrb[0].mxu0
    %v4000 = vadd.f32 %v3959, %v3999
    %v4001 = vpop.f32.mrb[0].mxu0
    %v4002 = vadd.f32 %v3961, %v4001
    %v4003 = vpop.f32.mrb[0].mxu0
    %v4004 = vpop.f32.mrb[0].mxu0
    %4005 = vdwg.mxu0
    %v4006 = vmax.f32 %v3836, 0.0
    %v4007 = vmax.f32 %v3838, 0.0
    %v4008 = vmax.f32 %v4000, 0.0
    %v4009 = vmax.f32 %v4002, 0.0
    %v4010 = vld [vmem:[#allocation10] sm:$0xff]
    %v4011 = vld [vmem:[#allocation10 + $0x8] sm:$0xff]
    %v4012 = vld [vmem:[#allocation10 + $0x10] sm:$0xff]
    %v4013 = vld [vmem:[#allocation10 + $0x18] sm:$0xff]
    %v4014 = vld [vmem:[#allocation10 + $0x20] sm:$0xff]
    %v4015 = vld [vmem:[#allocation10 + $0x28] sm:$0xff]
    %v4016 = vld [vmem:[#allocation10 + $0x30] sm:$0xff]
    %v4017 = vld [vmem:[#allocation10 + $0x38] sm:$0xff]
    %v4018 = vld [vmem:[#allocation10 + $0x40] sm:$0xff]
    %v4019 = vld [vmem:[#allocation10 + $0x48] sm:$0xff]
    %v4020 = vld [vmem:[#allocation10 + $0x50] sm:$0xff]
    %v4021 = vld [vmem:[#allocation10 + $0x58] sm:$0xff]
    %v4022 = vld [vmem:[#allocation10 + $0x60] sm:$0xff]
    %v4023 = vld [vmem:[#allocation10 + $0x68] sm:$0xff]
    %v4024 = vld [vmem:[#allocation10 + $0x70] sm:$0xff]
    %v4025 = vld [vmem:[#allocation10 + $0x78] sm:$0xff]
    %v4026 = vld [vmem:[#allocation10 + $0x80] sm:$0xff]
    %v4027 = vld [vmem:[#allocation10 + $0x88] sm:$0xff]
    %v4028 = vld [vmem:[#allocation10 + $0x90] sm:$0xff]
    %v4029 = vld [vmem:[#allocation10 + $0x98] sm:$0xff]
    %v4030 = vld [vmem:[#allocation10 + $0xa0] sm:$0xff]
    %v4031 = vld [vmem:[#allocation10 + $0xa8] sm:$0xff]
    %v4032 = vld [vmem:[#allocation10 + $0xb0] sm:$0xff]
    %v4033 = vld [vmem:[#allocation10 + $0xb8] sm:$0xff]
    %v4034 = vld [vmem:[#allocation10 + $0xc0] sm:$0xff]
    %v4035 = vld [vmem:[#allocation10 + $0xc8] sm:$0xff]
    %v4036 = vld [vmem:[#allocation10 + $0xd0] sm:$0xff]
    %v4037 = vld [vmem:[#allocation10 + $0xd8] sm:$0xff]
    %v4038 = vld [vmem:[#allocation10 + $0xe0] sm:$0xff]
    %v4039 = vld [vmem:[#allocation10 + $0xe8] sm:$0xff]
    %v4040 = vld [vmem:[#allocation10 + $0xf0] sm:$0xff]
    %v4041 = vld [vmem:[#allocation10 + $0xf8] sm:$0xff]
    %v4042 = vld [vmem:[#allocation10 + $0x100] sm:$0xff]
    %v4043 = vld [vmem:[#allocation10 + $0x108] sm:$0xff]
    %v4044 = vld [vmem:[#allocation10 + $0x110] sm:$0xff]
    %v4045 = vld [vmem:[#allocation10 + $0x118] sm:$0xff]
    %v4046 = vld [vmem:[#allocation10 + $0x120] sm:$0xff]
    %v4047 = vld [vmem:[#allocation10 + $0x128] sm:$0xff]
    %v4048 = vld [vmem:[#allocation10 + $0x130] sm:$0xff]
    %v4049 = vld [vmem:[#allocation10 + $0x138] sm:$0xff]
    %v4050 = vld [vmem:[#allocation10 + $0x140] sm:$0xff]
    %v4051 = vld [vmem:[#allocation10 + $0x148] sm:$0xff]
    %v4052 = vld [vmem:[#allocation10 + $0x150] sm:$0xff]
    %v4053 = vld [vmem:[#allocation10 + $0x158] sm:$0xff]
    %v4054 = vld [vmem:[#allocation10 + $0x160] sm:$0xff]
    %v4055 = vld [vmem:[#allocation10 + $0x168] sm:$0xff]
    %v4056 = vld [vmem:[#allocation10 + $0x170] sm:$0xff]
    %v4057 = vld [vmem:[#allocation10 + $0x178] sm:$0xff]
    %v4058 = vld [vmem:[#allocation10 + $0x180] sm:$0xff]
    %v4059 = vld [vmem:[#allocation10 + $0x188] sm:$0xff]
    %v4060 = vld [vmem:[#allocation10 + $0x190] sm:$0xff]
    %v4061 = vld [vmem:[#allocation10 + $0x198] sm:$0xff]
    %v4062 = vld [vmem:[#allocation10 + $0x1a0] sm:$0xff]
    %v4063 = vld [vmem:[#allocation10 + $0x1a8] sm:$0xff]
    %v4064 = vld [vmem:[#allocation10 + $0x1b0] sm:$0xff]
    %v4065 = vld [vmem:[#allocation10 + $0x1b8] sm:$0xff]
    %v4066 = vld [vmem:[#allocation10 + $0x1c0] sm:$0xff]
    %v4067 = vld [vmem:[#allocation10 + $0x1c8] sm:$0xff]
    %v4068 = vld [vmem:[#allocation10 + $0x1d0] sm:$0xff]
    %v4069 = vld [vmem:[#allocation10 + $0x1d8] sm:$0xff]
    %v4070 = vld [vmem:[#allocation10 + $0x1e0] sm:$0xff]
    %v4071 = vld [vmem:[#allocation10 + $0x1e8] sm:$0xff]
    %v4072 = vld [vmem:[#allocation10 + $0x1f0] sm:$0xff]
    %v4073 = vld [vmem:[#allocation10 + $0x1f8] sm:$0xff]
    %v4074 = vld [vmem:[%s6] sm:$0x3]
    %v4075 = vpack.c.bf16 %v4006, %v4006
    %v4076 = vpack.c.bf16 %v4007, %v4007
    %v4077 = vpack.c.bf16 %v4008, %v4008
    %v4078 = vpack.c.bf16 %v4009, %v4009
    %v4080 = vlaneseq
    %v4081 = vshrl.u32 %v4080, 7
    %v4082 = vsub.s32 0, %v4081
    %v4083 = vrot.slane %v4074, %v4082
    %v4084 = vlaneseq
    %v4085 = vshrl.u32 %v4084, 7
    %v4086 = vsub.s32 1, %v4085
    %v4087 = vrot.slane %v4074, %v4086
    %v4154 = vunpack.c.l.b16 %v4010
    %v4155 = vunpack.c.h.b16 %v4010
    %v4156 = vunpack.c.l.b16 %v4011
    %v4157 = vunpack.c.h.b16 %v4011
    %v4158 = vunpack.c.l.b16 %v4012
    %v4159 = vunpack.c.h.b16 %v4012
    %v4160 = vunpack.c.l.b16 %v4013
    %v4161 = vunpack.c.h.b16 %v4013
    %v4162 = vunpack.c.l.b16 %v4014
    %v4163 = vunpack.c.h.b16 %v4014
    %v4164 = vunpack.c.l.b16 %v4015
    %v4165 = vunpack.c.h.b16 %v4015
    %v4166 = vunpack.c.l.b16 %v4016
    %v4167 = vunpack.c.h.b16 %v4016
    %v4168 = vunpack.c.l.b16 %v4017
    %v4169 = vunpack.c.h.b16 %v4017
    %v4170 = vunpack.c.l.b16 %v4018
    %v4171 = vunpack.c.h.b16 %v4018
    %v4172 = vunpack.c.l.b16 %v4019
    %v4173 = vunpack.c.h.b16 %v4019
    %v4174 = vunpack.c.l.b16 %v4020
    %v4175 = vunpack.c.h.b16 %v4020
    %v4176 = vunpack.c.l.b16 %v4021
    %v4177 = vunpack.c.h.b16 %v4021
    %v4178 = vunpack.c.l.b16 %v4022
    %v4179 = vunpack.c.h.b16 %v4022
    %v4180 = vunpack.c.l.b16 %v4023
    %v4181 = vunpack.c.h.b16 %v4023
    %v4182 = vunpack.c.l.b16 %v4024
    %v4183 = vunpack.c.h.b16 %v4024
    %v4184 = vunpack.c.l.b16 %v4025
    %v4185 = vunpack.c.h.b16 %v4025
    %v4186 = vunpack.c.l.b16 %v4026
    %v4187 = vunpack.c.h.b16 %v4026
    %v4188 = vunpack.c.l.b16 %v4027
    %v4189 = vunpack.c.h.b16 %v4027
    %v4190 = vunpack.c.l.b16 %v4028
    %v4191 = vunpack.c.h.b16 %v4028
    %v4192 = vunpack.c.l.b16 %v4029
    %v4193 = vunpack.c.h.b16 %v4029
    %v4194 = vunpack.c.l.b16 %v4030
    %v4195 = vunpack.c.h.b16 %v4030
    %v4196 = vunpack.c.l.b16 %v4031
    %v4197 = vunpack.c.h.b16 %v4031
    %v4198 = vunpack.c.l.b16 %v4032
    %v4199 = vunpack.c.h.b16 %v4032
    %v4200 = vunpack.c.l.b16 %v4033
    %v4201 = vunpack.c.h.b16 %v4033
    %v4202 = vunpack.c.l.b16 %v4034
    %v4203 = vunpack.c.h.b16 %v4034
    %v4204 = vunpack.c.l.b16 %v4035
    %v4205 = vunpack.c.h.b16 %v4035
    %v4206 = vunpack.c.l.b16 %v4036
    %v4207 = vunpack.c.h.b16 %v4036
    %v4208 = vunpack.c.l.b16 %v4037
    %v4209 = vunpack.c.h.b16 %v4037
    %v4210 = vunpack.c.l.b16 %v4038
    %v4211 = vunpack.c.h.b16 %v4038
    %v4212 = vunpack.c.l.b16 %v4039
    %v4213 = vunpack.c.h.b16 %v4039
    %v4214 = vunpack.c.l.b16 %v4040
    %v4215 = vunpack.c.h.b16 %v4040
    %v4216 = vunpack.c.l.b16 %v4041
    %v4217 = vunpack.c.h.b16 %v4041
    %v4218 = vunpack.c.l.b16 %v4042
    %v4219 = vunpack.c.h.b16 %v4042
    %v4220 = vunpack.c.l.b16 %v4043
    %v4221 = vunpack.c.h.b16 %v4043
    %v4222 = vunpack.c.l.b16 %v4044
    %v4223 = vunpack.c.h.b16 %v4044
    %v4224 = vunpack.c.l.b16 %v4045
    %v4225 = vunpack.c.h.b16 %v4045
    %v4226 = vunpack.c.l.b16 %v4046
    %v4227 = vunpack.c.h.b16 %v4046
    %v4228 = vunpack.c.l.b16 %v4047
    %v4229 = vunpack.c.h.b16 %v4047
    %v4230 = vunpack.c.l.b16 %v4048
    %v4231 = vunpack.c.h.b16 %v4048
    %v4232 = vunpack.c.l.b16 %v4049
    %v4233 = vunpack.c.h.b16 %v4049
    %v4234 = vunpack.c.l.b16 %v4050
    %v4235 = vunpack.c.h.b16 %v4050
    %v4236 = vunpack.c.l.b16 %v4051
    %v4237 = vunpack.c.h.b16 %v4051
    %v4238 = vunpack.c.l.b16 %v4052
    %v4239 = vunpack.c.h.b16 %v4052
    %v4240 = vunpack.c.l.b16 %v4053
    %v4241 = vunpack.c.h.b16 %v4053
    %v4242 = vunpack.c.l.b16 %v4054
    %v4243 = vunpack.c.h.b16 %v4054
    %v4244 = vunpack.c.l.b16 %v4055
    %v4245 = vunpack.c.h.b16 %v4055
    %v4246 = vunpack.c.l.b16 %v4056
    %v4247 = vunpack.c.h.b16 %v4056
    %v4248 = vunpack.c.l.b16 %v4057
    %v4249 = vunpack.c.h.b16 %v4057
    %v4250 = vunpack.c.l.b16 %v4058
    %v4251 = vunpack.c.h.b16 %v4058
    %v4252 = vunpack.c.l.b16 %v4059
    %v4253 = vunpack.c.h.b16 %v4059
    %v4254 = vunpack.c.l.b16 %v4060
    %v4255 = vunpack.c.h.b16 %v4060
    %v4256 = vunpack.c.l.b16 %v4061
    %v4257 = vunpack.c.h.b16 %v4061
    %v4258 = vunpack.c.l.b16 %v4062
    %v4259 = vunpack.c.h.b16 %v4062
    %v4260 = vunpack.c.l.b16 %v4063
    %v4261 = vunpack.c.h.b16 %v4063
    %v4262 = vunpack.c.l.b16 %v4064
    %v4263 = vunpack.c.h.b16 %v4064
    %v4264 = vunpack.c.l.b16 %v4065
    %v4265 = vunpack.c.h.b16 %v4065
    %v4266 = vunpack.c.l.b16 %v4066
    %v4267 = vunpack.c.h.b16 %v4066
    %v4268 = vunpack.c.l.b16 %v4067
    %v4269 = vunpack.c.h.b16 %v4067
    %v4270 = vunpack.c.l.b16 %v4068
    %v4271 = vunpack.c.h.b16 %v4068
    %v4272 = vunpack.c.l.b16 %v4069
    %v4273 = vunpack.c.h.b16 %v4069
    %v4274 = vunpack.c.l.b16 %v4070
    %v4275 = vunpack.c.h.b16 %v4070
    %v4276 = vunpack.c.l.b16 %v4071
    %v4277 = vunpack.c.h.b16 %v4071
    %v4278 = vunpack.c.l.b16 %v4072
    %v4279 = vunpack.c.h.b16 %v4072
    %v4280 = vunpack.c.l.b16 %v4073
    %v4281 = vunpack.c.h.b16 %v4073
    %v4282 = vpack.c.b16 %v4156, %v4154
    %v4283 = vpack.c.b16 %v4157, %v4155
    %v4284 = vpack.c.b16 %v4160, %v4158
    %v4285 = vpack.c.b16 %v4161, %v4159
    %v4286 = vpack.c.b16 %v4164, %v4162
    %v4287 = vpack.c.b16 %v4165, %v4163
    %v4288 = vpack.c.b16 %v4168, %v4166
    %v4289 = vpack.c.b16 %v4169, %v4167
    %v4290 = vpack.c.b16 %v4172, %v4170
    %v4291 = vpack.c.b16 %v4173, %v4171
    %v4292 = vpack.c.b16 %v4176, %v4174
    %v4293 = vpack.c.b16 %v4177, %v4175
    %v4294 = vpack.c.b16 %v4180, %v4178
    %v4295 = vpack.c.b16 %v4181, %v4179
    %v4296 = vpack.c.b16 %v4184, %v4182
    %v4297 = vpack.c.b16 %v4185, %v4183
    %v4298 = vpack.c.b16 %v4188, %v4186
    %v4299 = vpack.c.b16 %v4189, %v4187
    %v4300 = vpack.c.b16 %v4192, %v4190
    %v4301 = vpack.c.b16 %v4193, %v4191
    %v4302 = vpack.c.b16 %v4196, %v4194
    %v4303 = vpack.c.b16 %v4197, %v4195
    %v4304 = vpack.c.b16 %v4200, %v4198
    %v4305 = vpack.c.b16 %v4201, %v4199
    %v4306 = vpack.c.b16 %v4204, %v4202
    %v4307 = vpack.c.b16 %v4205, %v4203
    %v4308 = vpack.c.b16 %v4208, %v4206
    %v4309 = vpack.c.b16 %v4209, %v4207
    %v4310 = vpack.c.b16 %v4212, %v4210
    %v4311 = vpack.c.b16 %v4213, %v4211
    %v4312 = vpack.c.b16 %v4216, %v4214
    %v4313 = vpack.c.b16 %v4217, %v4215
    %v4314 = vpack.c.b16 %v4220, %v4218
    %v4315 = vpack.c.b16 %v4221, %v4219
    %v4316 = vpack.c.b16 %v4224, %v4222
    %v4317 = vpack.c.b16 %v4225, %v4223
    %v4318 = vpack.c.b16 %v4228, %v4226
    %v4319 = vpack.c.b16 %v4229, %v4227
    %v4320 = vpack.c.b16 %v4232, %v4230
    %v4321 = vpack.c.b16 %v4233, %v4231
    %v4322 = vpack.c.b16 %v4236, %v4234
    %v4323 = vpack.c.b16 %v4237, %v4235
    %v4324 = vpack.c.b16 %v4240, %v4238
    %v4325 = vpack.c.b16 %v4241, %v4239
    %v4326 = vpack.c.b16 %v4244, %v4242
    %v4327 = vpack.c.b16 %v4245, %v4243
    %v4328 = vpack.c.b16 %v4248, %v4246
    %v4329 = vpack.c.b16 %v4249, %v4247
    %v4330 = vpack.c.b16 %v4252, %v4250
    %v4331 = vpack.c.b16 %v4253, %v4251
    %v4332 = vpack.c.b16 %v4256, %v4254
    %v4333 = vpack.c.b16 %v4257, %v4255
    %v4334 = vpack.c.b16 %v4260, %v4258
    %v4335 = vpack.c.b16 %v4261, %v4259
    %v4336 = vpack.c.b16 %v4264, %v4262
    %v4337 = vpack.c.b16 %v4265, %v4263
    %v4338 = vpack.c.b16 %v4268, %v4266
    %v4339 = vpack.c.b16 %v4269, %v4267
    %v4340 = vpack.c.b16 %v4272, %v4270
    %v4341 = vpack.c.b16 %v4273, %v4271
    %v4342 = vpack.c.b16 %v4276, %v4274
    %v4343 = vpack.c.b16 %v4277, %v4275
    %v4344 = vpack.c.b16 %v4280, %v4278
    %v4345 = vpack.c.b16 %v4281, %v4279
    %4410 = vmatprep.subr.bf16.mxu0 %v4283
    %4411 = vmatpush1.bf16.msra.mxu0 %v4282
    %4412 = vmatprep.subr.bf16.mxu0 %v4285
    %4413 = vmatpush1.bf16.msra.mxu0 %v4284
    %4414 = vmatprep.subr.bf16.mxu0 %v4287
    %4415 = vmatpush1.bf16.msra.mxu0 %v4286
    %4416 = vmatprep.subr.bf16.mxu0 %v4289
    %4417 = vmatpush1.bf16.msra.mxu0 %v4288
    %4418 = vmatprep.subr.bf16.mxu0 %v4291
    %4419 = vmatpush1.bf16.msra.mxu0 %v4290
    %4420 = vmatprep.subr.bf16.mxu0 %v4293
    %4421 = vmatpush1.bf16.msra.mxu0 %v4292
    %4422 = vmatprep.subr.bf16.mxu0 %v4295
    %4423 = vmatpush1.bf16.msra.mxu0 %v4294
    %4424 = vmatprep.subr.bf16.mxu0 %v4297
    %4425 = vmatpush1.bf16.msra.mxu0 %v4296
    %4426 = vmatprep.subr.bf16.mxu0 %v4299
    %4427 = vmatpush1.bf16.msra.mxu0 %v4298
    %4428 = vmatprep.subr.bf16.mxu0 %v4301
    %4429 = vmatpush1.bf16.msra.mxu0 %v4300
    %4430 = vmatprep.subr.bf16.mxu0 %v4303
    %4431 = vmatpush1.bf16.msra.mxu0 %v4302
    %4432 = vmatprep.subr.bf16.mxu0 %v4305
    %4433 = vmatpush1.bf16.msra.mxu0 %v4304
    %4434 = vmatprep.subr.bf16.mxu0 %v4307
    %4435 = vmatpush1.bf16.msra.mxu0 %v4306
    %4436 = vmatprep.subr.bf16.mxu0 %v4309
    %4437 = vmatpush1.bf16.msra.mxu0 %v4308
    %4438 = vmatprep.subr.bf16.mxu0 %v4311
    %4439 = vmatpush1.bf16.msra.mxu0 %v4310
    %4440 = vmatprep.subr.bf16.mxu0 %v4313
    %4441 = vmatpush1.bf16.msra.mxu0 %v4312
    %4442 = vmatprep.mubr.bf16.mxu0 %v4076
    %4443 = vmatmul.mubr.bf16.gmra.mrb[0].mxu0 %v4075
    %v4444 = vpop.f32.mrb[0].mxu0
    %v4445 = vadd.f32 %v4083, %v4444
    %v4446 = vpop.f32.mrb[0].mxu0
    %v4447 = vadd.f32 %v4087, %v4446
    %v4448 = vpop.f32.mrb[0].mxu0
    %v4449 = vpop.f32.mrb[0].mxu0
    %4450 = vdwg.mxu0
    %4451 = vmatprep.subr.bf16.mxu0 %v4315
    %4452 = vmatpush1.bf16.msra.mxu0 %v4314
    %4453 = vmatprep.subr.bf16.mxu0 %v4317
    %4454 = vmatpush1.bf16.msra.mxu0 %v4316
    %4455 = vmatprep.subr.bf16.mxu0 %v4319
    %4456 = vmatpush1.bf16.msra.mxu0 %v4318
    %4457 = vmatprep.subr.bf16.mxu0 %v4321
    %4458 = vmatpush1.bf16.msra.mxu0 %v4320
    %4459 = vmatprep.subr.bf16.mxu0 %v4323
    %4460 = vmatpush1.bf16.msra.mxu0 %v4322
    %4461 = vmatprep.subr.bf16.mxu0 %v4325
    %4462 = vmatpush1.bf16.msra.mxu0 %v4324
    %4463 = vmatprep.subr.bf16.mxu0 %v4327
    %4464 = vmatpush1.bf16.msra.mxu0 %v4326
    %4465 = vmatprep.subr.bf16.mxu0 %v4329
    %4466 = vmatpush1.bf16.msra.mxu0 %v4328
    %4467 = vmatprep.subr.bf16.mxu0 %v4331
    %4468 = vmatpush1.bf16.msra.mxu0 %v4330
    %4469 = vmatprep.subr.bf16.mxu0 %v4333
    %4470 = vmatpush1.bf16.msra.mxu0 %v4332
    %4471 = vmatprep.subr.bf16.mxu0 %v4335
    %4472 = vmatpush1.bf16.msra.mxu0 %v4334
    %4473 = vmatprep.subr.bf16.mxu0 %v4337
    %4474 = vmatpush1.bf16.msra.mxu0 %v4336
    %4475 = vmatprep.subr.bf16.mxu0 %v4339
    %4476 = vmatpush1.bf16.msra.mxu0 %v4338
    %4477 = vmatprep.subr.bf16.mxu0 %v4341
    %4478 = vmatpush1.bf16.msra.mxu0 %v4340
    %4479 = vmatprep.subr.bf16.mxu0 %v4343
    %4480 = vmatpush1.bf16.msra.mxu0 %v4342
    %4481 = vmatprep.subr.bf16.mxu0 %v4345
    %4482 = vmatpush1.bf16.msra.mxu0 %v4344
    %4483 = vmatprep.mubr.bf16.mxu0 %v4078
    %4484 = vmatmul.mubr.bf16.gmra.mrb[0].mxu0 %v4077
    %v4485 = vpop.f32.mrb[0].mxu0
    %v4486 = vadd.f32 %v4445, %v4485
    %v4487 = vpop.f32.mrb[0].mxu0
    %v4488 = vadd.f32 %v4447, %v4487
    %v4489 = vpop.f32.mrb[0].mxu0
    %v4490 = vpop.f32.mrb[0].mxu0
    %4491 = vdwg.mxu0
    %v4492 = vmax.f32 %v4486, 0.0
    %v4493 = vmax.f32 %v4488, 0.0
    %v4494 = vld [vmem:[#allocation11] sm:$0xf]
    %v4495 = vld [vmem:[#allocation11 + $0x4] sm:$0xf]
    %v4496 = vld [vmem:[#allocation11 + $0x8] sm:$0xf]
    %v4497 = vld [vmem:[#allocation11 + $0xc] sm:$0xf]
    %v4498 = vld [vmem:[#allocation11 + $0x10] sm:$0xf]
    %v4499 = vld [vmem:[#allocation11 + $0x14] sm:$0xf]
    %v4500 = vld [vmem:[#allocation11 + $0x18] sm:$0xf]
    %v4501 = vld [vmem:[#allocation11 + $0x1c] sm:$0xf]
    %v4502 = vld [vmem:[#allocation11 + $0x20] sm:$0xf]
    %v4503 = vld [vmem:[#allocation11 + $0x24] sm:$0xf]
    %v4504 = vld [vmem:[#allocation11 + $0x28] sm:$0xf]
    %v4505 = vld [vmem:[#allocation11 + $0x2c] sm:$0xf]
    %v4506 = vld [vmem:[#allocation11 + $0x30] sm:$0xf]
    %v4507 = vld [vmem:[#allocation11 + $0x34] sm:$0xf]
    %v4508 = vld [vmem:[#allocation11 + $0x38] sm:$0xf]
    %v4509 = vld [vmem:[#allocation11 + $0x3c] sm:$0xf]
    %v4510 = vld [vmem:[#allocation11 + $0x40] sm:$0xf]
    %v4511 = vld [vmem:[#allocation11 + $0x44] sm:$0xf]
    %v4512 = vld [vmem:[#allocation11 + $0x48] sm:$0xf]
    %v4513 = vld [vmem:[#allocation11 + $0x4c] sm:$0xf]
    %v4514 = vld [vmem:[#allocation11 + $0x50] sm:$0xf]
    %v4515 = vld [vmem:[#allocation11 + $0x54] sm:$0xf]
    %v4516 = vld [vmem:[#allocation11 + $0x58] sm:$0xf]
    %v4517 = vld [vmem:[#allocation11 + $0x5c] sm:$0xf]
    %v4518 = vld [vmem:[#allocation11 + $0x60] sm:$0xf]
    %v4519 = vld [vmem:[#allocation11 + $0x64] sm:$0xf]
    %v4520 = vld [vmem:[#allocation11 + $0x68] sm:$0xf]
    %v4521 = vld [vmem:[#allocation11 + $0x6c] sm:$0xf]
    %v4522 = vld [vmem:[#allocation11 + $0x70] sm:$0xf]
    %v4523 = vld [vmem:[#allocation11 + $0x74] sm:$0xf]
    %v4524 = vld [vmem:[#allocation11 + $0x78] sm:$0xf]
    %v4525 = vld [vmem:[#allocation11 + $0x7c] sm:$0xf]
    %v4526 = vld [vmem:[%s8] sm:$0x1]
    %v4527 = vpack.c.bf16 %v4492, %v4492
    %v4528 = vpack.c.bf16 %v4493, %v4493
    %v4530 = vlaneseq
    %v4531 = vshrl.u32 %v4530, 7
    %v4532 = vsub.s32 0, %v4531
    %v4533 = vrot.slane %v4526, %v4532
    %v4567 = vunpack.c.l.b16 %v4494
    %v4568 = vunpack.c.l.b16 %v4495
    %v4569 = vunpack.c.l.b16 %v4496
    %v4570 = vunpack.c.l.b16 %v4497
    %v4571 = vunpack.c.l.b16 %v4498
    %v4572 = vunpack.c.l.b16 %v4499
    %v4573 = vunpack.c.l.b16 %v4500
    %v4574 = vunpack.c.l.b16 %v4501
    %v4575 = vunpack.c.l.b16 %v4502
    %v4576 = vunpack.c.l.b16 %v4503
    %v4577 = vunpack.c.l.b16 %v4504
    %v4578 = vunpack.c.l.b16 %v4505
    %v4579 = vunpack.c.l.b16 %v4506
    %v4580 = vunpack.c.l.b16 %v4507
    %v4581 = vunpack.c.l.b16 %v4508
    %v4582 = vunpack.c.l.b16 %v4509
    %v4583 = vunpack.c.l.b16 %v4510
    %v4584 = vunpack.c.l.b16 %v4511
    %v4585 = vunpack.c.l.b16 %v4512
    %v4586 = vunpack.c.l.b16 %v4513
    %v4587 = vunpack.c.l.b16 %v4514
    %v4588 = vunpack.c.l.b16 %v4515
    %v4589 = vunpack.c.l.b16 %v4516
    %v4590 = vunpack.c.l.b16 %v4517
    %v4591 = vunpack.c.l.b16 %v4518
    %v4592 = vunpack.c.l.b16 %v4519
    %v4593 = vunpack.c.l.b16 %v4520
    %v4594 = vunpack.c.l.b16 %v4521
    %v4595 = vunpack.c.l.b16 %v4522
    %v4596 = vunpack.c.l.b16 %v4523
    %v4597 = vunpack.c.l.b16 %v4524
    %v4598 = vunpack.c.l.b16 %v4525
    %v4599 = vpack.c.b16 %v4568, %v4567
    %v4600 = vpack.c.b16 %v4570, %v4569
    %v4601 = vpack.c.b16 %v4572, %v4571
    %v4602 = vpack.c.b16 %v4574, %v4573
    %v4603 = vpack.c.b16 %v4576, %v4575
    %v4604 = vpack.c.b16 %v4578, %v4577
    %v4605 = vpack.c.b16 %v4580, %v4579
    %v4606 = vpack.c.b16 %v4582, %v4581
    %v4607 = vpack.c.b16 %v4584, %v4583
    %v4608 = vpack.c.b16 %v4586, %v4585
    %v4609 = vpack.c.b16 %v4588, %v4587
    %v4610 = vpack.c.b16 %v4590, %v4589
    %v4611 = vpack.c.b16 %v4592, %v4591
    %v4612 = vpack.c.b16 %v4594, %v4593
    %v4613 = vpack.c.b16 %v4596, %v4595
    %v4614 = vpack.c.b16 %v4598, %v4597
    %4631 = vmatprep.subr.bf16.mxu0 0
    %4632 = vmatpush1.bf16.msra.mxu0 %v4599
    %4633 = vmatprep.subr.bf16.mxu0 0
    %4634 = vmatpush1.bf16.msra.mxu0 %v4600
    %4635 = vmatprep.subr.bf16.mxu0 0
    %4636 = vmatpush1.bf16.msra.mxu0 %v4601
    %4637 = vmatprep.subr.bf16.mxu0 0
    %4638 = vmatpush1.bf16.msra.mxu0 %v4602
    %4639 = vmatprep.subr.bf16.mxu0 0
    %4640 = vmatpush1.bf16.msra.mxu0 %v4603
    %4641 = vmatprep.subr.bf16.mxu0 0
    %4642 = vmatpush1.bf16.msra.mxu0 %v4604
    %4643 = vmatprep.subr.bf16.mxu0 0
    %4644 = vmatpush1.bf16.msra.mxu0 %v4605
    %4645 = vmatprep.subr.bf16.mxu0 0
    %4646 = vmatpush1.bf16.msra.mxu0 %v4606
    %4647 = vmatprep.subr.bf16.mxu0 0
    %4648 = vmatpush1.bf16.msra.mxu0 %v4607
    %4649 = vmatprep.subr.bf16.mxu0 0
    %4650 = vmatpush1.bf16.msra.mxu0 %v4608
    %4651 = vmatprep.subr.bf16.mxu0 0
    %4652 = vmatpush1.bf16.msra.mxu0 %v4609
    %4653 = vmatprep.subr.bf16.mxu0 0
    %4654 = vmatpush1.bf16.msra.mxu0 %v4610
    %4655 = vmatprep.subr.bf16.mxu0 0
    %4656 = vmatpush1.bf16.msra.mxu0 %v4611
    %4657 = vmatprep.subr.bf16.mxu0 0
    %4658 = vmatpush1.bf16.msra.mxu0 %v4612
    %4659 = vmatprep.subr.bf16.mxu0 0
    %4660 = vmatpush1.bf16.msra.mxu0 %v4613
    %4661 = vmatprep.subr.bf16.mxu0 0
    %4662 = vmatpush1.bf16.msra.mxu0 %v4614
    %4663 = vmatprep.mubr.bf16.mxu0 %v4528
    %4664 = vmatmul.mubr.bf16.gmra.mrb[0].mxu0 %v4527
    %v4665 = vpop.f32.mrb[0].mxu0
    %v4666 = vadd.f32 %v4533, %v4665
    %v4667 = vpop.f32.mrb[0].mxu0
    %v4668 = vpop.f32.mrb[0].mxu0
    %v4669 = vpop.f32.mrb[0].mxu0
    %4670 = vdwg.mxu0
    %v4671 = vxor.u32 %v4666, 2147483648
    %v4672 = vmul.f32 %v4671, 1.442695
    %v4673 = vpow.pop %v4672
    %v4674 = vadd.f32 %v4673, 1.0
    %v4675 = vrcp.pop %v4674
    %v4676 = vmul.f32 1.0, %v4675
    %v4677 = vld [vmem:[#allocation13] sm:$0xff]
    %v4678 = vld [vmem:[#allocation13 + $0x8] sm:$0xff]
    %v4679 = vld [vmem:[#allocation13 + $0x10] sm:$0xff]
    %v4680 = vld [vmem:[#allocation13 + $0x18] sm:$0xff]
    %v4681 = vld [vmem:[#allocation13 + $0x20] sm:$0xff]
    %v4682 = vld [vmem:[#allocation13 + $0x28] sm:$0xff]
    %v4683 = vld [vmem:[#allocation13 + $0x30] sm:$0xff]
    %v4684 = vld [vmem:[#allocation13 + $0x38] sm:$0xff]
    %v4685 = vld [vmem:[#allocation13 + $0x40] sm:$0xff]
    %v4686 = vld [vmem:[#allocation13 + $0x48] sm:$0xff]
    %v4687 = vld [vmem:[#allocation13 + $0x50] sm:$0xff]
    %v4688 = vld [vmem:[#allocation13 + $0x58] sm:$0xff]
    %v4689 = vld [vmem:[#allocation13 + $0x60] sm:$0xff]
    %v4690 = vld [vmem:[#allocation13 + $0x68] sm:$0xff]
    %v4691 = vld [vmem:[#allocation13 + $0x70] sm:$0xff]
    %v4692 = vld [vmem:[#allocation13 + $0x78] sm:$0xff]
    %v4693 = vld [vmem:[%s10] sm:$0x3]
    %v4694 = vpack.c.bf16 %v4676, %v4676
    %v4696 = vlaneseq
    %v4697 = vshrl.u32 %v4696, 7
    %v4698 = vsub.s32 0, %v4697
    %v4699 = vrot.slane %v4693, %v4698
    %v4700 = vlaneseq
    %v4701 = vshrl.u32 %v4700, 7
    %v4702 = vsub.s32 1, %v4701
    %v4703 = vrot.slane %v4693, %v4702
    %v4722 = vunpack.c.l.b16 %v4677
    %v4723 = vunpack.c.h.b16 %v4677
    %v4724 = vunpack.c.l.b16 %v4678
    %v4725 = vunpack.c.h.b16 %v4678
    %v4726 = vunpack.c.l.b16 %v4679
    %v4727 = vunpack.c.h.b16 %v4679
    %v4728 = vunpack.c.l.b16 %v4680
    %v4729 = vunpack.c.h.b16 %v4680
    %v4730 = vunpack.c.l.b16 %v4681
    %v4731 = vunpack.c.h.b16 %v4681
    %v4732 = vunpack.c.l.b16 %v4682
    %v4733 = vunpack.c.h.b16 %v4682
    %v4734 = vunpack.c.l.b16 %v4683
    %v4735 = vunpack.c.h.b16 %v4683
    %v4736 = vunpack.c.l.b16 %v4684
    %v4737 = vunpack.c.h.b16 %v4684
    %v4738 = vunpack.c.l.b16 %v4685
    %v4739 = vunpack.c.h.b16 %v4685
    %v4740 = vunpack.c.l.b16 %v4686
    %v4741 = vunpack.c.h.b16 %v4686
    %v4742 = vunpack.c.l.b16 %v4687
    %v4743 = vunpack.c.h.b16 %v4687
    %v4744 = vunpack.c.l.b16 %v4688
    %v4745 = vunpack.c.h.b16 %v4688
    %v4746 = vunpack.c.l.b16 %v4689
    %v4747 = vunpack.c.h.b16 %v4689
    %v4748 = vunpack.c.l.b16 %v4690
    %v4749 = vunpack.c.h.b16 %v4690
    %v4750 = vunpack.c.l.b16 %v4691
    %v4751 = vunpack.c.h.b16 %v4691
    %v4752 = vunpack.c.l.b16 %v4692
    %v4753 = vunpack.c.h.b16 %v4692
    %v4754 = vpack.c.b16 %v4724, %v4722
    %v4755 = vpack.c.b16 %v4725, %v4723
    %v4756 = vpack.c.b16 %v4728, %v4726
    %v4757 = vpack.c.b16 %v4729, %v4727
    %v4758 = vpack.c.b16 %v4732, %v4730
    %v4759 = vpack.c.b16 %v4733, %v4731
    %v4760 = vpack.c.b16 %v4736, %v4734
    %v4761 = vpack.c.b16 %v4737, %v4735
    %v4762 = vpack.c.b16 %v4740, %v4738
    %v4763 = vpack.c.b16 %v4741, %v4739
    %v4764 = vpack.c.b16 %v4744, %v4742
    %v4765 = vpack.c.b16 %v4745, %v4743
    %v4766 = vpack.c.b16 %v4748, %v4746
    %v4767 = vpack.c.b16 %v4749, %v4747
    %v4768 = vpack.c.b16 %v4752, %v4750
    %v4769 = vpack.c.b16 %v4753, %v4751
    %4786 = vmatprep.subr.bf16.mxu0 %v4755
    %4787 = vmatpush1.bf16.msra.mxu0 %v4754
    %4788 = vmatprep.subr.bf16.mxu0 %v4757
    %4789 = vmatpush1.bf16.msra.mxu0 %v4756
    %4790 = vmatprep.subr.bf16.mxu0 %v4759
    %4791 = vmatpush1.bf16.msra.mxu0 %v4758
    %4792 = vmatprep.subr.bf16.mxu0 %v4761
    %4793 = vmatpush1.bf16.msra.mxu0 %v4760
    %4794 = vmatprep.subr.bf16.mxu0 %v4763
    %4795 = vmatpush1.bf16.msra.mxu0 %v4762
    %4796 = vmatprep.subr.bf16.mxu0 %v4765
    %4797 = vmatpush1.bf16.msra.mxu0 %v4764
    %4798 = vmatprep.subr.bf16.mxu0 %v4767
    %4799 = vmatpush1.bf16.msra.mxu0 %v4766
    %4800 = vmatprep.subr.bf16.mxu0 %v4769
    %4801 = vmatpush1.bf16.msra.mxu0 %v4768
    %4802 = vmatprep.subr.bf16.mxu0 0
    %4803 = vmatpush1.bf16.msra.mxu0 0
    %4804 = vmatprep.subr.bf16.mxu0 0
    %4805 = vmatpush1.bf16.msra.mxu0 0
    %4806 = vmatprep.subr.bf16.mxu0 0
    %4807 = vmatpush1.bf16.msra.mxu0 0
    %4808 = vmatprep.subr.bf16.mxu0 0
    %4809 = vmatpush1.bf16.msra.mxu0 0
    %4810 = vmatprep.subr.bf16.mxu0 0
    %4811 = vmatpush1.bf16.msra.mxu0 0
    %4812 = vmatprep.subr.bf16.mxu0 0
    %4813 = vmatpush1.bf16.msra.mxu0 0
    %4814 = vmatprep.subr.bf16.mxu0 0
    %4815 = vmatpush1.bf16.msra.mxu0 0
    %4816 = vmatprep.subr.bf16.mxu0 0
    %4817 = vmatpush1.bf16.msra.mxu0 0
    %4818 = vmatprep.mubr.bf16.mxu0 0
    %4819 = vmatmul.mubr.bf16.gmra.mrb[0].mxu0 %v4694
    %v4820 = vpop.f32.mrb[0].mxu0
    %v4821 = vadd.f32 %v4699, %v4820
    %v4822 = vpop.f32.mrb[0].mxu0
    %v4823 = vadd.f32 %v4703, %v4822
    %v4824 = vpop.f32.mrb[0].mxu0
    %v4825 = vpop.f32.mrb[0].mxu0
    %4826 = vdwg.mxu0
    %v4827 = vmax.f32 %v4821, 0.0
    %v4828 = vmax.f32 %v4823, 0.0
    %v4829 = vld [vmem:[#allocation14] sm:$0xff]
    %v4830 = vld [vmem:[#allocation14 + $0x8] sm:$0xff]
    %v4831 = vld [vmem:[#allocation14 + $0x10] sm:$0xff]
    %v4832 = vld [vmem:[#allocation14 + $0x18] sm:$0xff]
    %v4833 = vld [vmem:[#allocation14 + $0x20] sm:$0xff]
    %v4834 = vld [vmem:[#allocation14 + $0x28] sm:$0xff]
    %v4835 = vld [vmem:[#allocation14 + $0x30] sm:$0xff]
    %v4836 = vld [vmem:[#allocation14 + $0x38] sm:$0xff]
    %v4837 = vld [vmem:[#allocation14 + $0x40] sm:$0xff]
    %v4838 = vld [vmem:[#allocation14 + $0x48] sm:$0xff]
    %v4839 = vld [vmem:[#allocation14 + $0x50] sm:$0xff]
    %v4840 = vld [vmem:[#allocation14 + $0x58] sm:$0xff]
    %v4841 = vld [vmem:[#allocation14 + $0x60] sm:$0xff]
    %v4842 = vld [vmem:[#allocation14 + $0x68] sm:$0xff]
    %v4843 = vld [vmem:[#allocation14 + $0x70] sm:$0xff]
    %v4844 = vld [vmem:[#allocation14 + $0x78] sm:$0xff]
    %v4845 = vld [vmem:[#allocation14 + $0x80] sm:$0xff]
    %v4846 = vld [vmem:[#allocation14 + $0x88] sm:$0xff]
    %v4847 = vld [vmem:[#allocation14 + $0x90] sm:$0xff]
    %v4848 = vld [vmem:[#allocation14 + $0x98] sm:$0xff]
    %v4849 = vld [vmem:[#allocation14 + $0xa0] sm:$0xff]
    %v4850 = vld [vmem:[#allocation14 + $0xa8] sm:$0xff]
    %v4851 = vld [vmem:[#allocation14 + $0xb0] sm:$0xff]
    %v4852 = vld [vmem:[#allocation14 + $0xb8] sm:$0xff]
    %v4853 = vld [vmem:[#allocation14 + $0xc0] sm:$0xff]
    %v4854 = vld [vmem:[#allocation14 + $0xc8] sm:$0xff]
    %v4855 = vld [vmem:[#allocation14 + $0xd0] sm:$0xff]
    %v4856 = vld [vmem:[#allocation14 + $0xd8] sm:$0xff]
    %v4857 = vld [vmem:[#allocation14 + $0xe0] sm:$0xff]
    %v4858 = vld [vmem:[#allocation14 + $0xe8] sm:$0xff]
    %v4859 = vld [vmem:[#allocation14 + $0xf0] sm:$0xff]
    %v4860 = vld [vmem:[#allocation14 + $0xf8] sm:$0xff]
    %v4861 = vld [vmem:[#allocation14 + $0x100] sm:$0xff]
    %v4862 = vld [vmem:[#allocation14 + $0x108] sm:$0xff]
    %v4863 = vld [vmem:[#allocation14 + $0x110] sm:$0xff]
    %v4864 = vld [vmem:[#allocation14 + $0x118] sm:$0xff]
    %v4865 = vld [vmem:[#allocation14 + $0x120] sm:$0xff]
    %v4866 = vld [vmem:[#allocation14 + $0x128] sm:$0xff]
    %v4867 = vld [vmem:[#allocation14 + $0x130] sm:$0xff]
    %v4868 = vld [vmem:[#allocation14 + $0x138] sm:$0xff]
    %v4869 = vld [vmem:[#allocation14 + $0x140] sm:$0xff]
    %v4870 = vld [vmem:[#allocation14 + $0x148] sm:$0xff]
    %v4871 = vld [vmem:[#allocation14 + $0x150] sm:$0xff]
    %v4872 = vld [vmem:[#allocation14 + $0x158] sm:$0xff]
    %v4873 = vld [vmem:[#allocation14 + $0x160] sm:$0xff]
    %v4874 = vld [vmem:[#allocation14 + $0x168] sm:$0xff]
    %v4875 = vld [vmem:[#allocation14 + $0x170] sm:$0xff]
    %v4876 = vld [vmem:[#allocation14 + $0x178] sm:$0xff]
    %v4877 = vld [vmem:[#allocation14 + $0x180] sm:$0xff]
    %v4878 = vld [vmem:[#allocation14 + $0x188] sm:$0xff]
    %v4879 = vld [vmem:[#allocation14 + $0x190] sm:$0xff]
    %v4880 = vld [vmem:[#allocation14 + $0x198] sm:$0xff]
    %v4881 = vld [vmem:[#allocation14 + $0x1a0] sm:$0xff]
    %v4882 = vld [vmem:[#allocation14 + $0x1a8] sm:$0xff]
    %v4883 = vld [vmem:[#allocation14 + $0x1b0] sm:$0xff]
    %v4884 = vld [vmem:[#allocation14 + $0x1b8] sm:$0xff]
    %v4885 = vld [vmem:[#allocation14 + $0x1c0] sm:$0xff]
    %v4886 = vld [vmem:[#allocation14 + $0x1c8] sm:$0xff]
    %v4887 = vld [vmem:[#allocation14 + $0x1d0] sm:$0xff]
    %v4888 = vld [vmem:[#allocation14 + $0x1d8] sm:$0xff]
    %v4889 = vld [vmem:[#allocation14 + $0x1e0] sm:$0xff]
    %v4890 = vld [vmem:[#allocation14 + $0x1e8] sm:$0xff]
    %v4891 = vld [vmem:[#allocation14 + $0x1f0] sm:$0xff]
    %v4892 = vld [vmem:[#allocation14 + $0x1f8] sm:$0xff]
    %v4893 = vld [vmem:[%s12] sm:$0xf]
    %v4894 = vpack.c.bf16 %v4827, %v4827
    %v4895 = vpack.c.bf16 %v4828, %v4828
    %v4897 = vlaneseq
    %v4898 = vshrl.u32 %v4897, 7
    %v4899 = vsub.s32 0, %v4898
    %v4900 = vrot.slane %v4893, %v4899
    %v4901 = vlaneseq
    %v4902 = vshrl.u32 %v4901, 7
    %v4903 = vsub.s32 1, %v4902
    %v4904 = vrot.slane %v4893, %v4903
    %v4905 = vlaneseq
    %v4906 = vshrl.u32 %v4905, 7
    %v4907 = vsub.s32 2, %v4906
    %v4908 = vrot.slane %v4893, %v4907
    %v4909 = vlaneseq
    %v4910 = vshrl.u32 %v4909, 7
    %v4911 = vsub.s32 3, %v4910
    %v4912 = vrot.slane %v4893, %v4911
    %v4981 = vunpack.c.l.b16 %v4829
    %v4982 = vunpack.c.h.b16 %v4829
    %v4983 = vunpack.c.l.b16 %v4830
    %v4984 = vunpack.c.h.b16 %v4830
    %v4985 = vunpack.c.l.b16 %v4831
    %v4986 = vunpack.c.h.b16 %v4831
    %v4987 = vunpack.c.l.b16 %v4832
    %v4988 = vunpack.c.h.b16 %v4832
    %v4989 = vunpack.c.l.b16 %v4833
    %v4990 = vunpack.c.h.b16 %v4833
    %v4991 = vunpack.c.l.b16 %v4834
    %v4992 = vunpack.c.h.b16 %v4834
    %v4993 = vunpack.c.l.b16 %v4835
    %v4994 = vunpack.c.h.b16 %v4835
    %v4995 = vunpack.c.l.b16 %v4836
    %v4996 = vunpack.c.h.b16 %v4836
    %v4997 = vunpack.c.l.b16 %v4837
    %v4998 = vunpack.c.h.b16 %v4837
    %v4999 = vunpack.c.l.b16 %v4838
    %v5000 = vunpack.c.h.b16 %v4838
    %v5001 = vunpack.c.l.b16 %v4839
    %v5002 = vunpack.c.h.b16 %v4839
    %v5003 = vunpack.c.l.b16 %v4840
    %v5004 = vunpack.c.h.b16 %v4840
    %v5005 = vunpack.c.l.b16 %v4841
    %v5006 = vunpack.c.h.b16 %v4841
    %v5007 = vunpack.c.l.b16 %v4842
    %v5008 = vunpack.c.h.b16 %v4842
    %v5009 = vunpack.c.l.b16 %v4843
    %v5010 = vunpack.c.h.b16 %v4843
    %v5011 = vunpack.c.l.b16 %v4844
    %v5012 = vunpack.c.h.b16 %v4844
    %v5013 = vunpack.c.l.b16 %v4845
    %v5014 = vunpack.c.h.b16 %v4845
    %v5015 = vunpack.c.l.b16 %v4846
    %v5016 = vunpack.c.h.b16 %v4846
    %v5017 = vunpack.c.l.b16 %v4847
    %v5018 = vunpack.c.h.b16 %v4847
    %v5019 = vunpack.c.l.b16 %v4848
    %v5020 = vunpack.c.h.b16 %v4848
    %v5021 = vunpack.c.l.b16 %v4849
    %v5022 = vunpack.c.h.b16 %v4849
    %v5023 = vunpack.c.l.b16 %v4850
    %v5024 = vunpack.c.h.b16 %v4850
    %v5025 = vunpack.c.l.b16 %v4851
    %v5026 = vunpack.c.h.b16 %v4851
    %v5027 = vunpack.c.l.b16 %v4852
    %v5028 = vunpack.c.h.b16 %v4852
    %v5029 = vunpack.c.l.b16 %v4853
    %v5030 = vunpack.c.h.b16 %v4853
    %v5031 = vunpack.c.l.b16 %v4854
    %v5032 = vunpack.c.h.b16 %v4854
    %v5033 = vunpack.c.l.b16 %v4855
    %v5034 = vunpack.c.h.b16 %v4855
    %v5035 = vunpack.c.l.b16 %v4856
    %v5036 = vunpack.c.h.b16 %v4856
    %v5037 = vunpack.c.l.b16 %v4857
    %v5038 = vunpack.c.h.b16 %v4857
    %v5039 = vunpack.c.l.b16 %v4858
    %v5040 = vunpack.c.h.b16 %v4858
    %v5041 = vunpack.c.l.b16 %v4859
    %v5042 = vunpack.c.h.b16 %v4859
    %v5043 = vunpack.c.l.b16 %v4860
    %v5044 = vunpack.c.h.b16 %v4860
    %v5045 = vunpack.c.l.b16 %v4861
    %v5046 = vunpack.c.h.b16 %v4861
    %v5047 = vunpack.c.l.b16 %v4862
    %v5048 = vunpack.c.h.b16 %v4862
    %v5049 = vunpack.c.l.b16 %v4863
    %v5050 = vunpack.c.h.b16 %v4863
    %v5051 = vunpack.c.l.b16 %v4864
    %v5052 = vunpack.c.h.b16 %v4864
    %v5053 = vunpack.c.l.b16 %v4865
    %v5054 = vunpack.c.h.b16 %v4865
    %v5055 = vunpack.c.l.b16 %v4866
    %v5056 = vunpack.c.h.b16 %v4866
    %v5057 = vunpack.c.l.b16 %v4867
    %v5058 = vunpack.c.h.b16 %v4867
    %v5059 = vunpack.c.l.b16 %v4868
    %v5060 = vunpack.c.h.b16 %v4868
    %v5061 = vunpack.c.l.b16 %v4869
    %v5062 = vunpack.c.h.b16 %v4869
    %v5063 = vunpack.c.l.b16 %v4870
    %v5064 = vunpack.c.h.b16 %v4870
    %v5065 = vunpack.c.l.b16 %v4871
    %v5066 = vunpack.c.h.b16 %v4871
    %v5067 = vunpack.c.l.b16 %v4872
    %v5068 = vunpack.c.h.b16 %v4872
    %v5069 = vunpack.c.l.b16 %v4873
    %v5070 = vunpack.c.h.b16 %v4873
    %v5071 = vunpack.c.l.b16 %v4874
    %v5072 = vunpack.c.h.b16 %v4874
    %v5073 = vunpack.c.l.b16 %v4875
    %v5074 = vunpack.c.h.b16 %v4875
    %v5075 = vunpack.c.l.b16 %v4876
    %v5076 = vunpack.c.h.b16 %v4876
    %v5077 = vunpack.c.l.b16 %v4877
    %v5078 = vunpack.c.h.b16 %v4877
    %v5079 = vunpack.c.l.b16 %v4878
    %v5080 = vunpack.c.h.b16 %v4878
    %v5081 = vunpack.c.l.b16 %v4879
    %v5082 = vunpack.c.h.b16 %v4879
    %v5083 = vunpack.c.l.b16 %v4880
    %v5084 = vunpack.c.h.b16 %v4880
    %v5085 = vunpack.c.l.b16 %v4881
    %v5086 = vunpack.c.h.b16 %v4881
    %v5087 = vunpack.c.l.b16 %v4882
    %v5088 = vunpack.c.h.b16 %v4882
    %v5089 = vunpack.c.l.b16 %v4883
    %v5090 = vunpack.c.h.b16 %v4883
    %v5091 = vunpack.c.l.b16 %v4884
    %v5092 = vunpack.c.h.b16 %v4884
    %v5093 = vunpack.c.l.b16 %v4885
    %v5094 = vunpack.c.h.b16 %v4885
    %v5095 = vunpack.c.l.b16 %v4886
    %v5096 = vunpack.c.h.b16 %v4886
    %v5097 = vunpack.c.l.b16 %v4887
    %v5098 = vunpack.c.h.b16 %v4887
    %v5099 = vunpack.c.l.b16 %v4888
    %v5100 = vunpack.c.h.b16 %v4888
    %v5101 = vunpack.c.l.b16 %v4889
    %v5102 = vunpack.c.h.b16 %v4889
    %v5103 = vunpack.c.l.b16 %v4890
    %v5104 = vunpack.c.h.b16 %v4890
    %v5105 = vunpack.c.l.b16 %v4891
    %v5106 = vunpack.c.h.b16 %v4891
    %v5107 = vunpack.c.l.b16 %v4892
    %v5108 = vunpack.c.h.b16 %v4892
    %v5109 = vpack.c.b16 %v4985, %v4981
    %v5110 = vpack.c.b16 %v4986, %v4982
    %v5111 = vpack.c.b16 %v4987, %v4983
    %v5112 = vpack.c.b16 %v4988, %v4984
    %v5113 = vpack.c.b16 %v4993, %v4989
    %v5114 = vpack.c.b16 %v4994, %v4990
    %v5115 = vpack.c.b16 %v4995, %v4991
    %v5116 = vpack.c.b16 %v4996, %v4992
    %v5117 = vpack.c.b16 %v5001, %v4997
    %v5118 = vpack.c.b16 %v5002, %v4998
    %v5119 = vpack.c.b16 %v5003, %v4999
    %v5120 = vpack.c.b16 %v5004, %v5000
    %v5121 = vpack.c.b16 %v5009, %v5005
    %v5122 = vpack.c.b16 %v5010, %v5006
    %v5123 = vpack.c.b16 %v5011, %v5007
    %v5124 = vpack.c.b16 %v5012, %v5008
    %v5125 = vpack.c.b16 %v5017, %v5013
    %v5126 = vpack.c.b16 %v5018, %v5014
    %v5127 = vpack.c.b16 %v5019, %v5015
    %v5128 = vpack.c.b16 %v5020, %v5016
    %v5129 = vpack.c.b16 %v5025, %v5021
    %v5130 = vpack.c.b16 %v5026, %v5022
    %v5131 = vpack.c.b16 %v5027, %v5023
    %v5132 = vpack.c.b16 %v5028, %v5024
    %v5133 = vpack.c.b16 %v5033, %v5029
    %v5134 = vpack.c.b16 %v5034, %v5030
    %v5135 = vpack.c.b16 %v5035, %v5031
    %v5136 = vpack.c.b16 %v5036, %v5032
    %v5137 = vpack.c.b16 %v5041, %v5037
    %v5138 = vpack.c.b16 %v5042, %v5038
    %v5139 = vpack.c.b16 %v5043, %v5039
    %v5140 = vpack.c.b16 %v5044, %v5040
    %v5141 = vpack.c.b16 %v5049, %v5045
    %v5142 = vpack.c.b16 %v5050, %v5046
    %v5143 = vpack.c.b16 %v5051, %v5047
    %v5144 = vpack.c.b16 %v5052, %v5048
    %v5145 = vpack.c.b16 %v5057, %v5053
    %v5146 = vpack.c.b16 %v5058, %v5054
    %v5147 = vpack.c.b16 %v5059, %v5055
    %v5148 = vpack.c.b16 %v5060, %v5056
    %v5149 = vpack.c.b16 %v5065, %v5061
    %v5150 = vpack.c.b16 %v5066, %v5062
    %v5151 = vpack.c.b16 %v5067, %v5063
    %v5152 = vpack.c.b16 %v5068, %v5064
    %v5153 = vpack.c.b16 %v5073, %v5069
    %v5154 = vpack.c.b16 %v5074, %v5070
    %v5155 = vpack.c.b16 %v5075, %v5071
    %v5156 = vpack.c.b16 %v5076, %v5072
    %v5157 = vpack.c.b16 %v5081, %v5077
    %v5158 = vpack.c.b16 %v5082, %v5078
    %v5159 = vpack.c.b16 %v5083, %v5079
    %v5160 = vpack.c.b16 %v5084, %v5080
    %v5161 = vpack.c.b16 %v5089, %v5085
    %v5162 = vpack.c.b16 %v5090, %v5086
    %v5163 = vpack.c.b16 %v5091, %v5087
    %v5164 = vpack.c.b16 %v5092, %v5088
    %v5165 = vpack.c.b16 %v5097, %v5093
    %v5166 = vpack.c.b16 %v5098, %v5094
    %v5167 = vpack.c.b16 %v5099, %v5095
    %v5168 = vpack.c.b16 %v5100, %v5096
    %v5169 = vpack.c.b16 %v5105, %v5101
    %v5170 = vpack.c.b16 %v5106, %v5102
    %v5171 = vpack.c.b16 %v5107, %v5103
    %v5172 = vpack.c.b16 %v5108, %v5104
    %5237 = vmatprep.subr.bf16.mxu0 %v5110
    %5238 = vmatpush1.bf16.msra.mxu0 %v5109
    %5239 = vmatprep.subr.bf16.mxu0 %v5114
    %5240 = vmatpush1.bf16.msra.mxu0 %v5113
    %5241 = vmatprep.subr.bf16.mxu0 %v5118
    %5242 = vmatpush1.bf16.msra.mxu0 %v5117
    %5243 = vmatprep.subr.bf16.mxu0 %v5122
    %5244 = vmatpush1.bf16.msra.mxu0 %v5121
    %5245 = vmatprep.subr.bf16.mxu0 %v5126
    %5246 = vmatpush1.bf16.msra.mxu0 %v5125
    %5247 = vmatprep.subr.bf16.mxu0 %v5130
    %5248 = vmatpush1.bf16.msra.mxu0 %v5129
    %5249 = vmatprep.subr.bf16.mxu0 %v5134
    %5250 = vmatpush1.bf16.msra.mxu0 %v5133
    %5251 = vmatprep.subr.bf16.mxu0 %v5138
    %5252 = vmatpush1.bf16.msra.mxu0 %v5137
    %5253 = vmatprep.subr.bf16.mxu0 %v5142
    %5254 = vmatpush1.bf16.msra.mxu0 %v5141
    %5255 = vmatprep.subr.bf16.mxu0 %v5146
    %5256 = vmatpush1.bf16.msra.mxu0 %v5145
    %5257 = vmatprep.subr.bf16.mxu0 %v5150
    %5258 = vmatpush1.bf16.msra.mxu0 %v5149
    %5259 = vmatprep.subr.bf16.mxu0 %v5154
    %5260 = vmatpush1.bf16.msra.mxu0 %v5153
    %5261 = vmatprep.subr.bf16.mxu0 %v5158
    %5262 = vmatpush1.bf16.msra.mxu0 %v5157
    %5263 = vmatprep.subr.bf16.mxu0 %v5162
    %5264 = vmatpush1.bf16.msra.mxu0 %v5161
    %5265 = vmatprep.subr.bf16.mxu0 %v5166
    %5266 = vmatpush1.bf16.msra.mxu0 %v5165
    %5267 = vmatprep.subr.bf16.mxu0 %v5170
    %5268 = vmatpush1.bf16.msra.mxu0 %v5169
    %5269 = vmatprep.mubr.bf16.mxu0 %v4895
    %5270 = vmatmul.mubr.bf16.gmra.mrb[0].mxu0 %v4894
    %v5271 = vpop.f32.mrb[0].mxu0
    %v5272 = vadd.f32 %v4900, %v5271
    %v5273 = vpop.f32.mrb[0].mxu0
    %v5274 = vadd.f32 %v4904, %v5273
    %v5275 = vpop.f32.mrb[0].mxu0
    %v5276 = vpop.f32.mrb[0].mxu0
    %5277 = vdwg.mxu0
    %5278 = vmatprep.subr.bf16.mxu0 %v5112
    %5279 = vmatpush1.bf16.msra.mxu0 %v5111
    %5280 = vmatprep.subr.bf16.mxu0 %v5116
    %5281 = vmatpush1.bf16.msra.mxu0 %v5115
    %5282 = vmatprep.subr.bf16.mxu0 %v5120
    %5283 = vmatpush1.bf16.msra.mxu0 %v5119
    %5284 = vmatprep.subr.bf16.mxu0 %v5124
    %5285 = vmatpush1.bf16.msra.mxu0 %v5123
    %5286 = vmatprep.subr.bf16.mxu0 %v5128
    %5287 = vmatpush1.bf16.msra.mxu0 %v5127
    %5288 = vmatprep.subr.bf16.mxu0 %v5132
    %5289 = vmatpush1.bf16.msra.mxu0 %v5131
    %5290 = vmatprep.subr.bf16.mxu0 %v5136
    %5291 = vmatpush1.bf16.msra.mxu0 %v5135
    %5292 = vmatprep.subr.bf16.mxu0 %v5140
    %5293 = vmatpush1.bf16.msra.mxu0 %v5139
    %5294 = vmatprep.subr.bf16.mxu0 %v5144
    %5295 = vmatpush1.bf16.msra.mxu0 %v5143
    %5296 = vmatprep.subr.bf16.mxu0 %v5148
    %5297 = vmatpush1.bf16.msra.mxu0 %v5147
    %5298 = vmatprep.subr.bf16.mxu0 %v5152
    %5299 = vmatpush1.bf16.msra.mxu0 %v5151
    %5300 = vmatprep.subr.bf16.mxu0 %v5156
    %5301 = vmatpush1.bf16.msra.mxu0 %v5155
    %5302 = vmatprep.subr.bf16.mxu0 %v5160
    %5303 = vmatpush1.bf16.msra.mxu0 %v5159
    %5304 = vmatprep.subr.bf16.mxu0 %v5164
    %5305 = vmatpush1.bf16.msra.mxu0 %v5163
    %5306 = vmatprep.subr.bf16.mxu0 %v5168
    %5307 = vmatpush1.bf16.msra.mxu0 %v5167
    %5308 = vmatprep.subr.bf16.mxu0 %v5172
    %5309 = vmatpush1.bf16.msra.mxu0 %v5171
    %5310 = vmatprep.mubr.bf16.mxu0 %v4895
    %5311 = vmatmul.mubr.bf16.gmra.mrb[0].mxu0 %v4894
    %v5312 = vpop.f32.mrb[0].mxu0
    %v5313 = vadd.f32 %v4908, %v5312
    %v5314 = vpop.f32.mrb[0].mxu0
    %v5315 = vadd.f32 %v4912, %v5314
    %v5316 = vpop.f32.mrb[0].mxu0
    %v5317 = vpop.f32.mrb[0].mxu0
    %5318 = vdwg.mxu0
    %v5319 = vmax.f32 %v5272, 0.0
    %v5320 = vmax.f32 %v5274, 0.0
    %v5321 = vmax.f32 %v5313, 0.0
    %v5322 = vmax.f32 %v5315, 0.0
    %v5323 = vld [vmem:[#allocation16] sm:$0xff]
    %v5324 = vld [vmem:[#allocation16 + $0x8] sm:$0xff]
    %v5325 = vld [vmem:[#allocation16 + $0x10] sm:$0xff]
    %v5326 = vld [vmem:[#allocation16 + $0x18] sm:$0xff]
    %v5327 = vld [vmem:[#allocation16 + $0x20] sm:$0xff]
    %v5328 = vld [vmem:[#allocation16 + $0x28] sm:$0xff]
    %v5329 = vld [vmem:[#allocation16 + $0x30] sm:$0xff]
    %v5330 = vld [vmem:[#allocation16 + $0x38] sm:$0xff]
    %v5331 = vld [vmem:[#allocation16 + $0x40] sm:$0xff]
    %v5332 = vld [vmem:[#allocation16 + $0x48] sm:$0xff]
    %v5333 = vld [vmem:[#allocation16 + $0x50] sm:$0xff]
    %v5334 = vld [vmem:[#allocation16 + $0x58] sm:$0xff]
    %v5335 = vld [vmem:[#allocation16 + $0x60] sm:$0xff]
    %v5336 = vld [vmem:[#allocation16 + $0x68] sm:$0xff]
    %v5337 = vld [vmem:[#allocation16 + $0x70] sm:$0xff]
    %v5338 = vld [vmem:[#allocation16 + $0x78] sm:$0xff]
    %v5339 = vld [vmem:[#allocation16 + $0x80] sm:$0xff]
    %v5340 = vld [vmem:[#allocation16 + $0x88] sm:$0xff]
    %v5341 = vld [vmem:[#allocation16 + $0x90] sm:$0xff]
    %v5342 = vld [vmem:[#allocation16 + $0x98] sm:$0xff]
    %v5343 = vld [vmem:[#allocation16 + $0xa0] sm:$0xff]
    %v5344 = vld [vmem:[#allocation16 + $0xa8] sm:$0xff]
    %v5345 = vld [vmem:[#allocation16 + $0xb0] sm:$0xff]
    %v5346 = vld [vmem:[#allocation16 + $0xb8] sm:$0xff]
    %v5347 = vld [vmem:[#allocation16 + $0xc0] sm:$0xff]
    %v5348 = vld [vmem:[#allocation16 + $0xc8] sm:$0xff]
    %v5349 = vld [vmem:[#allocation16 + $0xd0] sm:$0xff]
    %v5350 = vld [vmem:[#allocation16 + $0xd8] sm:$0xff]
    %v5351 = vld [vmem:[#allocation16 + $0xe0] sm:$0xff]
    %v5352 = vld [vmem:[#allocation16 + $0xe8] sm:$0xff]
    %v5353 = vld [vmem:[#allocation16 + $0xf0] sm:$0xff]
    %v5354 = vld [vmem:[#allocation16 + $0xf8] sm:$0xff]
    %v5355 = vld [vmem:[#allocation16 + $0x100] sm:$0xff]
    %v5356 = vld [vmem:[#allocation16 + $0x108] sm:$0xff]
    %v5357 = vld [vmem:[#allocation16 + $0x110] sm:$0xff]
    %v5358 = vld [vmem:[#allocation16 + $0x118] sm:$0xff]
    %v5359 = vld [vmem:[#allocation16 + $0x120] sm:$0xff]
    %v5360 = vld [vmem:[#allocation16 + $0x128] sm:$0xff]
    %v5361 = vld [vmem:[#allocation16 + $0x130] sm:$0xff]
    %v5362 = vld [vmem:[#allocation16 + $0x138] sm:$0xff]
    %v5363 = vld [vmem:[#allocation16 + $0x140] sm:$0xff]
    %v5364 = vld [vmem:[#allocation16 + $0x148] sm:$0xff]
    %v5365 = vld [vmem:[#allocation16 + $0x150] sm:$0xff]
    %v5366 = vld [vmem:[#allocation16 + $0x158] sm:$0xff]
    %v5367 = vld [vmem:[#allocation16 + $0x160] sm:$0xff]
    %v5368 = vld [vmem:[#allocation16 + $0x168] sm:$0xff]
    %v5369 = vld [vmem:[#allocation16 + $0x170] sm:$0xff]
    %v5370 = vld [vmem:[#allocation16 + $0x178] sm:$0xff]
    %v5371 = vld [vmem:[#allocation16 + $0x180] sm:$0xff]
    %v5372 = vld [vmem:[#allocation16 + $0x188] sm:$0xff]
    %v5373 = vld [vmem:[#allocation16 + $0x190] sm:$0xff]
    %v5374 = vld [vmem:[#allocation16 + $0x198] sm:$0xff]
    %v5375 = vld [vmem:[#allocation16 + $0x1a0] sm:$0xff]
    %v5376 = vld [vmem:[#allocation16 + $0x1a8] sm:$0xff]
    %v5377 = vld [vmem:[#allocation16 + $0x1b0] sm:$0xff]
    %v5378 = vld [vmem:[#allocation16 + $0x1b8] sm:$0xff]
    %v5379 = vld [vmem:[#allocation16 + $0x1c0] sm:$0xff]
    %v5380 = vld [vmem:[#allocation16 + $0x1c8] sm:$0xff]
    %v5381 = vld [vmem:[#allocation16 + $0x1d0] sm:$0xff]
    %v5382 = vld [vmem:[#allocation16 + $0x1d8] sm:$0xff]
    %v5383 = vld [vmem:[#allocation16 + $0x1e0] sm:$0xff]
    %v5384 = vld [vmem:[#allocation16 + $0x1e8] sm:$0xff]
    %v5385 = vld [vmem:[#allocation16 + $0x1f0] sm:$0xff]
    %v5386 = vld [vmem:[#allocation16 + $0x1f8] sm:$0xff]
    %v5387 = vld [vmem:[#allocation16 + $0x200] sm:$0xff]
    %v5388 = vld [vmem:[#allocation16 + $0x208] sm:$0xff]
    %v5389 = vld [vmem:[#allocation16 + $0x210] sm:$0xff]
    %v5390 = vld [vmem:[#allocation16 + $0x218] sm:$0xff]
    %v5391 = vld [vmem:[#allocation16 + $0x220] sm:$0xff]
    %v5392 = vld [vmem:[#allocation16 + $0x228] sm:$0xff]
    %v5393 = vld [vmem:[#allocation16 + $0x230] sm:$0xff]
    %v5394 = vld [vmem:[#allocation16 + $0x238] sm:$0xff]
    %v5395 = vld [vmem:[#allocation16 + $0x240] sm:$0xff]
    %v5396 = vld [vmem:[#allocation16 + $0x248] sm:$0xff]
    %v5397 = vld [vmem:[#allocation16 + $0x250] sm:$0xff]
    %v5398 = vld [vmem:[#allocation16 + $0x258] sm:$0xff]
    %v5399 = vld [vmem:[#allocation16 + $0x260] sm:$0xff]
    %v5400 = vld [vmem:[#allocation16 + $0x268] sm:$0xff]
    %v5401 = vld [vmem:[#allocation16 + $0x270] sm:$0xff]
    %v5402 = vld [vmem:[#allocation16 + $0x278] sm:$0xff]
    %v5403 = vld [vmem:[#allocation16 + $0x280] sm:$0xff]
    %v5404 = vld [vmem:[#allocation16 + $0x288] sm:$0xff]
    %v5405 = vld [vmem:[#allocation16 + $0x290] sm:$0xff]
    %v5406 = vld [vmem:[#allocation16 + $0x298] sm:$0xff]
    %v5407 = vld [vmem:[#allocation16 + $0x2a0] sm:$0xff]
    %v5408 = vld [vmem:[#allocation16 + $0x2a8] sm:$0xff]
    %v5409 = vld [vmem:[#allocation16 + $0x2b0] sm:$0xff]
    %v5410 = vld [vmem:[#allocation16 + $0x2b8] sm:$0xff]
    %v5411 = vld [vmem:[#allocation16 + $0x2c0] sm:$0xff]
    %v5412 = vld [vmem:[#allocation16 + $0x2c8] sm:$0xff]
    %v5413 = vld [vmem:[#allocation16 + $0x2d0] sm:$0xff]
    %v5414 = vld [vmem:[#allocation16 + $0x2d8] sm:$0xff]
    %v5415 = vld [vmem:[#allocation16 + $0x2e0] sm:$0xff]
    %v5416 = vld [vmem:[#allocation16 + $0x2e8] sm:$0xff]
    %v5417 = vld [vmem:[#allocation16 + $0x2f0] sm:$0xff]
    %v5418 = vld [vmem:[#allocation16 + $0x2f8] sm:$0xff]
    %v5419 = vld [vmem:[#allocation16 + $0x300] sm:$0xff]
    %v5420 = vld [vmem:[#allocation16 + $0x308] sm:$0xff]
    %v5421 = vld [vmem:[#allocation16 + $0x310] sm:$0xff]
    %v5422 = vld [vmem:[#allocation16 + $0x318] sm:$0xff]
    %v5423 = vld [vmem:[#allocation16 + $0x320] sm:$0xff]
    %v5424 = vld [vmem:[#allocation16 + $0x328] sm:$0xff]
    %v5425 = vld [vmem:[#allocation16 + $0x330] sm:$0xff]
    %v5426 = vld [vmem:[#allocation16 + $0x338] sm:$0xff]
    %v5427 = vld [vmem:[#allocation16 + $0x340] sm:$0xff]
    %v5428 = vld [vmem:[#allocation16 + $0x348] sm:$0xff]
    %v5429 = vld [vmem:[#allocation16 + $0x350] sm:$0xff]
    %v5430 = vld [vmem:[#allocation16 + $0x358] sm:$0xff]
    %v5431 = vld [vmem:[#allocation16 + $0x360] sm:$0xff]
    %v5432 = vld [vmem:[#allocation16 + $0x368] sm:$0xff]
    %v5433 = vld [vmem:[#allocation16 + $0x370] sm:$0xff]
    %v5434 = vld [vmem:[#allocation16 + $0x378] sm:$0xff]
    %v5435 = vld [vmem:[#allocation16 + $0x380] sm:$0xff]
    %v5436 = vld [vmem:[#allocation16 + $0x388] sm:$0xff]
    %v5437 = vld [vmem:[#allocation16 + $0x390] sm:$0xff]
    %v5438 = vld [vmem:[#allocation16 + $0x398] sm:$0xff]
    %v5439 = vld [vmem:[#allocation16 + $0x3a0] sm:$0xff]
    %v5440 = vld [vmem:[#allocation16 + $0x3a8] sm:$0xff]
    %v5441 = vld [vmem:[#allocation16 + $0x3b0] sm:$0xff]
    %v5442 = vld [vmem:[#allocation16 + $0x3b8] sm:$0xff]
    %v5443 = vld [vmem:[#allocation16 + $0x3c0] sm:$0xff]
    %v5444 = vld [vmem:[#allocation16 + $0x3c8] sm:$0xff]
    %v5445 = vld [vmem:[#allocation16 + $0x3d0] sm:$0xff]
    %v5446 = vld [vmem:[#allocation16 + $0x3d8] sm:$0xff]
    %v5447 = vld [vmem:[#allocation16 + $0x3e0] sm:$0xff]
    %v5448 = vld [vmem:[#allocation16 + $0x3e8] sm:$0xff]
    %v5449 = vld [vmem:[#allocation16 + $0x3f0] sm:$0xff]
    %v5450 = vld [vmem:[#allocation16 + $0x3f8] sm:$0xff]
    %v5451 = vld [vmem:[#allocation16 + $0x400] sm:$0xff]
    %v5452 = vld [vmem:[#allocation16 + $0x408] sm:$0xff]
    %v5453 = vld [vmem:[#allocation16 + $0x410] sm:$0xff]
    %v5454 = vld [vmem:[#allocation16 + $0x418] sm:$0xff]
    %v5455 = vld [vmem:[#allocation16 + $0x420] sm:$0xff]
    %v5456 = vld [vmem:[#allocation16 + $0x428] sm:$0xff]
    %v5457 = vld [vmem:[#allocation16 + $0x430] sm:$0xff]
    %v5458 = vld [vmem:[#allocation16 + $0x438] sm:$0xff]
    %v5459 = vld [vmem:[#allocation16 + $0x440] sm:$0xff]
    %v5460 = vld [vmem:[#allocation16 + $0x448] sm:$0xff]
    %v5461 = vld [vmem:[#allocation16 + $0x450] sm:$0xff]
    %v5462 = vld [vmem:[#allocation16 + $0x458] sm:$0xff]
    %v5463 = vld [vmem:[#allocation16 + $0x460] sm:$0xff]
    %v5464 = vld [vmem:[#allocation16 + $0x468] sm:$0xff]
    %v5465 = vld [vmem:[#allocation16 + $0x470] sm:$0xff]
    %v5466 = vld [vmem:[#allocation16 + $0x478] sm:$0xff]
    %v5467 = vld [vmem:[#allocation16 + $0x480] sm:$0xff]
    %v5468 = vld [vmem:[#allocation16 + $0x488] sm:$0xff]
    %v5469 = vld [vmem:[#allocation16 + $0x490] sm:$0xff]
    %v5470 = vld [vmem:[#allocation16 + $0x498] sm:$0xff]
    %v5471 = vld [vmem:[#allocation16 + $0x4a0] sm:$0xff]
    %v5472 = vld [vmem:[#allocation16 + $0x4a8] sm:$0xff]
    %v5473 = vld [vmem:[#allocation16 + $0x4b0] sm:$0xff]
    %v5474 = vld [vmem:[#allocation16 + $0x4b8] sm:$0xff]
    %v5475 = vld [vmem:[#allocation16 + $0x4c0] sm:$0xff]
    %v5476 = vld [vmem:[#allocation16 + $0x4c8] sm:$0xff]
    %v5477 = vld [vmem:[#allocation16 + $0x4d0] sm:$0xff]
    %v5478 = vld [vmem:[#allocation16 + $0x4d8] sm:$0xff]
    %v5479 = vld [vmem:[#allocation16 + $0x4e0] sm:$0xff]
    %v5480 = vld [vmem:[#allocation16 + $0x4e8] sm:$0xff]
    %v5481 = vld [vmem:[#allocation16 + $0x4f0] sm:$0xff]
    %v5482 = vld [vmem:[#allocation16 + $0x4f8] sm:$0xff]
    %v5483 = vld [vmem:[#allocation16 + $0x500] sm:$0xff]
    %v5484 = vld [vmem:[#allocation16 + $0x508] sm:$0xff]
    %v5485 = vld [vmem:[#allocation16 + $0x510] sm:$0xff]
    %v5486 = vld [vmem:[#allocation16 + $0x518] sm:$0xff]
    %v5487 = vld [vmem:[#allocation16 + $0x520] sm:$0xff]
    %v5488 = vld [vmem:[#allocation16 + $0x528] sm:$0xff]
    %v5489 = vld [vmem:[#allocation16 + $0x530] sm:$0xff]
    %v5490 = vld [vmem:[#allocation16 + $0x538] sm:$0xff]
    %v5491 = vld [vmem:[#allocation16 + $0x540] sm:$0xff]
    %v5492 = vld [vmem:[#allocation16 + $0x548] sm:$0xff]
    %v5493 = vld [vmem:[#allocation16 + $0x550] sm:$0xff]
    %v5494 = vld [vmem:[#allocation16 + $0x558] sm:$0xff]
    %v5495 = vld [vmem:[#allocation16 + $0x560] sm:$0xff]
    %v5496 = vld [vmem:[#allocation16 + $0x568] sm:$0xff]
    %v5497 = vld [vmem:[#allocation16 + $0x570] sm:$0xff]
    %v5498 = vld [vmem:[#allocation16 + $0x578] sm:$0xff]
    %v5499 = vld [vmem:[#allocation16 + $0x580] sm:$0xff]
    %v5500 = vld [vmem:[#allocation16 + $0x588] sm:$0xff]
    %v5501 = vld [vmem:[#allocation16 + $0x590] sm:$0xff]
    %v5502 = vld [vmem:[#allocation16 + $0x598] sm:$0xff]
    %v5503 = vld [vmem:[#allocation16 + $0x5a0] sm:$0xff]
    %v5504 = vld [vmem:[#allocation16 + $0x5a8] sm:$0xff]
    %v5505 = vld [vmem:[#allocation16 + $0x5b0] sm:$0xff]
    %v5506 = vld [vmem:[#allocation16 + $0x5b8] sm:$0xff]
    %v5507 = vld [vmem:[#allocation16 + $0x5c0] sm:$0xff]
    %v5508 = vld [vmem:[#allocation16 + $0x5c8] sm:$0xff]
    %v5509 = vld [vmem:[#allocation16 + $0x5d0] sm:$0xff]
    %v5510 = vld [vmem:[#allocation16 + $0x5d8] sm:$0xff]
    %v5511 = vld [vmem:[#allocation16 + $0x5e0] sm:$0xff]
    %v5512 = vld [vmem:[#allocation16 + $0x5e8] sm:$0xff]
    %v5513 = vld [vmem:[#allocation16 + $0x5f0] sm:$0xff]
    %v5514 = vld [vmem:[#allocation16 + $0x5f8] sm:$0xff]
    %v5515 = vld [vmem:[#allocation16 + $0x600] sm:$0xff]
    %v5516 = vld [vmem:[#allocation16 + $0x608] sm:$0xff]
    %v5517 = vld [vmem:[#allocation16 + $0x610] sm:$0xff]
    %v5518 = vld [vmem:[#allocation16 + $0x618] sm:$0xff]
    %v5519 = vld [vmem:[#allocation16 + $0x620] sm:$0xff]
    %v5520 = vld [vmem:[#allocation16 + $0x628] sm:$0xff]
    %v5521 = vld [vmem:[#allocation16 + $0x630] sm:$0xff]
    %v5522 = vld [vmem:[#allocation16 + $0x638] sm:$0xff]
    %v5523 = vld [vmem:[#allocation16 + $0x640] sm:$0xff]
    %v5524 = vld [vmem:[#allocation16 + $0x648] sm:$0xff]
    %v5525 = vld [vmem:[#allocation16 + $0x650] sm:$0xff]
    %v5526 = vld [vmem:[#allocation16 + $0x658] sm:$0xff]
    %v5527 = vld [vmem:[#allocation16 + $0x660] sm:$0xff]
    %v5528 = vld [vmem:[#allocation16 + $0x668] sm:$0xff]
    %v5529 = vld [vmem:[#allocation16 + $0x670] sm:$0xff]
    %v5530 = vld [vmem:[#allocation16 + $0x678] sm:$0xff]
    %v5531 = vld [vmem:[#allocation16 + $0x680] sm:$0xff]
    %v5532 = vld [vmem:[#allocation16 + $0x688] sm:$0xff]
    %v5533 = vld [vmem:[#allocation16 + $0x690] sm:$0xff]
    %v5534 = vld [vmem:[#allocation16 + $0x698] sm:$0xff]
    %v5535 = vld [vmem:[#allocation16 + $0x6a0] sm:$0xff]
    %v5536 = vld [vmem:[#allocation16 + $0x6a8] sm:$0xff]
    %v5537 = vld [vmem:[#allocation16 + $0x6b0] sm:$0xff]
    %v5538 = vld [vmem:[#allocation16 + $0x6b8] sm:$0xff]
    %v5539 = vld [vmem:[#allocation16 + $0x6c0] sm:$0xff]
    %v5540 = vld [vmem:[#allocation16 + $0x6c8] sm:$0xff]
    %v5541 = vld [vmem:[#allocation16 + $0x6d0] sm:$0xff]
    %v5542 = vld [vmem:[#allocation16 + $0x6d8] sm:$0xff]
    %v5543 = vld [vmem:[#allocation16 + $0x6e0] sm:$0xff]
    %v5544 = vld [vmem:[#allocation16 + $0x6e8] sm:$0xff]
    %v5545 = vld [vmem:[#allocation16 + $0x6f0] sm:$0xff]
    %v5546 = vld [vmem:[#allocation16 + $0x6f8] sm:$0xff]
    %v5547 = vld [vmem:[#allocation16 + $0x700] sm:$0xff]
    %v5548 = vld [vmem:[#allocation16 + $0x708] sm:$0xff]
    %v5549 = vld [vmem:[#allocation16 + $0x710] sm:$0xff]
    %v5550 = vld [vmem:[#allocation16 + $0x718] sm:$0xff]
    %v5551 = vld [vmem:[#allocation16 + $0x720] sm:$0xff]
    %v5552 = vld [vmem:[#allocation16 + $0x728] sm:$0xff]
    %v5553 = vld [vmem:[#allocation16 + $0x730] sm:$0xff]
    %v5554 = vld [vmem:[#allocation16 + $0x738] sm:$0xff]
    %v5555 = vld [vmem:[#allocation16 + $0x740] sm:$0xff]
    %v5556 = vld [vmem:[#allocation16 + $0x748] sm:$0xff]
    %v5557 = vld [vmem:[#allocation16 + $0x750] sm:$0xff]
    %v5558 = vld [vmem:[#allocation16 + $0x758] sm:$0xff]
    %v5559 = vld [vmem:[#allocation16 + $0x760] sm:$0xff]
    %v5560 = vld [vmem:[#allocation16 + $0x768] sm:$0xff]
    %v5561 = vld [vmem:[#allocation16 + $0x770] sm:$0xff]
    %v5562 = vld [vmem:[#allocation16 + $0x778] sm:$0xff]
    %v5563 = vld [vmem:[#allocation16 + $0x780] sm:$0xff]
    %v5564 = vld [vmem:[#allocation16 + $0x788] sm:$0xff]
    %v5565 = vld [vmem:[#allocation16 + $0x790] sm:$0xff]
    %v5566 = vld [vmem:[#allocation16 + $0x798] sm:$0xff]
    %v5567 = vld [vmem:[#allocation16 + $0x7a0] sm:$0xff]
    %v5568 = vld [vmem:[#allocation16 + $0x7a8] sm:$0xff]
    %v5569 = vld [vmem:[#allocation16 + $0x7b0] sm:$0xff]
    %v5570 = vld [vmem:[#allocation16 + $0x7b8] sm:$0xff]
    %v5571 = vld [vmem:[#allocation16 + $0x7c0] sm:$0xff]
    %v5572 = vld [vmem:[#allocation16 + $0x7c8] sm:$0xff]
    %v5573 = vld [vmem:[#allocation16 + $0x7d0] sm:$0xff]
    %v5574 = vld [vmem:[#allocation16 + $0x7d8] sm:$0xff]
    %v5575 = vld [vmem:[#allocation16 + $0x7e0] sm:$0xff]
    %v5576 = vld [vmem:[#allocation16 + $0x7e8] sm:$0xff]
    %v5577 = vld [vmem:[#allocation16 + $0x7f0] sm:$0xff]
    %v5578 = vld [vmem:[#allocation16 + $0x7f8] sm:$0xff]
    %v5579 = vld [vmem:[%s14] sm:$0xff]
    %v5580 = vpack.c.bf16 %v5319, %v5319
    %v5581 = vpack.c.bf16 %v5320, %v5320
    %v5582 = vpack.c.bf16 %v5321, %v5321
    %v5583 = vpack.c.bf16 %v5322, %v5322
    %v5585 = vlaneseq
    %v5586 = vshrl.u32 %v5585, 7
    %v5587 = vsub.s32 0, %v5586
    %v5588 = vrot.slane %v5579, %v5587
    %v5589 = vlaneseq
    %v5590 = vshrl.u32 %v5589, 7
    %v5591 = vsub.s32 1, %v5590
    %v5592 = vrot.slane %v5579, %v5591
    %v5593 = vlaneseq
    %v5594 = vshrl.u32 %v5593, 7
    %v5595 = vsub.s32 2, %v5594
    %v5596 = vrot.slane %v5579, %v5595
    %v5597 = vlaneseq
    %v5598 = vshrl.u32 %v5597, 7
    %v5599 = vsub.s32 3, %v5598
    %v5600 = vrot.slane %v5579, %v5599
    %v5601 = vlaneseq
    %v5602 = vshrl.u32 %v5601, 7
    %v5603 = vsub.s32 4, %v5602
    %v5604 = vrot.slane %v5579, %v5603
    %v5605 = vlaneseq
    %v5606 = vshrl.u32 %v5605, 7
    %v5607 = vsub.s32 5, %v5606
    %v5608 = vrot.slane %v5579, %v5607
    %v5609 = vlaneseq
    %v5610 = vshrl.u32 %v5609, 7
    %v5611 = vsub.s32 6, %v5610
    %v5612 = vrot.slane %v5579, %v5611
    %v5613 = vlaneseq
    %v5614 = vshrl.u32 %v5613, 7
    %v5615 = vsub.s32 7, %v5614
    %v5616 = vrot.slane %v5579, %v5615
    %v5881 = vunpack.c.l.b16 %v5323
    %v5882 = vunpack.c.h.b16 %v5323
    %v5883 = vunpack.c.l.b16 %v5324
    %v5884 = vunpack.c.h.b16 %v5324
    %v5885 = vunpack.c.l.b16 %v5325
    %v5886 = vunpack.c.h.b16 %v5325
    %v5887 = vunpack.c.l.b16 %v5326
    %v5888 = vunpack.c.h.b16 %v5326
    %v5889 = vunpack.c.l.b16 %v5327
    %v5890 = vunpack.c.h.b16 %v5327
    %v5891 = vunpack.c.l.b16 %v5328
    %v5892 = vunpack.c.h.b16 %v5328
    %v5893 = vunpack.c.l.b16 %v5329
    %v5894 = vunpack.c.h.b16 %v5329
    %v5895 = vunpack.c.l.b16 %v5330
    %v5896 = vunpack.c.h.b16 %v5330
    %v5897 = vunpack.c.l.b16 %v5331
    %v5898 = vunpack.c.h.b16 %v5331
    %v5899 = vunpack.c.l.b16 %v5332
    %v5900 = vunpack.c.h.b16 %v5332
    %v5901 = vunpack.c.l.b16 %v5333
    %v5902 = vunpack.c.h.b16 %v5333
    %v5903 = vunpack.c.l.b16 %v5334
    %v5904 = vunpack.c.h.b16 %v5334
    %v5905 = vunpack.c.l.b16 %v5335
    %v5906 = vunpack.c.h.b16 %v5335
    %v5907 = vunpack.c.l.b16 %v5336
    %v5908 = vunpack.c.h.b16 %v5336
    %v5909 = vunpack.c.l.b16 %v5337
    %v5910 = vunpack.c.h.b16 %v5337
    %v5911 = vunpack.c.l.b16 %v5338
    %v5912 = vunpack.c.h.b16 %v5338
    %v5913 = vunpack.c.l.b16 %v5339
    %v5914 = vunpack.c.h.b16 %v5339
    %v5915 = vunpack.c.l.b16 %v5340
    %v5916 = vunpack.c.h.b16 %v5340
    %v5917 = vunpack.c.l.b16 %v5341
    %v5918 = vunpack.c.h.b16 %v5341
    %v5919 = vunpack.c.l.b16 %v5342
    %v5920 = vunpack.c.h.b16 %v5342
    %v5921 = vunpack.c.l.b16 %v5343
    %v5922 = vunpack.c.h.b16 %v5343
    %v5923 = vunpack.c.l.b16 %v5344
    %v5924 = vunpack.c.h.b16 %v5344
    %v5925 = vunpack.c.l.b16 %v5345
    %v5926 = vunpack.c.h.b16 %v5345
    %v5927 = vunpack.c.l.b16 %v5346
    %v5928 = vunpack.c.h.b16 %v5346
    %v5929 = vunpack.c.l.b16 %v5347
    %v5930 = vunpack.c.h.b16 %v5347
    %v5931 = vunpack.c.l.b16 %v5348
    %v5932 = vunpack.c.h.b16 %v5348
    %v5933 = vunpack.c.l.b16 %v5349
    %v5934 = vunpack.c.h.b16 %v5349
    %v5935 = vunpack.c.l.b16 %v5350
    %v5936 = vunpack.c.h.b16 %v5350
    %v5937 = vunpack.c.l.b16 %v5351
    %v5938 = vunpack.c.h.b16 %v5351
    %v5939 = vunpack.c.l.b16 %v5352
    %v5940 = vunpack.c.h.b16 %v5352
    %v5941 = vunpack.c.l.b16 %v5353
    %v5942 = vunpack.c.h.b16 %v5353
    %v5943 = vunpack.c.l.b16 %v5354
    %v5944 = vunpack.c.h.b16 %v5354
    %v5945 = vunpack.c.l.b16 %v5355
    %v5946 = vunpack.c.h.b16 %v5355
    %v5947 = vunpack.c.l.b16 %v5356
    %v5948 = vunpack.c.h.b16 %v5356
    %v5949 = vunpack.c.l.b16 %v5357
    %v5950 = vunpack.c.h.b16 %v5357
    %v5951 = vunpack.c.l.b16 %v5358
    %v5952 = vunpack.c.h.b16 %v5358
    %v5953 = vunpack.c.l.b16 %v5359
    %v5954 = vunpack.c.h.b16 %v5359
    %v5955 = vunpack.c.l.b16 %v5360
    %v5956 = vunpack.c.h.b16 %v5360
    %v5957 = vunpack.c.l.b16 %v5361
    %v5958 = vunpack.c.h.b16 %v5361
    %v5959 = vunpack.c.l.b16 %v5362
    %v5960 = vunpack.c.h.b16 %v5362
    %v5961 = vunpack.c.l.b16 %v5363
    %v5962 = vunpack.c.h.b16 %v5363
    %v5963 = vunpack.c.l.b16 %v5364
    %v5964 = vunpack.c.h.b16 %v5364
    %v5965 = vunpack.c.l.b16 %v5365
    %v5966 = vunpack.c.h.b16 %v5365
    %v5967 = vunpack.c.l.b16 %v5366
    %v5968 = vunpack.c.h.b16 %v5366
    %v5969 = vunpack.c.l.b16 %v5367
    %v5970 = vunpack.c.h.b16 %v5367
    %v5971 = vunpack.c.l.b16 %v5368
    %v5972 = vunpack.c.h.b16 %v5368
    %v5973 = vunpack.c.l.b16 %v5369
    %v5974 = vunpack.c.h.b16 %v5369
    %v5975 = vunpack.c.l.b16 %v5370
    %v5976 = vunpack.c.h.b16 %v5370
    %v5977 = vunpack.c.l.b16 %v5371
    %v5978 = vunpack.c.h.b16 %v5371
    %v5979 = vunpack.c.l.b16 %v5372
    %v5980 = vunpack.c.h.b16 %v5372
    %v5981 = vunpack.c.l.b16 %v5373
    %v5982 = vunpack.c.h.b16 %v5373
    %v5983 = vunpack.c.l.b16 %v5374
    %v5984 = vunpack.c.h.b16 %v5374
    %v5985 = vunpack.c.l.b16 %v5375
    %v5986 = vunpack.c.h.b16 %v5375
    %v5987 = vunpack.c.l.b16 %v5376
    %v5988 = vunpack.c.h.b16 %v5376
    %v5989 = vunpack.c.l.b16 %v5377
    %v5990 = vunpack.c.h.b16 %v5377
    %v5991 = vunpack.c.l.b16 %v5378
    %v5992 = vunpack.c.h.b16 %v5378
    %v5993 = vunpack.c.l.b16 %v5379
    %v5994 = vunpack.c.h.b16 %v5379
    %v5995 = vunpack.c.l.b16 %v5380
    %v5996 = vunpack.c.h.b16 %v5380
    %v5997 = vunpack.c.l.b16 %v5381
    %v5998 = vunpack.c.h.b16 %v5381
    %v5999 = vunpack.c.l.b16 %v5382
    %v6000 = vunpack.c.h.b16 %v5382
    %v6001 = vunpack.c.l.b16 %v5383
    %v6002 = vunpack.c.h.b16 %v5383
    %v6003 = vunpack.c.l.b16 %v5384
    %v6004 = vunpack.c.h.b16 %v5384
    %v6005 = vunpack.c.l.b16 %v5385
    %v6006 = vunpack.c.h.b16 %v5385
    %v6007 = vunpack.c.l.b16 %v5386
    %v6008 = vunpack.c.h.b16 %v5386
    %v6009 = vunpack.c.l.b16 %v5387
    %v6010 = vunpack.c.h.b16 %v5387
    %v6011 = vunpack.c.l.b16 %v5388
    %v6012 = vunpack.c.h.b16 %v5388
    %v6013 = vunpack.c.l.b16 %v5389
    %v6014 = vunpack.c.h.b16 %v5389
    %v6015 = vunpack.c.l.b16 %v5390
    %v6016 = vunpack.c.h.b16 %v5390
    %v6017 = vunpack.c.l.b16 %v5391
    %v6018 = vunpack.c.h.b16 %v5391
    %v6019 = vunpack.c.l.b16 %v5392
    %v6020 = vunpack.c.h.b16 %v5392
    %v6021 = vunpack.c.l.b16 %v5393
    %v6022 = vunpack.c.h.b16 %v5393
    %v6023 = vunpack.c.l.b16 %v5394
    %v6024 = vunpack.c.h.b16 %v5394
    %v6025 = vunpack.c.l.b16 %v5395
    %v6026 = vunpack.c.h.b16 %v5395
    %v6027 = vunpack.c.l.b16 %v5396
    %v6028 = vunpack.c.h.b16 %v5396
    %v6029 = vunpack.c.l.b16 %v5397
    %v6030 = vunpack.c.h.b16 %v5397
    %v6031 = vunpack.c.l.b16 %v5398
    %v6032 = vunpack.c.h.b16 %v5398
    %v6033 = vunpack.c.l.b16 %v5399
    %v6034 = vunpack.c.h.b16 %v5399
    %v6035 = vunpack.c.l.b16 %v5400
    %v6036 = vunpack.c.h.b16 %v5400
    %v6037 = vunpack.c.l.b16 %v5401
    %v6038 = vunpack.c.h.b16 %v5401
    %v6039 = vunpack.c.l.b16 %v5402
    %v6040 = vunpack.c.h.b16 %v5402
    %v6041 = vunpack.c.l.b16 %v5403
    %v6042 = vunpack.c.h.b16 %v5403
    %v6043 = vunpack.c.l.b16 %v5404
    %v6044 = vunpack.c.h.b16 %v5404
    %v6045 = vunpack.c.l.b16 %v5405
    %v6046 = vunpack.c.h.b16 %v5405
    %v6047 = vunpack.c.l.b16 %v5406
    %v6048 = vunpack.c.h.b16 %v5406
    %v6049 = vunpack.c.l.b16 %v5407
    %v6050 = vunpack.c.h.b16 %v5407
    %v6051 = vunpack.c.l.b16 %v5408
    %v6052 = vunpack.c.h.b16 %v5408
    %v6053 = vunpack.c.l.b16 %v5409
    %v6054 = vunpack.c.h.b16 %v5409
    %v6055 = vunpack.c.l.b16 %v5410
    %v6056 = vunpack.c.h.b16 %v5410
    %v6057 = vunpack.c.l.b16 %v5411
    %v6058 = vunpack.c.h.b16 %v5411
    %v6059 = vunpack.c.l.b16 %v5412
    %v6060 = vunpack.c.h.b16 %v5412
    %v6061 = vunpack.c.l.b16 %v5413
    %v6062 = vunpack.c.h.b16 %v5413
    %v6063 = vunpack.c.l.b16 %v5414
    %v6064 = vunpack.c.h.b16 %v5414
    %v6065 = vunpack.c.l.b16 %v5415
    %v6066 = vunpack.c.h.b16 %v5415
    %v6067 = vunpack.c.l.b16 %v5416
    %v6068 = vunpack.c.h.b16 %v5416
    %v6069 = vunpack.c.l.b16 %v5417
    %v6070 = vunpack.c.h.b16 %v5417
    %v6071 = vunpack.c.l.b16 %v5418
    %v6072 = vunpack.c.h.b16 %v5418
    %v6073 = vunpack.c.l.b16 %v5419
    %v6074 = vunpack.c.h.b16 %v5419
    %v6075 = vunpack.c.l.b16 %v5420
    %v6076 = vunpack.c.h.b16 %v5420
    %v6077 = vunpack.c.l.b16 %v5421
    %v6078 = vunpack.c.h.b16 %v5421
    %v6079 = vunpack.c.l.b16 %v5422
    %v6080 = vunpack.c.h.b16 %v5422
    %v6081 = vunpack.c.l.b16 %v5423
    %v6082 = vunpack.c.h.b16 %v5423
    %v6083 = vunpack.c.l.b16 %v5424
    %v6084 = vunpack.c.h.b16 %v5424
    %v6085 = vunpack.c.l.b16 %v5425
    %v6086 = vunpack.c.h.b16 %v5425
    %v6087 = vunpack.c.l.b16 %v5426
    %v6088 = vunpack.c.h.b16 %v5426
    %v6089 = vunpack.c.l.b16 %v5427
    %v6090 = vunpack.c.h.b16 %v5427
    %v6091 = vunpack.c.l.b16 %v5428
    %v6092 = vunpack.c.h.b16 %v5428
    %v6093 = vunpack.c.l.b16 %v5429
    %v6094 = vunpack.c.h.b16 %v5429
    %v6095 = vunpack.c.l.b16 %v5430
    %v6096 = vunpack.c.h.b16 %v5430
    %v6097 = vunpack.c.l.b16 %v5431
    %v6098 = vunpack.c.h.b16 %v5431
    %v6099 = vunpack.c.l.b16 %v5432
    %v6100 = vunpack.c.h.b16 %v5432
    %v6101 = vunpack.c.l.b16 %v5433
    %v6102 = vunpack.c.h.b16 %v5433
    %v6103 = vunpack.c.l.b16 %v5434
    %v6104 = vunpack.c.h.b16 %v5434
    %v6105 = vunpack.c.l.b16 %v5435
    %v6106 = vunpack.c.h.b16 %v5435
    %v6107 = vunpack.c.l.b16 %v5436
    %v6108 = vunpack.c.h.b16 %v5436
    %v6109 = vunpack.c.l.b16 %v5437
    %v6110 = vunpack.c.h.b16 %v5437
    %v6111 = vunpack.c.l.b16 %v5438
    %v6112 = vunpack.c.h.b16 %v5438
    %v6113 = vunpack.c.l.b16 %v5439
    %v6114 = vunpack.c.h.b16 %v5439
    %v6115 = vunpack.c.l.b16 %v5440
    %v6116 = vunpack.c.h.b16 %v5440
    %v6117 = vunpack.c.l.b16 %v5441
    %v6118 = vunpack.c.h.b16 %v5441
    %v6119 = vunpack.c.l.b16 %v5442
    %v6120 = vunpack.c.h.b16 %v5442
    %v6121 = vunpack.c.l.b16 %v5443
    %v6122 = vunpack.c.h.b16 %v5443
    %v6123 = vunpack.c.l.b16 %v5444
    %v6124 = vunpack.c.h.b16 %v5444
    %v6125 = vunpack.c.l.b16 %v5445
    %v6126 = vunpack.c.h.b16 %v5445
    %v6127 = vunpack.c.l.b16 %v5446
    %v6128 = vunpack.c.h.b16 %v5446
    %v6129 = vunpack.c.l.b16 %v5447
    %v6130 = vunpack.c.h.b16 %v5447
    %v6131 = vunpack.c.l.b16 %v5448
    %v6132 = vunpack.c.h.b16 %v5448
    %v6133 = vunpack.c.l.b16 %v5449
    %v6134 = vunpack.c.h.b16 %v5449
    %v6135 = vunpack.c.l.b16 %v5450
    %v6136 = vunpack.c.h.b16 %v5450
    %v6137 = vunpack.c.l.b16 %v5451
    %v6138 = vunpack.c.h.b16 %v5451
    %v6139 = vunpack.c.l.b16 %v5452
    %v6140 = vunpack.c.h.b16 %v5452
    %v6141 = vunpack.c.l.b16 %v5453
    %v6142 = vunpack.c.h.b16 %v5453
    %v6143 = vunpack.c.l.b16 %v5454
    %v6144 = vunpack.c.h.b16 %v5454
    %v6145 = vunpack.c.l.b16 %v5455
    %v6146 = vunpack.c.h.b16 %v5455
    %v6147 = vunpack.c.l.b16 %v5456
    %v6148 = vunpack.c.h.b16 %v5456
    %v6149 = vunpack.c.l.b16 %v5457
    %v6150 = vunpack.c.h.b16 %v5457
    %v6151 = vunpack.c.l.b16 %v5458
    %v6152 = vunpack.c.h.b16 %v5458
    %v6153 = vunpack.c.l.b16 %v5459
    %v6154 = vunpack.c.h.b16 %v5459
    %v6155 = vunpack.c.l.b16 %v5460
    %v6156 = vunpack.c.h.b16 %v5460
    %v6157 = vunpack.c.l.b16 %v5461
    %v6158 = vunpack.c.h.b16 %v5461
    %v6159 = vunpack.c.l.b16 %v5462
    %v6160 = vunpack.c.h.b16 %v5462
    %v6161 = vunpack.c.l.b16 %v5463
    %v6162 = vunpack.c.h.b16 %v5463
    %v6163 = vunpack.c.l.b16 %v5464
    %v6164 = vunpack.c.h.b16 %v5464
    %v6165 = vunpack.c.l.b16 %v5465
    %v6166 = vunpack.c.h.b16 %v5465
    %v6167 = vunpack.c.l.b16 %v5466
    %v6168 = vunpack.c.h.b16 %v5466
    %v6169 = vunpack.c.l.b16 %v5467
    %v6170 = vunpack.c.h.b16 %v5467
    %v6171 = vunpack.c.l.b16 %v5468
    %v6172 = vunpack.c.h.b16 %v5468
    %v6173 = vunpack.c.l.b16 %v5469
    %v6174 = vunpack.c.h.b16 %v5469
    %v6175 = vunpack.c.l.b16 %v5470
    %v6176 = vunpack.c.h.b16 %v5470
    %v6177 = vunpack.c.l.b16 %v5471
    %v6178 = vunpack.c.h.b16 %v5471
    %v6179 = vunpack.c.l.b16 %v5472
    %v6180 = vunpack.c.h.b16 %v5472
    %v6181 = vunpack.c.l.b16 %v5473
    %v6182 = vunpack.c.h.b16 %v5473
    %v6183 = vunpack.c.l.b16 %v5474
    %v6184 = vunpack.c.h.b16 %v5474
    %v6185 = vunpack.c.l.b16 %v5475
    %v6186 = vunpack.c.h.b16 %v5475
    %v6187 = vunpack.c.l.b16 %v5476
    %v6188 = vunpack.c.h.b16 %v5476
    %v6189 = vunpack.c.l.b16 %v5477
    %v6190 = vunpack.c.h.b16 %v5477
    %v6191 = vunpack.c.l.b16 %v5478
    %v6192 = vunpack.c.h.b16 %v5478
    %v6193 = vunpack.c.l.b16 %v5479
    %v6194 = vunpack.c.h.b16 %v5479
    %v6195 = vunpack.c.l.b16 %v5480
    %v6196 = vunpack.c.h.b16 %v5480
    %v6197 = vunpack.c.l.b16 %v5481
    %v6198 = vunpack.c.h.b16 %v5481
    %v6199 = vunpack.c.l.b16 %v5482
    %v6200 = vunpack.c.h.b16 %v5482
    %v6201 = vunpack.c.l.b16 %v5483
    %v6202 = vunpack.c.h.b16 %v5483
    %v6203 = vunpack.c.l.b16 %v5484
    %v6204 = vunpack.c.h.b16 %v5484
    %v6205 = vunpack.c.l.b16 %v5485
    %v6206 = vunpack.c.h.b16 %v5485
    %v6207 = vunpack.c.l.b16 %v5486
    %v6208 = vunpack.c.h.b16 %v5486
    %v6209 = vunpack.c.l.b16 %v5487
    %v6210 = vunpack.c.h.b16 %v5487
    %v6211 = vunpack.c.l.b16 %v5488
    %v6212 = vunpack.c.h.b16 %v5488
    %v6213 = vunpack.c.l.b16 %v5489
    %v6214 = vunpack.c.h.b16 %v5489
    %v6215 = vunpack.c.l.b16 %v5490
    %v6216 = vunpack.c.h.b16 %v5490
    %v6217 = vunpack.c.l.b16 %v5491
    %v6218 = vunpack.c.h.b16 %v5491
    %v6219 = vunpack.c.l.b16 %v5492
    %v6220 = vunpack.c.h.b16 %v5492
    %v6221 = vunpack.c.l.b16 %v5493
    %v6222 = vunpack.c.h.b16 %v5493
    %v6223 = vunpack.c.l.b16 %v5494
    %v6224 = vunpack.c.h.b16 %v5494
    %v6225 = vunpack.c.l.b16 %v5495
    %v6226 = vunpack.c.h.b16 %v5495
    %v6227 = vunpack.c.l.b16 %v5496
    %v6228 = vunpack.c.h.b16 %v5496
    %v6229 = vunpack.c.l.b16 %v5497
    %v6230 = vunpack.c.h.b16 %v5497
    %v6231 = vunpack.c.l.b16 %v5498
    %v6232 = vunpack.c.h.b16 %v5498
    %v6233 = vunpack.c.l.b16 %v5499
    %v6234 = vunpack.c.h.b16 %v5499
    %v6235 = vunpack.c.l.b16 %v5500
    %v6236 = vunpack.c.h.b16 %v5500
    %v6237 = vunpack.c.l.b16 %v5501
    %v6238 = vunpack.c.h.b16 %v5501
    %v6239 = vunpack.c.l.b16 %v5502
    %v6240 = vunpack.c.h.b16 %v5502
    %v6241 = vunpack.c.l.b16 %v5503
    %v6242 = vunpack.c.h.b16 %v5503
    %v6243 = vunpack.c.l.b16 %v5504
    %v6244 = vunpack.c.h.b16 %v5504
    %v6245 = vunpack.c.l.b16 %v5505
    %v6246 = vunpack.c.h.b16 %v5505
    %v6247 = vunpack.c.l.b16 %v5506
    %v6248 = vunpack.c.h.b16 %v5506
    %v6249 = vunpack.c.l.b16 %v5507
    %v6250 = vunpack.c.h.b16 %v5507
    %v6251 = vunpack.c.l.b16 %v5508
    %v6252 = vunpack.c.h.b16 %v5508
    %v6253 = vunpack.c.l.b16 %v5509
    %v6254 = vunpack.c.h.b16 %v5509
    %v6255 = vunpack.c.l.b16 %v5510
    %v6256 = vunpack.c.h.b16 %v5510
    %v6257 = vunpack.c.l.b16 %v5511
    %v6258 = vunpack.c.h.b16 %v5511
    %v6259 = vunpack.c.l.b16 %v5512
    %v6260 = vunpack.c.h.b16 %v5512
    %v6261 = vunpack.c.l.b16 %v5513
    %v6262 = vunpack.c.h.b16 %v5513
    %v6263 = vunpack.c.l.b16 %v5514
    %v6264 = vunpack.c.h.b16 %v5514
    %v6265 = vunpack.c.l.b16 %v5515
    %v6266 = vunpack.c.h.b16 %v5515
    %v6267 = vunpack.c.l.b16 %v5516
    %v6268 = vunpack.c.h.b16 %v5516
    %v6269 = vunpack.c.l.b16 %v5517
    %v6270 = vunpack.c.h.b16 %v5517
    %v6271 = vunpack.c.l.b16 %v5518
    %v6272 = vunpack.c.h.b16 %v5518
    %v6273 = vunpack.c.l.b16 %v5519
    %v6274 = vunpack.c.h.b16 %v5519
    %v6275 = vunpack.c.l.b16 %v5520
    %v6276 = vunpack.c.h.b16 %v5520
    %v6277 = vunpack.c.l.b16 %v5521
    %v6278 = vunpack.c.h.b16 %v5521
    %v6279 = vunpack.c.l.b16 %v5522
    %v6280 = vunpack.c.h.b16 %v5522
    %v6281 = vunpack.c.l.b16 %v5523
    %v6282 = vunpack.c.h.b16 %v5523
    %v6283 = vunpack.c.l.b16 %v5524
    %v6284 = vunpack.c.h.b16 %v5524
    %v6285 = vunpack.c.l.b16 %v5525
    %v6286 = vunpack.c.h.b16 %v5525
    %v6287 = vunpack.c.l.b16 %v5526
    %v6288 = vunpack.c.h.b16 %v5526
    %v6289 = vunpack.c.l.b16 %v5527
    %v6290 = vunpack.c.h.b16 %v5527
    %v6291 = vunpack.c.l.b16 %v5528
    %v6292 = vunpack.c.h.b16 %v5528
    %v6293 = vunpack.c.l.b16 %v5529
    %v6294 = vunpack.c.h.b16 %v5529
    %v6295 = vunpack.c.l.b16 %v5530
    %v6296 = vunpack.c.h.b16 %v5530
    %v6297 = vunpack.c.l.b16 %v5531
    %v6298 = vunpack.c.h.b16 %v5531
    %v6299 = vunpack.c.l.b16 %v5532
    %v6300 = vunpack.c.h.b16 %v5532
    %v6301 = vunpack.c.l.b16 %v5533
    %v6302 = vunpack.c.h.b16 %v5533
    %v6303 = vunpack.c.l.b16 %v5534
    %v6304 = vunpack.c.h.b16 %v5534
    %v6305 = vunpack.c.l.b16 %v5535
    %v6306 = vunpack.c.h.b16 %v5535
    %v6307 = vunpack.c.l.b16 %v5536
    %v6308 = vunpack.c.h.b16 %v5536
    %v6309 = vunpack.c.l.b16 %v5537
    %v6310 = vunpack.c.h.b16 %v5537
    %v6311 = vunpack.c.l.b16 %v5538
    %v6312 = vunpack.c.h.b16 %v5538
    %v6313 = vunpack.c.l.b16 %v5539
    %v6314 = vunpack.c.h.b16 %v5539
    %v6315 = vunpack.c.l.b16 %v5540
    %v6316 = vunpack.c.h.b16 %v5540
    %v6317 = vunpack.c.l.b16 %v5541
    %v6318 = vunpack.c.h.b16 %v5541
    %v6319 = vunpack.c.l.b16 %v5542
    %v6320 = vunpack.c.h.b16 %v5542
    %v6321 = vunpack.c.l.b16 %v5543
    %v6322 = vunpack.c.h.b16 %v5543
    %v6323 = vunpack.c.l.b16 %v5544
    %v6324 = vunpack.c.h.b16 %v5544
    %v6325 = vunpack.c.l.b16 %v5545
    %v6326 = vunpack.c.h.b16 %v5545
    %v6327 = vunpack.c.l.b16 %v5546
    %v6328 = vunpack.c.h.b16 %v5546
    %v6329 = vunpack.c.l.b16 %v5547
    %v6330 = vunpack.c.h.b16 %v5547
    %v6331 = vunpack.c.l.b16 %v5548
    %v6332 = vunpack.c.h.b16 %v5548
    %v6333 = vunpack.c.l.b16 %v5549
    %v6334 = vunpack.c.h.b16 %v5549
    %v6335 = vunpack.c.l.b16 %v5550
    %v6336 = vunpack.c.h.b16 %v5550
    %v6337 = vunpack.c.l.b16 %v5551
    %v6338 = vunpack.c.h.b16 %v5551
    %v6339 = vunpack.c.l.b16 %v5552
    %v6340 = vunpack.c.h.b16 %v5552
    %v6341 = vunpack.c.l.b16 %v5553
    %v6342 = vunpack.c.h.b16 %v5553
    %v6343 = vunpack.c.l.b16 %v5554
    %v6344 = vunpack.c.h.b16 %v5554
    %v6345 = vunpack.c.l.b16 %v5555
    %v6346 = vunpack.c.h.b16 %v5555
    %v6347 = vunpack.c.l.b16 %v5556
    %v6348 = vunpack.c.h.b16 %v5556
    %v6349 = vunpack.c.l.b16 %v5557
    %v6350 = vunpack.c.h.b16 %v5557
    %v6351 = vunpack.c.l.b16 %v5558
    %v6352 = vunpack.c.h.b16 %v5558
    %v6353 = vunpack.c.l.b16 %v5559
    %v6354 = vunpack.c.h.b16 %v5559
    %v6355 = vunpack.c.l.b16 %v5560
    %v6356 = vunpack.c.h.b16 %v5560
    %v6357 = vunpack.c.l.b16 %v5561
    %v6358 = vunpack.c.h.b16 %v5561
    %v6359 = vunpack.c.l.b16 %v5562
    %v6360 = vunpack.c.h.b16 %v5562
    %v6361 = vunpack.c.l.b16 %v5563
    %v6362 = vunpack.c.h.b16 %v5563
    %v6363 = vunpack.c.l.b16 %v5564
    %v6364 = vunpack.c.h.b16 %v5564
    %v6365 = vunpack.c.l.b16 %v5565
    %v6366 = vunpack.c.h.b16 %v5565
    %v6367 = vunpack.c.l.b16 %v5566
    %v6368 = vunpack.c.h.b16 %v5566
    %v6369 = vunpack.c.l.b16 %v5567
    %v6370 = vunpack.c.h.b16 %v5567
    %v6371 = vunpack.c.l.b16 %v5568
    %v6372 = vunpack.c.h.b16 %v5568
    %v6373 = vunpack.c.l.b16 %v5569
    %v6374 = vunpack.c.h.b16 %v5569
    %v6375 = vunpack.c.l.b16 %v5570
    %v6376 = vunpack.c.h.b16 %v5570
    %v6377 = vunpack.c.l.b16 %v5571
    %v6378 = vunpack.c.h.b16 %v5571
    %v6379 = vunpack.c.l.b16 %v5572
    %v6380 = vunpack.c.h.b16 %v5572
    %v6381 = vunpack.c.l.b16 %v5573
    %v6382 = vunpack.c.h.b16 %v5573
    %v6383 = vunpack.c.l.b16 %v5574
    %v6384 = vunpack.c.h.b16 %v5574
    %v6385 = vunpack.c.l.b16 %v5575
    %v6386 = vunpack.c.h.b16 %v5575
    %v6387 = vunpack.c.l.b16 %v5576
    %v6388 = vunpack.c.h.b16 %v5576
    %v6389 = vunpack.c.l.b16 %v5577
    %v6390 = vunpack.c.h.b16 %v5577
    %v6391 = vunpack.c.l.b16 %v5578
    %v6392 = vunpack.c.h.b16 %v5578
    %v6393 = vpack.c.b16 %v5889, %v5881
    %v6394 = vpack.c.b16 %v5890, %v5882
    %v6395 = vpack.c.b16 %v5891, %v5883
    %v6396 = vpack.c.b16 %v5892, %v5884
    %v6397 = vpack.c.b16 %v5893, %v5885
    %v6398 = vpack.c.b16 %v5894, %v5886
    %v6399 = vpack.c.b16 %v5895, %v5887
    %v6400 = vpack.c.b16 %v5896, %v5888
    %v6401 = vpack.c.b16 %v5905, %v5897
    %v6402 = vpack.c.b16 %v5906, %v5898
    %v6403 = vpack.c.b16 %v5907, %v5899
    %v6404 = vpack.c.b16 %v5908, %v5900
    %v6405 = vpack.c.b16 %v5909, %v5901
    %v6406 = vpack.c.b16 %v5910, %v5902
    %v6407 = vpack.c.b16 %v5911, %v5903
    %v6408 = vpack.c.b16 %v5912, %v5904
    %v6409 = vpack.c.b16 %v5921, %v5913
    %v6410 = vpack.c.b16 %v5922, %v5914
    %v6411 = vpack.c.b16 %v5923, %v5915
    %v6412 = vpack.c.b16 %v5924, %v5916
    %v6413 = vpack.c.b16 %v5925, %v5917
    %v6414 = vpack.c.b16 %v5926, %v5918
    %v6415 = vpack.c.b16 %v5927, %v5919
    %v6416 = vpack.c.b16 %v5928, %v5920
    %v6417 = vpack.c.b16 %v5937, %v5929
    %v6418 = vpack.c.b16 %v5938, %v5930
    %v6419 = vpack.c.b16 %v5939, %v5931
    %v6420 = vpack.c.b16 %v5940, %v5932
    %v6421 = vpack.c.b16 %v5941, %v5933
    %v6422 = vpack.c.b16 %v5942, %v5934
    %v6423 = vpack.c.b16 %v5943, %v5935
    %v6424 = vpack.c.b16 %v5944, %v5936
    %v6425 = vpack.c.b16 %v5953, %v5945
    %v6426 = vpack.c.b16 %v5954, %v5946
    %v6427 = vpack.c.b16 %v5955, %v5947
    %v6428 = vpack.c.b16 %v5956, %v5948
    %v6429 = vpack.c.b16 %v5957, %v5949
    %v6430 = vpack.c.b16 %v5958, %v5950
    %v6431 = vpack.c.b16 %v5959, %v5951
    %v6432 = vpack.c.b16 %v5960, %v5952
    %v6433 = vpack.c.b16 %v5969, %v5961
    %v6434 = vpack.c.b16 %v5970, %v5962
    %v6435 = vpack.c.b16 %v5971, %v5963
    %v6436 = vpack.c.b16 %v5972, %v5964
    %v6437 = vpack.c.b16 %v5973, %v5965
    %v6438 = vpack.c.b16 %v5974, %v5966
    %v6439 = vpack.c.b16 %v5975, %v5967
    %v6440 = vpack.c.b16 %v5976, %v5968
    %v6441 = vpack.c.b16 %v5985, %v5977
    %v6442 = vpack.c.b16 %v5986, %v5978
    %v6443 = vpack.c.b16 %v5987, %v5979
    %v6444 = vpack.c.b16 %v5988, %v5980
    %v6445 = vpack.c.b16 %v5989, %v5981
    %v6446 = vpack.c.b16 %v5990, %v5982
    %v6447 = vpack.c.b16 %v5991, %v5983
    %v6448 = vpack.c.b16 %v5992, %v5984
    %v6449 = vpack.c.b16 %v6001, %v5993
    %v6450 = vpack.c.b16 %v6002, %v5994
    %v6451 = vpack.c.b16 %v6003, %v5995
    %v6452 = vpack.c.b16 %v6004, %v5996
    %v6453 = vpack.c.b16 %v6005, %v5997
    %v6454 = vpack.c.b16 %v6006, %v5998
    %v6455 = vpack.c.b16 %v6007, %v5999
    %v6456 = vpack.c.b16 %v6008, %v6000
    %v6457 = vpack.c.b16 %v6017, %v6009
    %v6458 = vpack.c.b16 %v6018, %v6010
    %v6459 = vpack.c.b16 %v6019, %v6011
    %v6460 = vpack.c.b16 %v6020, %v6012
    %v6461 = vpack.c.b16 %v6021, %v6013
    %v6462 = vpack.c.b16 %v6022, %v6014
    %v6463 = vpack.c.b16 %v6023, %v6015
    %v6464 = vpack.c.b16 %v6024, %v6016
    %v6465 = vpack.c.b16 %v6033, %v6025
    %v6466 = vpack.c.b16 %v6034, %v6026
    %v6467 = vpack.c.b16 %v6035, %v6027
    %v6468 = vpack.c.b16 %v6036, %v6028
    %v6469 = vpack.c.b16 %v6037, %v6029
    %v6470 = vpack.c.b16 %v6038, %v6030
    %v6471 = vpack.c.b16 %v6039, %v6031
    %v6472 = vpack.c.b16 %v6040, %v6032
    %v6473 = vpack.c.b16 %v6049, %v6041
    %v6474 = vpack.c.b16 %v6050, %v6042
    %v6475 = vpack.c.b16 %v6051, %v6043
    %v6476 = vpack.c.b16 %v6052, %v6044
    %v6477 = vpack.c.b16 %v6053, %v6045
    %v6478 = vpack.c.b16 %v6054, %v6046
    %v6479 = vpack.c.b16 %v6055, %v6047
    %v6480 = vpack.c.b16 %v6056, %v6048
    %v6481 = vpack.c.b16 %v6065, %v6057
    %v6482 = vpack.c.b16 %v6066, %v6058
    %v6483 = vpack.c.b16 %v6067, %v6059
    %v6484 = vpack.c.b16 %v6068, %v6060
    %v6485 = vpack.c.b16 %v6069, %v6061
    %v6486 = vpack.c.b16 %v6070, %v6062
    %v6487 = vpack.c.b16 %v6071, %v6063
    %v6488 = vpack.c.b16 %v6072, %v6064
    %v6489 = vpack.c.b16 %v6081, %v6073
    %v6490 = vpack.c.b16 %v6082, %v6074
    %v6491 = vpack.c.b16 %v6083, %v6075
    %v6492 = vpack.c.b16 %v6084, %v6076
    %v6493 = vpack.c.b16 %v6085, %v6077
    %v6494 = vpack.c.b16 %v6086, %v6078
    %v6495 = vpack.c.b16 %v6087, %v6079
    %v6496 = vpack.c.b16 %v6088, %v6080
    %v6497 = vpack.c.b16 %v6097, %v6089
    %v6498 = vpack.c.b16 %v6098, %v6090
    %v6499 = vpack.c.b16 %v6099, %v6091
    %v6500 = vpack.c.b16 %v6100, %v6092
    %v6501 = vpack.c.b16 %v6101, %v6093
    %v6502 = vpack.c.b16 %v6102, %v6094
    %v6503 = vpack.c.b16 %v6103, %v6095
    %v6504 = vpack.c.b16 %v6104, %v6096
    %v6505 = vpack.c.b16 %v6113, %v6105
    %v6506 = vpack.c.b16 %v6114, %v6106
    %v6507 = vpack.c.b16 %v6115, %v6107
    %v6508 = vpack.c.b16 %v6116, %v6108
    %v6509 = vpack.c.b16 %v6117, %v6109
    %v6510 = vpack.c.b16 %v6118, %v6110
    %v6511 = vpack.c.b16 %v6119, %v6111
    %v6512 = vpack.c.b16 %v6120, %v6112
    %v6513 = vpack.c.b16 %v6129, %v6121
    %v6514 = vpack.c.b16 %v6130, %v6122
    %v6515 = vpack.c.b16 %v6131, %v6123
    %v6516 = vpack.c.b16 %v6132, %v6124
    %v6517 = vpack.c.b16 %v6133, %v6125
    %v6518 = vpack.c.b16 %v6134, %v6126
    %v6519 = vpack.c.b16 %v6135, %v6127
    %v6520 = vpack.c.b16 %v6136, %v6128
    %v6521 = vpack.c.b16 %v6145, %v6137
    %v6522 = vpack.c.b16 %v6146, %v6138
    %v6523 = vpack.c.b16 %v6147, %v6139
    %v6524 = vpack.c.b16 %v6148, %v6140
    %v6525 = vpack.c.b16 %v6149, %v6141
    %v6526 = vpack.c.b16 %v6150, %v6142
    %v6527 = vpack.c.b16 %v6151, %v6143
    %v6528 = vpack.c.b16 %v6152, %v6144
    %v6529 = vpack.c.b16 %v6161, %v6153
    %v6530 = vpack.c.b16 %v6162, %v6154
    %v6531 = vpack.c.b16 %v6163, %v6155
    %v6532 = vpack.c.b16 %v6164, %v6156
    %v6533 = vpack.c.b16 %v6165, %v6157
    %v6534 = vpack.c.b16 %v6166, %v6158
    %v6535 = vpack.c.b16 %v6167, %v6159
    %v6536 = vpack.c.b16 %v6168, %v6160
    %v6537 = vpack.c.b16 %v6177, %v6169
    %v6538 = vpack.c.b16 %v6178, %v6170
    %v6539 = vpack.c.b16 %v6179, %v6171
    %v6540 = vpack.c.b16 %v6180, %v6172
    %v6541 = vpack.c.b16 %v6181, %v6173
    %v6542 = vpack.c.b16 %v6182, %v6174
    %v6543 = vpack.c.b16 %v6183, %v6175
    %v6544 = vpack.c.b16 %v6184, %v6176
    %v6545 = vpack.c.b16 %v6193, %v6185
    %v6546 = vpack.c.b16 %v6194, %v6186
    %v6547 = vpack.c.b16 %v6195, %v6187
    %v6548 = vpack.c.b16 %v6196, %v6188
    %v6549 = vpack.c.b16 %v6197, %v6189
    %v6550 = vpack.c.b16 %v6198, %v6190
    %v6551 = vpack.c.b16 %v6199, %v6191
    %v6552 = vpack.c.b16 %v6200, %v6192
    %v6553 = vpack.c.b16 %v6209, %v6201
    %v6554 = vpack.c.b16 %v6210, %v6202
    %v6555 = vpack.c.b16 %v6211, %v6203
    %v6556 = vpack.c.b16 %v6212, %v6204
    %v6557 = vpack.c.b16 %v6213, %v6205
    %v6558 = vpack.c.b16 %v6214, %v6206
    %v6559 = vpack.c.b16 %v6215, %v6207
    %v6560 = vpack.c.b16 %v6216, %v6208
    %v6561 = vpack.c.b16 %v6225, %v6217
    %v6562 = vpack.c.b16 %v6226, %v6218
    %v6563 = vpack.c.b16 %v6227, %v6219
    %v6564 = vpack.c.b16 %v6228, %v6220
    %v6565 = vpack.c.b16 %v6229, %v6221
    %v6566 = vpack.c.b16 %v6230, %v6222
    %v6567 = vpack.c.b16 %v6231, %v6223
    %v6568 = vpack.c.b16 %v6232, %v6224
    %v6569 = vpack.c.b16 %v6241, %v6233
    %v6570 = vpack.c.b16 %v6242, %v6234
    %v6571 = vpack.c.b16 %v6243, %v6235
    %v6572 = vpack.c.b16 %v6244, %v6236
    %v6573 = vpack.c.b16 %v6245, %v6237
    %v6574 = vpack.c.b16 %v6246, %v6238
    %v6575 = vpack.c.b16 %v6247, %v6239
    %v6576 = vpack.c.b16 %v6248, %v6240
    %v6577 = vpack.c.b16 %v6257, %v6249
    %v6578 = vpack.c.b16 %v6258, %v6250
    %v6579 = vpack.c.b16 %v6259, %v6251
    %v6580 = vpack.c.b16 %v6260, %v6252
    %v6581 = vpack.c.b16 %v6261, %v6253
    %v6582 = vpack.c.b16 %v6262, %v6254
    %v6583 = vpack.c.b16 %v6263, %v6255
    %v6584 = vpack.c.b16 %v6264, %v6256
    %v6585 = vpack.c.b16 %v6273, %v6265
    %v6586 = vpack.c.b16 %v6274, %v6266
    %v6587 = vpack.c.b16 %v6275, %v6267
    %v6588 = vpack.c.b16 %v6276, %v6268
    %v6589 = vpack.c.b16 %v6277, %v6269
    %v6590 = vpack.c.b16 %v6278, %v6270
    %v6591 = vpack.c.b16 %v6279, %v6271
    %v6592 = vpack.c.b16 %v6280, %v6272
    %v6593 = vpack.c.b16 %v6289, %v6281
    %v6594 = vpack.c.b16 %v6290, %v6282
    %v6595 = vpack.c.b16 %v6291, %v6283
    %v6596 = vpack.c.b16 %v6292, %v6284
    %v6597 = vpack.c.b16 %v6293, %v6285
    %v6598 = vpack.c.b16 %v6294, %v6286
    %v6599 = vpack.c.b16 %v6295, %v6287
    %v6600 = vpack.c.b16 %v6296, %v6288
    %v6601 = vpack.c.b16 %v6305, %v6297
    %v6602 = vpack.c.b16 %v6306, %v6298
    %v6603 = vpack.c.b16 %v6307, %v6299
    %v6604 = vpack.c.b16 %v6308, %v6300
    %v6605 = vpack.c.b16 %v6309, %v6301
    %v6606 = vpack.c.b16 %v6310, %v6302
    %v6607 = vpack.c.b16 %v6311, %v6303
    %v6608 = vpack.c.b16 %v6312, %v6304
    %v6609 = vpack.c.b16 %v6321, %v6313
    %v6610 = vpack.c.b16 %v6322, %v6314
    %v6611 = vpack.c.b16 %v6323, %v6315
    %v6612 = vpack.c.b16 %v6324, %v6316
    %v6613 = vpack.c.b16 %v6325, %v6317
    %v6614 = vpack.c.b16 %v6326, %v6318
    %v6615 = vpack.c.b16 %v6327, %v6319
    %v6616 = vpack.c.b16 %v6328, %v6320
    %v6617 = vpack.c.b16 %v6337, %v6329
    %v6618 = vpack.c.b16 %v6338, %v6330
    %v6619 = vpack.c.b16 %v6339, %v6331
    %v6620 = vpack.c.b16 %v6340, %v6332
    %v6621 = vpack.c.b16 %v6341, %v6333
    %v6622 = vpack.c.b16 %v6342, %v6334
    %v6623 = vpack.c.b16 %v6343, %v6335
    %v6624 = vpack.c.b16 %v6344, %v6336
    %v6625 = vpack.c.b16 %v6353, %v6345
    %v6626 = vpack.c.b16 %v6354, %v6346
    %v6627 = vpack.c.b16 %v6355, %v6347
    %v6628 = vpack.c.b16 %v6356, %v6348
    %v6629 = vpack.c.b16 %v6357, %v6349
    %v6630 = vpack.c.b16 %v6358, %v6350
    %v6631 = vpack.c.b16 %v6359, %v6351
    %v6632 = vpack.c.b16 %v6360, %v6352
    %v6633 = vpack.c.b16 %v6369, %v6361
    %v6634 = vpack.c.b16 %v6370, %v6362
    %v6635 = vpack.c.b16 %v6371, %v6363
    %v6636 = vpack.c.b16 %v6372, %v6364
    %v6637 = vpack.c.b16 %v6373, %v6365
    %v6638 = vpack.c.b16 %v6374, %v6366
    %v6639 = vpack.c.b16 %v6375, %v6367
    %v6640 = vpack.c.b16 %v6376, %v6368
    %v6641 = vpack.c.b16 %v6385, %v6377
    %v6642 = vpack.c.b16 %v6386, %v6378
    %v6643 = vpack.c.b16 %v6387, %v6379
    %v6644 = vpack.c.b16 %v6388, %v6380
    %v6645 = vpack.c.b16 %v6389, %v6381
    %v6646 = vpack.c.b16 %v6390, %v6382
    %v6647 = vpack.c.b16 %v6391, %v6383
    %v6648 = vpack.c.b16 %v6392, %v6384
    %6905 = vmatprep.subr.bf16.mxu0 %v6394
    %6906 = vmatpush1.bf16.msra.mxu0 %v6393
    %6907 = vmatprep.subr.bf16.mxu0 %v6402
    %6908 = vmatpush1.bf16.msra.mxu0 %v6401
    %6909 = vmatprep.subr.bf16.mxu0 %v6410
    %6910 = vmatpush1.bf16.msra.mxu0 %v6409
    %6911 = vmatprep.subr.bf16.mxu0 %v6418
    %6912 = vmatpush1.bf16.msra.mxu0 %v6417
    %6913 = vmatprep.subr.bf16.mxu0 %v6426
    %6914 = vmatpush1.bf16.msra.mxu0 %v6425
    %6915 = vmatprep.subr.bf16.mxu0 %v6434
    %6916 = vmatpush1.bf16.msra.mxu0 %v6433
    %6917 = vmatprep.subr.bf16.mxu0 %v6442
    %6918 = vmatpush1.bf16.msra.mxu0 %v6441
    %6919 = vmatprep.subr.bf16.mxu0 %v6450
    %6920 = vmatpush1.bf16.msra.mxu0 %v6449
    %6921 = vmatprep.subr.bf16.mxu0 %v6458
    %6922 = vmatpush1.bf16.msra.mxu0 %v6457
    %6923 = vmatprep.subr.bf16.mxu0 %v6466
    %6924 = vmatpush1.bf16.msra.mxu0 %v6465
    %6925 = vmatprep.subr.bf16.mxu0 %v6474
    %6926 = vmatpush1.bf16.msra.mxu0 %v6473
    %6927 = vmatprep.subr.bf16.mxu0 %v6482
    %6928 = vmatpush1.bf16.msra.mxu0 %v6481
    %6929 = vmatprep.subr.bf16.mxu0 %v6490
    %6930 = vmatpush1.bf16.msra.mxu0 %v6489
    %6931 = vmatprep.subr.bf16.mxu0 %v6498
    %6932 = vmatpush1.bf16.msra.mxu0 %v6497
    %6933 = vmatprep.subr.bf16.mxu0 %v6506
    %6934 = vmatpush1.bf16.msra.mxu0 %v6505
    %6935 = vmatprep.subr.bf16.mxu0 %v6514
    %6936 = vmatpush1.bf16.msra.mxu0 %v6513
    %6937 = vmatprep.mubr.bf16.mxu0 %v5581
    %6938 = vmatmul.mubr.bf16.gmra.mrb[0].mxu0 %v5580
    %v6939 = vpop.f32.mrb[0].mxu0
    %v6940 = vadd.f32 %v5588, %v6939
    %v6941 = vpop.f32.mrb[0].mxu0
    %v6942 = vadd.f32 %v5592, %v6941
    %v6943 = vpop.f32.mrb[0].mxu0
    %v6944 = vpop.f32.mrb[0].mxu0
    %6945 = vdwg.mxu0
    %6946 = vmatprep.subr.bf16.mxu0 %v6522
    %6947 = vmatpush1.bf16.msra.mxu0 %v6521
    %6948 = vmatprep.subr.bf16.mxu0 %v6530
    %6949 = vmatpush1.bf16.msra.mxu0 %v6529
    %6950 = vmatprep.subr.bf16.mxu0 %v6538
    %6951 = vmatpush1.bf16.msra.mxu0 %v6537
    %6952 = vmatprep.subr.bf16.mxu0 %v6546
    %6953 = vmatpush1.bf16.msra.mxu0 %v6545
    %6954 = vmatprep.subr.bf16.mxu0 %v6554
    %6955 = vmatpush1.bf16.msra.mxu0 %v6553
    %6956 = vmatprep.subr.bf16.mxu0 %v6562
    %6957 = vmatpush1.bf16.msra.mxu0 %v6561
    %6958 = vmatprep.subr.bf16.mxu0 %v6570
    %6959 = vmatpush1.bf16.msra.mxu0 %v6569
    %6960 = vmatprep.subr.bf16.mxu0 %v6578
    %6961 = vmatpush1.bf16.msra.mxu0 %v6577
    %6962 = vmatprep.subr.bf16.mxu0 %v6586
    %6963 = vmatpush1.bf16.msra.mxu0 %v6585
    %6964 = vmatprep.subr.bf16.mxu0 %v6594
    %6965 = vmatpush1.bf16.msra.mxu0 %v6593
    %6966 = vmatprep.subr.bf16.mxu0 %v6602
    %6967 = vmatpush1.bf16.msra.mxu0 %v6601
    %6968 = vmatprep.subr.bf16.mxu0 %v6610
    %6969 = vmatpush1.bf16.msra.mxu0 %v6609
    %6970 = vmatprep.subr.bf16.mxu0 %v6618
    %6971 = vmatpush1.bf16.msra.mxu0 %v6617
    %6972 = vmatprep.subr.bf16.mxu0 %v6626
    %6973 = vmatpush1.bf16.msra.mxu0 %v6625
    %6974 = vmatprep.subr.bf16.mxu0 %v6634
    %6975 = vmatpush1.bf16.msra.mxu0 %v6633
    %6976 = vmatprep.subr.bf16.mxu0 %v6642
    %6977 = vmatpush1.bf16.msra.mxu0 %v6641
    %6978 = vmatprep.mubr.bf16.mxu0 %v5583
    %6979 = vmatmul.mubr.bf16.gmra.mrb[0].mxu0 %v5582
    %v6980 = vpop.f32.mrb[0].mxu0
    %v6981 = vadd.f32 %v6940, %v6980
    %v6982 = vpop.f32.mrb[0].mxu0
    %v6983 = vadd.f32 %v6942, %v6982
    %v6984 = vpop.f32.mrb[0].mxu0
    %v6985 = vpop.f32.mrb[0].mxu0
    %6986 = vdwg.mxu0
    %6987 = vmatprep.subr.bf16.mxu0 %v6396
    %6988 = vmatpush1.bf16.msra.mxu0 %v6395
    %6989 = vmatprep.subr.bf16.mxu0 %v6404
    %6990 = vmatpush1.bf16.msra.mxu0 %v6403
    %6991 = vmatprep.subr.bf16.mxu0 %v6412
    %6992 = vmatpush1.bf16.msra.mxu0 %v6411
    %6993 = vmatprep.subr.bf16.mxu0 %v6420
    %6994 = vmatpush1.bf16.msra.mxu0 %v6419
    %6995 = vmatprep.subr.bf16.mxu0 %v6428
    %6996 = vmatpush1.bf16.msra.mxu0 %v6427
    %6997 = vmatprep.subr.bf16.mxu0 %v6436
    %6998 = vmatpush1.bf16.msra.mxu0 %v6435
    %6999 = vmatprep.subr.bf16.mxu0 %v6444
    %7000 = vmatpush1.bf16.msra.mxu0 %v6443
    %7001 = vmatprep.subr.bf16.mxu0 %v6452
    %7002 = vmatpush1.bf16.msra.mxu0 %v6451
    %7003 = vmatprep.subr.bf16.mxu0 %v6460
    %7004 = vmatpush1.bf16.msra.mxu0 %v6459
    %7005 = vmatprep.subr.bf16.mxu0 %v6468
    %7006 = vmatpush1.bf16.msra.mxu0 %v6467
    %7007 = vmatprep.subr.bf16.mxu0 %v6476
    %7008 = vmatpush1.bf16.msra.mxu0 %v6475
    %7009 = vmatprep.subr.bf16.mxu0 %v6484
    %7010 = vmatpush1.bf16.msra.mxu0 %v6483
    %7011 = vmatprep.subr.bf16.mxu0 %v6492
    %7012 = vmatpush1.bf16.msra.mxu0 %v6491
    %7013 = vmatprep.subr.bf16.mxu0 %v6500
    %7014 = vmatpush1.bf16.msra.mxu0 %v6499
    %7015 = vmatprep.subr.bf16.mxu0 %v6508
    %7016 = vmatpush1.bf16.msra.mxu0 %v6507
    %7017 = vmatprep.subr.bf16.mxu0 %v6516
    %7018 = vmatpush1.bf16.msra.mxu0 %v6515
    %7019 = vmatprep.mubr.bf16.mxu0 %v5581
    %7020 = vmatmul.mubr.bf16.gmra.mrb[0].mxu0 %v5580
    %v7021 = vpop.f32.mrb[0].mxu0
    %v7022 = vadd.f32 %v5596, %v7021
    %v7023 = vpop.f32.mrb[0].mxu0
    %v7024 = vadd.f32 %v5600, %v7023
    %v7025 = vpop.f32.mrb[0].mxu0
    %v7026 = vpop.f32.mrb[0].mxu0
    %7027 = vdwg.mxu0
    %7028 = vmatprep.subr.bf16.mxu0 %v6524
    %7029 = vmatpush1.bf16.msra.mxu0 %v6523
    %7030 = vmatprep.subr.bf16.mxu0 %v6532
    %7031 = vmatpush1.bf16.msra.mxu0 %v6531
    %7032 = vmatprep.subr.bf16.mxu0 %v6540
    %7033 = vmatpush1.bf16.msra.mxu0 %v6539
    %7034 = vmatprep.subr.bf16.mxu0 %v6548
    %7035 = vmatpush1.bf16.msra.mxu0 %v6547
    %7036 = vmatprep.subr.bf16.mxu0 %v6556
    %7037 = vmatpush1.bf16.msra.mxu0 %v6555
    %7038 = vmatprep.subr.bf16.mxu0 %v6564
    %7039 = vmatpush1.bf16.msra.mxu0 %v6563
    %7040 = vmatprep.subr.bf16.mxu0 %v6572
    %7041 = vmatpush1.bf16.msra.mxu0 %v6571
    %7042 = vmatprep.subr.bf16.mxu0 %v6580
    %7043 = vmatpush1.bf16.msra.mxu0 %v6579
    %7044 = vmatprep.subr.bf16.mxu0 %v6588
    %7045 = vmatpush1.bf16.msra.mxu0 %v6587
    %7046 = vmatprep.subr.bf16.mxu0 %v6596
    %7047 = vmatpush1.bf16.msra.mxu0 %v6595
    %7048 = vmatprep.subr.bf16.mxu0 %v6604
    %7049 = vmatpush1.bf16.msra.mxu0 %v6603
    %7050 = vmatprep.subr.bf16.mxu0 %v6612
    %7051 = vmatpush1.bf16.msra.mxu0 %v6611
    %7052 = vmatprep.subr.bf16.mxu0 %v6620
    %7053 = vmatpush1.bf16.msra.mxu0 %v6619
    %7054 = vmatprep.subr.bf16.mxu0 %v6628
    %7055 = vmatpush1.bf16.msra.mxu0 %v6627
    %7056 = vmatprep.subr.bf16.mxu0 %v6636
    %7057 = vmatpush1.bf16.msra.mxu0 %v6635
    %7058 = vmatprep.subr.bf16.mxu0 %v6644
    %7059 = vmatpush1.bf16.msra.mxu0 %v6643
    %7060 = vmatprep.mubr.bf16.mxu0 %v5583
    %7061 = vmatmul.mubr.bf16.gmra.mrb[0].mxu0 %v5582
    %v7062 = vpop.f32.mrb[0].mxu0
    %v7063 = vadd.f32 %v7022, %v7062
    %v7064 = vpop.f32.mrb[0].mxu0
    %v7065 = vadd.f32 %v7024, %v7064
    %v7066 = vpop.f32.mrb[0].mxu0
    %v7067 = vpop.f32.mrb[0].mxu0
    %7068 = vdwg.mxu0
    %7069 = vmatprep.subr.bf16.mxu0 %v6398
    %7070 = vmatpush1.bf16.msra.mxu0 %v6397
    %7071 = vmatprep.subr.bf16.mxu0 %v6406
    %7072 = vmatpush1.bf16.msra.mxu0 %v6405
    %7073 = vmatprep.subr.bf16.mxu0 %v6414
    %7074 = vmatpush1.bf16.msra.mxu0 %v6413
    %7075 = vmatprep.subr.bf16.mxu0 %v6422
    %7076 = vmatpush1.bf16.msra.mxu0 %v6421
    %7077 = vmatprep.subr.bf16.mxu0 %v6430
    %7078 = vmatpush1.bf16.msra.mxu0 %v6429
    %7079 = vmatprep.subr.bf16.mxu0 %v6438
    %7080 = vmatpush1.bf16.msra.mxu0 %v6437
    %7081 = vmatprep.subr.bf16.mxu0 %v6446
    %7082 = vmatpush1.bf16.msra.mxu0 %v6445
    %7083 = vmatprep.subr.bf16.mxu0 %v6454
    %7084 = vmatpush1.bf16.msra.mxu0 %v6453
    %7085 = vmatprep.subr.bf16.mxu0 %v6462
    %7086 = vmatpush1.bf16.msra.mxu0 %v6461
    %7087 = vmatprep.subr.bf16.mxu0 %v6470
    %7088 = vmatpush1.bf16.msra.mxu0 %v6469
    %7089 = vmatprep.subr.bf16.mxu0 %v6478
    %7090 = vmatpush1.bf16.msra.mxu0 %v6477
    %7091 = vmatprep.subr.bf16.mxu0 %v6486
    %7092 = vmatpush1.bf16.msra.mxu0 %v6485
    %7093 = vmatprep.subr.bf16.mxu0 %v6494
    %7094 = vmatpush1.bf16.msra.mxu0 %v6493
    %7095 = vmatprep.subr.bf16.mxu0 %v6502
    %7096 = vmatpush1.bf16.msra.mxu0 %v6501
    %7097 = vmatprep.subr.bf16.mxu0 %v6510
    %7098 = vmatpush1.bf16.msra.mxu0 %v6509
    %7099 = vmatprep.subr.bf16.mxu0 %v6518
    %7100 = vmatpush1.bf16.msra.mxu0 %v6517
    %7101 = vmatprep.mubr.bf16.mxu0 %v5581
    %7102 = vmatmul.mubr.bf16.gmra.mrb[0].mxu0 %v5580
    %v7103 = vpop.f32.mrb[0].mxu0
    %v7104 = vadd.f32 %v5604, %v7103
    %v7105 = vpop.f32.mrb[0].mxu0
    %v7106 = vadd.f32 %v5608, %v7105
    %v7107 = vpop.f32.mrb[0].mxu0
    %v7108 = vpop.f32.mrb[0].mxu0
    %7109 = vdwg.mxu0
    %7110 = vmatprep.subr.bf16.mxu0 %v6526
    %7111 = vmatpush1.bf16.msra.mxu0 %v6525
    %7112 = vmatprep.subr.bf16.mxu0 %v6534
    %7113 = vmatpush1.bf16.msra.mxu0 %v6533
    %7114 = vmatprep.subr.bf16.mxu0 %v6542
    %7115 = vmatpush1.bf16.msra.mxu0 %v6541
    %7116 = vmatprep.subr.bf16.mxu0 %v6550
    %7117 = vmatpush1.bf16.msra.mxu0 %v6549
    %7118 = vmatprep.subr.bf16.mxu0 %v6558
    %7119 = vmatpush1.bf16.msra.mxu0 %v6557
    %7120 = vmatprep.subr.bf16.mxu0 %v6566
    %7121 = vmatpush1.bf16.msra.mxu0 %v6565
    %7122 = vmatprep.subr.bf16.mxu0 %v6574
    %7123 = vmatpush1.bf16.msra.mxu0 %v6573
    %7124 = vmatprep.subr.bf16.mxu0 %v6582
    %7125 = vmatpush1.bf16.msra.mxu0 %v6581
    %7126 = vmatprep.subr.bf16.mxu0 %v6590
    %7127 = vmatpush1.bf16.msra.mxu0 %v6589
    %7128 = vmatprep.subr.bf16.mxu0 %v6598
    %7129 = vmatpush1.bf16.msra.mxu0 %v6597
    %7130 = vmatprep.subr.bf16.mxu0 %v6606
    %7131 = vmatpush1.bf16.msra.mxu0 %v6605
    %7132 = vmatprep.subr.bf16.mxu0 %v6614
    %7133 = vmatpush1.bf16.msra.mxu0 %v6613
    %7134 = vmatprep.subr.bf16.mxu0 %v6622
    %7135 = vmatpush1.bf16.msra.mxu0 %v6621
    %7136 = vmatprep.subr.bf16.mxu0 %v6630
    %7137 = vmatpush1.bf16.msra.mxu0 %v6629
    %7138 = vmatprep.subr.bf16.mxu0 %v6638
    %7139 = vmatpush1.bf16.msra.mxu0 %v6637
    %7140 = vmatprep.subr.bf16.mxu0 %v6646
    %7141 = vmatpush1.bf16.msra.mxu0 %v6645
    %7142 = vmatprep.mubr.bf16.mxu0 %v5583
    %7143 = vmatmul.mubr.bf16.gmra.mrb[0].mxu0 %v5582
    %v7144 = vpop.f32.mrb[0].mxu0
    %v7145 = vadd.f32 %v7104, %v7144
    %v7146 = vpop.f32.mrb[0].mxu0
    %v7147 = vadd.f32 %v7106, %v7146
    %v7148 = vpop.f32.mrb[0].mxu0
    %v7149 = vpop.f32.mrb[0].mxu0
    %7150 = vdwg.mxu0
    %7151 = vmatprep.subr.bf16.mxu0 %v6400
    %7152 = vmatpush1.bf16.msra.mxu0 %v6399
    %7153 = vmatprep.subr.bf16.mxu0 %v6408
    %7154 = vmatpush1.bf16.msra.mxu0 %v6407
    %7155 = vmatprep.subr.bf16.mxu0 %v6416
    %7156 = vmatpush1.bf16.msra.mxu0 %v6415
    %7157 = vmatprep.subr.bf16.mxu0 %v6424
    %7158 = vmatpush1.bf16.msra.mxu0 %v6423
    %7159 = vmatprep.subr.bf16.mxu0 %v6432
    %7160 = vmatpush1.bf16.msra.mxu0 %v6431
    %7161 = vmatprep.subr.bf16.mxu0 %v6440
    %7162 = vmatpush1.bf16.msra.mxu0 %v6439
    %7163 = vmatprep.subr.bf16.mxu0 %v6448
    %7164 = vmatpush1.bf16.msra.mxu0 %v6447
    %7165 = vmatprep.subr.bf16.mxu0 %v6456
    %7166 = vmatpush1.bf16.msra.mxu0 %v6455
    %7167 = vmatprep.subr.bf16.mxu0 %v6464
    %7168 = vmatpush1.bf16.msra.mxu0 %v6463
    %7169 = vmatprep.subr.bf16.mxu0 %v6472
    %7170 = vmatpush1.bf16.msra.mxu0 %v6471
    %7171 = vmatprep.subr.bf16.mxu0 %v6480
    %7172 = vmatpush1.bf16.msra.mxu0 %v6479
    %7173 = vmatprep.subr.bf16.mxu0 %v6488
    %7174 = vmatpush1.bf16.msra.mxu0 %v6487
    %7175 = vmatprep.subr.bf16.mxu0 %v6496
    %7176 = vmatpush1.bf16.msra.mxu0 %v6495
    %7177 = vmatprep.subr.bf16.mxu0 %v6504
    %7178 = vmatpush1.bf16.msra.mxu0 %v6503
    %7179 = vmatprep.subr.bf16.mxu0 %v6512
    %7180 = vmatpush1.bf16.msra.mxu0 %v6511
    %7181 = vmatprep.subr.bf16.mxu0 %v6520
    %7182 = vmatpush1.bf16.msra.mxu0 %v6519
    %7183 = vmatprep.mubr.bf16.mxu0 %v5581
    %7184 = vmatmul.mubr.bf16.gmra.mrb[0].mxu0 %v5580
    %v7185 = vpop.f32.mrb[0].mxu0
    %v7186 = vadd.f32 %v5612, %v7185
    %v7187 = vpop.f32.mrb[0].mxu0
    %v7188 = vadd.f32 %v5616, %v7187
    %v7189 = vpop.f32.mrb[0].mxu0
    %v7190 = vpop.f32.mrb[0].mxu0
    %7191 = vdwg.mxu0
    %7192 = vmatprep.subr.bf16.mxu0 %v6528
    %7193 = vmatpush1.bf16.msra.mxu0 %v6527
    %7194 = vmatprep.subr.bf16.mxu0 %v6536
    %7195 = vmatpush1.bf16.msra.mxu0 %v6535
    %7196 = vmatprep.subr.bf16.mxu0 %v6544
    %7197 = vmatpush1.bf16.msra.mxu0 %v6543
    %7198 = vmatprep.subr.bf16.mxu0 %v6552
    %7199 = vmatpush1.bf16.msra.mxu0 %v6551
    %7200 = vmatprep.subr.bf16.mxu0 %v6560
    %7201 = vmatpush1.bf16.msra.mxu0 %v6559
    %7202 = vmatprep.subr.bf16.mxu0 %v6568
    %7203 = vmatpush1.bf16.msra.mxu0 %v6567
    %7204 = vmatprep.subr.bf16.mxu0 %v6576
    %7205 = vmatpush1.bf16.msra.mxu0 %v6575
    %7206 = vmatprep.subr.bf16.mxu0 %v6584
    %7207 = vmatpush1.bf16.msra.mxu0 %v6583
    %7208 = vmatprep.subr.bf16.mxu0 %v6592
    %7209 = vmatpush1.bf16.msra.mxu0 %v6591
    %7210 = vmatprep.subr.bf16.mxu0 %v6600
    %7211 = vmatpush1.bf16.msra.mxu0 %v6599
    %7212 = vmatprep.subr.bf16.mxu0 %v6608
    %7213 = vmatpush1.bf16.msra.mxu0 %v6607
    %7214 = vmatprep.subr.bf16.mxu0 %v6616
    %7215 = vmatpush1.bf16.msra.mxu0 %v6615
    %7216 = vmatprep.subr.bf16.mxu0 %v6624
    %7217 = vmatpush1.bf16.msra.mxu0 %v6623
    %7218 = vmatprep.subr.bf16.mxu0 %v6632
    %7219 = vmatpush1.bf16.msra.mxu0 %v6631
    %7220 = vmatprep.subr.bf16.mxu0 %v6640
    %7221 = vmatpush1.bf16.msra.mxu0 %v6639
    %7222 = vmatprep.subr.bf16.mxu0 %v6648
    %7223 = vmatpush1.bf16.msra.mxu0 %v6647
    %7224 = vmatprep.mubr.bf16.mxu0 %v5583
    %7225 = vmatmul.mubr.bf16.gmra.mrb[0].mxu0 %v5582
    %v7226 = vpop.f32.mrb[0].mxu0
    %v7227 = vadd.f32 %v7186, %v7226
    %v7228 = vpop.f32.mrb[0].mxu0
    %v7229 = vadd.f32 %v7188, %v7228
    %v7230 = vpop.f32.mrb[0].mxu0
    %v7231 = vpop.f32.mrb[0].mxu0
    %7232 = vdwg.mxu0
    %v7233 = vmax.f32 %v6981, 0.0
    %v7234 = vmax.f32 %v6983, 0.0
    %v7235 = vmax.f32 %v7063, 0.0
    %v7236 = vmax.f32 %v7065, 0.0
    %v7237 = vmax.f32 %v7145, 0.0
    %v7238 = vmax.f32 %v7147, 0.0
    %v7239 = vmax.f32 %v7227, 0.0
    %v7240 = vmax.f32 %v7229, 0.0
    %v7241 = vld [vmem:[#allocation17] sm:$0xff]
    %v7242 = vld [vmem:[#allocation17 + $0x8] sm:$0xff]
    %v7243 = vld [vmem:[#allocation17 + $0x10] sm:$0xff]
    %v7244 = vld [vmem:[#allocation17 + $0x18] sm:$0xff]
    %v7245 = vld [vmem:[#allocation17 + $0x20] sm:$0xff]
    %v7246 = vld [vmem:[#allocation17 + $0x28] sm:$0xff]
    %v7247 = vld [vmem:[#allocation17 + $0x30] sm:$0xff]
    %v7248 = vld [vmem:[#allocation17 + $0x38] sm:$0xff]
    %v7249 = vld [vmem:[#allocation17 + $0x40] sm:$0xff]
    %v7250 = vld [vmem:[#allocation17 + $0x48] sm:$0xff]
    %v7251 = vld [vmem:[#allocation17 + $0x50] sm:$0xff]
    %v7252 = vld [vmem:[#allocation17 + $0x58] sm:$0xff]
    %v7253 = vld [vmem:[#allocation17 + $0x60] sm:$0xff]
    %v7254 = vld [vmem:[#allocation17 + $0x68] sm:$0xff]
    %v7255 = vld [vmem:[#allocation17 + $0x70] sm:$0xff]
    %v7256 = vld [vmem:[#allocation17 + $0x78] sm:$0xff]
    %v7257 = vld [vmem:[#allocation17 + $0x80] sm:$0xff]
    %v7258 = vld [vmem:[#allocation17 + $0x88] sm:$0xff]
    %v7259 = vld [vmem:[#allocation17 + $0x90] sm:$0xff]
    %v7260 = vld [vmem:[#allocation17 + $0x98] sm:$0xff]
    %v7261 = vld [vmem:[#allocation17 + $0xa0] sm:$0xff]
    %v7262 = vld [vmem:[#allocation17 + $0xa8] sm:$0xff]
    %v7263 = vld [vmem:[#allocation17 + $0xb0] sm:$0xff]
    %v7264 = vld [vmem:[#allocation17 + $0xb8] sm:$0xff]
    %v7265 = vld [vmem:[#allocation17 + $0xc0] sm:$0xff]
    %v7266 = vld [vmem:[#allocation17 + $0xc8] sm:$0xff]
    %v7267 = vld [vmem:[#allocation17 + $0xd0] sm:$0xff]
    %v7268 = vld [vmem:[#allocation17 + $0xd8] sm:$0xff]
    %v7269 = vld [vmem:[#allocation17 + $0xe0] sm:$0xff]
    %v7270 = vld [vmem:[#allocation17 + $0xe8] sm:$0xff]
    %v7271 = vld [vmem:[#allocation17 + $0xf0] sm:$0xff]
    %v7272 = vld [vmem:[#allocation17 + $0xf8] sm:$0xff]
    %v7273 = vld [vmem:[#allocation17 + $0x100] sm:$0xff]
    %v7274 = vld [vmem:[#allocation17 + $0x108] sm:$0xff]
    %v7275 = vld [vmem:[#allocation17 + $0x110] sm:$0xff]
    %v7276 = vld [vmem:[#allocation17 + $0x118] sm:$0xff]
    %v7277 = vld [vmem:[#allocation17 + $0x120] sm:$0xff]
    %v7278 = vld [vmem:[#allocation17 + $0x128] sm:$0xff]
    %v7279 = vld [vmem:[#allocation17 + $0x130] sm:$0xff]
    %v7280 = vld [vmem:[#allocation17 + $0x138] sm:$0xff]
    %v7281 = vld [vmem:[#allocation17 + $0x140] sm:$0xff]
    %v7282 = vld [vmem:[#allocation17 + $0x148] sm:$0xff]
    %v7283 = vld [vmem:[#allocation17 + $0x150] sm:$0xff]
    %v7284 = vld [vmem:[#allocation17 + $0x158] sm:$0xff]
    %v7285 = vld [vmem:[#allocation17 + $0x160] sm:$0xff]
    %v7286 = vld [vmem:[#allocation17 + $0x168] sm:$0xff]
    %v7287 = vld [vmem:[#allocation17 + $0x170] sm:$0xff]
    %v7288 = vld [vmem:[#allocation17 + $0x178] sm:$0xff]
    %v7289 = vld [vmem:[#allocation17 + $0x180] sm:$0xff]
    %v7290 = vld [vmem:[#allocation17 + $0x188] sm:$0xff]
    %v7291 = vld [vmem:[#allocation17 + $0x190] sm:$0xff]
    %v7292 = vld [vmem:[#allocation17 + $0x198] sm:$0xff]
    %v7293 = vld [vmem:[#allocation17 + $0x1a0] sm:$0xff]
    %v7294 = vld [vmem:[#allocation17 + $0x1a8] sm:$0xff]
    %v7295 = vld [vmem:[#allocation17 + $0x1b0] sm:$0xff]
    %v7296 = vld [vmem:[#allocation17 + $0x1b8] sm:$0xff]
    %v7297 = vld [vmem:[#allocation17 + $0x1c0] sm:$0xff]
    %v7298 = vld [vmem:[#allocation17 + $0x1c8] sm:$0xff]
    %v7299 = vld [vmem:[#allocation17 + $0x1d0] sm:$0xff]
    %v7300 = vld [vmem:[#allocation17 + $0x1d8] sm:$0xff]
    %v7301 = vld [vmem:[#allocation17 + $0x1e0] sm:$0xff]
    %v7302 = vld [vmem:[#allocation17 + $0x1e8] sm:$0xff]
    %v7303 = vld [vmem:[#allocation17 + $0x1f0] sm:$0xff]
    %v7304 = vld [vmem:[#allocation17 + $0x1f8] sm:$0xff]
    %v7305 = vld [vmem:[#allocation17 + $0x200] sm:$0xff]
    %v7306 = vld [vmem:[#allocation17 + $0x208] sm:$0xff]
    %v7307 = vld [vmem:[#allocation17 + $0x210] sm:$0xff]
    %v7308 = vld [vmem:[#allocation17 + $0x218] sm:$0xff]
    %v7309 = vld [vmem:[#allocation17 + $0x220] sm:$0xff]
    %v7310 = vld [vmem:[#allocation17 + $0x228] sm:$0xff]
    %v7311 = vld [vmem:[#allocation17 + $0x230] sm:$0xff]
    %v7312 = vld [vmem:[#allocation17 + $0x238] sm:$0xff]
    %v7313 = vld [vmem:[#allocation17 + $0x240] sm:$0xff]
    %v7314 = vld [vmem:[#allocation17 + $0x248] sm:$0xff]
    %v7315 = vld [vmem:[#allocation17 + $0x250] sm:$0xff]
    %v7316 = vld [vmem:[#allocation17 + $0x258] sm:$0xff]
    %v7317 = vld [vmem:[#allocation17 + $0x260] sm:$0xff]
    %v7318 = vld [vmem:[#allocation17 + $0x268] sm:$0xff]
    %v7319 = vld [vmem:[#allocation17 + $0x270] sm:$0xff]
    %v7320 = vld [vmem:[#allocation17 + $0x278] sm:$0xff]
    %v7321 = vld [vmem:[#allocation17 + $0x280] sm:$0xff]
    %v7322 = vld [vmem:[#allocation17 + $0x288] sm:$0xff]
    %v7323 = vld [vmem:[#allocation17 + $0x290] sm:$0xff]
    %v7324 = vld [vmem:[#allocation17 + $0x298] sm:$0xff]
    %v7325 = vld [vmem:[#allocation17 + $0x2a0] sm:$0xff]
    %v7326 = vld [vmem:[#allocation17 + $0x2a8] sm:$0xff]
    %v7327 = vld [vmem:[#allocation17 + $0x2b0] sm:$0xff]
    %v7328 = vld [vmem:[#allocation17 + $0x2b8] sm:$0xff]
    %v7329 = vld [vmem:[#allocation17 + $0x2c0] sm:$0xff]
    %v7330 = vld [vmem:[#allocation17 + $0x2c8] sm:$0xff]
    %v7331 = vld [vmem:[#allocation17 + $0x2d0] sm:$0xff]
    %v7332 = vld [vmem:[#allocation17 + $0x2d8] sm:$0xff]
    %v7333 = vld [vmem:[#allocation17 + $0x2e0] sm:$0xff]
    %v7334 = vld [vmem:[#allocation17 + $0x2e8] sm:$0xff]
    %v7335 = vld [vmem:[#allocation17 + $0x2f0] sm:$0xff]
    %v7336 = vld [vmem:[#allocation17 + $0x2f8] sm:$0xff]
    %v7337 = vld [vmem:[#allocation17 + $0x300] sm:$0xff]
    %v7338 = vld [vmem:[#allocation17 + $0x308] sm:$0xff]
    %v7339 = vld [vmem:[#allocation17 + $0x310] sm:$0xff]
    %v7340 = vld [vmem:[#allocation17 + $0x318] sm:$0xff]
    %v7341 = vld [vmem:[#allocation17 + $0x320] sm:$0xff]
    %v7342 = vld [vmem:[#allocation17 + $0x328] sm:$0xff]
    %v7343 = vld [vmem:[#allocation17 + $0x330] sm:$0xff]
    %v7344 = vld [vmem:[#allocation17 + $0x338] sm:$0xff]
    %v7345 = vld [vmem:[#allocation17 + $0x340] sm:$0xff]
    %v7346 = vld [vmem:[#allocation17 + $0x348] sm:$0xff]
    %v7347 = vld [vmem:[#allocation17 + $0x350] sm:$0xff]
    %v7348 = vld [vmem:[#allocation17 + $0x358] sm:$0xff]
    %v7349 = vld [vmem:[#allocation17 + $0x360] sm:$0xff]
    %v7350 = vld [vmem:[#allocation17 + $0x368] sm:$0xff]
    %v7351 = vld [vmem:[#allocation17 + $0x370] sm:$0xff]
    %v7352 = vld [vmem:[#allocation17 + $0x378] sm:$0xff]
    %v7353 = vld [vmem:[#allocation17 + $0x380] sm:$0xff]
    %v7354 = vld [vmem:[#allocation17 + $0x388] sm:$0xff]
    %v7355 = vld [vmem:[#allocation17 + $0x390] sm:$0xff]
    %v7356 = vld [vmem:[#allocation17 + $0x398] sm:$0xff]
    %v7357 = vld [vmem:[#allocation17 + $0x3a0] sm:$0xff]
    %v7358 = vld [vmem:[#allocation17 + $0x3a8] sm:$0xff]
    %v7359 = vld [vmem:[#allocation17 + $0x3b0] sm:$0xff]
    %v7360 = vld [vmem:[#allocation17 + $0x3b8] sm:$0xff]
    %v7361 = vld [vmem:[#allocation17 + $0x3c0] sm:$0xff]
    %v7362 = vld [vmem:[#allocation17 + $0x3c8] sm:$0xff]
    %v7363 = vld [vmem:[#allocation17 + $0x3d0] sm:$0xff]
    %v7364 = vld [vmem:[#allocation17 + $0x3d8] sm:$0xff]
    %v7365 = vld [vmem:[#allocation17 + $0x3e0] sm:$0xff]
    %v7366 = vld [vmem:[#allocation17 + $0x3e8] sm:$0xff]
    %v7367 = vld [vmem:[#allocation17 + $0x3f0] sm:$0xff]
    %v7368 = vld [vmem:[#allocation17 + $0x3f8] sm:$0xff]
    %v7369 = vld [vmem:[#allocation17 + $0x400] sm:$0xff]
    %v7370 = vld [vmem:[#allocation17 + $0x408] sm:$0xff]
    %v7371 = vld [vmem:[#allocation17 + $0x410] sm:$0xff]
    %v7372 = vld [vmem:[#allocation17 + $0x418] sm:$0xff]
    %v7373 = vld [vmem:[#allocation17 + $0x420] sm:$0xff]
    %v7374 = vld [vmem:[#allocation17 + $0x428] sm:$0xff]
    %v7375 = vld [vmem:[#allocation17 + $0x430] sm:$0xff]
    %v7376 = vld [vmem:[#allocation17 + $0x438] sm:$0xff]
    %v7377 = vld [vmem:[#allocation17 + $0x440] sm:$0xff]
    %v7378 = vld [vmem:[#allocation17 + $0x448] sm:$0xff]
    %v7379 = vld [vmem:[#allocation17 + $0x450] sm:$0xff]
    %v7380 = vld [vmem:[#allocation17 + $0x458] sm:$0xff]
    %v7381 = vld [vmem:[#allocation17 + $0x460] sm:$0xff]
    %v7382 = vld [vmem:[#allocation17 + $0x468] sm:$0xff]
    %v7383 = vld [vmem:[#allocation17 + $0x470] sm:$0xff]
    %v7384 = vld [vmem:[#allocation17 + $0x478] sm:$0xff]
    %v7385 = vld [vmem:[#allocation17 + $0x480] sm:$0xff]
    %v7386 = vld [vmem:[#allocation17 + $0x488] sm:$0xff]
    %v7387 = vld [vmem:[#allocation17 + $0x490] sm:$0xff]
    %v7388 = vld [vmem:[#allocation17 + $0x498] sm:$0xff]
    %v7389 = vld [vmem:[#allocation17 + $0x4a0] sm:$0xff]
    %v7390 = vld [vmem:[#allocation17 + $0x4a8] sm:$0xff]
    %v7391 = vld [vmem:[#allocation17 + $0x4b0] sm:$0xff]
    %v7392 = vld [vmem:[#allocation17 + $0x4b8] sm:$0xff]
    %v7393 = vld [vmem:[#allocation17 + $0x4c0] sm:$0xff]
    %v7394 = vld [vmem:[#allocation17 + $0x4c8] sm:$0xff]
    %v7395 = vld [vmem:[#allocation17 + $0x4d0] sm:$0xff]
    %v7396 = vld [vmem:[#allocation17 + $0x4d8] sm:$0xff]
    %v7397 = vld [vmem:[#allocation17 + $0x4e0] sm:$0xff]
    %v7398 = vld [vmem:[#allocation17 + $0x4e8] sm:$0xff]
    %v7399 = vld [vmem:[#allocation17 + $0x4f0] sm:$0xff]
    %v7400 = vld [vmem:[#allocation17 + $0x4f8] sm:$0xff]
    %v7401 = vld [vmem:[#allocation17 + $0x500] sm:$0xff]
    %v7402 = vld [vmem:[#allocation17 + $0x508] sm:$0xff]
    %v7403 = vld [vmem:[#allocation17 + $0x510] sm:$0xff]
    %v7404 = vld [vmem:[#allocation17 + $0x518] sm:$0xff]
    %v7405 = vld [vmem:[#allocation17 + $0x520] sm:$0xff]
    %v7406 = vld [vmem:[#allocation17 + $0x528] sm:$0xff]
    %v7407 = vld [vmem:[#allocation17 + $0x530] sm:$0xff]
    %v7408 = vld [vmem:[#allocation17 + $0x538] sm:$0xff]
    %v7409 = vld [vmem:[#allocation17 + $0x540] sm:$0xff]
    %v7410 = vld [vmem:[#allocation17 + $0x548] sm:$0xff]
    %v7411 = vld [vmem:[#allocation17 + $0x550] sm:$0xff]
    %v7412 = vld [vmem:[#allocation17 + $0x558] sm:$0xff]
    %v7413 = vld [vmem:[#allocation17 + $0x560] sm:$0xff]
    %v7414 = vld [vmem:[#allocation17 + $0x568] sm:$0xff]
    %v7415 = vld [vmem:[#allocation17 + $0x570] sm:$0xff]
    %v7416 = vld [vmem:[#allocation17 + $0x578] sm:$0xff]
    %v7417 = vld [vmem:[#allocation17 + $0x580] sm:$0xff]
    %v7418 = vld [vmem:[#allocation17 + $0x588] sm:$0xff]
    %v7419 = vld [vmem:[#allocation17 + $0x590] sm:$0xff]
    %v7420 = vld [vmem:[#allocation17 + $0x598] sm:$0xff]
    %v7421 = vld [vmem:[#allocation17 + $0x5a0] sm:$0xff]
    %v7422 = vld [vmem:[#allocation17 + $0x5a8] sm:$0xff]
    %v7423 = vld [vmem:[#allocation17 + $0x5b0] sm:$0xff]
    %v7424 = vld [vmem:[#allocation17 + $0x5b8] sm:$0xff]
    %v7425 = vld [vmem:[#allocation17 + $0x5c0] sm:$0xff]
    %v7426 = vld [vmem:[#allocation17 + $0x5c8] sm:$0xff]
    %v7427 = vld [vmem:[#allocation17 + $0x5d0] sm:$0xff]
    %v7428 = vld [vmem:[#allocation17 + $0x5d8] sm:$0xff]
    %v7429 = vld [vmem:[#allocation17 + $0x5e0] sm:$0xff]
    %v7430 = vld [vmem:[#allocation17 + $0x5e8] sm:$0xff]
    %v7431 = vld [vmem:[#allocation17 + $0x5f0] sm:$0xff]
    %v7432 = vld [vmem:[#allocation17 + $0x5f8] sm:$0xff]
    %v7433 = vld [vmem:[#allocation17 + $0x600] sm:$0xff]
    %v7434 = vld [vmem:[#allocation17 + $0x608] sm:$0xff]
    %v7435 = vld [vmem:[#allocation17 + $0x610] sm:$0xff]
    %v7436 = vld [vmem:[#allocation17 + $0x618] sm:$0xff]
    %v7437 = vld [vmem:[#allocation17 + $0x620] sm:$0xff]
    %v7438 = vld [vmem:[#allocation17 + $0x628] sm:$0xff]
    %v7439 = vld [vmem:[#allocation17 + $0x630] sm:$0xff]
    %v7440 = vld [vmem:[#allocation17 + $0x638] sm:$0xff]
    %v7441 = vld [vmem:[#allocation17 + $0x640] sm:$0xff]
    %v7442 = vld [vmem:[#allocation17 + $0x648] sm:$0xff]
    %v7443 = vld [vmem:[#allocation17 + $0x650] sm:$0xff]
    %v7444 = vld [vmem:[#allocation17 + $0x658] sm:$0xff]
    %v7445 = vld [vmem:[#allocation17 + $0x660] sm:$0xff]
    %v7446 = vld [vmem:[#allocation17 + $0x668] sm:$0xff]
    %v7447 = vld [vmem:[#allocation17 + $0x670] sm:$0xff]
    %v7448 = vld [vmem:[#allocation17 + $0x678] sm:$0xff]
    %v7449 = vld [vmem:[#allocation17 + $0x680] sm:$0xff]
    %v7450 = vld [vmem:[#allocation17 + $0x688] sm:$0xff]
    %v7451 = vld [vmem:[#allocation17 + $0x690] sm:$0xff]
    %v7452 = vld [vmem:[#allocation17 + $0x698] sm:$0xff]
    %v7453 = vld [vmem:[#allocation17 + $0x6a0] sm:$0xff]
    %v7454 = vld [vmem:[#allocation17 + $0x6a8] sm:$0xff]
    %v7455 = vld [vmem:[#allocation17 + $0x6b0] sm:$0xff]
    %v7456 = vld [vmem:[#allocation17 + $0x6b8] sm:$0xff]
    %v7457 = vld [vmem:[#allocation17 + $0x6c0] sm:$0xff]
    %v7458 = vld [vmem:[#allocation17 + $0x6c8] sm:$0xff]
    %v7459 = vld [vmem:[#allocation17 + $0x6d0] sm:$0xff]
    %v7460 = vld [vmem:[#allocation17 + $0x6d8] sm:$0xff]
    %v7461 = vld [vmem:[#allocation17 + $0x6e0] sm:$0xff]
    %v7462 = vld [vmem:[#allocation17 + $0x6e8] sm:$0xff]
    %v7463 = vld [vmem:[#allocation17 + $0x6f0] sm:$0xff]
    %v7464 = vld [vmem:[#allocation17 + $0x6f8] sm:$0xff]
    %v7465 = vld [vmem:[#allocation17 + $0x700] sm:$0xff]
    %v7466 = vld [vmem:[#allocation17 + $0x708] sm:$0xff]
    %v7467 = vld [vmem:[#allocation17 + $0x710] sm:$0xff]
    %v7468 = vld [vmem:[#allocation17 + $0x718] sm:$0xff]
    %v7469 = vld [vmem:[#allocation17 + $0x720] sm:$0xff]
    %v7470 = vld [vmem:[#allocation17 + $0x728] sm:$0xff]
    %v7471 = vld [vmem:[#allocation17 + $0x730] sm:$0xff]
    %v7472 = vld [vmem:[#allocation17 + $0x738] sm:$0xff]
    %v7473 = vld [vmem:[#allocation17 + $0x740] sm:$0xff]
    %v7474 = vld [vmem:[#allocation17 + $0x748] sm:$0xff]
    %v7475 = vld [vmem:[#allocation17 + $0x750] sm:$0xff]
    %v7476 = vld [vmem:[#allocation17 + $0x758] sm:$0xff]
    %v7477 = vld [vmem:[#allocation17 + $0x760] sm:$0xff]
    %v7478 = vld [vmem:[#allocation17 + $0x768] sm:$0xff]
    %v7479 = vld [vmem:[#allocation17 + $0x770] sm:$0xff]
    %v7480 = vld [vmem:[#allocation17 + $0x778] sm:$0xff]
    %v7481 = vld [vmem:[#allocation17 + $0x780] sm:$0xff]
    %v7482 = vld [vmem:[#allocation17 + $0x788] sm:$0xff]
    %v7483 = vld [vmem:[#allocation17 + $0x790] sm:$0xff]
    %v7484 = vld [vmem:[#allocation17 + $0x798] sm:$0xff]
    %v7485 = vld [vmem:[#allocation17 + $0x7a0] sm:$0xff]
    %v7486 = vld [vmem:[#allocation17 + $0x7a8] sm:$0xff]
    %v7487 = vld [vmem:[#allocation17 + $0x7b0] sm:$0xff]
    %v7488 = vld [vmem:[#allocation17 + $0x7b8] sm:$0xff]
    %v7489 = vld [vmem:[#allocation17 + $0x7c0] sm:$0xff]
    %v7490 = vld [vmem:[#allocation17 + $0x7c8] sm:$0xff]
    %v7491 = vld [vmem:[#allocation17 + $0x7d0] sm:$0xff]
    %v7492 = vld [vmem:[#allocation17 + $0x7d8] sm:$0xff]
    %v7493 = vld [vmem:[#allocation17 + $0x7e0] sm:$0xff]
    %v7494 = vld [vmem:[#allocation17 + $0x7e8] sm:$0xff]
    %v7495 = vld [vmem:[#allocation17 + $0x7f0] sm:$0xff]
    %v7496 = vld [vmem:[#allocation17 + $0x7f8] sm:$0xff]
    %v7497 = vld [vmem:[%s16] sm:$0xf]
    %v7498 = vpack.c.bf16 %v7233, %v7233
    %v7499 = vpack.c.bf16 %v7234, %v7234
    %v7500 = vpack.c.bf16 %v7235, %v7235
    %v7501 = vpack.c.bf16 %v7236, %v7236
    %v7502 = vpack.c.bf16 %v7237, %v7237
    %v7503 = vpack.c.bf16 %v7238, %v7238
    %v7504 = vpack.c.bf16 %v7239, %v7239
    %v7505 = vpack.c.bf16 %v7240, %v7240
    %v7507 = vlaneseq
    %v7508 = vshrl.u32 %v7507, 7
    %v7509 = vsub.s32 0, %v7508
    %v7510 = vrot.slane %v7497, %v7509
    %v7511 = vlaneseq
    %v7512 = vshrl.u32 %v7511, 7
    %v7513 = vsub.s32 1, %v7512
    %v7514 = vrot.slane %v7497, %v7513
    %v7515 = vlaneseq
    %v7516 = vshrl.u32 %v7515, 7
    %v7517 = vsub.s32 2, %v7516
    %v7518 = vrot.slane %v7497, %v7517
    %v7519 = vlaneseq
    %v7520 = vshrl.u32 %v7519, 7
    %v7521 = vsub.s32 3, %v7520
    %v7522 = vrot.slane %v7497, %v7521
    %v7783 = vunpack.c.l.b16 %v7241
    %v7784 = vunpack.c.h.b16 %v7241
    %v7785 = vunpack.c.l.b16 %v7242
    %v7786 = vunpack.c.h.b16 %v7242
    %v7787 = vunpack.c.l.b16 %v7243
    %v7788 = vunpack.c.h.b16 %v7243
    %v7789 = vunpack.c.l.b16 %v7244
    %v7790 = vunpack.c.h.b16 %v7244
    %v7791 = vunpack.c.l.b16 %v7245
    %v7792 = vunpack.c.h.b16 %v7245
    %v7793 = vunpack.c.l.b16 %v7246
    %v7794 = vunpack.c.h.b16 %v7246
    %v7795 = vunpack.c.l.b16 %v7247
    %v7796 = vunpack.c.h.b16 %v7247
    %v7797 = vunpack.c.l.b16 %v7248
    %v7798 = vunpack.c.h.b16 %v7248
    %v7799 = vunpack.c.l.b16 %v7249
    %v7800 = vunpack.c.h.b16 %v7249
    %v7801 = vunpack.c.l.b16 %v7250
    %v7802 = vunpack.c.h.b16 %v7250
    %v7803 = vunpack.c.l.b16 %v7251
    %v7804 = vunpack.c.h.b16 %v7251
    %v7805 = vunpack.c.l.b16 %v7252
    %v7806 = vunpack.c.h.b16 %v7252
    %v7807 = vunpack.c.l.b16 %v7253
    %v7808 = vunpack.c.h.b16 %v7253
    %v7809 = vunpack.c.l.b16 %v7254
    %v7810 = vunpack.c.h.b16 %v7254
    %v7811 = vunpack.c.l.b16 %v7255
    %v7812 = vunpack.c.h.b16 %v7255
    %v7813 = vunpack.c.l.b16 %v7256
    %v7814 = vunpack.c.h.b16 %v7256
    %v7815 = vunpack.c.l.b16 %v7257
    %v7816 = vunpack.c.h.b16 %v7257
    %v7817 = vunpack.c.l.b16 %v7258
    %v7818 = vunpack.c.h.b16 %v7258
    %v7819 = vunpack.c.l.b16 %v7259
    %v7820 = vunpack.c.h.b16 %v7259
    %v7821 = vunpack.c.l.b16 %v7260
    %v7822 = vunpack.c.h.b16 %v7260
    %v7823 = vunpack.c.l.b16 %v7261
    %v7824 = vunpack.c.h.b16 %v7261
    %v7825 = vunpack.c.l.b16 %v7262
    %v7826 = vunpack.c.h.b16 %v7262
    %v7827 = vunpack.c.l.b16 %v7263
    %v7828 = vunpack.c.h.b16 %v7263
    %v7829 = vunpack.c.l.b16 %v7264
    %v7830 = vunpack.c.h.b16 %v7264
    %v7831 = vunpack.c.l.b16 %v7265
    %v7832 = vunpack.c.h.b16 %v7265
    %v7833 = vunpack.c.l.b16 %v7266
    %v7834 = vunpack.c.h.b16 %v7266
    %v7835 = vunpack.c.l.b16 %v7267
    %v7836 = vunpack.c.h.b16 %v7267
    %v7837 = vunpack.c.l.b16 %v7268
    %v7838 = vunpack.c.h.b16 %v7268
    %v7839 = vunpack.c.l.b16 %v7269
    %v7840 = vunpack.c.h.b16 %v7269
    %v7841 = vunpack.c.l.b16 %v7270
    %v7842 = vunpack.c.h.b16 %v7270
    %v7843 = vunpack.c.l.b16 %v7271
    %v7844 = vunpack.c.h.b16 %v7271
    %v7845 = vunpack.c.l.b16 %v7272
    %v7846 = vunpack.c.h.b16 %v7272
    %v7847 = vunpack.c.l.b16 %v7273
    %v7848 = vunpack.c.h.b16 %v7273
    %v7849 = vunpack.c.l.b16 %v7274
    %v7850 = vunpack.c.h.b16 %v7274
    %v7851 = vunpack.c.l.b16 %v7275
    %v7852 = vunpack.c.h.b16 %v7275
    %v7853 = vunpack.c.l.b16 %v7276
    %v7854 = vunpack.c.h.b16 %v7276
    %v7855 = vunpack.c.l.b16 %v7277
    %v7856 = vunpack.c.h.b16 %v7277
    %v7857 = vunpack.c.l.b16 %v7278
    %v7858 = vunpack.c.h.b16 %v7278
    %v7859 = vunpack.c.l.b16 %v7279
    %v7860 = vunpack.c.h.b16 %v7279
    %v7861 = vunpack.c.l.b16 %v7280
    %v7862 = vunpack.c.h.b16 %v7280
    %v7863 = vunpack.c.l.b16 %v7281
    %v7864 = vunpack.c.h.b16 %v7281
    %v7865 = vunpack.c.l.b16 %v7282
    %v7866 = vunpack.c.h.b16 %v7282
    %v7867 = vunpack.c.l.b16 %v7283
    %v7868 = vunpack.c.h.b16 %v7283
    %v7869 = vunpack.c.l.b16 %v7284
    %v7870 = vunpack.c.h.b16 %v7284
    %v7871 = vunpack.c.l.b16 %v7285
    %v7872 = vunpack.c.h.b16 %v7285
    %v7873 = vunpack.c.l.b16 %v7286
    %v7874 = vunpack.c.h.b16 %v7286
    %v7875 = vunpack.c.l.b16 %v7287
    %v7876 = vunpack.c.h.b16 %v7287
    %v7877 = vunpack.c.l.b16 %v7288
    %v7878 = vunpack.c.h.b16 %v7288
    %v7879 = vunpack.c.l.b16 %v7289
    %v7880 = vunpack.c.h.b16 %v7289
    %v7881 = vunpack.c.l.b16 %v7290
    %v7882 = vunpack.c.h.b16 %v7290
    %v7883 = vunpack.c.l.b16 %v7291
    %v7884 = vunpack.c.h.b16 %v7291
    %v7885 = vunpack.c.l.b16 %v7292
    %v7886 = vunpack.c.h.b16 %v7292
    %v7887 = vunpack.c.l.b16 %v7293
    %v7888 = vunpack.c.h.b16 %v7293
    %v7889 = vunpack.c.l.b16 %v7294
    %v7890 = vunpack.c.h.b16 %v7294
    %v7891 = vunpack.c.l.b16 %v7295
    %v7892 = vunpack.c.h.b16 %v7295
    %v7893 = vunpack.c.l.b16 %v7296
    %v7894 = vunpack.c.h.b16 %v7296
    %v7895 = vunpack.c.l.b16 %v7297
    %v7896 = vunpack.c.h.b16 %v7297
    %v7897 = vunpack.c.l.b16 %v7298
    %v7898 = vunpack.c.h.b16 %v7298
    %v7899 = vunpack.c.l.b16 %v7299
    %v7900 = vunpack.c.h.b16 %v7299
    %v7901 = vunpack.c.l.b16 %v7300
    %v7902 = vunpack.c.h.b16 %v7300
    %v7903 = vunpack.c.l.b16 %v7301
    %v7904 = vunpack.c.h.b16 %v7301
    %v7905 = vunpack.c.l.b16 %v7302
    %v7906 = vunpack.c.h.b16 %v7302
    %v7907 = vunpack.c.l.b16 %v7303
    %v7908 = vunpack.c.h.b16 %v7303
    %v7909 = vunpack.c.l.b16 %v7304
    %v7910 = vunpack.c.h.b16 %v7304
    %v7911 = vunpack.c.l.b16 %v7305
    %v7912 = vunpack.c.h.b16 %v7305
    %v7913 = vunpack.c.l.b16 %v7306
    %v7914 = vunpack.c.h.b16 %v7306
    %v7915 = vunpack.c.l.b16 %v7307
    %v7916 = vunpack.c.h.b16 %v7307
    %v7917 = vunpack.c.l.b16 %v7308
    %v7918 = vunpack.c.h.b16 %v7308
    %v7919 = vunpack.c.l.b16 %v7309
    %v7920 = vunpack.c.h.b16 %v7309
    %v7921 = vunpack.c.l.b16 %v7310
    %v7922 = vunpack.c.h.b16 %v7310
    %v7923 = vunpack.c.l.b16 %v7311
    %v7924 = vunpack.c.h.b16 %v7311
    %v7925 = vunpack.c.l.b16 %v7312
    %v7926 = vunpack.c.h.b16 %v7312
    %v7927 = vunpack.c.l.b16 %v7313
    %v7928 = vunpack.c.h.b16 %v7313
    %v7929 = vunpack.c.l.b16 %v7314
    %v7930 = vunpack.c.h.b16 %v7314
    %v7931 = vunpack.c.l.b16 %v7315
    %v7932 = vunpack.c.h.b16 %v7315
    %v7933 = vunpack.c.l.b16 %v7316
    %v7934 = vunpack.c.h.b16 %v7316
    %v7935 = vunpack.c.l.b16 %v7317
    %v7936 = vunpack.c.h.b16 %v7317
    %v7937 = vunpack.c.l.b16 %v7318
    %v7938 = vunpack.c.h.b16 %v7318
    %v7939 = vunpack.c.l.b16 %v7319
    %v7940 = vunpack.c.h.b16 %v7319
    %v7941 = vunpack.c.l.b16 %v7320
    %v7942 = vunpack.c.h.b16 %v7320
    %v7943 = vunpack.c.l.b16 %v7321
    %v7944 = vunpack.c.h.b16 %v7321
    %v7945 = vunpack.c.l.b16 %v7322
    %v7946 = vunpack.c.h.b16 %v7322
    %v7947 = vunpack.c.l.b16 %v7323
    %v7948 = vunpack.c.h.b16 %v7323
    %v7949 = vunpack.c.l.b16 %v7324
    %v7950 = vunpack.c.h.b16 %v7324
    %v7951 = vunpack.c.l.b16 %v7325
    %v7952 = vunpack.c.h.b16 %v7325
    %v7953 = vunpack.c.l.b16 %v7326
    %v7954 = vunpack.c.h.b16 %v7326
    %v7955 = vunpack.c.l.b16 %v7327
    %v7956 = vunpack.c.h.b16 %v7327
    %v7957 = vunpack.c.l.b16 %v7328
    %v7958 = vunpack.c.h.b16 %v7328
    %v7959 = vunpack.c.l.b16 %v7329
    %v7960 = vunpack.c.h.b16 %v7329
    %v7961 = vunpack.c.l.b16 %v7330
    %v7962 = vunpack.c.h.b16 %v7330
    %v7963 = vunpack.c.l.b16 %v7331
    %v7964 = vunpack.c.h.b16 %v7331
    %v7965 = vunpack.c.l.b16 %v7332
    %v7966 = vunpack.c.h.b16 %v7332
    %v7967 = vunpack.c.l.b16 %v7333
    %v7968 = vunpack.c.h.b16 %v7333
    %v7969 = vunpack.c.l.b16 %v7334
    %v7970 = vunpack.c.h.b16 %v7334
    %v7971 = vunpack.c.l.b16 %v7335
    %v7972 = vunpack.c.h.b16 %v7335
    %v7973 = vunpack.c.l.b16 %v7336
    %v7974 = vunpack.c.h.b16 %v7336
    %v7975 = vunpack.c.l.b16 %v7337
    %v7976 = vunpack.c.h.b16 %v7337
    %v7977 = vunpack.c.l.b16 %v7338
    %v7978 = vunpack.c.h.b16 %v7338
    %v7979 = vunpack.c.l.b16 %v7339
    %v7980 = vunpack.c.h.b16 %v7339
    %v7981 = vunpack.c.l.b16 %v7340
    %v7982 = vunpack.c.h.b16 %v7340
    %v7983 = vunpack.c.l.b16 %v7341
    %v7984 = vunpack.c.h.b16 %v7341
    %v7985 = vunpack.c.l.b16 %v7342
    %v7986 = vunpack.c.h.b16 %v7342
    %v7987 = vunpack.c.l.b16 %v7343
    %v7988 = vunpack.c.h.b16 %v7343
    %v7989 = vunpack.c.l.b16 %v7344
    %v7990 = vunpack.c.h.b16 %v7344
    %v7991 = vunpack.c.l.b16 %v7345
    %v7992 = vunpack.c.h.b16 %v7345
    %v7993 = vunpack.c.l.b16 %v7346
    %v7994 = vunpack.c.h.b16 %v7346
    %v7995 = vunpack.c.l.b16 %v7347
    %v7996 = vunpack.c.h.b16 %v7347
    %v7997 = vunpack.c.l.b16 %v7348
    %v7998 = vunpack.c.h.b16 %v7348
    %v7999 = vunpack.c.l.b16 %v7349
    %v8000 = vunpack.c.h.b16 %v7349
    %v8001 = vunpack.c.l.b16 %v7350
    %v8002 = vunpack.c.h.b16 %v7350
    %v8003 = vunpack.c.l.b16 %v7351
    %v8004 = vunpack.c.h.b16 %v7351
    %v8005 = vunpack.c.l.b16 %v7352
    %v8006 = vunpack.c.h.b16 %v7352
    %v8007 = vunpack.c.l.b16 %v7353
    %v8008 = vunpack.c.h.b16 %v7353
    %v8009 = vunpack.c.l.b16 %v7354
    %v8010 = vunpack.c.h.b16 %v7354
    %v8011 = vunpack.c.l.b16 %v7355
    %v8012 = vunpack.c.h.b16 %v7355
    %v8013 = vunpack.c.l.b16 %v7356
    %v8014 = vunpack.c.h.b16 %v7356
    %v8015 = vunpack.c.l.b16 %v7357
    %v8016 = vunpack.c.h.b16 %v7357
    %v8017 = vunpack.c.l.b16 %v7358
    %v8018 = vunpack.c.h.b16 %v7358
    %v8019 = vunpack.c.l.b16 %v7359
    %v8020 = vunpack.c.h.b16 %v7359
    %v8021 = vunpack.c.l.b16 %v7360
    %v8022 = vunpack.c.h.b16 %v7360
    %v8023 = vunpack.c.l.b16 %v7361
    %v8024 = vunpack.c.h.b16 %v7361
    %v8025 = vunpack.c.l.b16 %v7362
    %v8026 = vunpack.c.h.b16 %v7362
    %v8027 = vunpack.c.l.b16 %v7363
    %v8028 = vunpack.c.h.b16 %v7363
    %v8029 = vunpack.c.l.b16 %v7364
    %v8030 = vunpack.c.h.b16 %v7364
    %v8031 = vunpack.c.l.b16 %v7365
    %v8032 = vunpack.c.h.b16 %v7365
    %v8033 = vunpack.c.l.b16 %v7366
    %v8034 = vunpack.c.h.b16 %v7366
    %v8035 = vunpack.c.l.b16 %v7367
    %v8036 = vunpack.c.h.b16 %v7367
    %v8037 = vunpack.c.l.b16 %v7368
    %v8038 = vunpack.c.h.b16 %v7368
    %v8039 = vunpack.c.l.b16 %v7369
    %v8040 = vunpack.c.h.b16 %v7369
    %v8041 = vunpack.c.l.b16 %v7370
    %v8042 = vunpack.c.h.b16 %v7370
    %v8043 = vunpack.c.l.b16 %v7371
    %v8044 = vunpack.c.h.b16 %v7371
    %v8045 = vunpack.c.l.b16 %v7372
    %v8046 = vunpack.c.h.b16 %v7372
    %v8047 = vunpack.c.l.b16 %v7373
    %v8048 = vunpack.c.h.b16 %v7373
    %v8049 = vunpack.c.l.b16 %v7374
    %v8050 = vunpack.c.h.b16 %v7374
    %v8051 = vunpack.c.l.b16 %v7375
    %v8052 = vunpack.c.h.b16 %v7375
    %v8053 = vunpack.c.l.b16 %v7376
    %v8054 = vunpack.c.h.b16 %v7376
    %v8055 = vunpack.c.l.b16 %v7377
    %v8056 = vunpack.c.h.b16 %v7377
    %v8057 = vunpack.c.l.b16 %v7378
    %v8058 = vunpack.c.h.b16 %v7378
    %v8059 = vunpack.c.l.b16 %v7379
    %v8060 = vunpack.c.h.b16 %v7379
    %v8061 = vunpack.c.l.b16 %v7380
    %v8062 = vunpack.c.h.b16 %v7380
    %v8063 = vunpack.c.l.b16 %v7381
    %v8064 = vunpack.c.h.b16 %v7381
    %v8065 = vunpack.c.l.b16 %v7382
    %v8066 = vunpack.c.h.b16 %v7382
    %v8067 = vunpack.c.l.b16 %v7383
    %v8068 = vunpack.c.h.b16 %v7383
    %v8069 = vunpack.c.l.b16 %v7384
    %v8070 = vunpack.c.h.b16 %v7384
    %v8071 = vunpack.c.l.b16 %v7385
    %v8072 = vunpack.c.h.b16 %v7385
    %v8073 = vunpack.c.l.b16 %v7386
    %v8074 = vunpack.c.h.b16 %v7386
    %v8075 = vunpack.c.l.b16 %v7387
    %v8076 = vunpack.c.h.b16 %v7387
    %v8077 = vunpack.c.l.b16 %v7388
    %v8078 = vunpack.c.h.b16 %v7388
    %v8079 = vunpack.c.l.b16 %v7389
    %v8080 = vunpack.c.h.b16 %v7389
    %v8081 = vunpack.c.l.b16 %v7390
    %v8082 = vunpack.c.h.b16 %v7390
    %v8083 = vunpack.c.l.b16 %v7391
    %v8084 = vunpack.c.h.b16 %v7391
    %v8085 = vunpack.c.l.b16 %v7392
    %v8086 = vunpack.c.h.b16 %v7392
    %v8087 = vunpack.c.l.b16 %v7393
    %v8088 = vunpack.c.h.b16 %v7393
    %v8089 = vunpack.c.l.b16 %v7394
    %v8090 = vunpack.c.h.b16 %v7394
    %v8091 = vunpack.c.l.b16 %v7395
    %v8092 = vunpack.c.h.b16 %v7395
    %v8093 = vunpack.c.l.b16 %v7396
    %v8094 = vunpack.c.h.b16 %v7396
    %v8095 = vunpack.c.l.b16 %v7397
    %v8096 = vunpack.c.h.b16 %v7397
    %v8097 = vunpack.c.l.b16 %v7398
    %v8098 = vunpack.c.h.b16 %v7398
    %v8099 = vunpack.c.l.b16 %v7399
    %v8100 = vunpack.c.h.b16 %v7399
    %v8101 = vunpack.c.l.b16 %v7400
    %v8102 = vunpack.c.h.b16 %v7400
    %v8103 = vunpack.c.l.b16 %v7401
    %v8104 = vunpack.c.h.b16 %v7401
    %v8105 = vunpack.c.l.b16 %v7402
    %v8106 = vunpack.c.h.b16 %v7402
    %v8107 = vunpack.c.l.b16 %v7403
    %v8108 = vunpack.c.h.b16 %v7403
    %v8109 = vunpack.c.l.b16 %v7404
    %v8110 = vunpack.c.h.b16 %v7404
    %v8111 = vunpack.c.l.b16 %v7405
    %v8112 = vunpack.c.h.b16 %v7405
    %v8113 = vunpack.c.l.b16 %v7406
    %v8114 = vunpack.c.h.b16 %v7406
    %v8115 = vunpack.c.l.b16 %v7407
    %v8116 = vunpack.c.h.b16 %v7407
    %v8117 = vunpack.c.l.b16 %v7408
    %v8118 = vunpack.c.h.b16 %v7408
    %v8119 = vunpack.c.l.b16 %v7409
    %v8120 = vunpack.c.h.b16 %v7409
    %v8121 = vunpack.c.l.b16 %v7410
    %v8122 = vunpack.c.h.b16 %v7410
    %v8123 = vunpack.c.l.b16 %v7411
    %v8124 = vunpack.c.h.b16 %v7411
    %v8125 = vunpack.c.l.b16 %v7412
    %v8126 = vunpack.c.h.b16 %v7412
    %v8127 = vunpack.c.l.b16 %v7413
    %v8128 = vunpack.c.h.b16 %v7413
    %v8129 = vunpack.c.l.b16 %v7414
    %v8130 = vunpack.c.h.b16 %v7414
    %v8131 = vunpack.c.l.b16 %v7415
    %v8132 = vunpack.c.h.b16 %v7415
    %v8133 = vunpack.c.l.b16 %v7416
    %v8134 = vunpack.c.h.b16 %v7416
    %v8135 = vunpack.c.l.b16 %v7417
    %v8136 = vunpack.c.h.b16 %v7417
    %v8137 = vunpack.c.l.b16 %v7418
    %v8138 = vunpack.c.h.b16 %v7418
    %v8139 = vunpack.c.l.b16 %v7419
    %v8140 = vunpack.c.h.b16 %v7419
    %v8141 = vunpack.c.l.b16 %v7420
    %v8142 = vunpack.c.h.b16 %v7420
    %v8143 = vunpack.c.l.b16 %v7421
    %v8144 = vunpack.c.h.b16 %v7421
    %v8145 = vunpack.c.l.b16 %v7422
    %v8146 = vunpack.c.h.b16 %v7422
    %v8147 = vunpack.c.l.b16 %v7423
    %v8148 = vunpack.c.h.b16 %v7423
    %v8149 = vunpack.c.l.b16 %v7424
    %v8150 = vunpack.c.h.b16 %v7424
    %v8151 = vunpack.c.l.b16 %v7425
    %v8152 = vunpack.c.h.b16 %v7425
    %v8153 = vunpack.c.l.b16 %v7426
    %v8154 = vunpack.c.h.b16 %v7426
    %v8155 = vunpack.c.l.b16 %v7427
    %v8156 = vunpack.c.h.b16 %v7427
    %v8157 = vunpack.c.l.b16 %v7428
    %v8158 = vunpack.c.h.b16 %v7428
    %v8159 = vunpack.c.l.b16 %v7429
    %v8160 = vunpack.c.h.b16 %v7429
    %v8161 = vunpack.c.l.b16 %v7430
    %v8162 = vunpack.c.h.b16 %v7430
    %v8163 = vunpack.c.l.b16 %v7431
    %v8164 = vunpack.c.h.b16 %v7431
    %v8165 = vunpack.c.l.b16 %v7432
    %v8166 = vunpack.c.h.b16 %v7432
    %v8167 = vunpack.c.l.b16 %v7433
    %v8168 = vunpack.c.h.b16 %v7433
    %v8169 = vunpack.c.l.b16 %v7434
    %v8170 = vunpack.c.h.b16 %v7434
    %v8171 = vunpack.c.l.b16 %v7435
    %v8172 = vunpack.c.h.b16 %v7435
    %v8173 = vunpack.c.l.b16 %v7436
    %v8174 = vunpack.c.h.b16 %v7436
    %v8175 = vunpack.c.l.b16 %v7437
    %v8176 = vunpack.c.h.b16 %v7437
    %v8177 = vunpack.c.l.b16 %v7438
    %v8178 = vunpack.c.h.b16 %v7438
    %v8179 = vunpack.c.l.b16 %v7439
    %v8180 = vunpack.c.h.b16 %v7439
    %v8181 = vunpack.c.l.b16 %v7440
    %v8182 = vunpack.c.h.b16 %v7440
    %v8183 = vunpack.c.l.b16 %v7441
    %v8184 = vunpack.c.h.b16 %v7441
    %v8185 = vunpack.c.l.b16 %v7442
    %v8186 = vunpack.c.h.b16 %v7442
    %v8187 = vunpack.c.l.b16 %v7443
    %v8188 = vunpack.c.h.b16 %v7443
    %v8189 = vunpack.c.l.b16 %v7444
    %v8190 = vunpack.c.h.b16 %v7444
    %v8191 = vunpack.c.l.b16 %v7445
    %v8192 = vunpack.c.h.b16 %v7445
    %v8193 = vunpack.c.l.b16 %v7446
    %v8194 = vunpack.c.h.b16 %v7446
    %v8195 = vunpack.c.l.b16 %v7447
    %v8196 = vunpack.c.h.b16 %v7447
    %v8197 = vunpack.c.l.b16 %v7448
    %v8198 = vunpack.c.h.b16 %v7448
    %v8199 = vunpack.c.l.b16 %v7449
    %v8200 = vunpack.c.h.b16 %v7449
    %v8201 = vunpack.c.l.b16 %v7450
    %v8202 = vunpack.c.h.b16 %v7450
    %v8203 = vunpack.c.l.b16 %v7451
    %v8204 = vunpack.c.h.b16 %v7451
    %v8205 = vunpack.c.l.b16 %v7452
    %v8206 = vunpack.c.h.b16 %v7452
    %v8207 = vunpack.c.l.b16 %v7453
    %v8208 = vunpack.c.h.b16 %v7453
    %v8209 = vunpack.c.l.b16 %v7454
    %v8210 = vunpack.c.h.b16 %v7454
    %v8211 = vunpack.c.l.b16 %v7455
    %v8212 = vunpack.c.h.b16 %v7455
    %v8213 = vunpack.c.l.b16 %v7456
    %v8214 = vunpack.c.h.b16 %v7456
    %v8215 = vunpack.c.l.b16 %v7457
    %v8216 = vunpack.c.h.b16 %v7457
    %v8217 = vunpack.c.l.b16 %v7458
    %v8218 = vunpack.c.h.b16 %v7458
    %v8219 = vunpack.c.l.b16 %v7459
    %v8220 = vunpack.c.h.b16 %v7459
    %v8221 = vunpack.c.l.b16 %v7460
    %v8222 = vunpack.c.h.b16 %v7460
    %v8223 = vunpack.c.l.b16 %v7461
    %v8224 = vunpack.c.h.b16 %v7461
    %v8225 = vunpack.c.l.b16 %v7462
    %v8226 = vunpack.c.h.b16 %v7462
    %v8227 = vunpack.c.l.b16 %v7463
    %v8228 = vunpack.c.h.b16 %v7463
    %v8229 = vunpack.c.l.b16 %v7464
    %v8230 = vunpack.c.h.b16 %v7464
    %v8231 = vunpack.c.l.b16 %v7465
    %v8232 = vunpack.c.h.b16 %v7465
    %v8233 = vunpack.c.l.b16 %v7466
    %v8234 = vunpack.c.h.b16 %v7466
    %v8235 = vunpack.c.l.b16 %v7467
    %v8236 = vunpack.c.h.b16 %v7467
    %v8237 = vunpack.c.l.b16 %v7468
    %v8238 = vunpack.c.h.b16 %v7468
    %v8239 = vunpack.c.l.b16 %v7469
    %v8240 = vunpack.c.h.b16 %v7469
    %v8241 = vunpack.c.l.b16 %v7470
    %v8242 = vunpack.c.h.b16 %v7470
    %v8243 = vunpack.c.l.b16 %v7471
    %v8244 = vunpack.c.h.b16 %v7471
    %v8245 = vunpack.c.l.b16 %v7472
    %v8246 = vunpack.c.h.b16 %v7472
    %v8247 = vunpack.c.l.b16 %v7473
    %v8248 = vunpack.c.h.b16 %v7473
    %v8249 = vunpack.c.l.b16 %v7474
    %v8250 = vunpack.c.h.b16 %v7474
    %v8251 = vunpack.c.l.b16 %v7475
    %v8252 = vunpack.c.h.b16 %v7475
    %v8253 = vunpack.c.l.b16 %v7476
    %v8254 = vunpack.c.h.b16 %v7476
    %v8255 = vunpack.c.l.b16 %v7477
    %v8256 = vunpack.c.h.b16 %v7477
    %v8257 = vunpack.c.l.b16 %v7478
    %v8258 = vunpack.c.h.b16 %v7478
    %v8259 = vunpack.c.l.b16 %v7479
    %v8260 = vunpack.c.h.b16 %v7479
    %v8261 = vunpack.c.l.b16 %v7480
    %v8262 = vunpack.c.h.b16 %v7480
    %v8263 = vunpack.c.l.b16 %v7481
    %v8264 = vunpack.c.h.b16 %v7481
    %v8265 = vunpack.c.l.b16 %v7482
    %v8266 = vunpack.c.h.b16 %v7482
    %v8267 = vunpack.c.l.b16 %v7483
    %v8268 = vunpack.c.h.b16 %v7483
    %v8269 = vunpack.c.l.b16 %v7484
    %v8270 = vunpack.c.h.b16 %v7484
    %v8271 = vunpack.c.l.b16 %v7485
    %v8272 = vunpack.c.h.b16 %v7485
    %v8273 = vunpack.c.l.b16 %v7486
    %v8274 = vunpack.c.h.b16 %v7486
    %v8275 = vunpack.c.l.b16 %v7487
    %v8276 = vunpack.c.h.b16 %v7487
    %v8277 = vunpack.c.l.b16 %v7488
    %v8278 = vunpack.c.h.b16 %v7488
    %v8279 = vunpack.c.l.b16 %v7489
    %v8280 = vunpack.c.h.b16 %v7489
    %v8281 = vunpack.c.l.b16 %v7490
    %v8282 = vunpack.c.h.b16 %v7490
    %v8283 = vunpack.c.l.b16 %v7491
    %v8284 = vunpack.c.h.b16 %v7491
    %v8285 = vunpack.c.l.b16 %v7492
    %v8286 = vunpack.c.h.b16 %v7492
    %v8287 = vunpack.c.l.b16 %v7493
    %v8288 = vunpack.c.h.b16 %v7493
    %v8289 = vunpack.c.l.b16 %v7494
    %v8290 = vunpack.c.h.b16 %v7494
    %v8291 = vunpack.c.l.b16 %v7495
    %v8292 = vunpack.c.h.b16 %v7495
    %v8293 = vunpack.c.l.b16 %v7496
    %v8294 = vunpack.c.h.b16 %v7496
    %v8295 = vpack.c.b16 %v7787, %v7783
    %v8296 = vpack.c.b16 %v7788, %v7784
    %v8297 = vpack.c.b16 %v7789, %v7785
    %v8298 = vpack.c.b16 %v7790, %v7786
    %v8299 = vpack.c.b16 %v7795, %v7791
    %v8300 = vpack.c.b16 %v7796, %v7792
    %v8301 = vpack.c.b16 %v7797, %v7793
    %v8302 = vpack.c.b16 %v7798, %v7794
    %v8303 = vpack.c.b16 %v7803, %v7799
    %v8304 = vpack.c.b16 %v7804, %v7800
    %v8305 = vpack.c.b16 %v7805, %v7801
    %v8306 = vpack.c.b16 %v7806, %v7802
    %v8307 = vpack.c.b16 %v7811, %v7807
    %v8308 = vpack.c.b16 %v7812, %v7808
    %v8309 = vpack.c.b16 %v7813, %v7809
    %v8310 = vpack.c.b16 %v7814, %v7810
    %v8311 = vpack.c.b16 %v7819, %v7815
    %v8312 = vpack.c.b16 %v7820, %v7816
    %v8313 = vpack.c.b16 %v7821, %v7817
    %v8314 = vpack.c.b16 %v7822, %v7818
    %v8315 = vpack.c.b16 %v7827, %v7823
    %v8316 = vpack.c.b16 %v7828, %v7824
    %v8317 = vpack.c.b16 %v7829, %v7825
    %v8318 = vpack.c.b16 %v7830, %v7826
    %v8319 = vpack.c.b16 %v7835, %v7831
    %v8320 = vpack.c.b16 %v7836, %v7832
    %v8321 = vpack.c.b16 %v7837, %v7833
    %v8322 = vpack.c.b16 %v7838, %v7834
    %v8323 = vpack.c.b16 %v7843, %v7839
    %v8324 = vpack.c.b16 %v7844, %v7840
    %v8325 = vpack.c.b16 %v7845, %v7841
    %v8326 = vpack.c.b16 %v7846, %v7842
    %v8327 = vpack.c.b16 %v7851, %v7847
    %v8328 = vpack.c.b16 %v7852, %v7848
    %v8329 = vpack.c.b16 %v7853, %v7849
    %v8330 = vpack.c.b16 %v7854, %v7850
    %v8331 = vpack.c.b16 %v7859, %v7855
    %v8332 = vpack.c.b16 %v7860, %v7856
    %v8333 = vpack.c.b16 %v7861, %v7857
    %v8334 = vpack.c.b16 %v7862, %v7858
    %v8335 = vpack.c.b16 %v7867, %v7863
    %v8336 = vpack.c.b16 %v7868, %v7864
    %v8337 = vpack.c.b16 %v7869, %v7865
    %v8338 = vpack.c.b16 %v7870, %v7866
    %v8339 = vpack.c.b16 %v7875, %v7871
    %v8340 = vpack.c.b16 %v7876, %v7872
    %v8341 = vpack.c.b16 %v7877, %v7873
    %v8342 = vpack.c.b16 %v7878, %v7874
    %v8343 = vpack.c.b16 %v7883, %v7879
    %v8344 = vpack.c.b16 %v7884, %v7880
    %v8345 = vpack.c.b16 %v7885, %v7881
    %v8346 = vpack.c.b16 %v7886, %v7882
    %v8347 = vpack.c.b16 %v7891, %v7887
    %v8348 = vpack.c.b16 %v7892, %v7888
    %v8349 = vpack.c.b16 %v7893, %v7889
    %v8350 = vpack.c.b16 %v7894, %v7890
    %v8351 = vpack.c.b16 %v7899, %v7895
    %v8352 = vpack.c.b16 %v7900, %v7896
    %v8353 = vpack.c.b16 %v7901, %v7897
    %v8354 = vpack.c.b16 %v7902, %v7898
    %v8355 = vpack.c.b16 %v7907, %v7903
    %v8356 = vpack.c.b16 %v7908, %v7904
    %v8357 = vpack.c.b16 %v7909, %v7905
    %v8358 = vpack.c.b16 %v7910, %v7906
    %v8359 = vpack.c.b16 %v7915, %v7911
    %v8360 = vpack.c.b16 %v7916, %v7912
    %v8361 = vpack.c.b16 %v7917, %v7913
    %v8362 = vpack.c.b16 %v7918, %v7914
    %v8363 = vpack.c.b16 %v7923, %v7919
    %v8364 = vpack.c.b16 %v7924, %v7920
    %v8365 = vpack.c.b16 %v7925, %v7921
    %v8366 = vpack.c.b16 %v7926, %v7922
    %v8367 = vpack.c.b16 %v7931, %v7927
    %v8368 = vpack.c.b16 %v7932, %v7928
    %v8369 = vpack.c.b16 %v7933, %v7929
    %v8370 = vpack.c.b16 %v7934, %v7930
    %v8371 = vpack.c.b16 %v7939, %v7935
    %v8372 = vpack.c.b16 %v7940, %v7936
    %v8373 = vpack.c.b16 %v7941, %v7937
    %v8374 = vpack.c.b16 %v7942, %v7938
    %v8375 = vpack.c.b16 %v7947, %v7943
    %v8376 = vpack.c.b16 %v7948, %v7944
    %v8377 = vpack.c.b16 %v7949, %v7945
    %v8378 = vpack.c.b16 %v7950, %v7946
    %v8379 = vpack.c.b16 %v7955, %v7951
    %v8380 = vpack.c.b16 %v7956, %v7952
    %v8381 = vpack.c.b16 %v7957, %v7953
    %v8382 = vpack.c.b16 %v7958, %v7954
    %v8383 = vpack.c.b16 %v7963, %v7959
    %v8384 = vpack.c.b16 %v7964, %v7960
    %v8385 = vpack.c.b16 %v7965, %v7961
    %v8386 = vpack.c.b16 %v7966, %v7962
    %v8387 = vpack.c.b16 %v7971, %v7967
    %v8388 = vpack.c.b16 %v7972, %v7968
    %v8389 = vpack.c.b16 %v7973, %v7969
    %v8390 = vpack.c.b16 %v7974, %v7970
    %v8391 = vpack.c.b16 %v7979, %v7975
    %v8392 = vpack.c.b16 %v7980, %v7976
    %v8393 = vpack.c.b16 %v7981, %v7977
    %v8394 = vpack.c.b16 %v7982, %v7978
    %v8395 = vpack.c.b16 %v7987, %v7983
    %v8396 = vpack.c.b16 %v7988, %v7984
    %v8397 = vpack.c.b16 %v7989, %v7985
    %v8398 = vpack.c.b16 %v7990, %v7986
    %v8399 = vpack.c.b16 %v7995, %v7991
    %v8400 = vpack.c.b16 %v7996, %v7992
    %v8401 = vpack.c.b16 %v7997, %v7993
    %v8402 = vpack.c.b16 %v7998, %v7994
    %v8403 = vpack.c.b16 %v8003, %v7999
    %v8404 = vpack.c.b16 %v8004, %v8000
    %v8405 = vpack.c.b16 %v8005, %v8001
    %v8406 = vpack.c.b16 %v8006, %v8002
    %v8407 = vpack.c.b16 %v8011, %v8007
    %v8408 = vpack.c.b16 %v8012, %v8008
    %v8409 = vpack.c.b16 %v8013, %v8009
    %v8410 = vpack.c.b16 %v8014, %v8010
    %v8411 = vpack.c.b16 %v8019, %v8015
    %v8412 = vpack.c.b16 %v8020, %v8016
    %v8413 = vpack.c.b16 %v8021, %v8017
    %v8414 = vpack.c.b16 %v8022, %v8018
    %v8415 = vpack.c.b16 %v8027, %v8023
    %v8416 = vpack.c.b16 %v8028, %v8024
    %v8417 = vpack.c.b16 %v8029, %v8025
    %v8418 = vpack.c.b16 %v8030, %v8026
    %v8419 = vpack.c.b16 %v8035, %v8031
    %v8420 = vpack.c.b16 %v8036, %v8032
    %v8421 = vpack.c.b16 %v8037, %v8033
    %v8422 = vpack.c.b16 %v8038, %v8034
    %v8423 = vpack.c.b16 %v8043, %v8039
    %v8424 = vpack.c.b16 %v8044, %v8040
    %v8425 = vpack.c.b16 %v8045, %v8041
    %v8426 = vpack.c.b16 %v8046, %v8042
    %v8427 = vpack.c.b16 %v8051, %v8047
    %v8428 = vpack.c.b16 %v8052, %v8048
    %v8429 = vpack.c.b16 %v8053, %v8049
    %v8430 = vpack.c.b16 %v8054, %v8050
    %v8431 = vpack.c.b16 %v8059, %v8055
    %v8432 = vpack.c.b16 %v8060, %v8056
    %v8433 = vpack.c.b16 %v8061, %v8057
    %v8434 = vpack.c.b16 %v8062, %v8058
    %v8435 = vpack.c.b16 %v8067, %v8063
    %v8436 = vpack.c.b16 %v8068, %v8064
    %v8437 = vpack.c.b16 %v8069, %v8065
    %v8438 = vpack.c.b16 %v8070, %v8066
    %v8439 = vpack.c.b16 %v8075, %v8071
    %v8440 = vpack.c.b16 %v8076, %v8072
    %v8441 = vpack.c.b16 %v8077, %v8073
    %v8442 = vpack.c.b16 %v8078, %v8074
    %v8443 = vpack.c.b16 %v8083, %v8079
    %v8444 = vpack.c.b16 %v8084, %v8080
    %v8445 = vpack.c.b16 %v8085, %v8081
    %v8446 = vpack.c.b16 %v8086, %v8082
    %v8447 = vpack.c.b16 %v8091, %v8087
    %v8448 = vpack.c.b16 %v8092, %v8088
    %v8449 = vpack.c.b16 %v8093, %v8089
    %v8450 = vpack.c.b16 %v8094, %v8090
    %v8451 = vpack.c.b16 %v8099, %v8095
    %v8452 = vpack.c.b16 %v8100, %v8096
    %v8453 = vpack.c.b16 %v8101, %v8097
    %v8454 = vpack.c.b16 %v8102, %v8098
    %v8455 = vpack.c.b16 %v8107, %v8103
    %v8456 = vpack.c.b16 %v8108, %v8104
    %v8457 = vpack.c.b16 %v8109, %v8105
    %v8458 = vpack.c.b16 %v8110, %v8106
    %v8459 = vpack.c.b16 %v8115, %v8111
    %v8460 = vpack.c.b16 %v8116, %v8112
    %v8461 = vpack.c.b16 %v8117, %v8113
    %v8462 = vpack.c.b16 %v8118, %v8114
    %v8463 = vpack.c.b16 %v8123, %v8119
    %v8464 = vpack.c.b16 %v8124, %v8120
    %v8465 = vpack.c.b16 %v8125, %v8121
    %v8466 = vpack.c.b16 %v8126, %v8122
    %v8467 = vpack.c.b16 %v8131, %v8127
    %v8468 = vpack.c.b16 %v8132, %v8128
    %v8469 = vpack.c.b16 %v8133, %v8129
    %v8470 = vpack.c.b16 %v8134, %v8130
    %v8471 = vpack.c.b16 %v8139, %v8135
    %v8472 = vpack.c.b16 %v8140, %v8136
    %v8473 = vpack.c.b16 %v8141, %v8137
    %v8474 = vpack.c.b16 %v8142, %v8138
    %v8475 = vpack.c.b16 %v8147, %v8143
    %v8476 = vpack.c.b16 %v8148, %v8144
    %v8477 = vpack.c.b16 %v8149, %v8145
    %v8478 = vpack.c.b16 %v8150, %v8146
    %v8479 = vpack.c.b16 %v8155, %v8151
    %v8480 = vpack.c.b16 %v8156, %v8152
    %v8481 = vpack.c.b16 %v8157, %v8153
    %v8482 = vpack.c.b16 %v8158, %v8154
    %v8483 = vpack.c.b16 %v8163, %v8159
    %v8484 = vpack.c.b16 %v8164, %v8160
    %v8485 = vpack.c.b16 %v8165, %v8161
    %v8486 = vpack.c.b16 %v8166, %v8162
    %v8487 = vpack.c.b16 %v8171, %v8167
    %v8488 = vpack.c.b16 %v8172, %v8168
    %v8489 = vpack.c.b16 %v8173, %v8169
    %v8490 = vpack.c.b16 %v8174, %v8170
    %v8491 = vpack.c.b16 %v8179, %v8175
    %v8492 = vpack.c.b16 %v8180, %v8176
    %v8493 = vpack.c.b16 %v8181, %v8177
    %v8494 = vpack.c.b16 %v8182, %v8178
    %v8495 = vpack.c.b16 %v8187, %v8183
    %v8496 = vpack.c.b16 %v8188, %v8184
    %v8497 = vpack.c.b16 %v8189, %v8185
    %v8498 = vpack.c.b16 %v8190, %v8186
    %v8499 = vpack.c.b16 %v8195, %v8191
    %v8500 = vpack.c.b16 %v8196, %v8192
    %v8501 = vpack.c.b16 %v8197, %v8193
    %v8502 = vpack.c.b16 %v8198, %v8194
    %v8503 = vpack.c.b16 %v8203, %v8199
    %v8504 = vpack.c.b16 %v8204, %v8200
    %v8505 = vpack.c.b16 %v8205, %v8201
    %v8506 = vpack.c.b16 %v8206, %v8202
    %v8507 = vpack.c.b16 %v8211, %v8207
    %v8508 = vpack.c.b16 %v8212, %v8208
    %v8509 = vpack.c.b16 %v8213, %v8209
    %v8510 = vpack.c.b16 %v8214, %v8210
    %v8511 = vpack.c.b16 %v8219, %v8215
    %v8512 = vpack.c.b16 %v8220, %v8216
    %v8513 = vpack.c.b16 %v8221, %v8217
    %v8514 = vpack.c.b16 %v8222, %v8218
    %v8515 = vpack.c.b16 %v8227, %v8223
    %v8516 = vpack.c.b16 %v8228, %v8224
    %v8517 = vpack.c.b16 %v8229, %v8225
    %v8518 = vpack.c.b16 %v8230, %v8226
    %v8519 = vpack.c.b16 %v8235, %v8231
    %v8520 = vpack.c.b16 %v8236, %v8232
    %v8521 = vpack.c.b16 %v8237, %v8233
    %v8522 = vpack.c.b16 %v8238, %v8234
    %v8523 = vpack.c.b16 %v8243, %v8239
    %v8524 = vpack.c.b16 %v8244, %v8240
    %v8525 = vpack.c.b16 %v8245, %v8241
    %v8526 = vpack.c.b16 %v8246, %v8242
    %v8527 = vpack.c.b16 %v8251, %v8247
    %v8528 = vpack.c.b16 %v8252, %v8248
    %v8529 = vpack.c.b16 %v8253, %v8249
    %v8530 = vpack.c.b16 %v8254, %v8250
    %v8531 = vpack.c.b16 %v8259, %v8255
    %v8532 = vpack.c.b16 %v8260, %v8256
    %v8533 = vpack.c.b16 %v8261, %v8257
    %v8534 = vpack.c.b16 %v8262, %v8258
    %v8535 = vpack.c.b16 %v8267, %v8263
    %v8536 = vpack.c.b16 %v8268, %v8264
    %v8537 = vpack.c.b16 %v8269, %v8265
    %v8538 = vpack.c.b16 %v8270, %v8266
    %v8539 = vpack.c.b16 %v8275, %v8271
    %v8540 = vpack.c.b16 %v8276, %v8272
    %v8541 = vpack.c.b16 %v8277, %v8273
    %v8542 = vpack.c.b16 %v8278, %v8274
    %v8543 = vpack.c.b16 %v8283, %v8279
    %v8544 = vpack.c.b16 %v8284, %v8280
    %v8545 = vpack.c.b16 %v8285, %v8281
    %v8546 = vpack.c.b16 %v8286, %v8282
    %v8547 = vpack.c.b16 %v8291, %v8287
    %v8548 = vpack.c.b16 %v8292, %v8288
    %v8549 = vpack.c.b16 %v8293, %v8289
    %v8550 = vpack.c.b16 %v8294, %v8290
    %8807 = vmatprep.subr.bf16.mxu0 %v8296
    %8808 = vmatpush1.bf16.msra.mxu0 %v8295
    %8809 = vmatprep.subr.bf16.mxu0 %v8300
    %8810 = vmatpush1.bf16.msra.mxu0 %v8299
    %8811 = vmatprep.subr.bf16.mxu0 %v8304
    %8812 = vmatpush1.bf16.msra.mxu0 %v8303
    %8813 = vmatprep.subr.bf16.mxu0 %v8308
    %8814 = vmatpush1.bf16.msra.mxu0 %v8307
    %8815 = vmatprep.subr.bf16.mxu0 %v8312
    %8816 = vmatpush1.bf16.msra.mxu0 %v8311
    %8817 = vmatprep.subr.bf16.mxu0 %v8316
    %8818 = vmatpush1.bf16.msra.mxu0 %v8315
    %8819 = vmatprep.subr.bf16.mxu0 %v8320
    %8820 = vmatpush1.bf16.msra.mxu0 %v8319
    %8821 = vmatprep.subr.bf16.mxu0 %v8324
    %8822 = vmatpush1.bf16.msra.mxu0 %v8323
    %8823 = vmatprep.subr.bf16.mxu0 %v8328
    %8824 = vmatpush1.bf16.msra.mxu0 %v8327
    %8825 = vmatprep.subr.bf16.mxu0 %v8332
    %8826 = vmatpush1.bf16.msra.mxu0 %v8331
    %8827 = vmatprep.subr.bf16.mxu0 %v8336
    %8828 = vmatpush1.bf16.msra.mxu0 %v8335
    %8829 = vmatprep.subr.bf16.mxu0 %v8340
    %8830 = vmatpush1.bf16.msra.mxu0 %v8339
    %8831 = vmatprep.subr.bf16.mxu0 %v8344
    %8832 = vmatpush1.bf16.msra.mxu0 %v8343
    %8833 = vmatprep.subr.bf16.mxu0 %v8348
    %8834 = vmatpush1.bf16.msra.mxu0 %v8347
    %8835 = vmatprep.subr.bf16.mxu0 %v8352
    %8836 = vmatpush1.bf16.msra.mxu0 %v8351
    %8837 = vmatprep.subr.bf16.mxu0 %v8356
    %8838 = vmatpush1.bf16.msra.mxu0 %v8355
    %8839 = vmatprep.mubr.bf16.mxu0 %v7499
    %8840 = vmatmul.mubr.bf16.gmra.mrb[0].mxu0 %v7498
    %v8841 = vpop.f32.mrb[0].mxu0
    %v8842 = vadd.f32 %v7510, %v8841
    %v8843 = vpop.f32.mrb[0].mxu0
    %v8844 = vadd.f32 %v7514, %v8843
    %v8845 = vpop.f32.mrb[0].mxu0
    %v8846 = vpop.f32.mrb[0].mxu0
    %8847 = vdwg.mxu0
    %8848 = vmatprep.subr.bf16.mxu0 %v8360
    %8849 = vmatpush1.bf16.msra.mxu0 %v8359
    %8850 = vmatprep.subr.bf16.mxu0 %v8364
    %8851 = vmatpush1.bf16.msra.mxu0 %v8363
    %8852 = vmatprep.subr.bf16.mxu0 %v8368
    %8853 = vmatpush1.bf16.msra.mxu0 %v8367
    %8854 = vmatprep.subr.bf16.mxu0 %v8372
    %8855 = vmatpush1.bf16.msra.mxu0 %v8371
    %8856 = vmatprep.subr.bf16.mxu0 %v8376
    %8857 = vmatpush1.bf16.msra.mxu0 %v8375
    %8858 = vmatprep.subr.bf16.mxu0 %v8380
    %8859 = vmatpush1.bf16.msra.mxu0 %v8379
    %8860 = vmatprep.subr.bf16.mxu0 %v8384
    %8861 = vmatpush1.bf16.msra.mxu0 %v8383
    %8862 = vmatprep.subr.bf16.mxu0 %v8388
    %8863 = vmatpush1.bf16.msra.mxu0 %v8387
    %8864 = vmatprep.subr.bf16.mxu0 %v8392
    %8865 = vmatpush1.bf16.msra.mxu0 %v8391
    %8866 = vmatprep.subr.bf16.mxu0 %v8396
    %8867 = vmatpush1.bf16.msra.mxu0 %v8395
    %8868 = vmatprep.subr.bf16.mxu0 %v8400
    %8869 = vmatpush1.bf16.msra.mxu0 %v8399
    %8870 = vmatprep.subr.bf16.mxu0 %v8404
    %8871 = vmatpush1.bf16.msra.mxu0 %v8403
    %8872 = vmatprep.subr.bf16.mxu0 %v8408
    %8873 = vmatpush1.bf16.msra.mxu0 %v8407
    %8874 = vmatprep.subr.bf16.mxu0 %v8412
    %8875 = vmatpush1.bf16.msra.mxu0 %v8411
    %8876 = vmatprep.subr.bf16.mxu0 %v8416
    %8877 = vmatpush1.bf16.msra.mxu0 %v8415
    %8878 = vmatprep.subr.bf16.mxu0 %v8420
    %8879 = vmatpush1.bf16.msra.mxu0 %v8419
    %8880 = vmatprep.mubr.bf16.mxu0 %v7501
    %8881 = vmatmul.mubr.bf16.gmra.mrb[0].mxu0 %v7500
    %v8882 = vpop.f32.mrb[0].mxu0
    %v8883 = vadd.f32 %v8842, %v8882
    %v8884 = vpop.f32.mrb[0].mxu0
    %v8885 = vadd.f32 %v8844, %v8884
    %v8886 = vpop.f32.mrb[0].mxu0
    %v8887 = vpop.f32.mrb[0].mxu0
    %8888 = vdwg.mxu0
    %8889 = vmatprep.subr.bf16.mxu0 %v8424
    %8890 = vmatpush1.bf16.msra.mxu0 %v8423
    %8891 = vmatprep.subr.bf16.mxu0 %v8428
    %8892 = vmatpush1.bf16.msra.mxu0 %v8427
    %8893 = vmatprep.subr.bf16.mxu0 %v8432
    %8894 = vmatpush1.bf16.msra.mxu0 %v8431
    %8895 = vmatprep.subr.bf16.mxu0 %v8436
    %8896 = vmatpush1.bf16.msra.mxu0 %v8435
    %8897 = vmatprep.subr.bf16.mxu0 %v8440
    %8898 = vmatpush1.bf16.msra.mxu0 %v8439
    %8899 = vmatprep.subr.bf16.mxu0 %v8444
    %8900 = vmatpush1.bf16.msra.mxu0 %v8443
    %8901 = vmatprep.subr.bf16.mxu0 %v8448
    %8902 = vmatpush1.bf16.msra.mxu0 %v8447
    %8903 = vmatprep.subr.bf16.mxu0 %v8452
    %8904 = vmatpush1.bf16.msra.mxu0 %v8451
    %8905 = vmatprep.subr.bf16.mxu0 %v8456
    %8906 = vmatpush1.bf16.msra.mxu0 %v8455
    %8907 = vmatprep.subr.bf16.mxu0 %v8460
    %8908 = vmatpush1.bf16.msra.mxu0 %v8459
    %8909 = vmatprep.subr.bf16.mxu0 %v8464
    %8910 = vmatpush1.bf16.msra.mxu0 %v8463
    %8911 = vmatprep.subr.bf16.mxu0 %v8468
    %8912 = vmatpush1.bf16.msra.mxu0 %v8467
    %8913 = vmatprep.subr.bf16.mxu0 %v8472
    %8914 = vmatpush1.bf16.msra.mxu0 %v8471
    %8915 = vmatprep.subr.bf16.mxu0 %v8476
    %8916 = vmatpush1.bf16.msra.mxu0 %v8475
    %8917 = vmatprep.subr.bf16.mxu0 %v8480
    %8918 = vmatpush1.bf16.msra.mxu0 %v8479
    %8919 = vmatprep.subr.bf16.mxu0 %v8484
    %8920 = vmatpush1.bf16.msra.mxu0 %v8483
    %8921 = vmatprep.mubr.bf16.mxu0 %v7503
    %8922 = vmatmul.mubr.bf16.gmra.mrb[0].mxu0 %v7502
    %v8923 = vpop.f32.mrb[0].mxu0
    %v8924 = vadd.f32 %v8883, %v8923
    %v8925 = vpop.f32.mrb[0].mxu0
    %v8926 = vadd.f32 %v8885, %v8925
    %v8927 = vpop.f32.mrb[0].mxu0
    %v8928 = vpop.f32.mrb[0].mxu0
    %8929 = vdwg.mxu0
    %8930 = vmatprep.subr.bf16.mxu0 %v8488
    %8931 = vmatpush1.bf16.msra.mxu0 %v8487
    %8932 = vmatprep.subr.bf16.mxu0 %v8492
    %8933 = vmatpush1.bf16.msra.mxu0 %v8491
    %8934 = vmatprep.subr.bf16.mxu0 %v8496
    %8935 = vmatpush1.bf16.msra.mxu0 %v8495
    %8936 = vmatprep.subr.bf16.mxu0 %v8500
    %8937 = vmatpush1.bf16.msra.mxu0 %v8499
    %8938 = vmatprep.subr.bf16.mxu0 %v8504
    %8939 = vmatpush1.bf16.msra.mxu0 %v8503
    %8940 = vmatprep.subr.bf16.mxu0 %v8508
    %8941 = vmatpush1.bf16.msra.mxu0 %v8507
    %8942 = vmatprep.subr.bf16.mxu0 %v8512
    %8943 = vmatpush1.bf16.msra.mxu0 %v8511
    %8944 = vmatprep.subr.bf16.mxu0 %v8516
    %8945 = vmatpush1.bf16.msra.mxu0 %v8515
    %8946 = vmatprep.subr.bf16.mxu0 %v8520
    %8947 = vmatpush1.bf16.msra.mxu0 %v8519
    %8948 = vmatprep.subr.bf16.mxu0 %v8524
    %8949 = vmatpush1.bf16.msra.mxu0 %v8523
    %8950 = vmatprep.subr.bf16.mxu0 %v8528
    %8951 = vmatpush1.bf16.msra.mxu0 %v8527
    %8952 = vmatprep.subr.bf16.mxu0 %v8532
    %8953 = vmatpush1.bf16.msra.mxu0 %v8531
    %8954 = vmatprep.subr.bf16.mxu0 %v8536
    %8955 = vmatpush1.bf16.msra.mxu0 %v8535
    %8956 = vmatprep.subr.bf16.mxu0 %v8540
    %8957 = vmatpush1.bf16.msra.mxu0 %v8539
    %8958 = vmatprep.subr.bf16.mxu0 %v8544
    %8959 = vmatpush1.bf16.msra.mxu0 %v8543
    %8960 = vmatprep.subr.bf16.mxu0 %v8548
    %8961 = vmatpush1.bf16.msra.mxu0 %v8547
    %8962 = vmatprep.mubr.bf16.mxu0 %v7505
    %8963 = vmatmul.mubr.bf16.gmra.mrb[0].mxu0 %v7504
    %v8964 = vpop.f32.mrb[0].mxu0
    %v8965 = vadd.f32 %v8924, %v8964
    %v8966 = vpop.f32.mrb[0].mxu0
    %v8967 = vadd.f32 %v8926, %v8966
    %v8968 = vpop.f32.mrb[0].mxu0
    %v8969 = vpop.f32.mrb[0].mxu0
    %8970 = vdwg.mxu0
    %8971 = vmatprep.subr.bf16.mxu0 %v8298
    %8972 = vmatpush1.bf16.msra.mxu0 %v8297
    %8973 = vmatprep.subr.bf16.mxu0 %v8302
    %8974 = vmatpush1.bf16.msra.mxu0 %v8301
    %8975 = vmatprep.subr.bf16.mxu0 %v8306
    %8976 = vmatpush1.bf16.msra.mxu0 %v8305
    %8977 = vmatprep.subr.bf16.mxu0 %v8310
    %8978 = vmatpush1.bf16.msra.mxu0 %v8309
    %8979 = vmatprep.subr.bf16.mxu0 %v8314
    %8980 = vmatpush1.bf16.msra.mxu0 %v8313
    %8981 = vmatprep.subr.bf16.mxu0 %v8318
    %8982 = vmatpush1.bf16.msra.mxu0 %v8317
    %8983 = vmatprep.subr.bf16.mxu0 %v8322
    %8984 = vmatpush1.bf16.msra.mxu0 %v8321
    %8985 = vmatprep.subr.bf16.mxu0 %v8326
    %8986 = vmatpush1.bf16.msra.mxu0 %v8325
    %8987 = vmatprep.subr.bf16.mxu0 %v8330
    %8988 = vmatpush1.bf16.msra.mxu0 %v8329
    %8989 = vmatprep.subr.bf16.mxu0 %v8334
    %8990 = vmatpush1.bf16.msra.mxu0 %v8333
    %8991 = vmatprep.subr.bf16.mxu0 %v8338
    %8992 = vmatpush1.bf16.msra.mxu0 %v8337
    %8993 = vmatprep.subr.bf16.mxu0 %v8342
    %8994 = vmatpush1.bf16.msra.mxu0 %v8341
    %8995 = vmatprep.subr.bf16.mxu0 %v8346
    %8996 = vmatpush1.bf16.msra.mxu0 %v8345
    %8997 = vmatprep.subr.bf16.mxu0 %v8350
    %8998 = vmatpush1.bf16.msra.mxu0 %v8349
    %8999 = vmatprep.subr.bf16.mxu0 %v8354
    %9000 = vmatpush1.bf16.msra.mxu0 %v8353
    %9001 = vmatprep.subr.bf16.mxu0 %v8358
    %9002 = vmatpush1.bf16.msra.mxu0 %v8357
    %9003 = vmatprep.mubr.bf16.mxu0 %v7499
    %9004 = vmatmul.mubr.bf16.gmra.mrb[0].mxu0 %v7498
    %v9005 = vpop.f32.mrb[0].mxu0
    %v9006 = vadd.f32 %v7518, %v9005
    %v9007 = vpop.f32.mrb[0].mxu0
    %v9008 = vadd.f32 %v7522, %v9007
    %v9009 = vpop.f32.mrb[0].mxu0
    %v9010 = vpop.f32.mrb[0].mxu0
    %9011 = vdwg.mxu0
    %9012 = vmatprep.subr.bf16.mxu0 %v8362
    %9013 = vmatpush1.bf16.msra.mxu0 %v8361
    %9014 = vmatprep.subr.bf16.mxu0 %v8366
    %9015 = vmatpush1.bf16.msra.mxu0 %v8365
    %9016 = vmatprep.subr.bf16.mxu0 %v8370
    %9017 = vmatpush1.bf16.msra.mxu0 %v8369
    %9018 = vmatprep.subr.bf16.mxu0 %v8374
    %9019 = vmatpush1.bf16.msra.mxu0 %v8373
    %9020 = vmatprep.subr.bf16.mxu0 %v8378
    %9021 = vmatpush1.bf16.msra.mxu0 %v8377
    %9022 = vmatprep.subr.bf16.mxu0 %v8382
    %9023 = vmatpush1.bf16.msra.mxu0 %v8381
    %9024 = vmatprep.subr.bf16.mxu0 %v8386
    %9025 = vmatpush1.bf16.msra.mxu0 %v8385
    %9026 = vmatprep.subr.bf16.mxu0 %v8390
    %9027 = vmatpush1.bf16.msra.mxu0 %v8389
    %9028 = vmatprep.subr.bf16.mxu0 %v8394
    %9029 = vmatpush1.bf16.msra.mxu0 %v8393
    %9030 = vmatprep.subr.bf16.mxu0 %v8398
    %9031 = vmatpush1.bf16.msra.mxu0 %v8397
    %9032 = vmatprep.subr.bf16.mxu0 %v8402
    %9033 = vmatpush1.bf16.msra.mxu0 %v8401
    %9034 = vmatprep.subr.bf16.mxu0 %v8406
    %9035 = vmatpush1.bf16.msra.mxu0 %v8405
    %9036 = vmatprep.subr.bf16.mxu0 %v8410
    %9037 = vmatpush1.bf16.msra.mxu0 %v8409
    %9038 = vmatprep.subr.bf16.mxu0 %v8414
    %9039 = vmatpush1.bf16.msra.mxu0 %v8413
    %9040 = vmatprep.subr.bf16.mxu0 %v8418
    %9041 = vmatpush1.bf16.msra.mxu0 %v8417
    %9042 = vmatprep.subr.bf16.mxu0 %v8422
    %9043 = vmatpush1.bf16.msra.mxu0 %v8421
    %9044 = vmatprep.mubr.bf16.mxu0 %v7501
    %9045 = vmatmul.mubr.bf16.gmra.mrb[0].mxu0 %v7500
    %v9046 = vpop.f32.mrb[0].mxu0
    %v9047 = vadd.f32 %v9006, %v9046
    %v9048 = vpop.f32.mrb[0].mxu0
    %v9049 = vadd.f32 %v9008, %v9048
    %v9050 = vpop.f32.mrb[0].mxu0
    %v9051 = vpop.f32.mrb[0].mxu0
    %9052 = vdwg.mxu0
    %9053 = vmatprep.subr.bf16.mxu0 %v8426
    %9054 = vmatpush1.bf16.msra.mxu0 %v8425
    %9055 = vmatprep.subr.bf16.mxu0 %v8430
    %9056 = vmatpush1.bf16.msra.mxu0 %v8429
    %9057 = vmatprep.subr.bf16.mxu0 %v8434
    %9058 = vmatpush1.bf16.msra.mxu0 %v8433
    %9059 = vmatprep.subr.bf16.mxu0 %v8438
    %9060 = vmatpush1.bf16.msra.mxu0 %v8437
    %9061 = vmatprep.subr.bf16.mxu0 %v8442
    %9062 = vmatpush1.bf16.msra.mxu0 %v8441
    %9063 = vmatprep.subr.bf16.mxu0 %v8446
    %9064 = vmatpush1.bf16.msra.mxu0 %v8445
    %9065 = vmatprep.subr.bf16.mxu0 %v8450
    %9066 = vmatpush1.bf16.msra.mxu0 %v8449
    %9067 = vmatprep.subr.bf16.mxu0 %v8454
    %9068 = vmatpush1.bf16.msra.mxu0 %v8453
    %9069 = vmatprep.subr.bf16.mxu0 %v8458
    %9070 = vmatpush1.bf16.msra.mxu0 %v8457
    %9071 = vmatprep.subr.bf16.mxu0 %v8462
    %9072 = vmatpush1.bf16.msra.mxu0 %v8461
    %9073 = vmatprep.subr.bf16.mxu0 %v8466
    %9074 = vmatpush1.bf16.msra.mxu0 %v8465
    %9075 = vmatprep.subr.bf16.mxu0 %v8470
    %9076 = vmatpush1.bf16.msra.mxu0 %v8469
    %9077 = vmatprep.subr.bf16.mxu0 %v8474
    %9078 = vmatpush1.bf16.msra.mxu0 %v8473
    %9079 = vmatprep.subr.bf16.mxu0 %v8478
    %9080 = vmatpush1.bf16.msra.mxu0 %v8477
    %9081 = vmatprep.subr.bf16.mxu0 %v8482
    %9082 = vmatpush1.bf16.msra.mxu0 %v8481
    %9083 = vmatprep.subr.bf16.mxu0 %v8486
    %9084 = vmatpush1.bf16.msra.mxu0 %v8485
    %9085 = vmatprep.mubr.bf16.mxu0 %v7503
    %9086 = vmatmul.mubr.bf16.gmra.mrb[0].mxu0 %v7502
    %v9087 = vpop.f32.mrb[0].mxu0
    %v9088 = vadd.f32 %v9047, %v9087
    %v9089 = vpop.f32.mrb[0].mxu0
    %v9090 = vadd.f32 %v9049, %v9089
    %v9091 = vpop.f32.mrb[0].mxu0
    %v9092 = vpop.f32.mrb[0].mxu0
    %9093 = vdwg.mxu0
    %9094 = vmatprep.subr.bf16.mxu0 %v8490
    %9095 = vmatpush1.bf16.msra.mxu0 %v8489
    %9096 = vmatprep.subr.bf16.mxu0 %v8494
    %9097 = vmatpush1.bf16.msra.mxu0 %v8493
    %9098 = vmatprep.subr.bf16.mxu0 %v8498
    %9099 = vmatpush1.bf16.msra.mxu0 %v8497
    %9100 = vmatprep.subr.bf16.mxu0 %v8502
    %9101 = vmatpush1.bf16.msra.mxu0 %v8501
    %9102 = vmatprep.subr.bf16.mxu0 %v8506
    %9103 = vmatpush1.bf16.msra.mxu0 %v8505
    %9104 = vmatprep.subr.bf16.mxu0 %v8510
    %9105 = vmatpush1.bf16.msra.mxu0 %v8509
    %9106 = vmatprep.subr.bf16.mxu0 %v8514
    %9107 = vmatpush1.bf16.msra.mxu0 %v8513
    %9108 = vmatprep.subr.bf16.mxu0 %v8518
    %9109 = vmatpush1.bf16.msra.mxu0 %v8517
    %9110 = vmatprep.subr.bf16.mxu0 %v8522
    %9111 = vmatpush1.bf16.msra.mxu0 %v8521
    %9112 = vmatprep.subr.bf16.mxu0 %v8526
    %9113 = vmatpush1.bf16.msra.mxu0 %v8525
    %9114 = vmatprep.subr.bf16.mxu0 %v8530
    %9115 = vmatpush1.bf16.msra.mxu0 %v8529
    %9116 = vmatprep.subr.bf16.mxu0 %v8534
    %9117 = vmatpush1.bf16.msra.mxu0 %v8533
    %9118 = vmatprep.subr.bf16.mxu0 %v8538
    %9119 = vmatpush1.bf16.msra.mxu0 %v8537
    %9120 = vmatprep.subr.bf16.mxu0 %v8542
    %9121 = vmatpush1.bf16.msra.mxu0 %v8541
    %9122 = vmatprep.subr.bf16.mxu0 %v8546
    %9123 = vmatpush1.bf16.msra.mxu0 %v8545
    %9124 = vmatprep.subr.bf16.mxu0 %v8550
    %9125 = vmatpush1.bf16.msra.mxu0 %v8549
    %9126 = vmatprep.mubr.bf16.mxu0 %v7505
    %9127 = vmatmul.mubr.bf16.gmra.mrb[0].mxu0 %v7504
    %v9128 = vpop.f32.mrb[0].mxu0
    %v9129 = vadd.f32 %v9088, %v9128
    %v9130 = vpop.f32.mrb[0].mxu0
    %v9131 = vadd.f32 %v9090, %v9130
    %v9132 = vpop.f32.mrb[0].mxu0
    %v9133 = vpop.f32.mrb[0].mxu0
    %9134 = vdwg.mxu0
    %v9135 = vxor.u32 %v8965, 2147483648
    %v9136 = vxor.u32 %v8967, 2147483648
    %v9137 = vxor.u32 %v9129, 2147483648
    %v9138 = vxor.u32 %v9131, 2147483648
    %v9139 = vmul.f32 %v9135, 1.442695
    %v9140 = vpow.pop %v9139
    %v9141 = vmul.f32 %v9136, 1.442695
    %v9142 = vpow.pop %v9141
    %v9143 = vmul.f32 %v9137, 1.442695
    %v9144 = vpow.pop %v9143
    %v9145 = vmul.f32 %v9138, 1.442695
    %v9146 = vpow.pop %v9145
    %v9147 = vadd.f32 %v9140, 1.0
    %v9148 = vadd.f32 %v9142, 1.0
    %v9149 = vadd.f32 %v9144, 1.0
    %v9150 = vadd.f32 %v9146, 1.0
    %v9151 = vrcp.pop %v9147
    %v9152 = vmul.f32 1.0, %v9151
    %v9153 = vrcp.pop %v9148
    %v9154 = vmul.f32 1.0, %v9153
    %v9155 = vrcp.pop %v9149
    %v9156 = vmul.f32 1.0, %v9155
    %v9157 = vrcp.pop %v9150
    %v9158 = vmul.f32 1.0, %v9157
    %9159 = vst [vmem:[#allocation19] sm:$0xff] %v9152
    %9160 = vst [vmem:[#allocation19 + $0x8] sm:$0xff] %v9154
    %9161 = vst [vmem:[#allocation19 + $0x10] sm:$0xff] %v9156
    %9162 = vst [vmem:[#allocation19 + $0x18] sm:$0xff] %v9158
    // Predicated region
    $region110: #{tpu_custom_call.1} parent=1 // pred_check
      _
    $region111: #{tpu_custom_call.1} parent=1 // pred_check_branch
      %9164 = sbr.rel (0) target = $region113
    $region112: #{tpu_custom_call.1} parent=1 // pred_region
      %s9166 = ssub.s32 512, 512
      %9167 = vsyncadd [#allocation4], %s9166
      %s9169 = sshll.u32 [#allocation19], 4
      %s9170 = int_to_ptr.vmem [resolvable:$true] %s9169
      %9172 = dma.vmem_to_hbm [thread:$0]  %s9170, 512, %s17, [#allocation4]
    $region113: #{tpu_custom_call.1} parent=1 // pred_fallthru
      _
    // Predicated region
    $region114: #{tpu_custom_call.1} parent=1 // pred_check
      _
    $region115: #{tpu_custom_call.1} parent=1 // pred_check_branch
      %9174 = sbr.rel (0) target = $region117
    $region116: #{tpu_custom_call.1} parent=1 // pred_region
      %9175 = dma.done [#allocation4], 512
    $region117: #{tpu_custom_call.1} parent=1 // pred_fallthru
      _
    %9176 = vsyncpa [#allocation3], 1
    %9177 = vsyncpa [#allocation6], 1
    %9178 = vsyncpa [#allocation9], 1
    %9179 = vsyncpa [#allocation12], 1
    %9180 = vsyncpa [#allocation15], 1
    %9181 = vsyncpa [#allocation18], 1
    %9182 = vsyncpa [#allocation4], 1

</llo_original>
